<compile_context>
chip_gen: v6e
topology: v6e:2x2x1
jax: 0.10.0
libtpu: 0.0.40
codegen_flags: <defaults>
</compile_context>

<pallas_src>
import math
from functools import partial

import jax
import jax.numpy as jnp
from jax import lax
from jax.experimental import pallas as pl
from jax.experimental.pallas import tpu as pltpu


# ---------------------------------------------------------------------------
# In-kernel helpers
# ---------------------------------------------------------------------------
def _layernorm(x, gamma, beta, eps=1e-6):
    # x: (M, D) f32; gamma/beta: (1, D)
    mu = jnp.mean(x, axis=-1, keepdims=True)
    var = jnp.mean((x - mu) ** 2, axis=-1, keepdims=True)
    return (x - mu) * lax.rsqrt(var + eps) * gamma + beta


# ---------------------------------------------------------------------------
# Fused encoder kernel: one grid step = (one batch tile, one encoder layer)
# ---------------------------------------------------------------------------
def _encoder_kernel(x_ref, pe_ref,
                    ln1g_ref, ln1b_ref, wqkv_ref, bqkv_ref, wo_ref, bo_ref,
                    ln2g_ref, ln2b_ref, w1_ref, b1_ref, w2_ref, b2_ref,
                    ng_ref, nb_ref,
                    o_ref, res_ref,
                    *, bt, seq, n_head, d_k, d_v):
    layer = pl.program_id(1)
    n_layer = pl.num_programs(1)
    d_model = res_ref.shape[-1]

    # Layer 0: initialize the VMEM-resident residual stream with x + positional encoding.
    @pl.when(layer == 0)
    def _():
        xin = x_ref[...].astype(jnp.float32) + pe_ref[...][None, :, :]
        res_ref[...] = xin.reshape(bt * seq, d_model)

    x = res_ref[...]                                              # (Bt*S, D) f32, stays in VMEM

    # ---------------- pre-norm multi-head self-attention sublayer ----------------
    xn = _layernorm(x, ln1g_ref[0], ln1b_ref[0])                  # (Bt*S, D) f32
    qkv = jnp.dot(xn.astype(jnp.bfloat16), wqkv_ref[0],
                  preferred_element_type=jnp.float32) + bqkv_ref[0]   # (Bt*S, 3*H*d_k) f32
    hk = n_head * d_k
    # 1/sqrt(d_k) was folded into wqkv's Q columns (and bqkv's Q slice) at init time.
    q = qkv[:, :hk].astype(jnp.bfloat16)
    k = qkv[:, hk:2 * hk].astype(jnp.bfloat16)
    v = qkv[:, 2 * hk:].astype(jnp.bfloat16)

    # Per-(batch-row, head) attention with static lane slices (no head relayout / transpose).
    rows = []
    for b in range(bt):
        r0 = b * seq
        head_ctx = []
        for h in range(n_head):
            qh = q[r0:r0 + seq, h * d_k:(h + 1) * d_k]            # (S, d_k) bf16
            kh = k[r0:r0 + seq, h * d_k:(h + 1) * d_k]            # (S, d_k) bf16
            vh = v[r0:r0 + seq, h * d_v:(h + 1) * d_v]            # (S, d_v) bf16
            # QK^T without an explicit transpose: contract last dims of both operands.
            s = lax.dot_general(qh, kh, (((1,), (1,)), ((), ())),
                                preferred_element_type=jnp.float32)   # (S, S) f32
            # TODO(synk): apply `mask` here when supported.
            s = s - jnp.max(s, axis=-1, keepdims=True)
            p = jnp.exp(s)
            denom = jnp.sum(p, axis=-1, keepdims=True)                # (S, 1) f32
            ctx = jnp.dot(p.astype(jnp.bfloat16), vh,
                          preferred_element_type=jnp.float32)         # (S, d_v) f32
            # Normalize the small (S, d_v) context instead of the (S, S) probabilities.
            ctx = ctx * pl.reciprocal(denom, approx=True)
            head_ctx.append(ctx)
        rows.append(jnp.concatenate(head_ctx, axis=-1))               # (S, H*d_v)
    ctx_all = jnp.concatenate(rows, axis=0)                           # (Bt*S, H*d_v) f32

    attn = jnp.dot(ctx_all.astype(jnp.bfloat16), wo_ref[0],
                   preferred_element_type=jnp.float32) + bo_ref[0]
    x = x + attn                                                      # residual

    # ---------------- pre-norm position-wise FFN sublayer ----------------
    xn2 = _layernorm(x, ln2g_ref[0], ln2b_ref[0])
    h1 = jnp.dot(xn2.astype(jnp.bfloat16), w1_ref[0],
                 preferred_element_type=jnp.float32) + b1_ref[0]
    h1 = jnp.maximum(h1, 0.0)
    ffn = jnp.dot(h1.astype(jnp.bfloat16), w2_ref[0],
                  preferred_element_type=jnp.float32) + b2_ref[0]
    x = x + ffn                                                       # residual

    res_ref[...] = x

    # Last layer: final LayerNorm and single HBM writeback of this batch tile.
    @pl.when(layer == n_layer - 1)
    def _():
        y = _layernorm(x, ng_ref[...], nb_ref[...])
        o_ref[...] = y.reshape(bt, seq, d_model).astype(o_ref.dtype)


# ---------------------------------------------------------------------------
# Wrapper: one pallas_call for the whole encoder
# ---------------------------------------------------------------------------
def encoder_forward(x, params, *, n_head, d_k, d_v, mask=None, batch_tile=None):
    assert mask is None  # TODO(synk): masking not implemented
    B, S, D = x.shape
    pe = params["pe"][:S]                                         # (S, D)
    n_layers = params["wqkv"].shape[0]
    Bt = batch_tile or B
    assert B % Bt == 0

    layer_keys = ["ln1_g", "ln1_b", "wqkv", "bqkv", "wo", "bo",
                  "ln2_g", "ln2_b", "w1", "b1", "w2", "b2"]
    layer_args = [params[k] for k in layer_keys]                  # each stacked: (L, ...)

    act_spec = pl.BlockSpec((Bt, S, D), lambda b, l: (b, 0, 0))
    pe_spec = pl.BlockSpec((S, D), lambda b, l: (0, 0))

    def layer_spec(a):
        # Select layer l's slab; double-buffered across the "arbitrary" layer axis.
        return pl.BlockSpec((1,) + a.shape[1:], lambda b, l: (l,) + (0,) * (a.ndim - 1))

    def bcast_spec(a):
        return pl.BlockSpec(a.shape, lambda b, l: (0,) * a.ndim)

    kernel = partial(_encoder_kernel, bt=Bt, seq=S, n_head=n_head, d_k=d_k, d_v=d_v)
    return pl.pallas_call(
        kernel,
        out_shape=jax.ShapeDtypeStruct((B, S, D), x.dtype),
        grid=(B // Bt, n_layers),
        in_specs=[act_spec, pe_spec]
                 + [layer_spec(a) for a in layer_args]
                 + [bcast_spec(params["norm_g"]), bcast_spec(params["norm_b"])],
        out_specs=act_spec,
        scratch_shapes=[pltpu.VMEM((Bt * S, D), jnp.float32)],     # resident residual stream
        compiler_params=pltpu.CompilerParams(
            dimension_semantics=("parallel", "arbitrary"),
            vmem_limit_bytes=16 * 1024 * 1024,                     # right-sized (need ~2 MiB here)
        ),
    )(x, pe, *layer_args, params["norm_g"], params["norm_b"])


# ---------------------------------------------------------------------------
# Deterministic parameter construction (weights pre-stacked along the layer axis, bf16)
# ---------------------------------------------------------------------------
def sinusoidal_pe(max_len, d_model):
    pos = jnp.arange(max_len, dtype=jnp.float32)[:, None]            # (L, 1)
    i = jnp.arange(0, d_model, 2, dtype=jnp.float32)[None, :]        # (1, D/2)
    div = jnp.exp(-i * (math.log(10000.0) / d_model))
    ang = pos * div
    pe = jnp.zeros((max_len, d_model), jnp.float32)
    pe = pe.at[:, 0::2].set(jnp.sin(ang))
    pe = pe.at[:, 1::2].set(jnp.cos(ang))
    return pe


def init_params(key, n_layers, d_model, d_inner, n_head, d_k, d_v, max_seq_len):
    qkv_w = n_head * (2 * d_k + d_v)                               # fused Wq|Wk|Wv width
    scale_q = 1.0 / math.sqrt(d_k)

    def dense(k, shape):
        return jax.random.normal(k, shape, jnp.float32) * 0.02

    wqkv, wo, w1, w2 = [], [], [], []
    for l in range(n_layers):
        ks = jax.random.split(jax.random.fold_in(key, l), 4)
        wq = dense(ks[0], (d_model, qkv_w))
        # Fold the 1/sqrt(d_k) attention scale into the Q columns (and the Q bias, zero here).
        wq = wq.at[:, :n_head * d_k].multiply(scale_q)
        wqkv.append(wq)
        wo.append(dense(ks[1], (n_head * d_v, d_model)))
        w1.append(dense(ks[2], (d_model, d_inner)))
        w2.append(dense(ks[3], (d_inner, d_model)))

    L = n_layers
    return dict(
        pe=sinusoidal_pe(max_seq_len, d_model),
        ln1_g=jnp.ones((L, 1, d_model), jnp.float32),
        ln1_b=jnp.zeros((L, 1, d_model), jnp.float32),
        wqkv=jnp.stack(wqkv).astype(jnp.bfloat16),
        bqkv=jnp.zeros((L, 1, qkv_w), jnp.float32),
        wo=jnp.stack(wo).astype(jnp.bfloat16),
        bo=jnp.zeros((L, 1, d_model), jnp.float32),
        ln2_g=jnp.ones((L, 1, d_model), jnp.float32),
        ln2_b=jnp.zeros((L, 1, d_model), jnp.float32),
        w1=jnp.stack(w1).astype(jnp.bfloat16),
        b1=jnp.zeros((L, 1, d_inner), jnp.float32),
        w2=jnp.stack(w2).astype(jnp.bfloat16),
        b2=jnp.zeros((L, 1, d_model), jnp.float32),
        norm_g=jnp.ones((1, d_model), jnp.float32),
        norm_b=jnp.zeros((1, d_model), jnp.float32),
    )


# ---------------------------------------------------------------------------
# Main
# ---------------------------------------------------------------------------
if __name__ == "__main__":
    # Small but lane-aligned config (D, H*d_k, d_inner, S all multiples of 128 / MXU-friendly).
    n_layers, d_model, d_inner, n_head, d_k, d_v = 2, 128, 256, 4, 32, 32
    B, S = 2, 128
    max_seq_len = 512

    key = jax.random.PRNGKey(0)
    pkey, xkey = jax.random.split(key)

    params = init_params(pkey, n_layers, d_model, d_inner, n_head, d_k, d_v, max_seq_len)
    x = jax.random.normal(xkey, (B, S, d_model), jnp.float32)

    out = encoder_forward(x, params, n_head=n_head, d_k=d_k, d_v=d_v, mask=None)
    out = jax.block_until_ready(out)

    assert out.shape == (B, S, d_model) and out.dtype == jnp.float32
    assert bool(jnp.all(jnp.isfinite(out)))
    print("KERNEL_OK")
</pallas_src>

<mosaic_0001>
module attributes {stable_mosaic.version = 11 : i64} {
  func.func @_encoder_kernel(%arg0: i32, %arg1: i32, %arg2: memref<2x128x128xf32, #tpu.memory_space<vmem>>, %arg3: memref<128x128xf32, #tpu.memory_space<vmem>>, %arg4: memref<1x1x128xf32, #tpu.memory_space<vmem>>, %arg5: memref<1x1x128xf32, #tpu.memory_space<vmem>>, %arg6: memref<1x128x384xbf16, #tpu.memory_space<vmem>>, %arg7: memref<1x1x384xf32, #tpu.memory_space<vmem>>, %arg8: memref<1x128x128xbf16, #tpu.memory_space<vmem>>, %arg9: memref<1x1x128xf32, #tpu.memory_space<vmem>>, %arg10: memref<1x1x128xf32, #tpu.memory_space<vmem>>, %arg11: memref<1x1x128xf32, #tpu.memory_space<vmem>>, %arg12: memref<1x128x256xbf16, #tpu.memory_space<vmem>>, %arg13: memref<1x1x256xf32, #tpu.memory_space<vmem>>, %arg14: memref<1x256x128xbf16, #tpu.memory_space<vmem>>, %arg15: memref<1x1x128xf32, #tpu.memory_space<vmem>>, %arg16: memref<1x128xf32, #tpu.memory_space<vmem>>, %arg17: memref<1x128xf32, #tpu.memory_space<vmem>>, %arg18: memref<2x128x128xf32, #tpu.memory_space<vmem>>, %arg19: memref<256x128xf32, #tpu.memory_space<vmem>>) attributes {dimension_semantics = [#tpu.dimension_semantics<parallel>, #tpu.dimension_semantics<arbitrary>], iteration_bounds = array<i64: 1, 2>, scalar_prefetch = 0 : i64, scratch_operands = 1 : i64, tpu.core_type = #tpu.core_type<tc>, window_params = [{transform_indices = @transform_0, window_bounds = array<i64: 2, 128, 128>}, {pipeline_mode = #tpu.pipeline_mode<synchronous>, transform_indices = @transform_1, window_bounds = array<i64: 128, 128>}, {transform_indices = @transform_2, window_bounds = array<i64: 1, 1, 128>}, {transform_indices = @transform_3, window_bounds = array<i64: 1, 1, 128>}, {transform_indices = @transform_4, window_bounds = array<i64: 1, 128, 384>}, {transform_indices = @transform_5, window_bounds = array<i64: 1, 1, 384>}, {transform_indices = @transform_6, window_bounds = array<i64: 1, 128, 128>}, {transform_indices = @transform_7, window_bounds = array<i64: 1, 1, 128>}, {transform_indices = @transform_8, window_bounds = array<i64: 1, 1, 128>}, {transform_indices = @transform_9, window_bounds = array<i64: 1, 1, 128>}, {transform_indices = @transform_10, window_bounds = array<i64: 1, 128, 256>}, {transform_indices = @transform_11, window_bounds = array<i64: 1, 1, 256>}, {transform_indices = @transform_12, window_bounds = array<i64: 1, 256, 128>}, {transform_indices = @transform_13, window_bounds = array<i64: 1, 1, 128>}, {pipeline_mode = #tpu.pipeline_mode<synchronous>, transform_indices = @transform_14, window_bounds = array<i64: 1, 128>}, {pipeline_mode = #tpu.pipeline_mode<synchronous>, transform_indices = @transform_15, window_bounds = array<i64: 1, 128>}, {transform_indices = @transform_16, window_bounds = array<i64: 2, 128, 128>}]} {
    %c0_i32 = arith.constant 0 : i32
    %0 = arith.cmpi eq, %arg1, %c0_i32 : i32
    %1 = arith.extui %0 : i1 to i32
    %c0_i32_0 = arith.constant 0 : i32
    %2 = arith.cmpi ne, %1, %c0_i32_0 : i32
    scf.if %2 {
      %c0_87 = arith.constant 0 : index
      %c0_88 = arith.constant 0 : index
      %c0_89 = arith.constant 0 : index
      %233 = vector.load %arg2[%c0_87, %c0_88, %c0_89] : memref<2x128x128xf32, #tpu.memory_space<vmem>>, vector<2x128x128xf32>
      %c0_90 = arith.constant 0 : index
      %c0_91 = arith.constant 0 : index
      %234 = vector.load %arg3[%c0_90, %c0_91] : memref<128x128xf32, #tpu.memory_space<vmem>>, vector<128x128xf32>
      %235 = vector.shape_cast %234 : vector<128x128xf32> to vector<1x128x128xf32>
      %236 = vector.broadcast %235 : vector<1x128x128xf32> to vector<2x128x128xf32>
      %237 = arith.addf %233, %236 : vector<2x128x128xf32>
      %238 = vector.shape_cast %237 : vector<2x128x128xf32> to vector<256x128xf32>
      %c0_92 = arith.constant 0 : index
      %c0_93 = arith.constant 0 : index
      %239 = vector.load %arg19[%c0_92, %c0_93] : memref<256x128xf32, #tpu.memory_space<vmem>>, vector<256x128xf32>
      tpu.vector_store %arg19[%c0_92, %c0_93], %238 {strides = array<i32>} : memref<256x128xf32, #tpu.memory_space<vmem>>, vector<256x128xf32>,
    } else {
    }
    %c0 = arith.constant 0 : index
    %c0_1 = arith.constant 0 : index
    %3 = vector.load %arg19[%c0, %c0_1] : memref<256x128xf32, #tpu.memory_space<vmem>>, vector<256x128xf32>
    %c0_2 = arith.constant 0 : index
    %c0_3 = arith.constant 0 : index
    %c0_4 = arith.constant 0 : index
    %4 = vector.load %arg4[%c0_2, %c0_3, %c0_4] : memref<1x1x128xf32, #tpu.memory_space<vmem>>, vector<1x1x128xf32>
    %5 = vector.shape_cast %4 : vector<1x1x128xf32> to vector<1x128xf32>
    %c0_5 = arith.constant 0 : index
    %c0_6 = arith.constant 0 : index
    %c0_7 = arith.constant 0 : index
    %6 = vector.load %arg5[%c0_5, %c0_6, %c0_7] : memref<1x1x128xf32, #tpu.memory_space<vmem>>, vector<1x1x128xf32>
    %7 = vector.shape_cast %6 : vector<1x1x128xf32> to vector<1x128xf32>
    %cst = arith.constant dense<0.000000e+00> : vector<256xf32>
    %8 = vector.multi_reduction <add>, %3, %cst [1] : vector<256x128xf32> to vector<256xf32>
    %9 = vector.shape_cast %8 : vector<256xf32> to vector<256x1xf32>
    %cst_8 = arith.constant 1.280000e+02 : f32
    %10 = vector.broadcast %cst_8 : f32 to vector<256x1xf32>
    %11 = arith.divf %9, %10 : vector<256x1xf32>
    %12 = vector.broadcast %11 : vector<256x1xf32> to vector<256x128xf32>
    %13 = arith.subf %3, %12 : vector<256x128xf32>
    %14 = arith.mulf %13, %13 : vector<256x128xf32>
    %cst_9 = arith.constant dense<0.000000e+00> : vector<256xf32>
    %15 = vector.multi_reduction <add>, %14, %cst_9 [1] : vector<256x128xf32> to vector<256xf32>
    %16 = vector.shape_cast %15 : vector<256xf32> to vector<256x1xf32>
    %cst_10 = arith.constant 1.280000e+02 : f32
    %17 = vector.broadcast %cst_10 : f32 to vector<256x1xf32>
    %18 = arith.divf %16, %17 : vector<256x1xf32>
    %19 = vector.broadcast %11 : vector<256x1xf32> to vector<256x128xf32>
    %20 = arith.subf %3, %19 : vector<256x128xf32>
    %cst_11 = arith.constant 9.99999997E-7 : f32
    %21 = vector.broadcast %cst_11 : f32 to vector<256x1xf32>
    %22 = arith.addf %18, %21 : vector<256x1xf32>
    %23 = math.rsqrt %22 : vector<256x1xf32>
    %24 = vector.broadcast %23 : vector<256x1xf32> to vector<256x128xf32>
    %25 = arith.mulf %20, %24 : vector<256x128xf32>
    %26 = vector.broadcast %5 : vector<1x128xf32> to vector<256x128xf32>
    %27 = arith.mulf %25, %26 : vector<256x128xf32>
    %28 = vector.broadcast %7 : vector<1x128xf32> to vector<256x128xf32>
    %29 = arith.addf %27, %28 : vector<256x128xf32>
    %30 = arith.truncf %29 : vector<256x128xf32> to vector<256x128xbf16>
    %c0_12 = arith.constant 0 : index
    %c0_13 = arith.constant 0 : index
    %c0_14 = arith.constant 0 : index
    %31 = vector.load %arg6[%c0_12, %c0_13, %c0_14] : memref<1x128x384xbf16, #tpu.memory_space<vmem>>, vector<1x128x384xbf16>
    %32 = vector.shape_cast %31 : vector<1x128x384xbf16> to vector<128x384xbf16>
    %cst_15 = arith.constant dense<0.000000e+00> : vector<256x384xf32>
    %33 = tpu.matmul %30, %32, %cst_15 {dimension_numbers = #tpu.dot_dimension_numbers<[1], [0], [0], [1], [0, 0, 1, 1], [], []>} : vector<256x128xbf16>, vector<128x384xbf16>, vector<256x384xf32> -> vector<256x384xf32>
    %c0_16 = arith.constant 0 : index
    %c0_17 = arith.constant 0 : index
    %c0_18 = arith.constant 0 : index
    %34 = vector.load %arg7[%c0_16, %c0_17, %c0_18] : memref<1x1x384xf32, #tpu.memory_space<vmem>>, vector<1x1x384xf32>
    %35 = vector.shape_cast %34 : vector<1x1x384xf32> to vector<1x384xf32>
    %36 = vector.broadcast %35 : vector<1x384xf32> to vector<256x384xf32>
    %37 = arith.addf %33, %36 : vector<256x384xf32>
    %38 = vector.extract_strided_slice %37 {offsets = [0, 0], sizes = [256, 128], strides = [1, 1]} : vector<256x384xf32> to vector<256x128xf32>
    %39 = arith.truncf %38 : vector<256x128xf32> to vector<256x128xbf16>
    %40 = vector.extract_strided_slice %37 {offsets = [0, 128], sizes = [256, 128], strides = [1, 1]} : vector<256x384xf32> to vector<256x128xf32>
    %41 = arith.truncf %40 : vector<256x128xf32> to vector<256x128xbf16>
    %42 = vector.extract_strided_slice %37 {offsets = [0, 256], sizes = [256, 128], strides = [1, 1]} : vector<256x384xf32> to vector<256x128xf32>
    %43 = arith.truncf %42 : vector<256x128xf32> to vector<256x128xbf16>
    %44 = vector.extract_strided_slice %39 {offsets = [0, 0], sizes = [128, 32], strides = [1, 1]} : vector<256x128xbf16> to vector<128x32xbf16>
    %45 = vector.extract_strided_slice %41 {offsets = [0, 0], sizes = [128, 32], strides = [1, 1]} : vector<256x128xbf16> to vector<128x32xbf16>
    %46 = vector.extract_strided_slice %43 {offsets = [0, 0], sizes = [128, 32], strides = [1, 1]} : vector<256x128xbf16> to vector<128x32xbf16>
    %cst_19 = arith.constant dense<0.000000e+00> : vector<128x128xf32>
    %47 = tpu.matmul %44, %45, %cst_19 {dimension_numbers = #tpu.dot_dimension_numbers<[1], [1], [0], [0], [0, 0, 1, 0], [], []>} : vector<128x32xbf16>, vector<128x32xbf16>, vector<128x128xf32> -> vector<128x128xf32>
    %cst_20 = arith.constant dense<0xFF800000> : vector<128xf32>
    %48 = vector.multi_reduction <maximumf>, %47, %cst_20 [1] : vector<128x128xf32> to vector<128xf32>
    %49 = vector.shape_cast %48 : vector<128xf32> to vector<128x1xf32>
    %50 = vector.broadcast %49 : vector<128x1xf32> to vector<128x128xf32>
    %51 = arith.subf %47, %50 : vector<128x128xf32>
    %52 = math.exp %51 : vector<128x128xf32>
    %cst_21 = arith.constant dense<0.000000e+00> : vector<128xf32>
    %53 = vector.multi_reduction <add>, %52, %cst_21 [1] : vector<128x128xf32> to vector<128xf32>
    %54 = vector.shape_cast %53 : vector<128xf32> to vector<128x1xf32>
    %55 = arith.truncf %52 : vector<128x128xf32> to vector<128x128xbf16>
    %cst_22 = arith.constant dense<0.000000e+00> : vector<128x32xf32>
    %56 = tpu.matmul %55, %46, %cst_22 {dimension_numbers = #tpu.dot_dimension_numbers<[1], [0], [0], [1], [0, 0, 1, 1], [], []>} : vector<128x128xbf16>, vector<128x32xbf16>, vector<128x32xf32> -> vector<128x32xf32>
    %57 = tpu.reciprocal %54 {approx = true} : vector<128x1xf32> -> vector<128x1xf32>
    %58 = vector.broadcast %57 : vector<128x1xf32> to vector<128x32xf32>
    %59 = arith.mulf %56, %58 : vector<128x32xf32>
    %60 = vector.extract_strided_slice %39 {offsets = [0, 32], sizes = [128, 32], strides = [1, 1]} : vector<256x128xbf16> to vector<128x32xbf16>
    %61 = vector.extract_strided_slice %41 {offsets = [0, 32], sizes = [128, 32], strides = [1, 1]} : vector<256x128xbf16> to vector<128x32xbf16>
    %62 = vector.extract_strided_slice %43 {offsets = [0, 32], sizes = [128, 32], strides = [1, 1]} : vector<256x128xbf16> to vector<128x32xbf16>
    %cst_23 = arith.constant dense<0.000000e+00> : vector<128x128xf32>
    %63 = tpu.matmul %60, %61, %cst_23 {dimension_numbers = #tpu.dot_dimension_numbers<[1], [1], [0], [0], [0, 0, 1, 0], [], []>} : vector<128x32xbf16>, vector<128x32xbf16>, vector<128x128xf32> -> vector<128x128xf32>
    %cst_24 = arith.constant dense<0xFF800000> : vector<128xf32>
    %64 = vector.multi_reduction <maximumf>, %63, %cst_24 [1] : vector<128x128xf32> to vector<128xf32>
    %65 = vector.shape_cast %64 : vector<128xf32> to vector<128x1xf32>
    %66 = vector.broadcast %65 : vector<128x1xf32> to vector<128x128xf32>
    %67 = arith.subf %63, %66 : vector<128x128xf32>
    %68 = math.exp %67 : vector<128x128xf32>
    %cst_25 = arith.constant dense<0.000000e+00> : vector<128xf32>
    %69 = vector.multi_reduction <add>, %68, %cst_25 [1] : vector<128x128xf32> to vector<128xf32>
    %70 = vector.shape_cast %69 : vector<128xf32> to vector<128x1xf32>
    %71 = arith.truncf %68 : vector<128x128xf32> to vector<128x128xbf16>
    %cst_26 = arith.constant dense<0.000000e+00> : vector<128x32xf32>
    %72 = tpu.matmul %71, %62, %cst_26 {dimension_numbers = #tpu.dot_dimension_numbers<[1], [0], [0], [1], [0, 0, 1, 1], [], []>} : vector<128x128xbf16>, vector<128x32xbf16>, vector<128x32xf32> -> vector<128x32xf32>
    %73 = tpu.reciprocal %70 {approx = true} : vector<128x1xf32> -> vector<128x1xf32>
    %74 = vector.broadcast %73 : vector<128x1xf32> to vector<128x32xf32>
    %75 = arith.mulf %72, %74 : vector<128x32xf32>
    %76 = vector.extract_strided_slice %39 {offsets = [0, 64], sizes = [128, 32], strides = [1, 1]} : vector<256x128xbf16> to vector<128x32xbf16>
    %77 = vector.extract_strided_slice %41 {offsets = [0, 64], sizes = [128, 32], strides = [1, 1]} : vector<256x128xbf16> to vector<128x32xbf16>
    %78 = vector.extract_strided_slice %43 {offsets = [0, 64], sizes = [128, 32], strides = [1, 1]} : vector<256x128xbf16> to vector<128x32xbf16>
    %cst_27 = arith.constant dense<0.000000e+00> : vector<128x128xf32>
    %79 = tpu.matmul %76, %77, %cst_27 {dimension_numbers = #tpu.dot_dimension_numbers<[1], [1], [0], [0], [0, 0, 1, 0], [], []>} : vector<128x32xbf16>, vector<128x32xbf16>, vector<128x128xf32> -> vector<128x128xf32>
    %cst_28 = arith.constant dense<0xFF800000> : vector<128xf32>
    %80 = vector.multi_reduction <maximumf>, %79, %cst_28 [1] : vector<128x128xf32> to vector<128xf32>
    %81 = vector.shape_cast %80 : vector<128xf32> to vector<128x1xf32>
    %82 = vector.broadcast %81 : vector<128x1xf32> to vector<128x128xf32>
    %83 = arith.subf %79, %82 : vector<128x128xf32>
    %84 = math.exp %83 : vector<128x128xf32>
    %cst_29 = arith.constant dense<0.000000e+00> : vector<128xf32>
    %85 = vector.multi_reduction <add>, %84, %cst_29 [1] : vector<128x128xf32> to vector<128xf32>
    %86 = vector.shape_cast %85 : vector<128xf32> to vector<128x1xf32>
    %87 = arith.truncf %84 : vector<128x128xf32> to vector<128x128xbf16>
    %cst_30 = arith.constant dense<0.000000e+00> : vector<128x32xf32>
    %88 = tpu.matmul %87, %78, %cst_30 {dimension_numbers = #tpu.dot_dimension_numbers<[1], [0], [0], [1], [0, 0, 1, 1], [], []>} : vector<128x128xbf16>, vector<128x32xbf16>, vector<128x32xf32> -> vector<128x32xf32>
    %89 = tpu.reciprocal %86 {approx = true} : vector<128x1xf32> -> vector<128x1xf32>
    %90 = vector.broadcast %89 : vector<128x1xf32> to vector<128x32xf32>
    %91 = arith.mulf %88, %90 : vector<128x32xf32>
    %92 = vector.extract_strided_slice %39 {offsets = [0, 96], sizes = [128, 32], strides = [1, 1]} : vector<256x128xbf16> to vector<128x32xbf16>
    %93 = vector.extract_strided_slice %41 {offsets = [0, 96], sizes = [128, 32], strides = [1, 1]} : vector<256x128xbf16> to vector<128x32xbf16>
    %94 = vector.extract_strided_slice %43 {offsets = [0, 96], sizes = [128, 32], strides = [1, 1]} : vector<256x128xbf16> to vector<128x32xbf16>
    %cst_31 = arith.constant dense<0.000000e+00> : vector<128x128xf32>
    %95 = tpu.matmul %92, %93, %cst_31 {dimension_numbers = #tpu.dot_dimension_numbers<[1], [1], [0], [0], [0, 0, 1, 0], [], []>} : vector<128x32xbf16>, vector<128x32xbf16>, vector<128x128xf32> -> vector<128x128xf32>
    %cst_32 = arith.constant dense<0xFF800000> : vector<128xf32>
    %96 = vector.multi_reduction <maximumf>, %95, %cst_32 [1] : vector<128x128xf32> to vector<128xf32>
    %97 = vector.shape_cast %96 : vector<128xf32> to vector<128x1xf32>
    %98 = vector.broadcast %97 : vector<128x1xf32> to vector<128x128xf32>
    %99 = arith.subf %95, %98 : vector<128x128xf32>
    %100 = math.exp %99 : vector<128x128xf32>
    %cst_33 = arith.constant dense<0.000000e+00> : vector<128xf32>
    %101 = vector.multi_reduction <add>, %100, %cst_33 [1] : vector<128x128xf32> to vector<128xf32>
    %102 = vector.shape_cast %101 : vector<128xf32> to vector<128x1xf32>
    %103 = arith.truncf %100 : vector<128x128xf32> to vector<128x128xbf16>
    %cst_34 = arith.constant dense<0.000000e+00> : vector<128x32xf32>
    %104 = tpu.matmul %103, %94, %cst_34 {dimension_numbers = #tpu.dot_dimension_numbers<[1], [0], [0], [1], [0, 0, 1, 1], [], []>} : vector<128x128xbf16>, vector<128x32xbf16>, vector<128x32xf32> -> vector<128x32xf32>
    %105 = tpu.reciprocal %102 {approx = true} : vector<128x1xf32> -> vector<128x1xf32>
    %106 = vector.broadcast %105 : vector<128x1xf32> to vector<128x32xf32>
    %107 = arith.mulf %104, %106 : vector<128x32xf32>
    %108 = tpu.concatenate %59, %75, %91, %107 in 1 : vector<128x32xf32>, vector<128x32xf32>, vector<128x32xf32>, vector<128x32xf32> -> vector<128x128xf32>
    %109 = vector.extract_strided_slice %39 {offsets = [128, 0], sizes = [128, 32], strides = [1, 1]} : vector<256x128xbf16> to vector<128x32xbf16>
    %110 = vector.extract_strided_slice %41 {offsets = [128, 0], sizes = [128, 32], strides = [1, 1]} : vector<256x128xbf16> to vector<128x32xbf16>
    %111 = vector.extract_strided_slice %43 {offsets = [128, 0], sizes = [128, 32], strides = [1, 1]} : vector<256x128xbf16> to vector<128x32xbf16>
    %cst_35 = arith.constant dense<0.000000e+00> : vector<128x128xf32>
    %112 = tpu.matmul %109, %110, %cst_35 {dimension_numbers = #tpu.dot_dimension_numbers<[1], [1], [0], [0], [0, 0, 1, 0], [], []>} : vector<128x32xbf16>, vector<128x32xbf16>, vector<128x128xf32> -> vector<128x128xf32>
    %cst_36 = arith.constant dense<0xFF800000> : vector<128xf32>
    %113 = vector.multi_reduction <maximumf>, %112, %cst_36 [1] : vector<128x128xf32> to vector<128xf32>
    %114 = vector.shape_cast %113 : vector<128xf32> to vector<128x1xf32>
    %115 = vector.broadcast %114 : vector<128x1xf32> to vector<128x128xf32>
    %116 = arith.subf %112, %115 : vector<128x128xf32>
    %117 = math.exp %116 : vector<128x128xf32>
    %cst_37 = arith.constant dense<0.000000e+00> : vector<128xf32>
    %118 = vector.multi_reduction <add>, %117, %cst_37 [1] : vector<128x128xf32> to vector<128xf32>
    %119 = vector.shape_cast %118 : vector<128xf32> to vector<128x1xf32>
    %120 = arith.truncf %117 : vector<128x128xf32> to vector<128x128xbf16>
    %cst_38 = arith.constant dense<0.000000e+00> : vector<128x32xf32>
    %121 = tpu.matmul %120, %111, %cst_38 {dimension_numbers = #tpu.dot_dimension_numbers<[1], [0], [0], [1], [0, 0, 1, 1], [], []>} : vector<128x128xbf16>, vector<128x32xbf16>, vector<128x32xf32> -> vector<128x32xf32>
    %122 = tpu.reciprocal %119 {approx = true} : vector<128x1xf32> -> vector<128x1xf32>
    %123 = vector.broadcast %122 : vector<128x1xf32> to vector<128x32xf32>
    %124 = arith.mulf %121, %123 : vector<128x32xf32>
    %125 = vector.extract_strided_slice %39 {offsets = [128, 32], sizes = [128, 32], strides = [1, 1]} : vector<256x128xbf16> to vector<128x32xbf16>
    %126 = vector.extract_strided_slice %41 {offsets = [128, 32], sizes = [128, 32], strides = [1, 1]} : vector<256x128xbf16> to vector<128x32xbf16>
    %127 = vector.extract_strided_slice %43 {offsets = [128, 32], sizes = [128, 32], strides = [1, 1]} : vector<256x128xbf16> to vector<128x32xbf16>
    %cst_39 = arith.constant dense<0.000000e+00> : vector<128x128xf32>
    %128 = tpu.matmul %125, %126, %cst_39 {dimension_numbers = #tpu.dot_dimension_numbers<[1], [1], [0], [0], [0, 0, 1, 0], [], []>} : vector<128x32xbf16>, vector<128x32xbf16>, vector<128x128xf32> -> vector<128x128xf32>
    %cst_40 = arith.constant dense<0xFF800000> : vector<128xf32>
    %129 = vector.multi_reduction <maximumf>, %128, %cst_40 [1] : vector<128x128xf32> to vector<128xf32>
    %130 = vector.shape_cast %129 : vector<128xf32> to vector<128x1xf32>
    %131 = vector.broadcast %130 : vector<128x1xf32> to vector<128x128xf32>
    %132 = arith.subf %128, %131 : vector<128x128xf32>
    %133 = math.exp %132 : vector<128x128xf32>
    %cst_41 = arith.constant dense<0.000000e+00> : vector<128xf32>
    %134 = vector.multi_reduction <add>, %133, %cst_41 [1] : vector<128x128xf32> to vector<128xf32>
    %135 = vector.shape_cast %134 : vector<128xf32> to vector<128x1xf32>
    %136 = arith.truncf %133 : vector<128x128xf32> to vector<128x128xbf16>
    %cst_42 = arith.constant dense<0.000000e+00> : vector<128x32xf32>
    %137 = tpu.matmul %136, %127, %cst_42 {dimension_numbers = #tpu.dot_dimension_numbers<[1], [0], [0], [1], [0, 0, 1, 1], [], []>} : vector<128x128xbf16>, vector<128x32xbf16>, vector<128x32xf32> -> vector<128x32xf32>
    %138 = tpu.reciprocal %135 {approx = true} : vector<128x1xf32> -> vector<128x1xf32>
    %139 = vector.broadcast %138 : vector<128x1xf32> to vector<128x32xf32>
    %140 = arith.mulf %137, %139 : vector<128x32xf32>
    %141 = vector.extract_strided_slice %39 {offsets = [128, 64], sizes = [128, 32], strides = [1, 1]} : vector<256x128xbf16> to vector<128x32xbf16>
    %142 = vector.extract_strided_slice %41 {offsets = [128, 64], sizes = [128, 32], strides = [1, 1]} : vector<256x128xbf16> to vector<128x32xbf16>
    %143 = vector.extract_strided_slice %43 {offsets = [128, 64], sizes = [128, 32], strides = [1, 1]} : vector<256x128xbf16> to vector<128x32xbf16>
    %cst_43 = arith.constant dense<0.000000e+00> : vector<128x128xf32>
    %144 = tpu.matmul %141, %142, %cst_43 {dimension_numbers = #tpu.dot_dimension_numbers<[1], [1], [0], [0], [0, 0, 1, 0], [], []>} : vector<128x32xbf16>, vector<128x32xbf16>, vector<128x128xf32> -> vector<128x128xf32>
    %cst_44 = arith.constant dense<0xFF800000> : vector<128xf32>
    %145 = vector.multi_reduction <maximumf>, %144, %cst_44 [1] : vector<128x128xf32> to vector<128xf32>
    %146 = vector.shape_cast %145 : vector<128xf32> to vector<128x1xf32>
    %147 = vector.broadcast %146 : vector<128x1xf32> to vector<128x128xf32>
    %148 = arith.subf %144, %147 : vector<128x128xf32>
    %149 = math.exp %148 : vector<128x128xf32>
    %cst_45 = arith.constant dense<0.000000e+00> : vector<128xf32>
    %150 = vector.multi_reduction <add>, %149, %cst_45 [1] : vector<128x128xf32> to vector<128xf32>
    %151 = vector.shape_cast %150 : vector<128xf32> to vector<128x1xf32>
    %152 = arith.truncf %149 : vector<128x128xf32> to vector<128x128xbf16>
    %cst_46 = arith.constant dense<0.000000e+00> : vector<128x32xf32>
    %153 = tpu.matmul %152, %143, %cst_46 {dimension_numbers = #tpu.dot_dimension_numbers<[1], [0], [0], [1], [0, 0, 1, 1], [], []>} : vector<128x128xbf16>, vector<128x32xbf16>, vector<128x32xf32> -> vector<128x32xf32>
    %154 = tpu.reciprocal %151 {approx = true} : vector<128x1xf32> -> vector<128x1xf32>
    %155 = vector.broadcast %154 : vector<128x1xf32> to vector<128x32xf32>
    %156 = arith.mulf %153, %155 : vector<128x32xf32>
    %157 = vector.extract_strided_slice %39 {offsets = [128, 96], sizes = [128, 32], strides = [1, 1]} : vector<256x128xbf16> to vector<128x32xbf16>
    %158 = vector.extract_strided_slice %41 {offsets = [128, 96], sizes = [128, 32], strides = [1, 1]} : vector<256x128xbf16> to vector<128x32xbf16>
    %159 = vector.extract_strided_slice %43 {offsets = [128, 96], sizes = [128, 32], strides = [1, 1]} : vector<256x128xbf16> to vector<128x32xbf16>
    %cst_47 = arith.constant dense<0.000000e+00> : vector<128x128xf32>
    %160 = tpu.matmul %157, %158, %cst_47 {dimension_numbers = #tpu.dot_dimension_numbers<[1], [1], [0], [0], [0, 0, 1, 0], [], []>} : vector<128x32xbf16>, vector<128x32xbf16>, vector<128x128xf32> -> vector<128x128xf32>
    %cst_48 = arith.constant dense<0xFF800000> : vector<128xf32>
    %161 = vector.multi_reduction <maximumf>, %160, %cst_48 [1] : vector<128x128xf32> to vector<128xf32>
    %162 = vector.shape_cast %161 : vector<128xf32> to vector<128x1xf32>
    %163 = vector.broadcast %162 : vector<128x1xf32> to vector<128x128xf32>
    %164 = arith.subf %160, %163 : vector<128x128xf32>
    %165 = math.exp %164 : vector<128x128xf32>
    %cst_49 = arith.constant dense<0.000000e+00> : vector<128xf32>
    %166 = vector.multi_reduction <add>, %165, %cst_49 [1] : vector<128x128xf32> to vector<128xf32>
    %167 = vector.shape_cast %166 : vector<128xf32> to vector<128x1xf32>
    %168 = arith.truncf %165 : vector<128x128xf32> to vector<128x128xbf16>
    %cst_50 = arith.constant dense<0.000000e+00> : vector<128x32xf32>
    %169 = tpu.matmul %168, %159, %cst_50 {dimension_numbers = #tpu.dot_dimension_numbers<[1], [0], [0], [1], [0, 0, 1, 1], [], []>} : vector<128x128xbf16>, vector<128x32xbf16>, vector<128x32xf32> -> vector<128x32xf32>
    %170 = tpu.reciprocal %167 {approx = true} : vector<128x1xf32> -> vector<128x1xf32>
    %171 = vector.broadcast %170 : vector<128x1xf32> to vector<128x32xf32>
    %172 = arith.mulf %169, %171 : vector<128x32xf32>
    %173 = tpu.concatenate %124, %140, %156, %172 in 1 : vector<128x32xf32>, vector<128x32xf32>, vector<128x32xf32>, vector<128x32xf32> -> vector<128x128xf32>
    %174 = tpu.concatenate %108, %173 in 0 : vector<128x128xf32>, vector<128x128xf32> -> vector<256x128xf32>
    %175 = arith.truncf %174 : vector<256x128xf32> to vector<256x128xbf16>
    %c0_51 = arith.constant 0 : index
    %c0_52 = arith.constant 0 : index
    %c0_53 = arith.constant 0 : index
    %176 = vector.load %arg8[%c0_51, %c0_52, %c0_53] : memref<1x128x128xbf16, #tpu.memory_space<vmem>>, vector<1x128x128xbf16>
    %177 = vector.shape_cast %176 : vector<1x128x128xbf16> to vector<128x128xbf16>
    %cst_54 = arith.constant dense<0.000000e+00> : vector<256x128xf32>
    %178 = tpu.matmul %175, %177, %cst_54 {dimension_numbers = #tpu.dot_dimension_numbers<[1], [0], [0], [1], [0, 0, 1, 1], [], []>} : vector<256x128xbf16>, vector<128x128xbf16>, vector<256x128xf32> -> vector<256x128xf32>
    %c0_55 = arith.constant 0 : index
    %c0_56 = arith.constant 0 : index
    %c0_57 = arith.constant 0 : index
    %179 = vector.load %arg9[%c0_55, %c0_56, %c0_57] : memref<1x1x128xf32, #tpu.memory_space<vmem>>, vector<1x1x128xf32>
    %180 = vector.shape_cast %179 : vector<1x1x128xf32> to vector<1x128xf32>
    %181 = vector.broadcast %180 : vector<1x128xf32> to vector<256x128xf32>
    %182 = arith.addf %178, %181 : vector<256x128xf32>
    %183 = arith.addf %3, %182 : vector<256x128xf32>
    %c0_58 = arith.constant 0 : index
    %c0_59 = arith.constant 0 : index
    %c0_60 = arith.constant 0 : index
    %184 = vector.load %arg10[%c0_58, %c0_59, %c0_60] : memref<1x1x128xf32, #tpu.memory_space<vmem>>, vector<1x1x128xf32>
    %185 = vector.shape_cast %184 : vector<1x1x128xf32> to vector<1x128xf32>
    %c0_61 = arith.constant 0 : index
    %c0_62 = arith.constant 0 : index
    %c0_63 = arith.constant 0 : index
    %186 = vector.load %arg11[%c0_61, %c0_62, %c0_63] : memref<1x1x128xf32, #tpu.memory_space<vmem>>, vector<1x1x128xf32>
    %187 = vector.shape_cast %186 : vector<1x1x128xf32> to vector<1x128xf32>
    %cst_64 = arith.constant dense<0.000000e+00> : vector<256xf32>
    %188 = vector.multi_reduction <add>, %183, %cst_64 [1] : vector<256x128xf32> to vector<256xf32>
    %189 = vector.shape_cast %188 : vector<256xf32> to vector<256x1xf32>
    %cst_65 = arith.constant 1.280000e+02 : f32
    %190 = vector.broadcast %cst_65 : f32 to vector<256x1xf32>
    %191 = arith.divf %189, %190 : vector<256x1xf32>
    %192 = vector.broadcast %191 : vector<256x1xf32> to vector<256x128xf32>
    %193 = arith.subf %183, %192 : vector<256x128xf32>
    %194 = arith.mulf %193, %193 : vector<256x128xf32>
    %cst_66 = arith.constant dense<0.000000e+00> : vector<256xf32>
    %195 = vector.multi_reduction <add>, %194, %cst_66 [1] : vector<256x128xf32> to vector<256xf32>
    %196 = vector.shape_cast %195 : vector<256xf32> to vector<256x1xf32>
    %cst_67 = arith.constant 1.280000e+02 : f32
    %197 = vector.broadcast %cst_67 : f32 to vector<256x1xf32>
    %198 = arith.divf %196, %197 : vector<256x1xf32>
    %199 = vector.broadcast %191 : vector<256x1xf32> to vector<256x128xf32>
    %200 = arith.subf %183, %199 : vector<256x128xf32>
    %cst_68 = arith.constant 9.99999997E-7 : f32
    %201 = vector.broadcast %cst_68 : f32 to vector<256x1xf32>
    %202 = arith.addf %198, %201 : vector<256x1xf32>
    %203 = math.rsqrt %202 : vector<256x1xf32>
    %204 = vector.broadcast %203 : vector<256x1xf32> to vector<256x128xf32>
    %205 = arith.mulf %200, %204 : vector<256x128xf32>
    %206 = vector.broadcast %185 : vector<1x128xf32> to vector<256x128xf32>
    %207 = arith.mulf %205, %206 : vector<256x128xf32>
    %208 = vector.broadcast %187 : vector<1x128xf32> to vector<256x128xf32>
    %209 = arith.addf %207, %208 : vector<256x128xf32>
    %210 = arith.truncf %209 : vector<256x128xf32> to vector<256x128xbf16>
    %c0_69 = arith.constant 0 : index
    %c0_70 = arith.constant 0 : index
    %c0_71 = arith.constant 0 : index
    %211 = vector.load %arg12[%c0_69, %c0_70, %c0_71] : memref<1x128x256xbf16, #tpu.memory_space<vmem>>, vector<1x128x256xbf16>
    %212 = vector.shape_cast %211 : vector<1x128x256xbf16> to vector<128x256xbf16>
    %cst_72 = arith.constant dense<0.000000e+00> : vector<256x256xf32>
    %213 = tpu.matmul %210, %212, %cst_72 {dimension_numbers = #tpu.dot_dimension_numbers<[1], [0], [0], [1], [0, 0, 1, 1], [], []>} : vector<256x128xbf16>, vector<128x256xbf16>, vector<256x256xf32> -> vector<256x256xf32>
    %c0_73 = arith.constant 0 : index
    %c0_74 = arith.constant 0 : index
    %c0_75 = arith.constant 0 : index
    %214 = vector.load %arg13[%c0_73, %c0_74, %c0_75] : memref<1x1x256xf32, #tpu.memory_space<vmem>>, vector<1x1x256xf32>
    %215 = vector.shape_cast %214 : vector<1x1x256xf32> to vector<1x256xf32>
    %216 = vector.broadcast %215 : vector<1x256xf32> to vector<256x256xf32>
    %217 = arith.addf %213, %216 : vector<256x256xf32>
    %cst_76 = arith.constant 0.000000e+00 : f32
    %218 = vector.broadcast %cst_76 : f32 to vector<256x256xf32>
    %219 = arith.maximumf %217, %218 : vector<256x256xf32>
    %220 = arith.truncf %219 : vector<256x256xf32> to vector<256x256xbf16>
    %c0_77 = arith.constant 0 : index
    %c0_78 = arith.constant 0 : index
    %c0_79 = arith.constant 0 : index
    %221 = vector.load %arg14[%c0_77, %c0_78, %c0_79] : memref<1x256x128xbf16, #tpu.memory_space<vmem>>, vector<1x256x128xbf16>
    %222 = vector.shape_cast %221 : vector<1x256x128xbf16> to vector<256x128xbf16>
    %cst_80 = arith.constant dense<0.000000e+00> : vector<256x128xf32>
    %223 = tpu.matmul %220, %222, %cst_80 {dimension_numbers = #tpu.dot_dimension_numbers<[1], [0], [0], [1], [0, 0, 1, 1], [], []>} : vector<256x256xbf16>, vector<256x128xbf16>, vector<256x128xf32> -> vector<256x128xf32>
    %c0_81 = arith.constant 0 : index
    %c0_82 = arith.constant 0 : index
    %c0_83 = arith.constant 0 : index
    %224 = vector.load %arg15[%c0_81, %c0_82, %c0_83] : memref<1x1x128xf32, #tpu.memory_space<vmem>>, vector<1x1x128xf32>
    %225 = vector.shape_cast %224 : vector<1x1x128xf32> to vector<1x128xf32>
    %226 = vector.broadcast %225 : vector<1x128xf32> to vector<256x128xf32>
    %227 = arith.addf %223, %226 : vector<256x128xf32>
    %228 = arith.addf %183, %227 : vector<256x128xf32>
    %c0_84 = arith.constant 0 : index
    %c0_85 = arith.constant 0 : index
    %229 = vector.load %arg19[%c0_84, %c0_85] : memref<256x128xf32, #tpu.memory_space<vmem>>, vector<256x128xf32>
    tpu.vector_store %arg19[%c0_84, %c0_85], %228 {strides = array<i32>} : memref<256x128xf32, #tpu.memory_space<vmem>>, vector<256x128xf32>,
    %c1_i32 = arith.constant 1 : i32
    %230 = arith.cmpi eq, %arg1, %c1_i32 : i32
    %231 = arith.extui %230 : i1 to i32
    %c0_i32_86 = arith.constant 0 : i32
    %232 = arith.cmpi ne, %231, %c0_i32_86 : i32
    scf.if %232 {
      %c0_87 = arith.constant 0 : index
      %c0_88 = arith.constant 0 : index
      %233 = vector.load %arg16[%c0_87, %c0_88] : memref<1x128xf32, #tpu.memory_space<vmem>>, vector<1x128xf32>
      %c0_89 = arith.constant 0 : index
      %c0_90 = arith.constant 0 : index
      %234 = vector.load %arg17[%c0_89, %c0_90] : memref<1x128xf32, #tpu.memory_space<vmem>>, vector<1x128xf32>
      %cst_91 = arith.constant dense<0.000000e+00> : vector<256xf32>
      %235 = vector.multi_reduction <add>, %228, %cst_91 [1] : vector<256x128xf32> to vector<256xf32>
      %236 = vector.shape_cast %235 : vector<256xf32> to vector<256x1xf32>
      %cst_92 = arith.constant 1.280000e+02 : f32
      %237 = vector.broadcast %cst_92 : f32 to vector<256x1xf32>
      %238 = arith.divf %236, %237 : vector<256x1xf32>
      %239 = vector.broadcast %238 : vector<256x1xf32> to vector<256x128xf32>
      %240 = arith.subf %228, %239 : vector<256x128xf32>
      %241 = arith.mulf %240, %240 : vector<256x128xf32>
      %cst_93 = arith.constant dense<0.000000e+00> : vector<256xf32>
      %242 = vector.multi_reduction <add>, %241, %cst_93 [1] : vector<256x128xf32> to vector<256xf32>
      %243 = vector.shape_cast %242 : vector<256xf32> to vector<256x1xf32>
      %cst_94 = arith.constant 1.280000e+02 : f32
      %244 = vector.broadcast %cst_94 : f32 to vector<256x1xf32>
      %245 = arith.divf %243, %244 : vector<256x1xf32>
      %246 = vector.broadcast %238 : vector<256x1xf32> to vector<256x128xf32>
      %247 = arith.subf %228, %246 : vector<256x128xf32>
      %cst_95 = arith.constant 9.99999997E-7 : f32
      %248 = vector.broadcast %cst_95 : f32 to vector<256x1xf32>
      %249 = arith.addf %245, %248 : vector<256x1xf32>
      %250 = math.rsqrt %249 : vector<256x1xf32>
      %251 = vector.broadcast %250 : vector<256x1xf32> to vector<256x128xf32>
      %252 = arith.mulf %247, %251 : vector<256x128xf32>
      %253 = vector.broadcast %233 : vector<1x128xf32> to vector<256x128xf32>
      %254 = arith.mulf %252, %253 : vector<256x128xf32>
      %255 = vector.broadcast %234 : vector<1x128xf32> to vector<256x128xf32>
      %256 = arith.addf %254, %255 : vector<256x128xf32>
      %257 = vector.shape_cast %256 : vector<256x128xf32> to vector<2x128x128xf32>
      %c0_96 = arith.constant 0 : index
      %c0_97 = arith.constant 0 : index
      %c0_98 = arith.constant 0 : index
      %258 = vector.load %arg18[%c0_96, %c0_97, %c0_98] : memref<2x128x128xf32, #tpu.memory_space<vmem>>, vector<2x128x128xf32>
      tpu.vector_store %arg18[%c0_96, %c0_97, %c0_98], %257 {strides = array<i32>} : memref<2x128x128xf32, #tpu.memory_space<vmem>>, vector<2x128x128xf32>,
    } else {
    }
    return
  }
  func.func @transform_0(%arg0: i32, %arg1: i32) -> (i32, i32, i32) {
    %c0_i32 = arith.constant 0 : i32
    %c0_i32_0 = arith.constant 0 : i32
    %c0_i32_1 = arith.constant 0 : i32
    return %arg0, %c0_i32, %c0_i32_0 : i32, i32, i32
  }
  func.func @transform_1(%arg0: i32, %arg1: i32) -> (i32, i32) {
    %c0_i32 = arith.constant 0 : i32
    %c0_i32_0 = arith.constant 0 : i32
    %c0_i32_1 = arith.constant 0 : i32
    return %c0_i32, %c0_i32_0 : i32, i32
  }
  func.func @transform_2(%arg0: i32, %arg1: i32) -> (i32, i32, i32) {
    %c0_i32 = arith.constant 0 : i32
    %c0_i32_0 = arith.constant 0 : i32
    %c0_i32_1 = arith.constant 0 : i32
    return %arg1, %c0_i32, %c0_i32_0 : i32, i32, i32
  }
  func.func @transform_3(%arg0: i32, %arg1: i32) -> (i32, i32, i32) {
    %c0_i32 = arith.constant 0 : i32
    %c0_i32_0 = arith.constant 0 : i32
    %c0_i32_1 = arith.constant 0 : i32
    return %arg1, %c0_i32, %c0_i32_0 : i32, i32, i32
  }
  func.func @transform_4(%arg0: i32, %arg1: i32) -> (i32, i32, i32) {
    %c0_i32 = arith.constant 0 : i32
    %c0_i32_0 = arith.constant 0 : i32
    %c0_i32_1 = arith.constant 0 : i32
    return %arg1, %c0_i32, %c0_i32_0 : i32, i32, i32
  }
  func.func @transform_5(%arg0: i32, %arg1: i32) -> (i32, i32, i32) {
    %c0_i32 = arith.constant 0 : i32
    %c0_i32_0 = arith.constant 0 : i32
    %c0_i32_1 = arith.constant 0 : i32
    return %arg1, %c0_i32, %c0_i32_0 : i32, i32, i32
  }
  func.func @transform_6(%arg0: i32, %arg1: i32) -> (i32, i32, i32) {
    %c0_i32 = arith.constant 0 : i32
    %c0_i32_0 = arith.constant 0 : i32
    %c0_i32_1 = arith.constant 0 : i32
    return %arg1, %c0_i32, %c0_i32_0 : i32, i32, i32
  }
  func.func @transform_7(%arg0: i32, %arg1: i32) -> (i32, i32, i32) {
    %c0_i32 = arith.constant 0 : i32
    %c0_i32_0 = arith.constant 0 : i32
    %c0_i32_1 = arith.constant 0 : i32
    return %arg1, %c0_i32, %c0_i32_0 : i32, i32, i32
  }
  func.func @transform_8(%arg0: i32, %arg1: i32) -> (i32, i32, i32) {
    %c0_i32 = arith.constant 0 : i32
    %c0_i32_0 = arith.constant 0 : i32
    %c0_i32_1 = arith.constant 0 : i32
    return %arg1, %c0_i32, %c0_i32_0 : i32, i32, i32
  }
  func.func @transform_9(%arg0: i32, %arg1: i32) -> (i32, i32, i32) {
    %c0_i32 = arith.constant 0 : i32
    %c0_i32_0 = arith.constant 0 : i32
    %c0_i32_1 = arith.constant 0 : i32
    return %arg1, %c0_i32, %c0_i32_0 : i32, i32, i32
  }
  func.func @transform_10(%arg0: i32, %arg1: i32) -> (i32, i32, i32) {
    %c0_i32 = arith.constant 0 : i32
    %c0_i32_0 = arith.constant 0 : i32
    %c0_i32_1 = arith.constant 0 : i32
    return %arg1, %c0_i32, %c0_i32_0 : i32, i32, i32
  }
  func.func @transform_11(%arg0: i32, %arg1: i32) -> (i32, i32, i32) {
    %c0_i32 = arith.constant 0 : i32
    %c0_i32_0 = arith.constant 0 : i32
    %c0_i32_1 = arith.constant 0 : i32
    return %arg1, %c0_i32, %c0_i32_0 : i32, i32, i32
  }
  func.func @transform_12(%arg0: i32, %arg1: i32) -> (i32, i32, i32) {
    %c0_i32 = arith.constant 0 : i32
    %c0_i32_0 = arith.constant 0 : i32
    %c0_i32_1 = arith.constant 0 : i32
    return %arg1, %c0_i32, %c0_i32_0 : i32, i32, i32
  }
  func.func @transform_13(%arg0: i32, %arg1: i32) -> (i32, i32, i32) {
    %c0_i32 = arith.constant 0 : i32
    %c0_i32_0 = arith.constant 0 : i32
    %c0_i32_1 = arith.constant 0 : i32
    return %arg1, %c0_i32, %c0_i32_0 : i32, i32, i32
  }
  func.func @transform_14(%arg0: i32, %arg1: i32) -> (i32, i32) {
    %c0_i32 = arith.constant 0 : i32
    %c0_i32_0 = arith.constant 0 : i32
    %c0_i32_1 = arith.constant 0 : i32
    return %c0_i32, %c0_i32_0 : i32, i32
  }
  func.func @transform_15(%arg0: i32, %arg1: i32) -> (i32, i32) {
    %c0_i32 = arith.constant 0 : i32
    %c0_i32_0 = arith.constant 0 : i32
    %c0_i32_1 = arith.constant 0 : i32
    return %c0_i32, %c0_i32_0 : i32, i32
  }
  func.func @transform_16(%arg0: i32, %arg1: i32) -> (i32, i32, i32) {
    %c0_i32 = arith.constant 0 : i32
    %c0_i32_0 = arith.constant 0 : i32
    %c0_i32_1 = arith.constant 0 : i32
    return %arg0, %c0_i32, %c0_i32_0 : i32, i32, i32
  }
}

</mosaic_0001>

<llo_original>
// kernel: tpu_custom_call.1
$region0: #{tpu_custom_call.1}
  #allocation0 [shape = 'u32[]', space=smem, size = 0x4, offset = 0x4, fixed_abs, tag = 'smem constant byte address 0x4 - core index']
  #allocation1 [shape = 'u32[144,128]{1,0:T(1,128)}', space=vmem, size = 0x12000, scoped, tag = 'internal scratch']
  #allocation2 [shape = 'f32[256,128]{1,0:T(8,128)}', space=vmem, size = 0x20000, scoped, tag = 'scratch operand']
  %s0 = inlined_call_operand.hbm [shape: f32[2,128,128], index: 0, kind: input, shape index: {}]
  %s1 = inlined_call_operand.hbm [shape: f32[128,128], index: 1, kind: input, shape index: {}]
  %s2 = inlined_call_operand.hbm [shape: f32[2,1,128], index: 2, kind: input, shape index: {}]
  %s3 = inlined_call_operand.hbm [shape: f32[2,1,128], index: 3, kind: input, shape index: {}]
  %s4 = inlined_call_operand.hbm [shape: bf16[2,128,384], index: 4, kind: input, shape index: {}]
  %s5 = inlined_call_operand.vmem [shape: f32[2,1,384], index: 5, kind: input, shape index: {}]
  %s6 = inlined_call_operand.hbm [shape: bf16[2,128,128], index: 6, kind: input, shape index: {}]
  %s7 = inlined_call_operand.vmem [shape: f32[2,1,128], index: 7, kind: input, shape index: {}]
  %s8 = inlined_call_operand.vmem [shape: f32[2,1,128], index: 8, kind: input, shape index: {}]
  %s9 = inlined_call_operand.vmem [shape: f32[2,1,128], index: 9, kind: input, shape index: {}]
  %s10 = inlined_call_operand.hbm [shape: bf16[2,128,256], index: 10, kind: input, shape index: {}]
  %s11 = inlined_call_operand.vmem [shape: f32[2,1,256], index: 11, kind: input, shape index: {}]
  %s12 = inlined_call_operand.hbm [shape: bf16[2,256,128], index: 12, kind: input, shape index: {}]
  %s13 = inlined_call_operand.vmem [shape: f32[2,1,128], index: 13, kind: input, shape index: {}]
  %s14 = inlined_call_operand.vmem [shape: f32[1,128], index: 14, kind: input, shape index: {}]
  %s15 = inlined_call_operand.vmem [shape: f32[1,128], index: 15, kind: input, shape index: {}]
  %s16 = inlined_call_operand.hbm [shape: f32[2,128,128], index: 16, kind: output, shape index: {}]
  %s17 = sld [smem:[#allocation0]]
  $region137: #{tpu_custom_call.1} parent=0
    _
  %s19 = ssub.s32 1, %s17
  %s20 = scalar_select 0, %s19, %s17
  $region1: #{tpu_custom_call.1} parent=0
    #allocation3 [shape = 'u8[131072]{0}', space=vmem, size = 0x20000, scoped, tag = 'input window, operand 0, single buffered']
    #allocation4 [shape = 's32[2]{0}', space=sflag, size = 0x8, scoped, tag = 'scoped memory for tpu_custom_call.1']
    #allocation5 [shape = 's32[2]{0}', space=sflag, size = 0x8, scoped, tag = 'scoped memory for tpu_custom_call.1']
    #allocation6 [shape = 'u8[65536]{0}', space=vmem, size = 0x10000, scoped, tag = 'input window, operand 1, single buffered']
    #allocation7 [shape = 's32[1]{0}', space=sflag, size = 0x4, scoped, tag = 'scoped memory for tpu_custom_call.1']
    #allocation8 [shape = 'u8[1024]{0}', space=vmem, size = 0x400, scoped, tag = 'input window, operand 2']
    #allocation9 [shape = 'u8[1024]{0}', space=vmem, size = 0x400, scoped, tag = 'input window, operand 3']
    #allocation10 [shape = 'u8[196608]{0}', space=vmem, size = 0x30000, scoped, tag = 'input window, operand 4']
    #allocation11 [shape = 'u8[65536]{0}', space=vmem, size = 0x10000, scoped, tag = 'input window, operand 6']
    #allocation12 [shape = 'u8[131072]{0}', space=vmem, size = 0x20000, scoped, tag = 'input window, operand 10']
    #allocation13 [shape = 'u8[131072]{0}', space=vmem, size = 0x20000, scoped, tag = 'input window, operand 12']
    #allocation14 [shape = 'u8[131072]{0}', space=vmem, size = 0x20000, scoped, tag = 'output window, operand 0, single buffered']
    %21 = vsyncpa [#allocation4], 0
    %22 = vsyncpa [#allocation7], 0
    %23 = vsyncpa [#allocation5], 0
    loop: start=0, step=1, limit=4
    $region2: #{tpu_custom_call.1} parent=1 // loop_pre_header
      _
    $region3: #{tpu_custom_call.1} parent=1 // loop_header
      %s25 = sphi 0, %s29
      %p26 = scmp.ge.s32.totalorder %s25, 4
      %s32 = sphi 0, %s44
      %s33 = sphi 0, %s40
      %s34 = sphi 0, %s32
      %s35 = sphi 0, %s33
      %s36 = sphi 0, %s34
      %s37 = sphi 0, %s35
      %s47 = sphi 0, %s49
      %s50 = sphi 0, %s47
      %s51 = sphi 0, %s50
      %s67 = sphi 0, %s51
      %s71 = sphi 0, %s71
      %s73 = sphi 0, %s71
      %s74 = sphi 0, %s73
      %s88 = sphi 0, %s74
      %s94 = sphi 0, %s96
      %s97 = sphi 0, %s94
      %s98 = sphi 0, %s97
      %s114 = sphi 0, %s98
      %s120 = sphi 0, %s122
      %s123 = sphi 0, %s120
      %s124 = sphi 0, %s123
      %s140 = sphi 0, %s124
      %s146 = sphi 0, %s148
      %s149 = sphi 0, %s146
      %s150 = sphi 0, %s149
      %s166 = sphi 0, %s150
      %s172 = sphi 0, %s174
      %s175 = sphi 0, %s172
      %s176 = sphi 0, %s175
      %s192 = sphi 0, %s176
      %s198 = sphi 0, %s200
      %s201 = sphi 0, %s198
      %s202 = sphi 0, %s201
      %s218 = sphi 0, %s202
      %s224 = sphi 0, %s226
      %s227 = sphi 0, %s224
      %s228 = sphi 0, %s227
      %s244 = sphi 0, %s228
      %s250 = sphi 0, %s252
      %s253 = sphi 0, %s250
      %s254 = sphi 0, %s253
      %s270 = sphi 0, %s254
      %s276 = sphi 0, %s278
      %s279 = sphi 0, %s276
      %s280 = sphi 0, %s279
      %s296 = sphi 0, %s280
      %s302 = sphi 0, %s304
      %s305 = sphi 0, %s302
      %s306 = sphi 0, %s305
      %s322 = sphi 0, %s306
      %s328 = sphi 0, %s330
      %s331 = sphi 0, %s328
      %s332 = sphi 0, %s331
      %s348 = sphi 0, %s332
      %s354 = sphi 0, %s356
      %s357 = sphi 0, %s354
      %s358 = sphi 0, %s357
      %s374 = sphi 0, %s358
      %s380 = sphi 0, %s382
      %s383 = sphi 0, %s380
      %s384 = sphi 0, %s383
      %s400 = sphi 0, %s384
      %s404 = sphi 0, %s404
      %s406 = sphi 0, %s404
      %s407 = sphi 0, %s406
      %s421 = sphi 0, %s407
      %s425 = sphi 0, %s425
      %s427 = sphi 0, %s425
      %s428 = sphi 0, %s427
      %s442 = sphi 0, %s428
      %s448 = sphi 0, %s450
      %s451 = sphi 0, %s448
      %s452 = sphi 0, %s451
      %s468 = sphi 0, %s452
    $region4: #{tpu_custom_call.1} parent=1 // loop_header_branch
      %28 = sbr.rel (%p26) target = $region8
    $region5: #{tpu_custom_call.1} parent=1 // loop_body
      %s30 = ssub.s32 %s25, 1
      %s31 = ssub.s32 %s25, 2
      %s38 = sadd.s32 1, %s33
      %p39 = scmp.ge.s32.totalorder %s38, 2
      %s40 = scalar_select %p39, 0, %s38
      %s41 = sadd.s32 1, %s32
      %s42 = scalar_select %p39, %s41, %s32
      %p43 = scmp.ge.s32.totalorder %s42, 1
      %s44 = scalar_select %p43, 0, %s42
      %s45 = ssub.s32 %s32, %s44
      %p46 = scmp.eq.s32.totalorder %s45, 0
      %s48 = sadd.s32 %s47, 1
      %s49 = scalar_select %p46, %s47, %s48
      %p52 = pneg %p46
      %p53 = scmp.eq.s32.totalorder %s25, 1
      %p54 = por %p52, %p53
      %p55 = scmp.ne.s32.totalorder %s47, %s50
      %p56 = scmp.eq.s32.totalorder %s25, 0
      %p57 = por %p55, %p56
      %p58 = scmp.ne.s32.totalorder %s47, %s50
      %p59 = scmp.eq.s32.totalorder %s30, 1
      %p60 = por %p58, %p59
      %p61 = scmp.ne.s32.totalorder %s50, %s51
      %p62 = scmp.eq.s32.totalorder %s30, 0
      %p63 = por %p61, %p62
      %p64 = scmp.ne.s32.totalorder %s50, %s51
      %p65 = scmp.eq.s32.totalorder %s31, 1
      %p66 = por %p64, %p65
      %p68 = scmp.ne.s32.totalorder %s51, %s67
      %p69 = scmp.eq.s32.totalorder %s31, 0
      %p70 = por %p68, %p69
      %s72 = sadd.s32 %s71, 1
      %p75 = scmp.eq.s32.totalorder %s25, 1
      %p76 = scmp.ne.s32.totalorder %s71, %s73
      %p77 = scmp.eq.s32.totalorder %s25, 0
      %p78 = por %p76, %p77
      %p79 = scmp.ne.s32.totalorder %s71, %s73
      %p80 = scmp.eq.s32.totalorder %s30, 1
      %p81 = por %p79, %p80
      %p82 = scmp.ne.s32.totalorder %s73, %s74
      %p83 = scmp.eq.s32.totalorder %s30, 0
      %p84 = por %p82, %p83
      %p85 = scmp.ne.s32.totalorder %s73, %s74
      %p86 = scmp.eq.s32.totalorder %s31, 1
      %p87 = por %p85, %p86
      %p89 = scmp.ne.s32.totalorder %s74, %s88
      %p90 = scmp.eq.s32.totalorder %s31, 0
      %p91 = por %p89, %p90
      %s92 = ssub.s32 %s33, %s40
      %p93 = scmp.eq.s32.totalorder %s92, 0
      %s95 = sadd.s32 %s94, 1
      %s96 = scalar_select %p93, %s94, %s95
      %p99 = pneg %p93
      %p100 = scmp.eq.s32.totalorder %s25, 1
      %p101 = por %p99, %p100
      %p102 = scmp.ne.s32.totalorder %s94, %s97
      %p103 = scmp.eq.s32.totalorder %s25, 0
      %p104 = por %p102, %p103
      %p105 = scmp.ne.s32.totalorder %s94, %s97
      %p106 = scmp.eq.s32.totalorder %s30, 1
      %p107 = por %p105, %p106
      %p108 = scmp.ne.s32.totalorder %s97, %s98
      %p109 = scmp.eq.s32.totalorder %s30, 0
      %p110 = por %p108, %p109
      %p111 = scmp.ne.s32.totalorder %s97, %s98
      %p112 = scmp.eq.s32.totalorder %s31, 1
      %p113 = por %p111, %p112
      %p115 = scmp.ne.s32.totalorder %s98, %s114
      %p116 = scmp.eq.s32.totalorder %s31, 0
      %p117 = por %p115, %p116
      %s118 = ssub.s32 %s33, %s40
      %p119 = scmp.eq.s32.totalorder %s118, 0
      %s121 = sadd.s32 %s120, 1
      %s122 = scalar_select %p119, %s120, %s121
      %p125 = pneg %p119
      %p126 = scmp.eq.s32.totalorder %s25, 1
      %p127 = por %p125, %p126
      %p128 = scmp.ne.s32.totalorder %s120, %s123
      %p129 = scmp.eq.s32.totalorder %s25, 0
      %p130 = por %p128, %p129
      %p131 = scmp.ne.s32.totalorder %s120, %s123
      %p132 = scmp.eq.s32.totalorder %s30, 1
      %p133 = por %p131, %p132
      %p134 = scmp.ne.s32.totalorder %s123, %s124
      %p135 = scmp.eq.s32.totalorder %s30, 0
      %p136 = por %p134, %p135
      %p137 = scmp.ne.s32.totalorder %s123, %s124
      %p138 = scmp.eq.s32.totalorder %s31, 1
      %p139 = por %p137, %p138
      %p141 = scmp.ne.s32.totalorder %s124, %s140
      %p142 = scmp.eq.s32.totalorder %s31, 0
      %p143 = por %p141, %p142
      %s144 = ssub.s32 %s33, %s40
      %p145 = scmp.eq.s32.totalorder %s144, 0
      %s147 = sadd.s32 %s146, 1
      %s148 = scalar_select %p145, %s146, %s147
      %p151 = pneg %p145
      %p152 = scmp.eq.s32.totalorder %s25, 1
      %p153 = por %p151, %p152
      %p154 = scmp.ne.s32.totalorder %s146, %s149
      %p155 = scmp.eq.s32.totalorder %s25, 0
      %p156 = por %p154, %p155
      %p157 = scmp.ne.s32.totalorder %s146, %s149
      %p158 = scmp.eq.s32.totalorder %s30, 1
      %p159 = por %p157, %p158
      %p160 = scmp.ne.s32.totalorder %s149, %s150
      %p161 = scmp.eq.s32.totalorder %s30, 0
      %p162 = por %p160, %p161
      %p163 = scmp.ne.s32.totalorder %s149, %s150
      %p164 = scmp.eq.s32.totalorder %s31, 1
      %p165 = por %p163, %p164
      %p167 = scmp.ne.s32.totalorder %s150, %s166
      %p168 = scmp.eq.s32.totalorder %s31, 0
      %p169 = por %p167, %p168
      %s170 = ssub.s32 %s33, %s40
      %p171 = scmp.eq.s32.totalorder %s170, 0
      %s173 = sadd.s32 %s172, 1
      %s174 = scalar_select %p171, %s172, %s173
      %p177 = pneg %p171
      %p178 = scmp.eq.s32.totalorder %s25, 1
      %p179 = por %p177, %p178
      %p180 = scmp.ne.s32.totalorder %s172, %s175
      %p181 = scmp.eq.s32.totalorder %s25, 0
      %p182 = por %p180, %p181
      %p183 = scmp.ne.s32.totalorder %s172, %s175
      %p184 = scmp.eq.s32.totalorder %s30, 1
      %p185 = por %p183, %p184
      %p186 = scmp.ne.s32.totalorder %s175, %s176
      %p187 = scmp.eq.s32.totalorder %s30, 0
      %p188 = por %p186, %p187
      %p189 = scmp.ne.s32.totalorder %s175, %s176
      %p190 = scmp.eq.s32.totalorder %s31, 1
      %p191 = por %p189, %p190
      %p193 = scmp.ne.s32.totalorder %s176, %s192
      %p194 = scmp.eq.s32.totalorder %s31, 0
      %p195 = por %p193, %p194
      %s196 = ssub.s32 %s33, %s40
      %p197 = scmp.eq.s32.totalorder %s196, 0
      %s199 = sadd.s32 %s198, 1
      %s200 = scalar_select %p197, %s198, %s199
      %p203 = pneg %p197
      %p204 = scmp.eq.s32.totalorder %s25, 1
      %p205 = por %p203, %p204
      %p206 = scmp.ne.s32.totalorder %s198, %s201
      %p207 = scmp.eq.s32.totalorder %s25, 0
      %p208 = por %p206, %p207
      %p209 = scmp.ne.s32.totalorder %s198, %s201
      %p210 = scmp.eq.s32.totalorder %s30, 1
      %p211 = por %p209, %p210
      %p212 = scmp.ne.s32.totalorder %s201, %s202
      %p213 = scmp.eq.s32.totalorder %s30, 0
      %p214 = por %p212, %p213
      %p215 = scmp.ne.s32.totalorder %s201, %s202
      %p216 = scmp.eq.s32.totalorder %s31, 1
      %p217 = por %p215, %p216
      %p219 = scmp.ne.s32.totalorder %s202, %s218
      %p220 = scmp.eq.s32.totalorder %s31, 0
      %p221 = por %p219, %p220
      %s222 = ssub.s32 %s33, %s40
      %p223 = scmp.eq.s32.totalorder %s222, 0
      %s225 = sadd.s32 %s224, 1
      %s226 = scalar_select %p223, %s224, %s225
      %p229 = pneg %p223
      %p230 = scmp.eq.s32.totalorder %s25, 1
      %p231 = por %p229, %p230
      %p232 = scmp.ne.s32.totalorder %s224, %s227
      %p233 = scmp.eq.s32.totalorder %s25, 0
      %p234 = por %p232, %p233
      %p235 = scmp.ne.s32.totalorder %s224, %s227
      %p236 = scmp.eq.s32.totalorder %s30, 1
      %p237 = por %p235, %p236
      %p238 = scmp.ne.s32.totalorder %s227, %s228
      %p239 = scmp.eq.s32.totalorder %s30, 0
      %p240 = por %p238, %p239
      %p241 = scmp.ne.s32.totalorder %s227, %s228
      %p242 = scmp.eq.s32.totalorder %s31, 1
      %p243 = por %p241, %p242
      %p245 = scmp.ne.s32.totalorder %s228, %s244
      %p246 = scmp.eq.s32.totalorder %s31, 0
      %p247 = por %p245, %p246
      %s248 = ssub.s32 %s33, %s40
      %p249 = scmp.eq.s32.totalorder %s248, 0
      %s251 = sadd.s32 %s250, 1
      %s252 = scalar_select %p249, %s250, %s251
      %p255 = pneg %p249
      %p256 = scmp.eq.s32.totalorder %s25, 1
      %p257 = por %p255, %p256
      %p258 = scmp.ne.s32.totalorder %s250, %s253
      %p259 = scmp.eq.s32.totalorder %s25, 0
      %p260 = por %p258, %p259
      %p261 = scmp.ne.s32.totalorder %s250, %s253
      %p262 = scmp.eq.s32.totalorder %s30, 1
      %p263 = por %p261, %p262
      %p264 = scmp.ne.s32.totalorder %s253, %s254
      %p265 = scmp.eq.s32.totalorder %s30, 0
      %p266 = por %p264, %p265
      %p267 = scmp.ne.s32.totalorder %s253, %s254
      %p268 = scmp.eq.s32.totalorder %s31, 1
      %p269 = por %p267, %p268
      %p271 = scmp.ne.s32.totalorder %s254, %s270
      %p272 = scmp.eq.s32.totalorder %s31, 0
      %p273 = por %p271, %p272
      %s274 = ssub.s32 %s33, %s40
      %p275 = scmp.eq.s32.totalorder %s274, 0
      %s277 = sadd.s32 %s276, 1
      %s278 = scalar_select %p275, %s276, %s277
      %p281 = pneg %p275
      %p282 = scmp.eq.s32.totalorder %s25, 1
      %p283 = por %p281, %p282
      %p284 = scmp.ne.s32.totalorder %s276, %s279
      %p285 = scmp.eq.s32.totalorder %s25, 0
      %p286 = por %p284, %p285
      %p287 = scmp.ne.s32.totalorder %s276, %s279
      %p288 = scmp.eq.s32.totalorder %s30, 1
      %p289 = por %p287, %p288
      %p290 = scmp.ne.s32.totalorder %s279, %s280
      %p291 = scmp.eq.s32.totalorder %s30, 0
      %p292 = por %p290, %p291
      %p293 = scmp.ne.s32.totalorder %s279, %s280
      %p294 = scmp.eq.s32.totalorder %s31, 1
      %p295 = por %p293, %p294
      %p297 = scmp.ne.s32.totalorder %s280, %s296
      %p298 = scmp.eq.s32.totalorder %s31, 0
      %p299 = por %p297, %p298
      %s300 = ssub.s32 %s33, %s40
      %p301 = scmp.eq.s32.totalorder %s300, 0
      %s303 = sadd.s32 %s302, 1
      %s304 = scalar_select %p301, %s302, %s303
      %p307 = pneg %p301
      %p308 = scmp.eq.s32.totalorder %s25, 1
      %p309 = por %p307, %p308
      %p310 = scmp.ne.s32.totalorder %s302, %s305
      %p311 = scmp.eq.s32.totalorder %s25, 0
      %p312 = por %p310, %p311
      %p313 = scmp.ne.s32.totalorder %s302, %s305
      %p314 = scmp.eq.s32.totalorder %s30, 1
      %p315 = por %p313, %p314
      %p316 = scmp.ne.s32.totalorder %s305, %s306
      %p317 = scmp.eq.s32.totalorder %s30, 0
      %p318 = por %p316, %p317
      %p319 = scmp.ne.s32.totalorder %s305, %s306
      %p320 = scmp.eq.s32.totalorder %s31, 1
      %p321 = por %p319, %p320
      %p323 = scmp.ne.s32.totalorder %s306, %s322
      %p324 = scmp.eq.s32.totalorder %s31, 0
      %p325 = por %p323, %p324
      %s326 = ssub.s32 %s33, %s40
      %p327 = scmp.eq.s32.totalorder %s326, 0
      %s329 = sadd.s32 %s328, 1
      %s330 = scalar_select %p327, %s328, %s329
      %p333 = pneg %p327
      %p334 = scmp.eq.s32.totalorder %s25, 1
      %p335 = por %p333, %p334
      %p336 = scmp.ne.s32.totalorder %s328, %s331
      %p337 = scmp.eq.s32.totalorder %s25, 0
      %p338 = por %p336, %p337
      %p339 = scmp.ne.s32.totalorder %s328, %s331
      %p340 = scmp.eq.s32.totalorder %s30, 1
      %p341 = por %p339, %p340
      %p342 = scmp.ne.s32.totalorder %s331, %s332
      %p343 = scmp.eq.s32.totalorder %s30, 0
      %p344 = por %p342, %p343
      %p345 = scmp.ne.s32.totalorder %s331, %s332
      %p346 = scmp.eq.s32.totalorder %s31, 1
      %p347 = por %p345, %p346
      %p349 = scmp.ne.s32.totalorder %s332, %s348
      %p350 = scmp.eq.s32.totalorder %s31, 0
      %p351 = por %p349, %p350
      %s352 = ssub.s32 %s33, %s40
      %p353 = scmp.eq.s32.totalorder %s352, 0
      %s355 = sadd.s32 %s354, 1
      %s356 = scalar_select %p353, %s354, %s355
      %p359 = pneg %p353
      %p360 = scmp.eq.s32.totalorder %s25, 1
      %p361 = por %p359, %p360
      %p362 = scmp.ne.s32.totalorder %s354, %s357
      %p363 = scmp.eq.s32.totalorder %s25, 0
      %p364 = por %p362, %p363
      %p365 = scmp.ne.s32.totalorder %s354, %s357
      %p366 = scmp.eq.s32.totalorder %s30, 1
      %p367 = por %p365, %p366
      %p368 = scmp.ne.s32.totalorder %s357, %s358
      %p369 = scmp.eq.s32.totalorder %s30, 0
      %p370 = por %p368, %p369
      %p371 = scmp.ne.s32.totalorder %s357, %s358
      %p372 = scmp.eq.s32.totalorder %s31, 1
      %p373 = por %p371, %p372
      %p375 = scmp.ne.s32.totalorder %s358, %s374
      %p376 = scmp.eq.s32.totalorder %s31, 0
      %p377 = por %p375, %p376
      %s378 = ssub.s32 %s33, %s40
      %p379 = scmp.eq.s32.totalorder %s378, 0
      %s381 = sadd.s32 %s380, 1
      %s382 = scalar_select %p379, %s380, %s381
      %p385 = pneg %p379
      %p386 = scmp.eq.s32.totalorder %s25, 1
      %p387 = por %p385, %p386
      %p388 = scmp.ne.s32.totalorder %s380, %s383
      %p389 = scmp.eq.s32.totalorder %s25, 0
      %p390 = por %p388, %p389
      %p391 = scmp.ne.s32.totalorder %s380, %s383
      %p392 = scmp.eq.s32.totalorder %s30, 1
      %p393 = por %p391, %p392
      %p394 = scmp.ne.s32.totalorder %s383, %s384
      %p395 = scmp.eq.s32.totalorder %s30, 0
      %p396 = por %p394, %p395
      %p397 = scmp.ne.s32.totalorder %s383, %s384
      %p398 = scmp.eq.s32.totalorder %s31, 1
      %p399 = por %p397, %p398
      %p401 = scmp.ne.s32.totalorder %s384, %s400
      %p402 = scmp.eq.s32.totalorder %s31, 0
      %p403 = por %p401, %p402
      %s405 = sadd.s32 %s404, 1
      %p408 = scmp.eq.s32.totalorder %s25, 1
      %p409 = scmp.ne.s32.totalorder %s404, %s406
      %p410 = scmp.eq.s32.totalorder %s25, 0
      %p411 = por %p409, %p410
      %p412 = scmp.ne.s32.totalorder %s404, %s406
      %p413 = scmp.eq.s32.totalorder %s30, 1
      %p414 = por %p412, %p413
      %p415 = scmp.ne.s32.totalorder %s406, %s407
      %p416 = scmp.eq.s32.totalorder %s30, 0
      %p417 = por %p415, %p416
      %p418 = scmp.ne.s32.totalorder %s406, %s407
      %p419 = scmp.eq.s32.totalorder %s31, 1
      %p420 = por %p418, %p419
      %p422 = scmp.ne.s32.totalorder %s407, %s421
      %p423 = scmp.eq.s32.totalorder %s31, 0
      %p424 = por %p422, %p423
      %s426 = sadd.s32 %s425, 1
      %p429 = scmp.eq.s32.totalorder %s25, 1
      %p430 = scmp.ne.s32.totalorder %s425, %s427
      %p431 = scmp.eq.s32.totalorder %s25, 0
      %p432 = por %p430, %p431
      %p433 = scmp.ne.s32.totalorder %s425, %s427
      %p434 = scmp.eq.s32.totalorder %s30, 1
      %p435 = por %p433, %p434
      %p436 = scmp.ne.s32.totalorder %s427, %s428
      %p437 = scmp.eq.s32.totalorder %s30, 0
      %p438 = por %p436, %p437
      %p439 = scmp.ne.s32.totalorder %s427, %s428
      %p440 = scmp.eq.s32.totalorder %s31, 1
      %p441 = por %p439, %p440
      %p443 = scmp.ne.s32.totalorder %s428, %s442
      %p444 = scmp.eq.s32.totalorder %s31, 0
      %p445 = por %p443, %p444
      %s446 = ssub.s32 %s32, %s44
      %p447 = scmp.eq.s32.totalorder %s446, 0
      %s449 = sadd.s32 %s448, 1
      %s450 = scalar_select %p447, %s448, %s449
      %p453 = pneg %p447
      %p454 = scmp.eq.s32.totalorder %s25, 1
      %p455 = por %p453, %p454
      %p456 = scmp.ne.s32.totalorder %s448, %s451
      %p457 = scmp.eq.s32.totalorder %s25, 0
      %p458 = por %p456, %p457
      %p459 = scmp.ne.s32.totalorder %s448, %s451
      %p460 = scmp.eq.s32.totalorder %s30, 1
      %p461 = por %p459, %p460
      %p462 = scmp.ne.s32.totalorder %s451, %s452
      %p463 = scmp.eq.s32.totalorder %s30, 0
      %p464 = por %p462, %p463
      %p465 = scmp.ne.s32.totalorder %s451, %s452
      %p466 = scmp.eq.s32.totalorder %s31, 1
      %p467 = por %p465, %p466
      %p469 = scmp.ne.s32.totalorder %s452, %s468
      %p470 = scmp.eq.s32.totalorder %s31, 0
      %p471 = por %p469, %p470
      %p472 = scmp.le.s32.totalorder 1, %s25
      %p473 = scmp.lt.s32.totalorder %s25, 3
      %p474 = pnand %p472, %p473
      %p475 = pneg %p474
      // Predicated region
      $region9: #{tpu_custom_call.1} parent=5 // pred_check
        _
      $region10: #{tpu_custom_call.1} parent=5 // pred_check_branch
        %477 = sbr.rel (%p474) target = $region12
      $region11: #{tpu_custom_call.1} parent=5 // pred_region
        %s478 = ssub.s32 %s25, 1
        // Predicated region
        $region13: #{tpu_custom_call.1} parent=11 // pred_check
          %p479 = pneg %p63
        $region14: #{tpu_custom_call.1} parent=11 // pred_check_branch
          %481 = sbr.rel (%p479) target = $region16
        $region15: #{tpu_custom_call.1} parent=11 // pred_region
          %s482 = smul.u32 2, %s34
          %s484 = ssub.s32 4096, 4096
          %485 = vsyncadd [#allocation4], %s484
          %s486 = smul.addr %s482, 16
          %s487 = smul.addr %s486, 128
          %s488 = scalar_lea.hbm %s0, %s487
          %s489 = sshll.u32 [#allocation3], 4
          %s490 = int_to_ptr.vmem [resolvable:$true] %s489
          %495 = dma.hbm_to_vmem [thread:$0]  %s488, 4096, %s490, [#allocation4], 128, 128, 8
        $region16: #{tpu_custom_call.1} parent=11 // pred_fallthru
          _
        // Predicated region
        $region17: #{tpu_custom_call.1} parent=11 // pred_check
          %p496 = pneg %p84
        $region18: #{tpu_custom_call.1} parent=11 // pred_check_branch
          %498 = sbr.rel (%p496) target = $region20
        $region19: #{tpu_custom_call.1} parent=11 // pred_region
          %s500 = ssub.s32 2048, 2048
          %501 = vsyncadd [#allocation7], %s500
          %s502 = sshll.u32 [#allocation6], 4
          %s503 = int_to_ptr.vmem [resolvable:$true] %s502
          %508 = dma.hbm_to_vmem [thread:$0]  %s1, 2048, %s503, [#allocation7], 128, 128, 8
        $region20: #{tpu_custom_call.1} parent=11 // pred_fallthru
          _
        // Predicated region
        $region21: #{tpu_custom_call.1} parent=11 // pred_check
          %p509 = pneg %p417
        $region22: #{tpu_custom_call.1} parent=11 // pred_check_branch
          %511 = sbr.rel (%p509) target = $region24
        $region23: #{tpu_custom_call.1} parent=11 // pred_region
          _
        $region24: #{tpu_custom_call.1} parent=11 // pred_fallthru
          _
        // Predicated region
        $region25: #{tpu_custom_call.1} parent=11 // pred_check
          %p512 = pneg %p438
        $region26: #{tpu_custom_call.1} parent=11 // pred_check_branch
          %514 = sbr.rel (%p512) target = $region28
        $region27: #{tpu_custom_call.1} parent=11 // pred_region
          _
        $region28: #{tpu_custom_call.1} parent=11 // pred_fallthru
          _
      $region12: #{tpu_custom_call.1} parent=5 // pred_fallthru
        _
      %p515 = scmp.lt.s32.totalorder %s25, 2
      // Predicated region
      $region29: #{tpu_custom_call.1} parent=5 // pred_check
        %p516 = pneg %p515
      $region30: #{tpu_custom_call.1} parent=5 // pred_check_branch
        %518 = sbr.rel (%p516) target = $region32
      $region31: #{tpu_custom_call.1} parent=5 // pred_region
        // Predicated region
        $region33: #{tpu_custom_call.1} parent=31 // pred_check
          %p519 = pneg %p104
        $region34: #{tpu_custom_call.1} parent=31 // pred_check_branch
          %521 = sbr.rel (%p519) target = $region36
        $region35: #{tpu_custom_call.1} parent=31 // pred_region
          %s522 = sand.u32 %s25, 1
          %s523 = scalar_lea.sflag [#allocation4], %s522
          %s524 = sand.u32 %s94, 1
          %s525 = scalar_lea.vmem [#allocation8], %s524
          %s527 = ssub.s32 16, 16
          %528 = vsyncadd %s523, %s527
          %s529 = smul.addr %s33, 16
          %s530 = scalar_lea.hbm %s2, %s529
          %s532 = sshll.u32 %s525, 4
          %s533 = int_to_ptr.vmem [resolvable:$true] %s532
          %535 = dma.hbm_to_vmem [thread:$0]  %s530, 16, %s533, %s523
        $region36: #{tpu_custom_call.1} parent=31 // pred_fallthru
          _
        // Predicated region
        $region37: #{tpu_custom_call.1} parent=31 // pred_check
          %p536 = pneg %p130
        $region38: #{tpu_custom_call.1} parent=31 // pred_check_branch
          %538 = sbr.rel (%p536) target = $region40
        $region39: #{tpu_custom_call.1} parent=31 // pred_region
          %s539 = sand.u32 %s25, 1
          %s540 = scalar_lea.sflag [#allocation4], %s539
          %s541 = sand.u32 %s120, 1
          %s542 = scalar_lea.vmem [#allocation9], %s541
          %s544 = ssub.s32 16, 16
          %545 = vsyncadd %s540, %s544
          %s546 = smul.addr %s33, 16
          %s547 = scalar_lea.hbm %s3, %s546
          %s549 = sshll.u32 %s542, 4
          %s550 = int_to_ptr.vmem [resolvable:$true] %s549
          %552 = dma.hbm_to_vmem [thread:$0]  %s547, 16, %s550, %s540
        $region40: #{tpu_custom_call.1} parent=31 // pred_fallthru
          _
        // Predicated region
        $region41: #{tpu_custom_call.1} parent=31 // pred_check
          %p553 = pneg %p156
        $region42: #{tpu_custom_call.1} parent=31 // pred_check_branch
          %555 = sbr.rel (%p553) target = $region44
        $region43: #{tpu_custom_call.1} parent=31 // pred_region
          %s556 = sand.u32 %s25, 1
          %s557 = scalar_lea.sflag [#allocation4], %s556
          %s558 = sand.u32 %s146, 1
          %s559 = smul.addr %s558, 192
          %s560 = scalar_lea.vmem [#allocation10], %s559
          %s562 = ssub.s32 3072, 3072
          %563 = vsyncadd %s557, %s562
          %s564 = smul.addr %s33, 48
          %s565 = smul.addr %s564, 64
          %s566 = scalar_lea.hbm %s4, %s565
          %s567 = sshll.u32 %s560, 4
          %s568 = int_to_ptr.vmem [resolvable:$true] %s567
          %573 = dma.hbm_to_vmem [thread:$0]  %s566, 3072, %s568, %s557, 192, 192, 12
        $region44: #{tpu_custom_call.1} parent=31 // pred_fallthru
          _
        // Predicated region
        $region45: #{tpu_custom_call.1} parent=31 // pred_check
          %p574 = pneg %p182
        $region46: #{tpu_custom_call.1} parent=31 // pred_check_branch
          %576 = sbr.rel (%p574) target = $region48
        $region47: #{tpu_custom_call.1} parent=31 // pred_region
          %p577 = scmp.lt.s32.totalorder %s33, 1
          %s578 = scalar_select %p577, %s33, 1
          %s579 = smul.addr %s578, 3
          %s580 = scalar_lea.vmem %s5, %s579
        $region48: #{tpu_custom_call.1} parent=31 // pred_fallthru
          _
        // Predicated region
        $region49: #{tpu_custom_call.1} parent=31 // pred_check
          %p581 = pneg %p208
        $region50: #{tpu_custom_call.1} parent=31 // pred_check_branch
          %583 = sbr.rel (%p581) target = $region52
        $region51: #{tpu_custom_call.1} parent=31 // pred_region
          %s584 = sand.u32 %s25, 1
          %s585 = scalar_lea.sflag [#allocation4], %s584
          %s586 = sand.u32 %s198, 1
          %s587 = smul.addr %s586, 64
          %s588 = scalar_lea.vmem [#allocation11], %s587
          %s590 = ssub.s32 1024, 1024
          %591 = vsyncadd %s585, %s590
          %s592 = smul.addr %s33, 16
          %s593 = smul.addr %s592, 64
          %s594 = scalar_lea.hbm %s6, %s593
          %s595 = sshll.u32 %s588, 4
          %s596 = int_to_ptr.vmem [resolvable:$true] %s595
          %601 = dma.hbm_to_vmem [thread:$0]  %s594, 1024, %s596, %s585, 64, 64, 4
        $region52: #{tpu_custom_call.1} parent=31 // pred_fallthru
          _
        // Predicated region
        $region53: #{tpu_custom_call.1} parent=31 // pred_check
          %p602 = pneg %p234
        $region54: #{tpu_custom_call.1} parent=31 // pred_check_branch
          %604 = sbr.rel (%p602) target = $region56
        $region55: #{tpu_custom_call.1} parent=31 // pred_region
          %p605 = scmp.lt.s32.totalorder %s33, 1
          %s606 = scalar_select %p605, %s33, 1
          %s607 = scalar_lea.vmem %s7, %s606
        $region56: #{tpu_custom_call.1} parent=31 // pred_fallthru
          _
        // Predicated region
        $region57: #{tpu_custom_call.1} parent=31 // pred_check
          %p608 = pneg %p260
        $region58: #{tpu_custom_call.1} parent=31 // pred_check_branch
          %610 = sbr.rel (%p608) target = $region60
        $region59: #{tpu_custom_call.1} parent=31 // pred_region
          %p611 = scmp.lt.s32.totalorder %s33, 1
          %s612 = scalar_select %p611, %s33, 1
          %s613 = scalar_lea.vmem %s8, %s612
        $region60: #{tpu_custom_call.1} parent=31 // pred_fallthru
          _
        // Predicated region
        $region61: #{tpu_custom_call.1} parent=31 // pred_check
          %p614 = pneg %p286
        $region62: #{tpu_custom_call.1} parent=31 // pred_check_branch
          %616 = sbr.rel (%p614) target = $region64
        $region63: #{tpu_custom_call.1} parent=31 // pred_region
          %p617 = scmp.lt.s32.totalorder %s33, 1
          %s618 = scalar_select %p617, %s33, 1
          %s619 = scalar_lea.vmem %s9, %s618
        $region64: #{tpu_custom_call.1} parent=31 // pred_fallthru
          _
        // Predicated region
        $region65: #{tpu_custom_call.1} parent=31 // pred_check
          %p620 = pneg %p312
        $region66: #{tpu_custom_call.1} parent=31 // pred_check_branch
          %622 = sbr.rel (%p620) target = $region68
        $region67: #{tpu_custom_call.1} parent=31 // pred_region
          %s623 = sand.u32 %s25, 1
          %s624 = scalar_lea.sflag [#allocation4], %s623
          %s625 = sand.u32 %s302, 1
          %s626 = smul.addr %s625, 128
          %s627 = scalar_lea.vmem [#allocation12], %s626
          %s629 = ssub.s32 2048, 2048
          %630 = vsyncadd %s624, %s629
          %s631 = smul.addr %s33, 32
          %s632 = smul.addr %s631, 64
          %s633 = scalar_lea.hbm %s10, %s632
          %s634 = sshll.u32 %s627, 4
          %s635 = int_to_ptr.vmem [resolvable:$true] %s634
          %640 = dma.hbm_to_vmem [thread:$0]  %s633, 2048, %s635, %s624, 128, 128, 8
        $region68: #{tpu_custom_call.1} parent=31 // pred_fallthru
          _
        // Predicated region
        $region69: #{tpu_custom_call.1} parent=31 // pred_check
          %p641 = pneg %p338
        $region70: #{tpu_custom_call.1} parent=31 // pred_check_branch
          %643 = sbr.rel (%p641) target = $region72
        $region71: #{tpu_custom_call.1} parent=31 // pred_region
          %p644 = scmp.lt.s32.totalorder %s33, 1
          %s645 = scalar_select %p644, %s33, 1
          %s646 = smul.addr %s645, 2
          %s647 = scalar_lea.vmem %s11, %s646
        $region72: #{tpu_custom_call.1} parent=31 // pred_fallthru
          _
        // Predicated region
        $region73: #{tpu_custom_call.1} parent=31 // pred_check
          %p648 = pneg %p364
        $region74: #{tpu_custom_call.1} parent=31 // pred_check_branch
          %650 = sbr.rel (%p648) target = $region76
        $region75: #{tpu_custom_call.1} parent=31 // pred_region
          %s651 = sand.u32 %s25, 1
          %s652 = scalar_lea.sflag [#allocation4], %s651
          %s653 = sand.u32 %s354, 1
          %s654 = smul.addr %s653, 128
          %s655 = scalar_lea.vmem [#allocation13], %s654
          %s657 = ssub.s32 2048, 2048
          %658 = vsyncadd %s652, %s657
          %s659 = smul.addr %s33, 32
          %s660 = smul.addr %s659, 64
          %s661 = scalar_lea.hbm %s12, %s660
          %s662 = sshll.u32 %s655, 4
          %s663 = int_to_ptr.vmem [resolvable:$true] %s662
          %668 = dma.hbm_to_vmem [thread:$0]  %s661, 2048, %s663, %s652, 64, 64, 4
        $region76: #{tpu_custom_call.1} parent=31 // pred_fallthru
          _
        // Predicated region
        $region77: #{tpu_custom_call.1} parent=31 // pred_check
          %p669 = pneg %p390
        $region78: #{tpu_custom_call.1} parent=31 // pred_check_branch
          %671 = sbr.rel (%p669) target = $region80
        $region79: #{tpu_custom_call.1} parent=31 // pred_region
          %p672 = scmp.lt.s32.totalorder %s33, 1
          %s673 = scalar_select %p672, %s33, 1
          %s674 = scalar_lea.vmem %s13, %s673
        $region80: #{tpu_custom_call.1} parent=31 // pred_fallthru
          _
      $region32: #{tpu_custom_call.1} parent=5 // pred_fallthru
        _
      %p675 = scmp.le.s32.totalorder 1, %s25
      %p676 = scmp.lt.s32.totalorder %s25, 3
      %p677 = pnand %p675, %p676
      %p678 = pneg %p677
      // Predicated region
      $region81: #{tpu_custom_call.1} parent=5 // pred_check
        _
      $region82: #{tpu_custom_call.1} parent=5 // pred_check_branch
        %680 = sbr.rel (%p677) target = $region84
      $region83: #{tpu_custom_call.1} parent=5 // pred_region
        %s681 = ssub.s32 %s25, 1
        // Predicated region
        $region85: #{tpu_custom_call.1} parent=83 // pred_check
          %p682 = pneg %p63
        $region86: #{tpu_custom_call.1} parent=83 // pred_check_branch
          %684 = sbr.rel (%p682) target = $region88
        $region87: #{tpu_custom_call.1} parent=83 // pred_region
          %685 = dma.done [#allocation4], 4096
        $region88: #{tpu_custom_call.1} parent=83 // pred_fallthru
          _
        // Predicated region
        $region89: #{tpu_custom_call.1} parent=83 // pred_check
          %p686 = pneg %p84
        $region90: #{tpu_custom_call.1} parent=83 // pred_check_branch
          %688 = sbr.rel (%p686) target = $region92
        $region91: #{tpu_custom_call.1} parent=83 // pred_region
          %689 = dma.done [#allocation7], 2048
        $region92: #{tpu_custom_call.1} parent=83 // pred_fallthru
          _
        %s690 = sand.u32 %s30, 1
        %s691 = scalar_lea.sflag [#allocation4], %s690
        %s692 = sand.u32 %s97, 1
        %s693 = scalar_lea.vmem [#allocation8], %s692
        // Predicated region
        $region93: #{tpu_custom_call.1} parent=83 // pred_check
          %p694 = pneg %p110
        $region94: #{tpu_custom_call.1} parent=83 // pred_check_branch
          %696 = sbr.rel (%p694) target = $region96
        $region95: #{tpu_custom_call.1} parent=83 // pred_region
          %697 = dma.done %s691, 16
        $region96: #{tpu_custom_call.1} parent=83 // pred_fallthru
          _
        %s698 = sand.u32 %s30, 1
        %s699 = scalar_lea.sflag [#allocation4], %s698
        %s700 = sand.u32 %s123, 1
        %s701 = scalar_lea.vmem [#allocation9], %s700
        // Predicated region
        $region97: #{tpu_custom_call.1} parent=83 // pred_check
          %p702 = pneg %p136
        $region98: #{tpu_custom_call.1} parent=83 // pred_check_branch
          %704 = sbr.rel (%p702) target = $region100
        $region99: #{tpu_custom_call.1} parent=83 // pred_region
          %705 = dma.done %s699, 16
        $region100: #{tpu_custom_call.1} parent=83 // pred_fallthru
          _
        %s706 = sand.u32 %s30, 1
        %s707 = scalar_lea.sflag [#allocation4], %s706
        %s708 = sand.u32 %s149, 1
        %s709 = smul.addr %s708, 192
        %s710 = scalar_lea.vmem [#allocation10], %s709
        // Predicated region
        $region101: #{tpu_custom_call.1} parent=83 // pred_check
          %p711 = pneg %p162
        $region102: #{tpu_custom_call.1} parent=83 // pred_check_branch
          %713 = sbr.rel (%p711) target = $region104
        $region103: #{tpu_custom_call.1} parent=83 // pred_region
          %714 = dma.done %s707, 3072
        $region104: #{tpu_custom_call.1} parent=83 // pred_fallthru
          _
        %s715 = sand.u32 %s30, 1
        %s716 = scalar_lea.sflag [#allocation4], %s715
        %s717 = sand.u32 %s201, 1
        %s718 = smul.addr %s717, 64
        %s719 = scalar_lea.vmem [#allocation11], %s718
        // Predicated region
        $region105: #{tpu_custom_call.1} parent=83 // pred_check
          %p720 = pneg %p214
        $region106: #{tpu_custom_call.1} parent=83 // pred_check_branch
          %722 = sbr.rel (%p720) target = $region108
        $region107: #{tpu_custom_call.1} parent=83 // pred_region
          %723 = dma.done %s716, 1024
        $region108: #{tpu_custom_call.1} parent=83 // pred_fallthru
          _
        %s724 = sand.u32 %s30, 1
        %s725 = scalar_lea.sflag [#allocation4], %s724
        %s726 = sand.u32 %s305, 1
        %s727 = smul.addr %s726, 128
        %s728 = scalar_lea.vmem [#allocation12], %s727
        // Predicated region
        $region109: #{tpu_custom_call.1} parent=83 // pred_check
          %p729 = pneg %p318
        $region110: #{tpu_custom_call.1} parent=83 // pred_check_branch
          %731 = sbr.rel (%p729) target = $region112
        $region111: #{tpu_custom_call.1} parent=83 // pred_region
          %732 = dma.done %s725, 2048
        $region112: #{tpu_custom_call.1} parent=83 // pred_fallthru
          _
        %s733 = sand.u32 %s30, 1
        %s734 = scalar_lea.sflag [#allocation4], %s733
        %s735 = sand.u32 %s357, 1
        %s736 = smul.addr %s735, 128
        %s737 = scalar_lea.vmem [#allocation13], %s736
        // Predicated region
        $region113: #{tpu_custom_call.1} parent=83 // pred_check
          %p738 = pneg %p370
        $region114: #{tpu_custom_call.1} parent=83 // pred_check_branch
          %740 = sbr.rel (%p738) target = $region116
        $region115: #{tpu_custom_call.1} parent=83 // pred_region
          %741 = dma.done %s734, 2048
        $region116: #{tpu_custom_call.1} parent=83 // pred_fallthru
          _
        %p742 = pneg %p63
        %p743 = pneg %p60
        %p744 = pneg %p84
        %p745 = pneg %p81
        %s746 = sand.u32 %s30, 1
        %s747 = scalar_lea.sflag [#allocation4], %s746
        %s748 = sand.u32 %s97, 1
        %s749 = scalar_lea.vmem [#allocation8], %s748
        %p750 = pneg %p110
        %p751 = pneg %p107
        %s752 = sand.u32 %s30, 1
        %s753 = scalar_lea.sflag [#allocation4], %s752
        %s754 = sand.u32 %s123, 1
        %s755 = scalar_lea.vmem [#allocation9], %s754
        %p756 = pneg %p136
        %p757 = pneg %p133
        %s758 = sand.u32 %s30, 1
        %s759 = scalar_lea.sflag [#allocation4], %s758
        %s760 = sand.u32 %s149, 1
        %s761 = smul.addr %s760, 192
        %s762 = scalar_lea.vmem [#allocation10], %s761
        %p763 = pneg %p162
        %p764 = pneg %p159
        %p765 = scmp.lt.s32.totalorder %s35, 1
        %s766 = scalar_select %p765, %s35, 1
        %s767 = smul.addr %s766, 3
        %s768 = scalar_lea.vmem %s5, %s767
        %p769 = pneg %p188
        %p770 = pneg %p185
        %s771 = sand.u32 %s30, 1
        %s772 = scalar_lea.sflag [#allocation4], %s771
        %s773 = sand.u32 %s201, 1
        %s774 = smul.addr %s773, 64
        %s775 = scalar_lea.vmem [#allocation11], %s774
        %p776 = pneg %p214
        %p777 = pneg %p211
        %p778 = scmp.lt.s32.totalorder %s35, 1
        %s779 = scalar_select %p778, %s35, 1
        %s780 = scalar_lea.vmem %s7, %s779
        %p781 = pneg %p240
        %p782 = pneg %p237
        %p783 = scmp.lt.s32.totalorder %s35, 1
        %s784 = scalar_select %p783, %s35, 1
        %s785 = scalar_lea.vmem %s8, %s784
        %p786 = pneg %p266
        %p787 = pneg %p263
        %p788 = scmp.lt.s32.totalorder %s35, 1
        %s789 = scalar_select %p788, %s35, 1
        %s790 = scalar_lea.vmem %s9, %s789
        %p791 = pneg %p292
        %p792 = pneg %p289
        %s793 = sand.u32 %s30, 1
        %s794 = scalar_lea.sflag [#allocation4], %s793
        %s795 = sand.u32 %s305, 1
        %s796 = smul.addr %s795, 128
        %s797 = scalar_lea.vmem [#allocation12], %s796
        %p798 = pneg %p318
        %p799 = pneg %p315
        %p800 = scmp.lt.s32.totalorder %s35, 1
        %s801 = scalar_select %p800, %s35, 1
        %s802 = smul.addr %s801, 2
        %s803 = scalar_lea.vmem %s11, %s802
        %p804 = pneg %p344
        %p805 = pneg %p341
        %s806 = sand.u32 %s30, 1
        %s807 = scalar_lea.sflag [#allocation4], %s806
        %s808 = sand.u32 %s357, 1
        %s809 = smul.addr %s808, 128
        %s810 = scalar_lea.vmem [#allocation13], %s809
        %p811 = pneg %p370
        %p812 = pneg %p367
        %p813 = scmp.lt.s32.totalorder %s35, 1
        %s814 = scalar_select %p813, %s35, 1
        %s815 = scalar_lea.vmem %s13, %s814
        %p816 = pneg %p396
        %p817 = pneg %p393
        %p818 = pneg %p417
        %p819 = pneg %p414
        %p820 = pneg %p438
        %p821 = pneg %p435
        %p822 = pneg %p464
        %p823 = pneg %p461
        %s824 = smul.u32 2, %s34
        %p825 = scmp.lt.s32.totalorder %s35, 1
        %s826 = scalar_select %p825, %s35, 1
        %s827 = smul.addr %s826, 3
        %s828 = scalar_lea.vmem %s5, %s827
        %p829 = scmp.lt.s32.totalorder %s35, 1
        %s830 = scalar_select %p829, %s35, 1
        %s831 = scalar_lea.vmem %s7, %s830
        %p832 = scmp.lt.s32.totalorder %s35, 1
        %s833 = scalar_select %p832, %s35, 1
        %s834 = scalar_lea.vmem %s8, %s833
        %p835 = scmp.lt.s32.totalorder %s35, 1
        %s836 = scalar_select %p835, %s35, 1
        %s837 = scalar_lea.vmem %s9, %s836
        %p838 = scmp.lt.s32.totalorder %s35, 1
        %s839 = scalar_select %p838, %s35, 1
        %s840 = smul.addr %s839, 2
        %s841 = scalar_lea.vmem %s11, %s840
        %p842 = scmp.lt.s32.totalorder %s35, 1
        %s843 = scalar_select %p842, %s35, 1
        %s844 = scalar_lea.vmem %s13, %s843
        %s845 = smul.u32 2, %s34
        %p847 = scmp.eq.s32.totalorder %s35, 0
        // Predicated region
        $region117: #{tpu_custom_call.1} parent=83 // pred_check
          %p848 = pneg %p847
        $region118: #{tpu_custom_call.1} parent=83 // pred_check_branch
          %850 = sbr.rel (%p848) target = $region120
        $region119: #{tpu_custom_call.1} parent=83 // pred_region
          %v851 = vld [vmem:[#allocation3] sm:$0xff]
          %v852 = vld [vmem:[#allocation3 + $0x8] sm:$0xff]
          %v853 = vld [vmem:[#allocation3 + $0x10] sm:$0xff]
          %v854 = vld [vmem:[#allocation3 + $0x18] sm:$0xff]
          %v855 = vld [vmem:[#allocation3 + $0x20] sm:$0xff]
          %v856 = vld [vmem:[#allocation3 + $0x28] sm:$0xff]
          %v857 = vld [vmem:[#allocation3 + $0x30] sm:$0xff]
          %v858 = vld [vmem:[#allocation3 + $0x38] sm:$0xff]
          %v859 = vld [vmem:[#allocation3 + $0x40] sm:$0xff]
          %v860 = vld [vmem:[#allocation3 + $0x48] sm:$0xff]
          %v861 = vld [vmem:[#allocation3 + $0x50] sm:$0xff]
          %v862 = vld [vmem:[#allocation3 + $0x58] sm:$0xff]
          %v863 = vld [vmem:[#allocation3 + $0x60] sm:$0xff]
          %v864 = vld [vmem:[#allocation3 + $0x68] sm:$0xff]
          %v865 = vld [vmem:[#allocation3 + $0x70] sm:$0xff]
          %v866 = vld [vmem:[#allocation3 + $0x78] sm:$0xff]
          %v867 = vld [vmem:[#allocation3 + $0x80] sm:$0xff]
          %v868 = vld [vmem:[#allocation3 + $0x88] sm:$0xff]
          %v869 = vld [vmem:[#allocation3 + $0x90] sm:$0xff]
          %v870 = vld [vmem:[#allocation3 + $0x98] sm:$0xff]
          %v871 = vld [vmem:[#allocation3 + $0xa0] sm:$0xff]
          %v872 = vld [vmem:[#allocation3 + $0xa8] sm:$0xff]
          %v873 = vld [vmem:[#allocation3 + $0xb0] sm:$0xff]
          %v874 = vld [vmem:[#allocation3 + $0xb8] sm:$0xff]
          %v875 = vld [vmem:[#allocation3 + $0xc0] sm:$0xff]
          %v876 = vld [vmem:[#allocation3 + $0xc8] sm:$0xff]
          %v877 = vld [vmem:[#allocation3 + $0xd0] sm:$0xff]
          %v878 = vld [vmem:[#allocation3 + $0xd8] sm:$0xff]
          %v879 = vld [vmem:[#allocation3 + $0xe0] sm:$0xff]
          %v880 = vld [vmem:[#allocation3 + $0xe8] sm:$0xff]
          %v881 = vld [vmem:[#allocation3 + $0xf0] sm:$0xff]
          %v882 = vld [vmem:[#allocation3 + $0xf8] sm:$0xff]
          %v883 = vld [vmem:[#allocation6] sm:$0xff]
          %v884 = vld [vmem:[#allocation6 + $0x8] sm:$0xff]
          %v885 = vld [vmem:[#allocation6 + $0x10] sm:$0xff]
          %v886 = vld [vmem:[#allocation6 + $0x18] sm:$0xff]
          %v887 = vld [vmem:[#allocation6 + $0x20] sm:$0xff]
          %v888 = vld [vmem:[#allocation6 + $0x28] sm:$0xff]
          %v889 = vld [vmem:[#allocation6 + $0x30] sm:$0xff]
          %v890 = vld [vmem:[#allocation6 + $0x38] sm:$0xff]
          %v891 = vld [vmem:[#allocation6 + $0x40] sm:$0xff]
          %v892 = vld [vmem:[#allocation6 + $0x48] sm:$0xff]
          %v893 = vld [vmem:[#allocation6 + $0x50] sm:$0xff]
          %v894 = vld [vmem:[#allocation6 + $0x58] sm:$0xff]
          %v895 = vld [vmem:[#allocation6 + $0x60] sm:$0xff]
          %v896 = vld [vmem:[#allocation6 + $0x68] sm:$0xff]
          %v897 = vld [vmem:[#allocation6 + $0x70] sm:$0xff]
          %v898 = vld [vmem:[#allocation6 + $0x78] sm:$0xff]
          %v899 = vadd.f32 %v851, %v883
          %v900 = vadd.f32 %v852, %v884
          %v901 = vadd.f32 %v853, %v885
          %v902 = vadd.f32 %v854, %v886
          %v903 = vadd.f32 %v855, %v887
          %v904 = vadd.f32 %v856, %v888
          %v905 = vadd.f32 %v857, %v889
          %v906 = vadd.f32 %v858, %v890
          %v907 = vadd.f32 %v859, %v891
          %v908 = vadd.f32 %v860, %v892
          %v909 = vadd.f32 %v861, %v893
          %v910 = vadd.f32 %v862, %v894
          %v911 = vadd.f32 %v863, %v895
          %v912 = vadd.f32 %v864, %v896
          %v913 = vadd.f32 %v865, %v897
          %v914 = vadd.f32 %v866, %v898
          %v915 = vadd.f32 %v867, %v883
          %v916 = vadd.f32 %v868, %v884
          %v917 = vadd.f32 %v869, %v885
          %v918 = vadd.f32 %v870, %v886
          %v919 = vadd.f32 %v871, %v887
          %v920 = vadd.f32 %v872, %v888
          %v921 = vadd.f32 %v873, %v889
          %v922 = vadd.f32 %v874, %v890
          %v923 = vadd.f32 %v875, %v891
          %v924 = vadd.f32 %v876, %v892
          %v925 = vadd.f32 %v877, %v893
          %v926 = vadd.f32 %v878, %v894
          %v927 = vadd.f32 %v879, %v895
          %v928 = vadd.f32 %v880, %v896
          %v929 = vadd.f32 %v881, %v897
          %v930 = vadd.f32 %v882, %v898
          %931 = vst [vmem:[#allocation2] sm:$0xff] %v899
          %932 = vst [vmem:[#allocation2 + $0x8] sm:$0xff] %v900
          %933 = vst [vmem:[#allocation2 + $0x10] sm:$0xff] %v901
          %934 = vst [vmem:[#allocation2 + $0x18] sm:$0xff] %v902
          %935 = vst [vmem:[#allocation2 + $0x20] sm:$0xff] %v903
          %936 = vst [vmem:[#allocation2 + $0x28] sm:$0xff] %v904
          %937 = vst [vmem:[#allocation2 + $0x30] sm:$0xff] %v905
          %938 = vst [vmem:[#allocation2 + $0x38] sm:$0xff] %v906
          %939 = vst [vmem:[#allocation2 + $0x40] sm:$0xff] %v907
          %940 = vst [vmem:[#allocation2 + $0x48] sm:$0xff] %v908
          %941 = vst [vmem:[#allocation2 + $0x50] sm:$0xff] %v909
          %942 = vst [vmem:[#allocation2 + $0x58] sm:$0xff] %v910
          %943 = vst [vmem:[#allocation2 + $0x60] sm:$0xff] %v911
          %944 = vst [vmem:[#allocation2 + $0x68] sm:$0xff] %v912
          %945 = vst [vmem:[#allocation2 + $0x70] sm:$0xff] %v913
          %946 = vst [vmem:[#allocation2 + $0x78] sm:$0xff] %v914
          %947 = vst [vmem:[#allocation2 + $0x80] sm:$0xff] %v915
          %948 = vst [vmem:[#allocation2 + $0x88] sm:$0xff] %v916
          %949 = vst [vmem:[#allocation2 + $0x90] sm:$0xff] %v917
          %950 = vst [vmem:[#allocation2 + $0x98] sm:$0xff] %v918
          %951 = vst [vmem:[#allocation2 + $0xa0] sm:$0xff] %v919
          %952 = vst [vmem:[#allocation2 + $0xa8] sm:$0xff] %v920
          %953 = vst [vmem:[#allocation2 + $0xb0] sm:$0xff] %v921
          %954 = vst [vmem:[#allocation2 + $0xb8] sm:$0xff] %v922
          %955 = vst [vmem:[#allocation2 + $0xc0] sm:$0xff] %v923
          %956 = vst [vmem:[#allocation2 + $0xc8] sm:$0xff] %v924
          %957 = vst [vmem:[#allocation2 + $0xd0] sm:$0xff] %v925
          %958 = vst [vmem:[#allocation2 + $0xd8] sm:$0xff] %v926
          %959 = vst [vmem:[#allocation2 + $0xe0] sm:$0xff] %v927
          %960 = vst [vmem:[#allocation2 + $0xe8] sm:$0xff] %v928
          %961 = vst [vmem:[#allocation2 + $0xf0] sm:$0xff] %v929
          %962 = vst [vmem:[#allocation2 + $0xf8] sm:$0xff] %v930
        $region120: #{tpu_custom_call.1} parent=83 // pred_fallthru
          _
        %v963 = vld [vmem:[#allocation2] sm:$0xff]
        %v964 = vld [vmem:[#allocation2 + $0x8] sm:$0xff]
        %v965 = vld [vmem:[#allocation2 + $0x10] sm:$0xff]
        %v966 = vld [vmem:[#allocation2 + $0x18] sm:$0xff]
        %v967 = vld [vmem:[#allocation2 + $0x20] sm:$0xff]
        %v968 = vld [vmem:[#allocation2 + $0x28] sm:$0xff]
        %v969 = vld [vmem:[#allocation2 + $0x30] sm:$0xff]
        %v970 = vld [vmem:[#allocation2 + $0x38] sm:$0xff]
        %v971 = vld [vmem:[#allocation2 + $0x40] sm:$0xff]
        %v972 = vld [vmem:[#allocation2 + $0x48] sm:$0xff]
        %v973 = vld [vmem:[#allocation2 + $0x50] sm:$0xff]
        %v974 = vld [vmem:[#allocation2 + $0x58] sm:$0xff]
        %v975 = vld [vmem:[#allocation2 + $0x60] sm:$0xff]
        %v976 = vld [vmem:[#allocation2 + $0x68] sm:$0xff]
        %v977 = vld [vmem:[#allocation2 + $0x70] sm:$0xff]
        %v978 = vld [vmem:[#allocation2 + $0x78] sm:$0xff]
        %v979 = vld [vmem:[#allocation2 + $0x80] sm:$0xff]
        %v980 = vld [vmem:[#allocation2 + $0x88] sm:$0xff]
        %v981 = vld [vmem:[#allocation2 + $0x90] sm:$0xff]
        %v982 = vld [vmem:[#allocation2 + $0x98] sm:$0xff]
        %v983 = vld [vmem:[#allocation2 + $0xa0] sm:$0xff]
        %v984 = vld [vmem:[#allocation2 + $0xa8] sm:$0xff]
        %v985 = vld [vmem:[#allocation2 + $0xb0] sm:$0xff]
        %v986 = vld [vmem:[#allocation2 + $0xb8] sm:$0xff]
        %v987 = vld [vmem:[#allocation2 + $0xc0] sm:$0xff]
        %v988 = vld [vmem:[#allocation2 + $0xc8] sm:$0xff]
        %v989 = vld [vmem:[#allocation2 + $0xd0] sm:$0xff]
        %v990 = vld [vmem:[#allocation2 + $0xd8] sm:$0xff]
        %v991 = vld [vmem:[#allocation2 + $0xe0] sm:$0xff]
        %v992 = vld [vmem:[#allocation2 + $0xe8] sm:$0xff]
        %v993 = vld [vmem:[#allocation2 + $0xf0] sm:$0xff]
        %v994 = vld [vmem:[#allocation2 + $0xf8] sm:$0xff]
        %v995 = vld [vmem:[%s693] sm:$0x1]
        %v996 = vld [vmem:[%s701] sm:$0x1]
        %997 = vadd.xlane.f32.xlu0 %v963
        %v998 = vpop.xlane.xlu0 %997
        %999 = vadd.xlane.f32.xlu0 %v964
        %v1000 = vpop.xlane.xlu0 %999
        %1001 = vadd.xlane.f32.xlu0 %v965
        %v1002 = vpop.xlane.xlu0 %1001
        %1003 = vadd.xlane.f32.xlu0 %v966
        %v1004 = vpop.xlane.xlu0 %1003
        %1005 = vadd.xlane.f32.xlu0 %v967
        %v1006 = vpop.xlane.xlu0 %1005
        %1007 = vadd.xlane.f32.xlu0 %v968
        %v1008 = vpop.xlane.xlu0 %1007
        %1009 = vadd.xlane.f32.xlu0 %v969
        %v1010 = vpop.xlane.xlu0 %1009
        %1011 = vadd.xlane.f32.xlu0 %v970
        %v1012 = vpop.xlane.xlu0 %1011
        %1013 = vadd.xlane.f32.xlu0 %v971
        %v1014 = vpop.xlane.xlu0 %1013
        %1015 = vadd.xlane.f32.xlu0 %v972
        %v1016 = vpop.xlane.xlu0 %1015
        %1017 = vadd.xlane.f32.xlu0 %v973
        %v1018 = vpop.xlane.xlu0 %1017
        %1019 = vadd.xlane.f32.xlu0 %v974
        %v1020 = vpop.xlane.xlu0 %1019
        %1021 = vadd.xlane.f32.xlu0 %v975
        %v1022 = vpop.xlane.xlu0 %1021
        %1023 = vadd.xlane.f32.xlu0 %v976
        %v1024 = vpop.xlane.xlu0 %1023
        %1025 = vadd.xlane.f32.xlu0 %v977
        %v1026 = vpop.xlane.xlu0 %1025
        %1027 = vadd.xlane.f32.xlu0 %v978
        %v1028 = vpop.xlane.xlu0 %1027
        %1029 = vadd.xlane.f32.xlu0 %v979
        %v1030 = vpop.xlane.xlu0 %1029
        %1031 = vadd.xlane.f32.xlu0 %v980
        %v1032 = vpop.xlane.xlu0 %1031
        %1033 = vadd.xlane.f32.xlu0 %v981
        %v1034 = vpop.xlane.xlu0 %1033
        %1035 = vadd.xlane.f32.xlu0 %v982
        %v1036 = vpop.xlane.xlu0 %1035
        %1037 = vadd.xlane.f32.xlu0 %v983
        %v1038 = vpop.xlane.xlu0 %1037
        %1039 = vadd.xlane.f32.xlu0 %v984
        %v1040 = vpop.xlane.xlu0 %1039
        %1041 = vadd.xlane.f32.xlu0 %v985
        %v1042 = vpop.xlane.xlu0 %1041
        %1043 = vadd.xlane.f32.xlu0 %v986
        %v1044 = vpop.xlane.xlu0 %1043
        %1045 = vadd.xlane.f32.xlu0 %v987
        %v1046 = vpop.xlane.xlu0 %1045
        %1047 = vadd.xlane.f32.xlu0 %v988
        %v1048 = vpop.xlane.xlu0 %1047
        %1049 = vadd.xlane.f32.xlu0 %v989
        %v1050 = vpop.xlane.xlu0 %1049
        %1051 = vadd.xlane.f32.xlu0 %v990
        %v1052 = vpop.xlane.xlu0 %1051
        %1053 = vadd.xlane.f32.xlu0 %v991
        %v1054 = vpop.xlane.xlu0 %1053
        %1055 = vadd.xlane.f32.xlu0 %v992
        %v1056 = vpop.xlane.xlu0 %1055
        %1057 = vadd.xlane.f32.xlu0 %v993
        %v1058 = vpop.xlane.xlu0 %1057
        %1059 = vadd.xlane.f32.xlu0 %v994
        %v1060 = vpop.xlane.xlu0 %1059
        %v1061 = vrcp.pop 128.0
        %v1062 = vmul.f32 %v998, %v1061
        %v1063 = vmul.f32 %v1000, %v1061
        %v1064 = vmul.f32 %v1002, %v1061
        %v1065 = vmul.f32 %v1004, %v1061
        %v1066 = vmul.f32 %v1006, %v1061
        %v1067 = vmul.f32 %v1008, %v1061
        %v1068 = vmul.f32 %v1010, %v1061
        %v1069 = vmul.f32 %v1012, %v1061
        %v1070 = vmul.f32 %v1014, %v1061
        %v1071 = vmul.f32 %v1016, %v1061
        %v1072 = vmul.f32 %v1018, %v1061
        %v1073 = vmul.f32 %v1020, %v1061
        %v1074 = vmul.f32 %v1022, %v1061
        %v1075 = vmul.f32 %v1024, %v1061
        %v1076 = vmul.f32 %v1026, %v1061
        %v1077 = vmul.f32 %v1028, %v1061
        %v1078 = vmul.f32 %v1030, %v1061
        %v1079 = vmul.f32 %v1032, %v1061
        %v1080 = vmul.f32 %v1034, %v1061
        %v1081 = vmul.f32 %v1036, %v1061
        %v1082 = vmul.f32 %v1038, %v1061
        %v1083 = vmul.f32 %v1040, %v1061
        %v1084 = vmul.f32 %v1042, %v1061
        %v1085 = vmul.f32 %v1044, %v1061
        %v1086 = vmul.f32 %v1046, %v1061
        %v1087 = vmul.f32 %v1048, %v1061
        %v1088 = vmul.f32 %v1050, %v1061
        %v1089 = vmul.f32 %v1052, %v1061
        %v1090 = vmul.f32 %v1054, %v1061
        %v1091 = vmul.f32 %v1056, %v1061
        %v1092 = vmul.f32 %v1058, %v1061
        %v1093 = vmul.f32 %v1060, %v1061
        %v1094 = vsub.f32 %v963, %v1062
        %v1095 = vsub.f32 %v964, %v1063
        %v1096 = vsub.f32 %v965, %v1064
        %v1097 = vsub.f32 %v966, %v1065
        %v1098 = vsub.f32 %v967, %v1066
        %v1099 = vsub.f32 %v968, %v1067
        %v1100 = vsub.f32 %v969, %v1068
        %v1101 = vsub.f32 %v970, %v1069
        %v1102 = vsub.f32 %v971, %v1070
        %v1103 = vsub.f32 %v972, %v1071
        %v1104 = vsub.f32 %v973, %v1072
        %v1105 = vsub.f32 %v974, %v1073
        %v1106 = vsub.f32 %v975, %v1074
        %v1107 = vsub.f32 %v976, %v1075
        %v1108 = vsub.f32 %v977, %v1076
        %v1109 = vsub.f32 %v978, %v1077
        %v1110 = vsub.f32 %v979, %v1078
        %v1111 = vsub.f32 %v980, %v1079
        %v1112 = vsub.f32 %v981, %v1080
        %v1113 = vsub.f32 %v982, %v1081
        %v1114 = vsub.f32 %v983, %v1082
        %v1115 = vsub.f32 %v984, %v1083
        %v1116 = vsub.f32 %v985, %v1084
        %v1117 = vsub.f32 %v986, %v1085
        %v1118 = vsub.f32 %v987, %v1086
        %v1119 = vsub.f32 %v988, %v1087
        %v1120 = vsub.f32 %v989, %v1088
        %v1121 = vsub.f32 %v990, %v1089
        %v1122 = vsub.f32 %v991, %v1090
        %v1123 = vsub.f32 %v992, %v1091
        %v1124 = vsub.f32 %v993, %v1092
        %v1125 = vsub.f32 %v994, %v1093
        %v1126 = vmul.f32 %v1094, %v1094
        %v1127 = vmul.f32 %v1095, %v1095
        %v1128 = vmul.f32 %v1096, %v1096
        %v1129 = vmul.f32 %v1097, %v1097
        %v1130 = vmul.f32 %v1098, %v1098
        %v1131 = vmul.f32 %v1099, %v1099
        %v1132 = vmul.f32 %v1100, %v1100
        %v1133 = vmul.f32 %v1101, %v1101
        %v1134 = vmul.f32 %v1102, %v1102
        %v1135 = vmul.f32 %v1103, %v1103
        %v1136 = vmul.f32 %v1104, %v1104
        %v1137 = vmul.f32 %v1105, %v1105
        %v1138 = vmul.f32 %v1106, %v1106
        %v1139 = vmul.f32 %v1107, %v1107
        %v1140 = vmul.f32 %v1108, %v1108
        %v1141 = vmul.f32 %v1109, %v1109
        %v1142 = vmul.f32 %v1110, %v1110
        %v1143 = vmul.f32 %v1111, %v1111
        %v1144 = vmul.f32 %v1112, %v1112
        %v1145 = vmul.f32 %v1113, %v1113
        %v1146 = vmul.f32 %v1114, %v1114
        %v1147 = vmul.f32 %v1115, %v1115
        %v1148 = vmul.f32 %v1116, %v1116
        %v1149 = vmul.f32 %v1117, %v1117
        %v1150 = vmul.f32 %v1118, %v1118
        %v1151 = vmul.f32 %v1119, %v1119
        %v1152 = vmul.f32 %v1120, %v1120
        %v1153 = vmul.f32 %v1121, %v1121
        %v1154 = vmul.f32 %v1122, %v1122
        %v1155 = vmul.f32 %v1123, %v1123
        %v1156 = vmul.f32 %v1124, %v1124
        %v1157 = vmul.f32 %v1125, %v1125
        %1158 = vadd.xlane.f32.xlu0 %v1126
        %v1159 = vpop.xlane.xlu0 %1158
        %1160 = vadd.xlane.f32.xlu0 %v1127
        %v1161 = vpop.xlane.xlu0 %1160
        %1162 = vadd.xlane.f32.xlu0 %v1128
        %v1163 = vpop.xlane.xlu0 %1162
        %1164 = vadd.xlane.f32.xlu0 %v1129
        %v1165 = vpop.xlane.xlu0 %1164
        %1166 = vadd.xlane.f32.xlu0 %v1130
        %v1167 = vpop.xlane.xlu0 %1166
        %1168 = vadd.xlane.f32.xlu0 %v1131
        %v1169 = vpop.xlane.xlu0 %1168
        %1170 = vadd.xlane.f32.xlu0 %v1132
        %v1171 = vpop.xlane.xlu0 %1170
        %1172 = vadd.xlane.f32.xlu0 %v1133
        %v1173 = vpop.xlane.xlu0 %1172
        %1174 = vadd.xlane.f32.xlu0 %v1134
        %v1175 = vpop.xlane.xlu0 %1174
        %1176 = vadd.xlane.f32.xlu0 %v1135
        %v1177 = vpop.xlane.xlu0 %1176
        %1178 = vadd.xlane.f32.xlu0 %v1136
        %v1179 = vpop.xlane.xlu0 %1178
        %1180 = vadd.xlane.f32.xlu0 %v1137
        %v1181 = vpop.xlane.xlu0 %1180
        %1182 = vadd.xlane.f32.xlu0 %v1138
        %v1183 = vpop.xlane.xlu0 %1182
        %1184 = vadd.xlane.f32.xlu0 %v1139
        %v1185 = vpop.xlane.xlu0 %1184
        %1186 = vadd.xlane.f32.xlu0 %v1140
        %v1187 = vpop.xlane.xlu0 %1186
        %1188 = vadd.xlane.f32.xlu0 %v1141
        %v1189 = vpop.xlane.xlu0 %1188
        %1190 = vadd.xlane.f32.xlu0 %v1142
        %v1191 = vpop.xlane.xlu0 %1190
        %1192 = vadd.xlane.f32.xlu0 %v1143
        %v1193 = vpop.xlane.xlu0 %1192
        %1194 = vadd.xlane.f32.xlu0 %v1144
        %v1195 = vpop.xlane.xlu0 %1194
        %1196 = vadd.xlane.f32.xlu0 %v1145
        %v1197 = vpop.xlane.xlu0 %1196
        %1198 = vadd.xlane.f32.xlu0 %v1146
        %v1199 = vpop.xlane.xlu0 %1198
        %1200 = vadd.xlane.f32.xlu0 %v1147
        %v1201 = vpop.xlane.xlu0 %1200
        %1202 = vadd.xlane.f32.xlu0 %v1148
        %v1203 = vpop.xlane.xlu0 %1202
        %1204 = vadd.xlane.f32.xlu0 %v1149
        %v1205 = vpop.xlane.xlu0 %1204
        %1206 = vadd.xlane.f32.xlu0 %v1150
        %v1207 = vpop.xlane.xlu0 %1206
        %1208 = vadd.xlane.f32.xlu0 %v1151
        %v1209 = vpop.xlane.xlu0 %1208
        %1210 = vadd.xlane.f32.xlu0 %v1152
        %v1211 = vpop.xlane.xlu0 %1210
        %1212 = vadd.xlane.f32.xlu0 %v1153
        %v1213 = vpop.xlane.xlu0 %1212
        %1214 = vadd.xlane.f32.xlu0 %v1154
        %v1215 = vpop.xlane.xlu0 %1214
        %1216 = vadd.xlane.f32.xlu0 %v1155
        %v1217 = vpop.xlane.xlu0 %1216
        %1218 = vadd.xlane.f32.xlu0 %v1156
        %v1219 = vpop.xlane.xlu0 %1218
        %1220 = vadd.xlane.f32.xlu0 %v1157
        %v1221 = vpop.xlane.xlu0 %1220
        %v1222 = vmul.f32 %v1159, %v1061
        %v1223 = vmul.f32 %v1161, %v1061
        %v1224 = vmul.f32 %v1163, %v1061
        %v1225 = vmul.f32 %v1165, %v1061
        %v1226 = vmul.f32 %v1167, %v1061
        %v1227 = vmul.f32 %v1169, %v1061
        %v1228 = vmul.f32 %v1171, %v1061
        %v1229 = vmul.f32 %v1173, %v1061
        %v1230 = vmul.f32 %v1175, %v1061
        %v1231 = vmul.f32 %v1177, %v1061
        %v1232 = vmul.f32 %v1179, %v1061
        %v1233 = vmul.f32 %v1181, %v1061
        %v1234 = vmul.f32 %v1183, %v1061
        %v1235 = vmul.f32 %v1185, %v1061
        %v1236 = vmul.f32 %v1187, %v1061
        %v1237 = vmul.f32 %v1189, %v1061
        %v1238 = vmul.f32 %v1191, %v1061
        %v1239 = vmul.f32 %v1193, %v1061
        %v1240 = vmul.f32 %v1195, %v1061
        %v1241 = vmul.f32 %v1197, %v1061
        %v1242 = vmul.f32 %v1199, %v1061
        %v1243 = vmul.f32 %v1201, %v1061
        %v1244 = vmul.f32 %v1203, %v1061
        %v1245 = vmul.f32 %v1205, %v1061
        %v1246 = vmul.f32 %v1207, %v1061
        %v1247 = vmul.f32 %v1209, %v1061
        %v1248 = vmul.f32 %v1211, %v1061
        %v1249 = vmul.f32 %v1213, %v1061
        %v1250 = vmul.f32 %v1215, %v1061
        %v1251 = vmul.f32 %v1217, %v1061
        %v1252 = vmul.f32 %v1219, %v1061
        %v1253 = vmul.f32 %v1221, %v1061
        %v1254 = vadd.f32 %v1222, 1e-06
        %v1255 = vadd.f32 %v1223, 1e-06
        %v1256 = vadd.f32 %v1224, 1e-06
        %v1257 = vadd.f32 %v1225, 1e-06
        %v1258 = vadd.f32 %v1226, 1e-06
        %v1259 = vadd.f32 %v1227, 1e-06
        %v1260 = vadd.f32 %v1228, 1e-06
        %v1261 = vadd.f32 %v1229, 1e-06
        %v1262 = vadd.f32 %v1230, 1e-06
        %v1263 = vadd.f32 %v1231, 1e-06
        %v1264 = vadd.f32 %v1232, 1e-06
        %v1265 = vadd.f32 %v1233, 1e-06
        %v1266 = vadd.f32 %v1234, 1e-06
        %v1267 = vadd.f32 %v1235, 1e-06
        %v1268 = vadd.f32 %v1236, 1e-06
        %v1269 = vadd.f32 %v1237, 1e-06
        %v1270 = vadd.f32 %v1238, 1e-06
        %v1271 = vadd.f32 %v1239, 1e-06
        %v1272 = vadd.f32 %v1240, 1e-06
        %v1273 = vadd.f32 %v1241, 1e-06
        %v1274 = vadd.f32 %v1242, 1e-06
        %v1275 = vadd.f32 %v1243, 1e-06
        %v1276 = vadd.f32 %v1244, 1e-06
        %v1277 = vadd.f32 %v1245, 1e-06
        %v1278 = vadd.f32 %v1246, 1e-06
        %v1279 = vadd.f32 %v1247, 1e-06
        %v1280 = vadd.f32 %v1248, 1e-06
        %v1281 = vadd.f32 %v1249, 1e-06
        %v1282 = vadd.f32 %v1250, 1e-06
        %v1283 = vadd.f32 %v1251, 1e-06
        %v1284 = vadd.f32 %v1252, 1e-06
        %v1285 = vadd.f32 %v1253, 1e-06
        %v1286 = vrsqrt.pop %v1254
        %v1287 = vrsqrt.pop %v1255
        %v1288 = vrsqrt.pop %v1256
        %v1289 = vrsqrt.pop %v1257
        %v1290 = vrsqrt.pop %v1258
        %v1291 = vrsqrt.pop %v1259
        %v1292 = vrsqrt.pop %v1260
        %v1293 = vrsqrt.pop %v1261
        %v1294 = vrsqrt.pop %v1262
        %v1295 = vrsqrt.pop %v1263
        %v1296 = vrsqrt.pop %v1264
        %v1297 = vrsqrt.pop %v1265
        %v1298 = vrsqrt.pop %v1266
        %v1299 = vrsqrt.pop %v1267
        %v1300 = vrsqrt.pop %v1268
        %v1301 = vrsqrt.pop %v1269
        %v1302 = vrsqrt.pop %v1270
        %v1303 = vrsqrt.pop %v1271
        %v1304 = vrsqrt.pop %v1272
        %v1305 = vrsqrt.pop %v1273
        %v1306 = vrsqrt.pop %v1274
        %v1307 = vrsqrt.pop %v1275
        %v1308 = vrsqrt.pop %v1276
        %v1309 = vrsqrt.pop %v1277
        %v1310 = vrsqrt.pop %v1278
        %v1311 = vrsqrt.pop %v1279
        %v1312 = vrsqrt.pop %v1280
        %v1313 = vrsqrt.pop %v1281
        %v1314 = vrsqrt.pop %v1282
        %v1315 = vrsqrt.pop %v1283
        %v1316 = vrsqrt.pop %v1284
        %v1317 = vrsqrt.pop %v1285
        %v1318 = vmul.f32 %v1094, %v1286
        %v1319 = vmul.f32 %v1095, %v1287
        %v1320 = vmul.f32 %v1096, %v1288
        %v1321 = vmul.f32 %v1097, %v1289
        %v1322 = vmul.f32 %v1098, %v1290
        %v1323 = vmul.f32 %v1099, %v1291
        %v1324 = vmul.f32 %v1100, %v1292
        %v1325 = vmul.f32 %v1101, %v1293
        %v1326 = vmul.f32 %v1102, %v1294
        %v1327 = vmul.f32 %v1103, %v1295
        %v1328 = vmul.f32 %v1104, %v1296
        %v1329 = vmul.f32 %v1105, %v1297
        %v1330 = vmul.f32 %v1106, %v1298
        %v1331 = vmul.f32 %v1107, %v1299
        %v1332 = vmul.f32 %v1108, %v1300
        %v1333 = vmul.f32 %v1109, %v1301
        %v1334 = vmul.f32 %v1110, %v1302
        %v1335 = vmul.f32 %v1111, %v1303
        %v1336 = vmul.f32 %v1112, %v1304
        %v1337 = vmul.f32 %v1113, %v1305
        %v1338 = vmul.f32 %v1114, %v1306
        %v1339 = vmul.f32 %v1115, %v1307
        %v1340 = vmul.f32 %v1116, %v1308
        %v1341 = vmul.f32 %v1117, %v1309
        %v1342 = vmul.f32 %v1118, %v1310
        %v1343 = vmul.f32 %v1119, %v1311
        %v1344 = vmul.f32 %v1120, %v1312
        %v1345 = vmul.f32 %v1121, %v1313
        %v1346 = vmul.f32 %v1122, %v1314
        %v1347 = vmul.f32 %v1123, %v1315
        %v1348 = vmul.f32 %v1124, %v1316
        %v1349 = vmul.f32 %v1125, %v1317
        %v1351 = vlaneseq
        %v1352 = vshrl.u32 %v1351, 7
        %v1353 = vsub.s32 0, %v1352
        %v1354 = vrot.slane %v995, %v1353
        %v1356 = vmul.f32 %v1318, %v1354
        %v1357 = vmul.f32 %v1319, %v1354
        %v1358 = vmul.f32 %v1320, %v1354
        %v1359 = vmul.f32 %v1321, %v1354
        %v1360 = vmul.f32 %v1322, %v1354
        %v1361 = vmul.f32 %v1323, %v1354
        %v1362 = vmul.f32 %v1324, %v1354
        %v1363 = vmul.f32 %v1325, %v1354
        %v1364 = vmul.f32 %v1326, %v1354
        %v1365 = vmul.f32 %v1327, %v1354
        %v1366 = vmul.f32 %v1328, %v1354
        %v1367 = vmul.f32 %v1329, %v1354
        %v1368 = vmul.f32 %v1330, %v1354
        %v1369 = vmul.f32 %v1331, %v1354
        %v1370 = vmul.f32 %v1332, %v1354
        %v1371 = vmul.f32 %v1333, %v1354
        %v1372 = vmul.f32 %v1334, %v1354
        %v1373 = vmul.f32 %v1335, %v1354
        %v1374 = vmul.f32 %v1336, %v1354
        %v1375 = vmul.f32 %v1337, %v1354
        %v1376 = vmul.f32 %v1338, %v1354
        %v1377 = vmul.f32 %v1339, %v1354
        %v1378 = vmul.f32 %v1340, %v1354
        %v1379 = vmul.f32 %v1341, %v1354
        %v1380 = vmul.f32 %v1342, %v1354
        %v1381 = vmul.f32 %v1343, %v1354
        %v1382 = vmul.f32 %v1344, %v1354
        %v1383 = vmul.f32 %v1345, %v1354
        %v1384 = vmul.f32 %v1346, %v1354
        %v1385 = vmul.f32 %v1347, %v1354
        %v1386 = vmul.f32 %v1348, %v1354
        %v1387 = vmul.f32 %v1349, %v1354
        %v1389 = vlaneseq
        %v1390 = vshrl.u32 %v1389, 7
        %v1391 = vsub.s32 0, %v1390
        %v1392 = vrot.slane %v996, %v1391
        %v1394 = vadd.f32 %v1356, %v1392
        %v1395 = vadd.f32 %v1357, %v1392
        %v1396 = vadd.f32 %v1358, %v1392
        %v1397 = vadd.f32 %v1359, %v1392
        %v1398 = vadd.f32 %v1360, %v1392
        %v1399 = vadd.f32 %v1361, %v1392
        %v1400 = vadd.f32 %v1362, %v1392
        %v1401 = vadd.f32 %v1363, %v1392
        %v1402 = vadd.f32 %v1364, %v1392
        %v1403 = vadd.f32 %v1365, %v1392
        %v1404 = vadd.f32 %v1366, %v1392
        %v1405 = vadd.f32 %v1367, %v1392
        %v1406 = vadd.f32 %v1368, %v1392
        %v1407 = vadd.f32 %v1369, %v1392
        %v1408 = vadd.f32 %v1370, %v1392
        %v1409 = vadd.f32 %v1371, %v1392
        %v1410 = vadd.f32 %v1372, %v1392
        %v1411 = vadd.f32 %v1373, %v1392
        %v1412 = vadd.f32 %v1374, %v1392
        %v1413 = vadd.f32 %v1375, %v1392
        %v1414 = vadd.f32 %v1376, %v1392
        %v1415 = vadd.f32 %v1377, %v1392
        %v1416 = vadd.f32 %v1378, %v1392
        %v1417 = vadd.f32 %v1379, %v1392
        %v1418 = vadd.f32 %v1380, %v1392
        %v1419 = vadd.f32 %v1381, %v1392
        %v1420 = vadd.f32 %v1382, %v1392
        %v1421 = vadd.f32 %v1383, %v1392
        %v1422 = vadd.f32 %v1384, %v1392
        %v1423 = vadd.f32 %v1385, %v1392
        %v1424 = vadd.f32 %v1386, %v1392
        %v1425 = vadd.f32 %v1387, %v1392
        %v1426 = vpack.c.bf16 %v1395, %v1394
        %v1427 = vpack.c.bf16 %v1397, %v1396
        %v1428 = vpack.c.bf16 %v1399, %v1398
        %v1429 = vpack.c.bf16 %v1401, %v1400
        %v1430 = vpack.c.bf16 %v1403, %v1402
        %v1431 = vpack.c.bf16 %v1405, %v1404
        %v1432 = vpack.c.bf16 %v1407, %v1406
        %v1433 = vpack.c.bf16 %v1409, %v1408
        %v1434 = vpack.c.bf16 %v1411, %v1410
        %v1435 = vpack.c.bf16 %v1413, %v1412
        %v1436 = vpack.c.bf16 %v1415, %v1414
        %v1437 = vpack.c.bf16 %v1417, %v1416
        %v1438 = vpack.c.bf16 %v1419, %v1418
        %v1439 = vpack.c.bf16 %v1421, %v1420
        %v1440 = vpack.c.bf16 %v1423, %v1422
        %v1441 = vpack.c.bf16 %v1425, %v1424
        %v1442 = vld [vmem:[%s710] sm:$0xff]
        %v1443 = vld [vmem:[%s710 + $0x8] sm:$0xf]
        %v1444 = vld [vmem:[%s710 + $0xc] sm:$0xff]
        %v1445 = vld [vmem:[%s710 + $0x14] sm:$0xf]
        %v1446 = vld [vmem:[%s710 + $0x18] sm:$0xff]
        %v1447 = vld [vmem:[%s710 + $0x20] sm:$0xf]
        %v1448 = vld [vmem:[%s710 + $0x24] sm:$0xff]
        %v1449 = vld [vmem:[%s710 + $0x2c] sm:$0xf]
        %v1450 = vld [vmem:[%s710 + $0x30] sm:$0xff]
        %v1451 = vld [vmem:[%s710 + $0x38] sm:$0xf]
        %v1452 = vld [vmem:[%s710 + $0x3c] sm:$0xff]
        %v1453 = vld [vmem:[%s710 + $0x44] sm:$0xf]
        %v1454 = vld [vmem:[%s710 + $0x48] sm:$0xff]
        %v1455 = vld [vmem:[%s710 + $0x50] sm:$0xf]
        %v1456 = vld [vmem:[%s710 + $0x54] sm:$0xff]
        %v1457 = vld [vmem:[%s710 + $0x5c] sm:$0xf]
        %v1458 = vld [vmem:[%s710 + $0x60] sm:$0xff]
        %v1459 = vld [vmem:[%s710 + $0x68] sm:$0xf]
        %v1460 = vld [vmem:[%s710 + $0x6c] sm:$0xff]
        %v1461 = vld [vmem:[%s710 + $0x74] sm:$0xf]
        %v1462 = vld [vmem:[%s710 + $0x78] sm:$0xff]
        %v1463 = vld [vmem:[%s710 + $0x80] sm:$0xf]
        %v1464 = vld [vmem:[%s710 + $0x84] sm:$0xff]
        %v1465 = vld [vmem:[%s710 + $0x8c] sm:$0xf]
        %v1466 = vld [vmem:[%s710 + $0x90] sm:$0xff]
        %v1467 = vld [vmem:[%s710 + $0x98] sm:$0xf]
        %v1468 = vld [vmem:[%s710 + $0x9c] sm:$0xff]
        %v1469 = vld [vmem:[%s710 + $0xa4] sm:$0xf]
        %v1470 = vld [vmem:[%s710 + $0xa8] sm:$0xff]
        %v1471 = vld [vmem:[%s710 + $0xb0] sm:$0xf]
        %v1472 = vld [vmem:[%s710 + $0xb4] sm:$0xff]
        %v1473 = vld [vmem:[%s710 + $0xbc] sm:$0xf]
        %v1474 = vld [vmem:[%s828] sm:$0x7]
        %v1476 = vlaneseq
        %v1477 = vshrl.u32 %v1476, 7
        %v1478 = vsub.s32 0, %v1477
        %v1479 = vrot.slane %v1474, %v1478
        %v1480 = vlaneseq
        %v1481 = vshrl.u32 %v1480, 7
        %v1482 = vsub.s32 1, %v1481
        %v1483 = vrot.slane %v1474, %v1482
        %v1484 = vlaneseq
        %v1485 = vshrl.u32 %v1484, 7
        %v1486 = vsub.s32 2, %v1485
        %v1487 = vrot.slane %v1474, %v1486
        %v1523 = vunpack.c.l.b16 %v1442
        %v1524 = vunpack.c.h.b16 %v1442
        %v1525 = vunpack.c.l.b16 %v1443
        %v1526 = vunpack.c.l.b16 %v1444
        %v1527 = vunpack.c.h.b16 %v1444
        %v1528 = vunpack.c.l.b16 %v1445
        %v1529 = vunpack.c.l.b16 %v1446
        %v1530 = vunpack.c.h.b16 %v1446
        %v1531 = vunpack.c.l.b16 %v1447
        %v1532 = vunpack.c.l.b16 %v1448
        %v1533 = vunpack.c.h.b16 %v1448
        %v1534 = vunpack.c.l.b16 %v1449
        %v1535 = vunpack.c.l.b16 %v1450
        %v1536 = vunpack.c.h.b16 %v1450
        %v1537 = vunpack.c.l.b16 %v1451
        %v1538 = vunpack.c.l.b16 %v1452
        %v1539 = vunpack.c.h.b16 %v1452
        %v1540 = vunpack.c.l.b16 %v1453
        %v1541 = vunpack.c.l.b16 %v1454
        %v1542 = vunpack.c.h.b16 %v1454
        %v1543 = vunpack.c.l.b16 %v1455
        %v1544 = vunpack.c.l.b16 %v1456
        %v1545 = vunpack.c.h.b16 %v1456
        %v1546 = vunpack.c.l.b16 %v1457
        %v1547 = vunpack.c.l.b16 %v1458
        %v1548 = vunpack.c.h.b16 %v1458
        %v1549 = vunpack.c.l.b16 %v1459
        %v1550 = vunpack.c.l.b16 %v1460
        %v1551 = vunpack.c.h.b16 %v1460
        %v1552 = vunpack.c.l.b16 %v1461
        %v1553 = vunpack.c.l.b16 %v1462
        %v1554 = vunpack.c.h.b16 %v1462
        %v1555 = vunpack.c.l.b16 %v1463
        %v1556 = vunpack.c.l.b16 %v1464
        %v1557 = vunpack.c.h.b16 %v1464
        %v1558 = vunpack.c.l.b16 %v1465
        %v1559 = vunpack.c.l.b16 %v1466
        %v1560 = vunpack.c.h.b16 %v1466
        %v1561 = vunpack.c.l.b16 %v1467
        %v1562 = vunpack.c.l.b16 %v1468
        %v1563 = vunpack.c.h.b16 %v1468
        %v1564 = vunpack.c.l.b16 %v1469
        %v1565 = vunpack.c.l.b16 %v1470
        %v1566 = vunpack.c.h.b16 %v1470
        %v1567 = vunpack.c.l.b16 %v1471
        %v1568 = vunpack.c.l.b16 %v1472
        %v1569 = vunpack.c.h.b16 %v1472
        %v1570 = vunpack.c.l.b16 %v1473
        %v1571 = vpack.c.b16 %v1526, %v1523
        %v1572 = vpack.c.b16 %v1527, %v1524
        %v1573 = vpack.c.b16 %v1528, %v1525
        %v1574 = vpack.c.b16 %v1532, %v1529
        %v1575 = vpack.c.b16 %v1533, %v1530
        %v1576 = vpack.c.b16 %v1534, %v1531
        %v1577 = vpack.c.b16 %v1538, %v1535
        %v1578 = vpack.c.b16 %v1539, %v1536
        %v1579 = vpack.c.b16 %v1540, %v1537
        %v1580 = vpack.c.b16 %v1544, %v1541
        %v1581 = vpack.c.b16 %v1545, %v1542
        %v1582 = vpack.c.b16 %v1546, %v1543
        %v1583 = vpack.c.b16 %v1550, %v1547
        %v1584 = vpack.c.b16 %v1551, %v1548
        %v1585 = vpack.c.b16 %v1552, %v1549
        %v1586 = vpack.c.b16 %v1556, %v1553
        %v1587 = vpack.c.b16 %v1557, %v1554
        %v1588 = vpack.c.b16 %v1558, %v1555
        %v1589 = vpack.c.b16 %v1562, %v1559
        %v1590 = vpack.c.b16 %v1563, %v1560
        %v1591 = vpack.c.b16 %v1564, %v1561
        %v1592 = vpack.c.b16 %v1568, %v1565
        %v1593 = vpack.c.b16 %v1569, %v1566
        %v1594 = vpack.c.b16 %v1570, %v1567
        %1619 = vmatprep.subr.bf16.mxu0 %v1593
        %1620 = vmatpush1.bf16.msra.mxu0 %v1592
        %1621 = vmatprep.subr.bf16.mxu0 %v1590
        %1622 = vmatpush1.bf16.msra.mxu0 %v1589
        %1623 = vmatprep.subr.bf16.mxu0 %v1587
        %1624 = vmatpush1.bf16.msra.mxu0 %v1586
        %1625 = vmatprep.subr.bf16.mxu0 %v1584
        %1626 = vmatpush1.bf16.msra.mxu0 %v1583
        %1627 = vmatprep.subr.bf16.mxu0 %v1581
        %1628 = vmatpush1.bf16.msra.mxu0 %v1580
        %1629 = vmatprep.subr.bf16.mxu0 %v1578
        %1630 = vmatpush1.bf16.msra.mxu0 %v1577
        %1631 = vmatprep.subr.bf16.mxu0 %v1575
        %1632 = vmatpush1.bf16.msra.mxu0 %v1574
        %1633 = vmatprep.subr.bf16.mxu0 %v1572
        %1634 = vmatpush1.bf16.msra.mxu0 %v1571
        %1635 = vmatprep.subr.bf16.mxu0 0
        %1636 = vmatpush2.bf16.msra.mxu0 0
        %1637 = vmatprep.subr.bf16.mxu0 0
        %1638 = vmatpush2.bf16.msra.mxu0 0
        %1639 = vmatprep.subr.bf16.mxu0 0
        %1640 = vmatpush2.bf16.msra.mxu0 0
        %1641 = vmatprep.subr.bf16.mxu0 0
        %1642 = vmatpush2.bf16.msra.mxu0 0
        %1643 = vmatprep.subr.bf16.mxu0 0
        %1644 = vmatpush2.bf16.msra.mxu0 0
        %1645 = vmatprep.subr.bf16.mxu0 0
        %1646 = vmatpush2.bf16.msra.mxu0 0
        %1647 = vmatprep.subr.bf16.mxu0 0
        %1648 = vmatpush2.bf16.msra.mxu0 0
        %1649 = vmatprep.subr.bf16.mxu0 0
        %1650 = vmatpush2.bf16.msra.mxu0 0
        %1651 = vmatprep.mubr.bf16.mxu0 0
        %1652 = vmatmul.mubr.bf16.gmra.mxu0 %v1426
        %v1653 = vpop.f32.mrf.mxu0
        %v1654 = vadd.f32 %v1479, %v1653
        %v1655 = vpop.f32.mrf.mxu0
        %v1656 = vadd.f32 %v1483, %v1655
        %v1657 = vpop.f32.mrf.mxu0
        %v1658 = vadd.f32 %v1479, %v1657
        %v1659 = vpop.f32.mrf.mxu0
        %v1660 = vadd.f32 %v1483, %v1659
        %1661 = vmatprep.mubr.bf16.mxu0 0
        %1662 = vmatmul.mubr.bf16.gmra.mxu0 %v1427
        %v1663 = vpop.f32.mrf.mxu0
        %v1664 = vadd.f32 %v1479, %v1663
        %v1665 = vpop.f32.mrf.mxu0
        %v1666 = vadd.f32 %v1483, %v1665
        %v1667 = vpop.f32.mrf.mxu0
        %v1668 = vadd.f32 %v1479, %v1667
        %v1669 = vpop.f32.mrf.mxu0
        %v1670 = vadd.f32 %v1483, %v1669
        %1671 = vmatprep.mubr.bf16.mxu0 0
        %1672 = vmatmul.mubr.bf16.gmra.mxu0 %v1428
        %v1673 = vpop.f32.mrf.mxu0
        %v1674 = vadd.f32 %v1479, %v1673
        %v1675 = vpop.f32.mrf.mxu0
        %v1676 = vadd.f32 %v1483, %v1675
        %v1677 = vpop.f32.mrf.mxu0
        %v1678 = vadd.f32 %v1479, %v1677
        %v1679 = vpop.f32.mrf.mxu0
        %v1680 = vadd.f32 %v1483, %v1679
        %1681 = vmatprep.mubr.bf16.mxu0 0
        %1682 = vmatmul.mubr.bf16.gmra.mxu0 %v1429
        %v1683 = vpop.f32.mrf.mxu0
        %v1684 = vadd.f32 %v1479, %v1683
        %v1685 = vpop.f32.mrf.mxu0
        %v1686 = vadd.f32 %v1483, %v1685
        %v1687 = vpop.f32.mrf.mxu0
        %v1688 = vadd.f32 %v1479, %v1687
        %v1689 = vpop.f32.mrf.mxu0
        %v1690 = vadd.f32 %v1483, %v1689
        %1691 = vmatprep.mubr.bf16.mxu0 0
        %1692 = vmatmul.mubr.bf16.gmra.mxu0 %v1430
        %v1693 = vpop.f32.mrf.mxu0
        %v1694 = vadd.f32 %v1479, %v1693
        %v1695 = vpop.f32.mrf.mxu0
        %v1696 = vadd.f32 %v1483, %v1695
        %v1697 = vpop.f32.mrf.mxu0
        %v1698 = vadd.f32 %v1479, %v1697
        %v1699 = vpop.f32.mrf.mxu0
        %v1700 = vadd.f32 %v1483, %v1699
        %1701 = vmatprep.mubr.bf16.mxu0 0
        %1702 = vmatmul.mubr.bf16.gmra.mxu0 %v1431
        %v1703 = vpop.f32.mrf.mxu0
        %v1704 = vadd.f32 %v1479, %v1703
        %v1705 = vpop.f32.mrf.mxu0
        %v1706 = vadd.f32 %v1483, %v1705
        %v1707 = vpop.f32.mrf.mxu0
        %v1708 = vadd.f32 %v1479, %v1707
        %v1709 = vpop.f32.mrf.mxu0
        %v1710 = vadd.f32 %v1483, %v1709
        %1711 = vmatprep.mubr.bf16.mxu0 0
        %1712 = vmatmul.mubr.bf16.gmra.mxu0 %v1432
        %v1713 = vpop.f32.mrf.mxu0
        %v1714 = vadd.f32 %v1479, %v1713
        %v1715 = vpop.f32.mrf.mxu0
        %v1716 = vadd.f32 %v1483, %v1715
        %v1717 = vpop.f32.mrf.mxu0
        %v1718 = vadd.f32 %v1479, %v1717
        %v1719 = vpop.f32.mrf.mxu0
        %v1720 = vadd.f32 %v1483, %v1719
        %1721 = vmatprep.mubr.bf16.mxu0 0
        %1722 = vmatmul.mubr.bf16.gmra.mxu0 %v1433
        %v1723 = vpop.f32.mrf.mxu0
        %v1724 = vadd.f32 %v1479, %v1723
        %v1725 = vpop.f32.mrf.mxu0
        %v1726 = vadd.f32 %v1483, %v1725
        %v1727 = vpop.f32.mrf.mxu0
        %v1728 = vadd.f32 %v1479, %v1727
        %v1729 = vpop.f32.mrf.mxu0
        %v1730 = vadd.f32 %v1483, %v1729
        %1731 = vmatprep.mubr.bf16.mxu0 0
        %1732 = vmatmul.mubr.bf16.gmra.mxu0 %v1434
        %v1733 = vpop.f32.mrf.mxu0
        %v1734 = vadd.f32 %v1479, %v1733
        %v1735 = vpop.f32.mrf.mxu0
        %v1736 = vadd.f32 %v1483, %v1735
        %v1737 = vpop.f32.mrf.mxu0
        %v1738 = vadd.f32 %v1479, %v1737
        %v1739 = vpop.f32.mrf.mxu0
        %v1740 = vadd.f32 %v1483, %v1739
        %1741 = vmatprep.mubr.bf16.mxu0 0
        %1742 = vmatmul.mubr.bf16.gmra.mxu0 %v1435
        %v1743 = vpop.f32.mrf.mxu0
        %v1744 = vadd.f32 %v1479, %v1743
        %v1745 = vpop.f32.mrf.mxu0
        %v1746 = vadd.f32 %v1483, %v1745
        %v1747 = vpop.f32.mrf.mxu0
        %v1748 = vadd.f32 %v1479, %v1747
        %v1749 = vpop.f32.mrf.mxu0
        %v1750 = vadd.f32 %v1483, %v1749
        %1751 = vmatprep.mubr.bf16.mxu0 0
        %1752 = vmatmul.mubr.bf16.gmra.mxu0 %v1436
        %v1753 = vpop.f32.mrf.mxu0
        %v1754 = vadd.f32 %v1479, %v1753
        %v1755 = vpop.f32.mrf.mxu0
        %v1756 = vadd.f32 %v1483, %v1755
        %v1757 = vpop.f32.mrf.mxu0
        %v1758 = vadd.f32 %v1479, %v1757
        %v1759 = vpop.f32.mrf.mxu0
        %v1760 = vadd.f32 %v1483, %v1759
        %1761 = vmatprep.mubr.bf16.mxu0 0
        %1762 = vmatmul.mubr.bf16.gmra.mxu0 %v1437
        %v1763 = vpop.f32.mrf.mxu0
        %v1764 = vadd.f32 %v1479, %v1763
        %v1765 = vpop.f32.mrf.mxu0
        %v1766 = vadd.f32 %v1483, %v1765
        %v1767 = vpop.f32.mrf.mxu0
        %v1768 = vadd.f32 %v1479, %v1767
        %v1769 = vpop.f32.mrf.mxu0
        %v1770 = vadd.f32 %v1483, %v1769
        %1771 = vmatprep.mubr.bf16.mxu0 0
        %1772 = vmatmul.mubr.bf16.gmra.mxu0 %v1438
        %v1773 = vpop.f32.mrf.mxu0
        %v1774 = vadd.f32 %v1479, %v1773
        %v1775 = vpop.f32.mrf.mxu0
        %v1776 = vadd.f32 %v1483, %v1775
        %v1777 = vpop.f32.mrf.mxu0
        %v1778 = vadd.f32 %v1479, %v1777
        %v1779 = vpop.f32.mrf.mxu0
        %v1780 = vadd.f32 %v1483, %v1779
        %1781 = vmatprep.mubr.bf16.mxu0 0
        %1782 = vmatmul.mubr.bf16.gmra.mxu0 %v1439
        %v1783 = vpop.f32.mrf.mxu0
        %v1784 = vadd.f32 %v1479, %v1783
        %v1785 = vpop.f32.mrf.mxu0
        %v1786 = vadd.f32 %v1483, %v1785
        %v1787 = vpop.f32.mrf.mxu0
        %v1788 = vadd.f32 %v1479, %v1787
        %v1789 = vpop.f32.mrf.mxu0
        %v1790 = vadd.f32 %v1483, %v1789
        %1791 = vmatprep.mubr.bf16.mxu0 0
        %1792 = vmatmul.mubr.bf16.gmra.mxu0 %v1440
        %v1793 = vpop.f32.mrf.mxu0
        %v1794 = vadd.f32 %v1479, %v1793
        %v1795 = vpop.f32.mrf.mxu0
        %v1796 = vadd.f32 %v1483, %v1795
        %v1797 = vpop.f32.mrf.mxu0
        %v1798 = vadd.f32 %v1479, %v1797
        %v1799 = vpop.f32.mrf.mxu0
        %v1800 = vadd.f32 %v1483, %v1799
        %1801 = vmatprep.mubr.bf16.mxu0 0
        %1802 = vmatmul.mubr.bf16.gmra.mxu0 %v1441
        %v1803 = vpop.f32.mrf.mxu0
        %v1804 = vadd.f32 %v1479, %v1803
        %v1805 = vpop.f32.mrf.mxu0
        %v1806 = vadd.f32 %v1483, %v1805
        %v1807 = vpop.f32.mrf.mxu0
        %v1808 = vadd.f32 %v1479, %v1807
        %v1809 = vpop.f32.mrf.mxu0
        %v1810 = vadd.f32 %v1483, %v1809
        %1811 = vdwg.mxu0
        %1812 = vmatprep.subr.bf16.mxu0 0
        %1813 = vmatpush1.bf16.msra.mxu0 %v1594
        %1814 = vmatprep.subr.bf16.mxu0 0
        %1815 = vmatpush1.bf16.msra.mxu0 %v1591
        %1816 = vmatprep.subr.bf16.mxu0 0
        %1817 = vmatpush1.bf16.msra.mxu0 %v1588
        %1818 = vmatprep.subr.bf16.mxu0 0
        %1819 = vmatpush1.bf16.msra.mxu0 %v1585
        %1820 = vmatprep.subr.bf16.mxu0 0
        %1821 = vmatpush1.bf16.msra.mxu0 %v1582
        %1822 = vmatprep.subr.bf16.mxu0 0
        %1823 = vmatpush1.bf16.msra.mxu0 %v1579
        %1824 = vmatprep.subr.bf16.mxu0 0
        %1825 = vmatpush1.bf16.msra.mxu0 %v1576
        %1826 = vmatprep.subr.bf16.mxu0 0
        %1827 = vmatpush1.bf16.msra.mxu0 %v1573
        %1828 = vmatprep.subr.bf16.mxu0 0
        %1829 = vmatpush2.bf16.msra.mxu0 0
        %1830 = vmatprep.subr.bf16.mxu0 0
        %1831 = vmatpush2.bf16.msra.mxu0 0
        %1832 = vmatprep.subr.bf16.mxu0 0
        %1833 = vmatpush2.bf16.msra.mxu0 0
        %1834 = vmatprep.subr.bf16.mxu0 0
        %1835 = vmatpush2.bf16.msra.mxu0 0
        %1836 = vmatprep.subr.bf16.mxu0 0
        %1837 = vmatpush2.bf16.msra.mxu0 0
        %1838 = vmatprep.subr.bf16.mxu0 0
        %1839 = vmatpush2.bf16.msra.mxu0 0
        %1840 = vmatprep.subr.bf16.mxu0 0
        %1841 = vmatpush2.bf16.msra.mxu0 0
        %1842 = vmatprep.subr.bf16.mxu0 0
        %1843 = vmatpush2.bf16.msra.mxu0 0
        %1844 = vmatprep.mubr.bf16.mxu0 0
        %1845 = vmatmul.mubr.bf16.gmra.mxu0 %v1426
        %v1846 = vpop.f32.mrf.mxu0
        %v1847 = vadd.f32 %v1487, %v1846
        %v1848 = vpop.f32.mrf.mxu0
        %v1849 = vpop.f32.mrf.mxu0
        %v1850 = vadd.f32 %v1487, %v1849
        %v1851 = vpop.f32.mrf.mxu0
        %1852 = vmatprep.mubr.bf16.mxu0 0
        %1853 = vmatmul.mubr.bf16.gmra.mxu0 %v1427
        %v1854 = vpop.f32.mrf.mxu0
        %v1855 = vadd.f32 %v1487, %v1854
        %v1856 = vpop.f32.mrf.mxu0
        %v1857 = vpop.f32.mrf.mxu0
        %v1858 = vadd.f32 %v1487, %v1857
        %v1859 = vpop.f32.mrf.mxu0
        %1860 = vmatprep.mubr.bf16.mxu0 0
        %1861 = vmatmul.mubr.bf16.gmra.mxu0 %v1428
        %v1862 = vpop.f32.mrf.mxu0
        %v1863 = vadd.f32 %v1487, %v1862
        %v1864 = vpop.f32.mrf.mxu0
        %v1865 = vpop.f32.mrf.mxu0
        %v1866 = vadd.f32 %v1487, %v1865
        %v1867 = vpop.f32.mrf.mxu0
        %1868 = vmatprep.mubr.bf16.mxu0 0
        %1869 = vmatmul.mubr.bf16.gmra.mxu0 %v1429
        %v1870 = vpop.f32.mrf.mxu0
        %v1871 = vadd.f32 %v1487, %v1870
        %v1872 = vpop.f32.mrf.mxu0
        %v1873 = vpop.f32.mrf.mxu0
        %v1874 = vadd.f32 %v1487, %v1873
        %v1875 = vpop.f32.mrf.mxu0
        %1876 = vmatprep.mubr.bf16.mxu0 0
        %1877 = vmatmul.mubr.bf16.gmra.mxu0 %v1430
        %v1878 = vpop.f32.mrf.mxu0
        %v1879 = vadd.f32 %v1487, %v1878
        %v1880 = vpop.f32.mrf.mxu0
        %v1881 = vpop.f32.mrf.mxu0
        %v1882 = vadd.f32 %v1487, %v1881
        %v1883 = vpop.f32.mrf.mxu0
        %1884 = vmatprep.mubr.bf16.mxu0 0
        %1885 = vmatmul.mubr.bf16.gmra.mxu0 %v1431
        %v1886 = vpop.f32.mrf.mxu0
        %v1887 = vadd.f32 %v1487, %v1886
        %v1888 = vpop.f32.mrf.mxu0
        %v1889 = vpop.f32.mrf.mxu0
        %v1890 = vadd.f32 %v1487, %v1889
        %v1891 = vpop.f32.mrf.mxu0
        %1892 = vmatprep.mubr.bf16.mxu0 0
        %1893 = vmatmul.mubr.bf16.gmra.mxu0 %v1432
        %v1894 = vpop.f32.mrf.mxu0
        %v1895 = vadd.f32 %v1487, %v1894
        %v1896 = vpop.f32.mrf.mxu0
        %v1897 = vpop.f32.mrf.mxu0
        %v1898 = vadd.f32 %v1487, %v1897
        %v1899 = vpop.f32.mrf.mxu0
        %1900 = vmatprep.mubr.bf16.mxu0 0
        %1901 = vmatmul.mubr.bf16.gmra.mxu0 %v1433
        %v1902 = vpop.f32.mrf.mxu0
        %v1903 = vadd.f32 %v1487, %v1902
        %v1904 = vpop.f32.mrf.mxu0
        %v1905 = vpop.f32.mrf.mxu0
        %v1906 = vadd.f32 %v1487, %v1905
        %v1907 = vpop.f32.mrf.mxu0
        %1908 = vmatprep.mubr.bf16.mxu0 0
        %1909 = vmatmul.mubr.bf16.gmra.mxu0 %v1434
        %v1910 = vpop.f32.mrf.mxu0
        %v1911 = vadd.f32 %v1487, %v1910
        %v1912 = vpop.f32.mrf.mxu0
        %v1913 = vpop.f32.mrf.mxu0
        %v1914 = vadd.f32 %v1487, %v1913
        %v1915 = vpop.f32.mrf.mxu0
        %1916 = vmatprep.mubr.bf16.mxu0 0
        %1917 = vmatmul.mubr.bf16.gmra.mxu0 %v1435
        %v1918 = vpop.f32.mrf.mxu0
        %v1919 = vadd.f32 %v1487, %v1918
        %v1920 = vpop.f32.mrf.mxu0
        %v1921 = vpop.f32.mrf.mxu0
        %v1922 = vadd.f32 %v1487, %v1921
        %v1923 = vpop.f32.mrf.mxu0
        %1924 = vmatprep.mubr.bf16.mxu0 0
        %1925 = vmatmul.mubr.bf16.gmra.mxu0 %v1436
        %v1926 = vpop.f32.mrf.mxu0
        %v1927 = vadd.f32 %v1487, %v1926
        %v1928 = vpop.f32.mrf.mxu0
        %v1929 = vpop.f32.mrf.mxu0
        %v1930 = vadd.f32 %v1487, %v1929
        %v1931 = vpop.f32.mrf.mxu0
        %1932 = vmatprep.mubr.bf16.mxu0 0
        %1933 = vmatmul.mubr.bf16.gmra.mxu0 %v1437
        %v1934 = vpop.f32.mrf.mxu0
        %v1935 = vadd.f32 %v1487, %v1934
        %v1936 = vpop.f32.mrf.mxu0
        %v1937 = vpop.f32.mrf.mxu0
        %v1938 = vadd.f32 %v1487, %v1937
        %v1939 = vpop.f32.mrf.mxu0
        %1940 = vmatprep.mubr.bf16.mxu0 0
        %1941 = vmatmul.mubr.bf16.gmra.mxu0 %v1438
        %v1942 = vpop.f32.mrf.mxu0
        %v1943 = vadd.f32 %v1487, %v1942
        %v1944 = vpop.f32.mrf.mxu0
        %v1945 = vpop.f32.mrf.mxu0
        %v1946 = vadd.f32 %v1487, %v1945
        %v1947 = vpop.f32.mrf.mxu0
        %1948 = vmatprep.mubr.bf16.mxu0 0
        %1949 = vmatmul.mubr.bf16.gmra.mxu0 %v1439
        %v1950 = vpop.f32.mrf.mxu0
        %v1951 = vadd.f32 %v1487, %v1950
        %v1952 = vpop.f32.mrf.mxu0
        %v1953 = vpop.f32.mrf.mxu0
        %v1954 = vadd.f32 %v1487, %v1953
        %v1955 = vpop.f32.mrf.mxu0
        %1956 = vmatprep.mubr.bf16.mxu0 0
        %1957 = vmatmul.mubr.bf16.gmra.mxu0 %v1440
        %v1958 = vpop.f32.mrf.mxu0
        %v1959 = vadd.f32 %v1487, %v1958
        %v1960 = vpop.f32.mrf.mxu0
        %v1961 = vpop.f32.mrf.mxu0
        %v1962 = vadd.f32 %v1487, %v1961
        %v1963 = vpop.f32.mrf.mxu0
        %1964 = vmatprep.mubr.bf16.mxu0 0
        %1965 = vmatmul.mubr.bf16.gmra.mxu0 %v1441
        %v1966 = vpop.f32.mrf.mxu0
        %v1967 = vadd.f32 %v1487, %v1966
        %v1968 = vpop.f32.mrf.mxu0
        %v1969 = vpop.f32.mrf.mxu0
        %v1970 = vadd.f32 %v1487, %v1969
        %v1971 = vpop.f32.mrf.mxu0
        %1972 = vdwg.mxu0
        %v1973 = vpack.c.bf16 %v1658, %v1654
        %v1974 = vpack.c.bf16 %v1668, %v1664
        %v1975 = vpack.c.bf16 %v1678, %v1674
        %v1976 = vpack.c.bf16 %v1688, %v1684
        %v1977 = vpack.c.bf16 %v1698, %v1694
        %v1978 = vpack.c.bf16 %v1708, %v1704
        %v1979 = vpack.c.bf16 %v1718, %v1714
        %v1980 = vpack.c.bf16 %v1728, %v1724
        %v1981 = vpack.c.bf16 %v1738, %v1734
        %v1982 = vpack.c.bf16 %v1748, %v1744
        %v1983 = vpack.c.bf16 %v1758, %v1754
        %v1984 = vpack.c.bf16 %v1768, %v1764
        %v1985 = vpack.c.bf16 %v1778, %v1774
        %v1986 = vpack.c.bf16 %v1788, %v1784
        %v1987 = vpack.c.bf16 %v1798, %v1794
        %v1988 = vpack.c.bf16 %v1808, %v1804
        %v1989 = vpack.c.bf16 %v1660, %v1656
        %v1990 = vpack.c.bf16 %v1670, %v1666
        %v1991 = vpack.c.bf16 %v1680, %v1676
        %v1992 = vpack.c.bf16 %v1690, %v1686
        %v1993 = vpack.c.bf16 %v1700, %v1696
        %v1994 = vpack.c.bf16 %v1710, %v1706
        %v1995 = vpack.c.bf16 %v1720, %v1716
        %v1996 = vpack.c.bf16 %v1730, %v1726
        %v1997 = vpack.c.bf16 %v1740, %v1736
        %v1998 = vpack.c.bf16 %v1750, %v1746
        %v1999 = vpack.c.bf16 %v1760, %v1756
        %v2000 = vpack.c.bf16 %v1770, %v1766
        %v2001 = vpack.c.bf16 %v1780, %v1776
        %v2002 = vpack.c.bf16 %v1790, %v1786
        %v2003 = vpack.c.bf16 %v1800, %v1796
        %v2004 = vpack.c.bf16 %v1810, %v1806
        %v2005 = vpack.c.bf16 %v1850, %v1847
        %v2006 = vpack.c.bf16 %v1858, %v1855
        %v2007 = vpack.c.bf16 %v1866, %v1863
        %v2008 = vpack.c.bf16 %v1874, %v1871
        %v2009 = vpack.c.bf16 %v1882, %v1879
        %v2010 = vpack.c.bf16 %v1890, %v1887
        %v2011 = vpack.c.bf16 %v1898, %v1895
        %v2012 = vpack.c.bf16 %v1906, %v1903
        %v2013 = vpack.c.bf16 %v1914, %v1911
        %v2014 = vpack.c.bf16 %v1922, %v1919
        %v2015 = vpack.c.bf16 %v1930, %v1927
        %v2016 = vpack.c.bf16 %v1938, %v1935
        %v2017 = vpack.c.bf16 %v1946, %v1943
        %v2018 = vpack.c.bf16 %v1954, %v1951
        %v2019 = vpack.c.bf16 %v1962, %v1959
        %v2020 = vpack.c.bf16 %v1970, %v1967
        %vm2021 = vcmask 261120
        %v2023 = vsel %vm2021, %v1973, 0
        %v2026 = vsel %vm2021, %v1974, 0
        %v2029 = vsel %vm2021, %v1975, 0
        %v2032 = vsel %vm2021, %v1976, 0
        %v2035 = vsel %vm2021, %v1977, 0
        %v2038 = vsel %vm2021, %v1978, 0
        %v2041 = vsel %vm2021, %v1979, 0
        %v2044 = vsel %vm2021, %v1980, 0
        %v2047 = vsel %vm2021, %v1989, 0
        %v2050 = vsel %vm2021, %v1990, 0
        %v2053 = vsel %vm2021, %v1991, 0
        %v2056 = vsel %vm2021, %v1992, 0
        %v2059 = vsel %vm2021, %v1993, 0
        %v2062 = vsel %vm2021, %v1994, 0
        %v2065 = vsel %vm2021, %v1995, 0
        %v2068 = vsel %vm2021, %v1996, 0
        %2070 = vmatprep.subr.bf16.mxu0 0
        %2071 = vmatpush1.bf16.xpose.msra.mxu0 %v2068
        %2072 = vmatprep.subr.bf16.mxu0 0
        %2073 = vmatpush1.bf16.xpose.msra.mxu0 %v2065
        %2074 = vmatprep.subr.bf16.mxu0 0
        %2075 = vmatpush1.bf16.xpose.msra.mxu0 %v2062
        %2076 = vmatprep.subr.bf16.mxu0 0
        %2077 = vmatpush1.bf16.xpose.msra.mxu0 %v2059
        %2078 = vmatprep.subr.bf16.mxu0 0
        %2079 = vmatpush1.bf16.xpose.msra.mxu0 %v2056
        %2080 = vmatprep.subr.bf16.mxu0 0
        %2081 = vmatpush1.bf16.xpose.msra.mxu0 %v2053
        %2082 = vmatprep.subr.bf16.mxu0 0
        %2083 = vmatpush1.bf16.xpose.msra.mxu0 %v2050
        %2084 = vmatprep.subr.bf16.mxu0 0
        %2085 = vmatpush1.bf16.xpose.msra.mxu0 %v2047
        %2086 = vmatprep.subr.bf16.mxu0 0
        %2087 = vmatpush2.bf16.xpose.msra.mxu0 0
        %2088 = vmatprep.subr.bf16.mxu0 0
        %2089 = vmatpush2.bf16.xpose.msra.mxu0 0
        %2090 = vmatprep.subr.bf16.mxu0 0
        %2091 = vmatpush2.bf16.xpose.msra.mxu0 0
        %2092 = vmatprep.subr.bf16.mxu0 0
        %2093 = vmatpush2.bf16.xpose.msra.mxu0 0
        %2094 = vmatprep.subr.bf16.mxu0 0
        %2095 = vmatpush2.bf16.xpose.msra.mxu0 0
        %2096 = vmatprep.subr.bf16.mxu0 0
        %2097 = vmatpush2.bf16.xpose.msra.mxu0 0
        %2098 = vmatprep.subr.bf16.mxu0 0
        %2099 = vmatpush2.bf16.xpose.msra.mxu0 0
        %2100 = vmatprep.subr.bf16.mxu0 0
        %2101 = vmatpush2.bf16.xpose.msra.mxu0 0
        %2102 = vmatprep.mubr.bf16.mxu0 0
        %2103 = vmatmul.mubr.bf16.gmra.mxu0 %v2023
        %v2104 = vpop.f32.mrf.mxu0
        %v2105 = vadd.f32 0.0, %v2104
        %v2106 = vpop.f32.mrf.mxu0
        %v2107 = vpop.f32.mrf.mxu0
        %v2108 = vadd.f32 0.0, %v2107
        %v2109 = vpop.f32.mrf.mxu0
        %2110 = vmatprep.mubr.bf16.mxu0 0
        %2111 = vmatmul.mubr.bf16.gmra.mxu0 %v2026
        %v2112 = vpop.f32.mrf.mxu0
        %v2113 = vadd.f32 0.0, %v2112
        %v2114 = vpop.f32.mrf.mxu0
        %v2115 = vpop.f32.mrf.mxu0
        %v2116 = vadd.f32 0.0, %v2115
        %v2117 = vpop.f32.mrf.mxu0
        %2118 = vmatprep.mubr.bf16.mxu0 0
        %2119 = vmatmul.mubr.bf16.gmra.mxu0 %v2029
        %v2120 = vpop.f32.mrf.mxu0
        %v2121 = vadd.f32 0.0, %v2120
        %v2122 = vpop.f32.mrf.mxu0
        %v2123 = vpop.f32.mrf.mxu0
        %v2124 = vadd.f32 0.0, %v2123
        %v2125 = vpop.f32.mrf.mxu0
        %2126 = vmatprep.mubr.bf16.mxu0 0
        %2127 = vmatmul.mubr.bf16.gmra.mxu0 %v2032
        %v2128 = vpop.f32.mrf.mxu0
        %v2129 = vadd.f32 0.0, %v2128
        %v2130 = vpop.f32.mrf.mxu0
        %v2131 = vpop.f32.mrf.mxu0
        %v2132 = vadd.f32 0.0, %v2131
        %v2133 = vpop.f32.mrf.mxu0
        %2134 = vmatprep.mubr.bf16.mxu0 0
        %2135 = vmatmul.mubr.bf16.gmra.mxu0 %v2035
        %v2136 = vpop.f32.mrf.mxu0
        %v2137 = vadd.f32 0.0, %v2136
        %v2138 = vpop.f32.mrf.mxu0
        %v2139 = vpop.f32.mrf.mxu0
        %v2140 = vadd.f32 0.0, %v2139
        %v2141 = vpop.f32.mrf.mxu0
        %2142 = vmatprep.mubr.bf16.mxu0 0
        %2143 = vmatmul.mubr.bf16.gmra.mxu0 %v2038
        %v2144 = vpop.f32.mrf.mxu0
        %v2145 = vadd.f32 0.0, %v2144
        %v2146 = vpop.f32.mrf.mxu0
        %v2147 = vpop.f32.mrf.mxu0
        %v2148 = vadd.f32 0.0, %v2147
        %v2149 = vpop.f32.mrf.mxu0
        %2150 = vmatprep.mubr.bf16.mxu0 0
        %2151 = vmatmul.mubr.bf16.gmra.mxu0 %v2041
        %v2152 = vpop.f32.mrf.mxu0
        %v2153 = vadd.f32 0.0, %v2152
        %v2154 = vpop.f32.mrf.mxu0
        %v2155 = vpop.f32.mrf.mxu0
        %v2156 = vadd.f32 0.0, %v2155
        %v2157 = vpop.f32.mrf.mxu0
        %2158 = vmatprep.mubr.bf16.mxu0 0
        %2159 = vmatmul.mubr.bf16.gmra.mxu0 %v2044
        %v2160 = vpop.f32.mrf.mxu0
        %v2161 = vadd.f32 0.0, %v2160
        %v2162 = vpop.f32.mrf.mxu0
        %v2163 = vpop.f32.mrf.mxu0
        %v2164 = vadd.f32 0.0, %v2163
        %v2165 = vpop.f32.mrf.mxu0
        %2166 = vdwg.mxu0
        %2167 = vmax.xlane.f32.xlu0 %v2105
        %v2168 = vpop.xlane.xlu0 %2167
        %2169 = vmax.xlane.f32.xlu0 %v2108
        %v2170 = vpop.xlane.xlu0 %2169
        %2171 = vmax.xlane.f32.xlu0 %v2113
        %v2172 = vpop.xlane.xlu0 %2171
        %2173 = vmax.xlane.f32.xlu0 %v2116
        %v2174 = vpop.xlane.xlu0 %2173
        %2175 = vmax.xlane.f32.xlu0 %v2121
        %v2176 = vpop.xlane.xlu0 %2175
        %2177 = vmax.xlane.f32.xlu0 %v2124
        %v2178 = vpop.xlane.xlu0 %2177
        %2179 = vmax.xlane.f32.xlu0 %v2129
        %v2180 = vpop.xlane.xlu0 %2179
        %2181 = vmax.xlane.f32.xlu0 %v2132
        %v2182 = vpop.xlane.xlu0 %2181
        %2183 = vmax.xlane.f32.xlu0 %v2137
        %v2184 = vpop.xlane.xlu0 %2183
        %2185 = vmax.xlane.f32.xlu0 %v2140
        %v2186 = vpop.xlane.xlu0 %2185
        %2187 = vmax.xlane.f32.xlu0 %v2145
        %v2188 = vpop.xlane.xlu0 %2187
        %2189 = vmax.xlane.f32.xlu0 %v2148
        %v2190 = vpop.xlane.xlu0 %2189
        %2191 = vmax.xlane.f32.xlu0 %v2153
        %v2192 = vpop.xlane.xlu0 %2191
        %2193 = vmax.xlane.f32.xlu0 %v2156
        %v2194 = vpop.xlane.xlu0 %2193
        %2195 = vmax.xlane.f32.xlu0 %v2161
        %v2196 = vpop.xlane.xlu0 %2195
        %2197 = vmax.xlane.f32.xlu0 %v2164
        %v2198 = vpop.xlane.xlu0 %2197
        %v2199 = vsub.f32 %v2105, %v2168
        %v2200 = vsub.f32 %v2108, %v2170
        %v2201 = vsub.f32 %v2113, %v2172
        %v2202 = vsub.f32 %v2116, %v2174
        %v2203 = vsub.f32 %v2121, %v2176
        %v2204 = vsub.f32 %v2124, %v2178
        %v2205 = vsub.f32 %v2129, %v2180
        %v2206 = vsub.f32 %v2132, %v2182
        %v2207 = vsub.f32 %v2137, %v2184
        %v2208 = vsub.f32 %v2140, %v2186
        %v2209 = vsub.f32 %v2145, %v2188
        %v2210 = vsub.f32 %v2148, %v2190
        %v2211 = vsub.f32 %v2153, %v2192
        %v2212 = vsub.f32 %v2156, %v2194
        %v2213 = vsub.f32 %v2161, %v2196
        %v2214 = vsub.f32 %v2164, %v2198
        %v2215 = vmul.f32 %v2199, 1.442695
        %v2216 = vpow.pop %v2215
        %v2217 = vmul.f32 %v2200, 1.442695
        %v2218 = vpow.pop %v2217
        %v2219 = vmul.f32 %v2201, 1.442695
        %v2220 = vpow.pop %v2219
        %v2221 = vmul.f32 %v2202, 1.442695
        %v2222 = vpow.pop %v2221
        %v2223 = vmul.f32 %v2203, 1.442695
        %v2224 = vpow.pop %v2223
        %v2225 = vmul.f32 %v2204, 1.442695
        %v2226 = vpow.pop %v2225
        %v2227 = vmul.f32 %v2205, 1.442695
        %v2228 = vpow.pop %v2227
        %v2229 = vmul.f32 %v2206, 1.442695
        %v2230 = vpow.pop %v2229
        %v2231 = vmul.f32 %v2207, 1.442695
        %v2232 = vpow.pop %v2231
        %v2233 = vmul.f32 %v2208, 1.442695
        %v2234 = vpow.pop %v2233
        %v2235 = vmul.f32 %v2209, 1.442695
        %v2236 = vpow.pop %v2235
        %v2237 = vmul.f32 %v2210, 1.442695
        %v2238 = vpow.pop %v2237
        %v2239 = vmul.f32 %v2211, 1.442695
        %v2240 = vpow.pop %v2239
        %v2241 = vmul.f32 %v2212, 1.442695
        %v2242 = vpow.pop %v2241
        %v2243 = vmul.f32 %v2213, 1.442695
        %v2244 = vpow.pop %v2243
        %v2245 = vmul.f32 %v2214, 1.442695
        %v2246 = vpow.pop %v2245
        %2247 = vadd.xlane.f32.xlu0 %v2216
        %v2248 = vpop.xlane.xlu0 %2247
        %2249 = vadd.xlane.f32.xlu0 %v2218
        %v2250 = vpop.xlane.xlu0 %2249
        %2251 = vadd.xlane.f32.xlu0 %v2220
        %v2252 = vpop.xlane.xlu0 %2251
        %2253 = vadd.xlane.f32.xlu0 %v2222
        %v2254 = vpop.xlane.xlu0 %2253
        %2255 = vadd.xlane.f32.xlu0 %v2224
        %v2256 = vpop.xlane.xlu0 %2255
        %2257 = vadd.xlane.f32.xlu0 %v2226
        %v2258 = vpop.xlane.xlu0 %2257
        %2259 = vadd.xlane.f32.xlu0 %v2228
        %v2260 = vpop.xlane.xlu0 %2259
        %2261 = vadd.xlane.f32.xlu0 %v2230
        %v2262 = vpop.xlane.xlu0 %2261
        %2263 = vadd.xlane.f32.xlu0 %v2232
        %v2264 = vpop.xlane.xlu0 %2263
        %2265 = vadd.xlane.f32.xlu0 %v2234
        %v2266 = vpop.xlane.xlu0 %2265
        %2267 = vadd.xlane.f32.xlu0 %v2236
        %v2268 = vpop.xlane.xlu0 %2267
        %2269 = vadd.xlane.f32.xlu0 %v2238
        %v2270 = vpop.xlane.xlu0 %2269
        %2271 = vadd.xlane.f32.xlu0 %v2240
        %v2272 = vpop.xlane.xlu0 %2271
        %2273 = vadd.xlane.f32.xlu0 %v2242
        %v2274 = vpop.xlane.xlu0 %2273
        %2275 = vadd.xlane.f32.xlu0 %v2244
        %v2276 = vpop.xlane.xlu0 %2275
        %2277 = vadd.xlane.f32.xlu0 %v2246
        %v2278 = vpop.xlane.xlu0 %2277
        %v2279 = vpack.c.bf16 %v2218, %v2216
        %v2280 = vpack.c.bf16 %v2222, %v2220
        %v2281 = vpack.c.bf16 %v2226, %v2224
        %v2282 = vpack.c.bf16 %v2230, %v2228
        %v2283 = vpack.c.bf16 %v2234, %v2232
        %v2284 = vpack.c.bf16 %v2238, %v2236
        %v2285 = vpack.c.bf16 %v2242, %v2240
        %v2286 = vpack.c.bf16 %v2246, %v2244
        %2287 = vmatprep.subr.bf16.mxu0 0
        %2288 = vmatpush1.bf16.msra.mxu0 %v2012
        %2289 = vmatprep.subr.bf16.mxu0 0
        %2290 = vmatpush1.bf16.msra.mxu0 %v2011
        %2291 = vmatprep.subr.bf16.mxu0 0
        %2292 = vmatpush1.bf16.msra.mxu0 %v2010
        %2293 = vmatprep.subr.bf16.mxu0 0
        %2294 = vmatpush1.bf16.msra.mxu0 %v2009
        %2295 = vmatprep.subr.bf16.mxu0 0
        %2296 = vmatpush1.bf16.msra.mxu0 %v2008
        %2297 = vmatprep.subr.bf16.mxu0 0
        %2298 = vmatpush1.bf16.msra.mxu0 %v2007
        %2299 = vmatprep.subr.bf16.mxu0 0
        %2300 = vmatpush1.bf16.msra.mxu0 %v2006
        %2301 = vmatprep.subr.bf16.mxu0 0
        %2302 = vmatpush1.bf16.msra.mxu0 %v2005
        %2303 = vmatprep.subr.bf16.mxu0 0
        %2304 = vmatpush2.bf16.msra.mxu0 0
        %2305 = vmatprep.subr.bf16.mxu0 0
        %2306 = vmatpush2.bf16.msra.mxu0 0
        %2307 = vmatprep.subr.bf16.mxu0 0
        %2308 = vmatpush2.bf16.msra.mxu0 0
        %2309 = vmatprep.subr.bf16.mxu0 0
        %2310 = vmatpush2.bf16.msra.mxu0 0
        %2311 = vmatprep.subr.bf16.mxu0 0
        %2312 = vmatpush2.bf16.msra.mxu0 0
        %2313 = vmatprep.subr.bf16.mxu0 0
        %2314 = vmatpush2.bf16.msra.mxu0 0
        %2315 = vmatprep.subr.bf16.mxu0 0
        %2316 = vmatpush2.bf16.msra.mxu0 0
        %2317 = vmatprep.subr.bf16.mxu0 0
        %2318 = vmatpush2.bf16.msra.mxu0 0
        %2319 = vmatprep.mubr.bf16.mxu0 0
        %2320 = vmatmul.mubr.bf16.gmra.mxu0 %v2279
        %v2321 = vpop.f32.mrf.mxu0
        %v2322 = vadd.f32 0.0, %v2321
        %v2323 = vpop.f32.mrf.mxu0
        %v2324 = vpop.f32.mrf.mxu0
        %v2325 = vadd.f32 0.0, %v2324
        %v2326 = vpop.f32.mrf.mxu0
        %2327 = vmatprep.mubr.bf16.mxu0 0
        %2328 = vmatmul.mubr.bf16.gmra.mxu0 %v2280
        %v2329 = vpop.f32.mrf.mxu0
        %v2330 = vadd.f32 0.0, %v2329
        %v2331 = vpop.f32.mrf.mxu0
        %v2332 = vpop.f32.mrf.mxu0
        %v2333 = vadd.f32 0.0, %v2332
        %v2334 = vpop.f32.mrf.mxu0
        %2335 = vmatprep.mubr.bf16.mxu0 0
        %2336 = vmatmul.mubr.bf16.gmra.mxu0 %v2281
        %v2337 = vpop.f32.mrf.mxu0
        %v2338 = vadd.f32 0.0, %v2337
        %v2339 = vpop.f32.mrf.mxu0
        %v2340 = vpop.f32.mrf.mxu0
        %v2341 = vadd.f32 0.0, %v2340
        %v2342 = vpop.f32.mrf.mxu0
        %2343 = vmatprep.mubr.bf16.mxu0 0
        %2344 = vmatmul.mubr.bf16.gmra.mxu0 %v2282
        %v2345 = vpop.f32.mrf.mxu0
        %v2346 = vadd.f32 0.0, %v2345
        %v2347 = vpop.f32.mrf.mxu0
        %v2348 = vpop.f32.mrf.mxu0
        %v2349 = vadd.f32 0.0, %v2348
        %v2350 = vpop.f32.mrf.mxu0
        %2351 = vmatprep.mubr.bf16.mxu0 0
        %2352 = vmatmul.mubr.bf16.gmra.mxu0 %v2283
        %v2353 = vpop.f32.mrf.mxu0
        %v2354 = vadd.f32 0.0, %v2353
        %v2355 = vpop.f32.mrf.mxu0
        %v2356 = vpop.f32.mrf.mxu0
        %v2357 = vadd.f32 0.0, %v2356
        %v2358 = vpop.f32.mrf.mxu0
        %2359 = vmatprep.mubr.bf16.mxu0 0
        %2360 = vmatmul.mubr.bf16.gmra.mxu0 %v2284
        %v2361 = vpop.f32.mrf.mxu0
        %v2362 = vadd.f32 0.0, %v2361
        %v2363 = vpop.f32.mrf.mxu0
        %v2364 = vpop.f32.mrf.mxu0
        %v2365 = vadd.f32 0.0, %v2364
        %v2366 = vpop.f32.mrf.mxu0
        %2367 = vmatprep.mubr.bf16.mxu0 0
        %2368 = vmatmul.mubr.bf16.gmra.mxu0 %v2285
        %v2369 = vpop.f32.mrf.mxu0
        %v2370 = vadd.f32 0.0, %v2369
        %v2371 = vpop.f32.mrf.mxu0
        %v2372 = vpop.f32.mrf.mxu0
        %v2373 = vadd.f32 0.0, %v2372
        %v2374 = vpop.f32.mrf.mxu0
        %2375 = vmatprep.mubr.bf16.mxu0 0
        %2376 = vmatmul.mubr.bf16.gmra.mxu0 %v2286
        %v2377 = vpop.f32.mrf.mxu0
        %v2378 = vadd.f32 0.0, %v2377
        %v2379 = vpop.f32.mrf.mxu0
        %v2380 = vpop.f32.mrf.mxu0
        %v2381 = vadd.f32 0.0, %v2380
        %v2382 = vpop.f32.mrf.mxu0
        %2383 = vdwg.mxu0
        %v2384 = vrcp.pop %v2248
        %v2385 = vrcp.pop %v2250
        %v2386 = vrcp.pop %v2252
        %v2387 = vrcp.pop %v2254
        %v2388 = vrcp.pop %v2256
        %v2389 = vrcp.pop %v2258
        %v2390 = vrcp.pop %v2260
        %v2391 = vrcp.pop %v2262
        %v2392 = vrcp.pop %v2264
        %v2393 = vrcp.pop %v2266
        %v2394 = vrcp.pop %v2268
        %v2395 = vrcp.pop %v2270
        %v2396 = vrcp.pop %v2272
        %v2397 = vrcp.pop %v2274
        %v2398 = vrcp.pop %v2276
        %v2399 = vrcp.pop %v2278
        %v2400 = vmul.f32 %v2322, %v2384
        %v2401 = vmul.f32 %v2325, %v2385
        %v2402 = vmul.f32 %v2330, %v2386
        %v2403 = vmul.f32 %v2333, %v2387
        %v2404 = vmul.f32 %v2338, %v2388
        %v2405 = vmul.f32 %v2341, %v2389
        %v2406 = vmul.f32 %v2346, %v2390
        %v2407 = vmul.f32 %v2349, %v2391
        %v2408 = vmul.f32 %v2354, %v2392
        %v2409 = vmul.f32 %v2357, %v2393
        %v2410 = vmul.f32 %v2362, %v2394
        %v2411 = vmul.f32 %v2365, %v2395
        %v2412 = vmul.f32 %v2370, %v2396
        %v2413 = vmul.f32 %v2373, %v2397
        %v2414 = vmul.f32 %v2378, %v2398
        %v2415 = vmul.f32 %v2381, %v2399
        %2424 = vrot.lane.b32.xlu0 %v1973, 96
        %v2425 = vpop.permute.xlu0 %2424
        %2426 = vrot.lane.b32.xlu0 %v1974, 96
        %v2427 = vpop.permute.xlu0 %2426
        %2428 = vrot.lane.b32.xlu0 %v1975, 96
        %v2429 = vpop.permute.xlu0 %2428
        %2430 = vrot.lane.b32.xlu0 %v1976, 96
        %v2431 = vpop.permute.xlu0 %2430
        %2432 = vrot.lane.b32.xlu0 %v1977, 96
        %v2433 = vpop.permute.xlu0 %2432
        %2434 = vrot.lane.b32.xlu0 %v1978, 96
        %v2435 = vpop.permute.xlu0 %2434
        %2436 = vrot.lane.b32.xlu0 %v1979, 96
        %v2437 = vpop.permute.xlu0 %2436
        %2438 = vrot.lane.b32.xlu0 %v1980, 96
        %v2439 = vpop.permute.xlu0 %2438
        %2448 = vrot.lane.b32.xlu0 %v1989, 96
        %v2449 = vpop.permute.xlu0 %2448
        %2450 = vrot.lane.b32.xlu0 %v1990, 96
        %v2451 = vpop.permute.xlu0 %2450
        %2452 = vrot.lane.b32.xlu0 %v1991, 96
        %v2453 = vpop.permute.xlu0 %2452
        %2454 = vrot.lane.b32.xlu0 %v1992, 96
        %v2455 = vpop.permute.xlu0 %2454
        %2456 = vrot.lane.b32.xlu0 %v1993, 96
        %v2457 = vpop.permute.xlu0 %2456
        %2458 = vrot.lane.b32.xlu0 %v1994, 96
        %v2459 = vpop.permute.xlu0 %2458
        %2460 = vrot.lane.b32.xlu0 %v1995, 96
        %v2461 = vpop.permute.xlu0 %2460
        %2462 = vrot.lane.b32.xlu0 %v1996, 96
        %v2463 = vpop.permute.xlu0 %2462
        %v2465 = vsel %vm2021, %v2425, 0
        %v2468 = vsel %vm2021, %v2427, 0
        %v2471 = vsel %vm2021, %v2429, 0
        %v2474 = vsel %vm2021, %v2431, 0
        %v2477 = vsel %vm2021, %v2433, 0
        %v2480 = vsel %vm2021, %v2435, 0
        %v2483 = vsel %vm2021, %v2437, 0
        %v2486 = vsel %vm2021, %v2439, 0
        %v2489 = vsel %vm2021, %v2449, 0
        %v2492 = vsel %vm2021, %v2451, 0
        %v2495 = vsel %vm2021, %v2453, 0
        %v2498 = vsel %vm2021, %v2455, 0
        %v2501 = vsel %vm2021, %v2457, 0
        %v2504 = vsel %vm2021, %v2459, 0
        %v2507 = vsel %vm2021, %v2461, 0
        %v2510 = vsel %vm2021, %v2463, 0
        %2512 = vmatprep.subr.bf16.mxu0 0
        %2513 = vmatpush1.bf16.xpose.msra.mxu0 %v2510
        %2514 = vmatprep.subr.bf16.mxu0 0
        %2515 = vmatpush1.bf16.xpose.msra.mxu0 %v2507
        %2516 = vmatprep.subr.bf16.mxu0 0
        %2517 = vmatpush1.bf16.xpose.msra.mxu0 %v2504
        %2518 = vmatprep.subr.bf16.mxu0 0
        %2519 = vmatpush1.bf16.xpose.msra.mxu0 %v2501
        %2520 = vmatprep.subr.bf16.mxu0 0
        %2521 = vmatpush1.bf16.xpose.msra.mxu0 %v2498
        %2522 = vmatprep.subr.bf16.mxu0 0
        %2523 = vmatpush1.bf16.xpose.msra.mxu0 %v2495
        %2524 = vmatprep.subr.bf16.mxu0 0
        %2525 = vmatpush1.bf16.xpose.msra.mxu0 %v2492
        %2526 = vmatprep.subr.bf16.mxu0 0
        %2527 = vmatpush1.bf16.xpose.msra.mxu0 %v2489
        %2528 = vmatprep.subr.bf16.mxu0 0
        %2529 = vmatpush2.bf16.xpose.msra.mxu0 0
        %2530 = vmatprep.subr.bf16.mxu0 0
        %2531 = vmatpush2.bf16.xpose.msra.mxu0 0
        %2532 = vmatprep.subr.bf16.mxu0 0
        %2533 = vmatpush2.bf16.xpose.msra.mxu0 0
        %2534 = vmatprep.subr.bf16.mxu0 0
        %2535 = vmatpush2.bf16.xpose.msra.mxu0 0
        %2536 = vmatprep.subr.bf16.mxu0 0
        %2537 = vmatpush2.bf16.xpose.msra.mxu0 0
        %2538 = vmatprep.subr.bf16.mxu0 0
        %2539 = vmatpush2.bf16.xpose.msra.mxu0 0
        %2540 = vmatprep.subr.bf16.mxu0 0
        %2541 = vmatpush2.bf16.xpose.msra.mxu0 0
        %2542 = vmatprep.subr.bf16.mxu0 0
        %2543 = vmatpush2.bf16.xpose.msra.mxu0 0
        %2544 = vmatprep.mubr.bf16.mxu0 0
        %2545 = vmatmul.mubr.bf16.gmra.mxu0 %v2465
        %v2546 = vpop.f32.mrf.mxu0
        %v2547 = vadd.f32 0.0, %v2546
        %v2548 = vpop.f32.mrf.mxu0
        %v2549 = vpop.f32.mrf.mxu0
        %v2550 = vadd.f32 0.0, %v2549
        %v2551 = vpop.f32.mrf.mxu0
        %2552 = vmatprep.mubr.bf16.mxu0 0
        %2553 = vmatmul.mubr.bf16.gmra.mxu0 %v2468
        %v2554 = vpop.f32.mrf.mxu0
        %v2555 = vadd.f32 0.0, %v2554
        %v2556 = vpop.f32.mrf.mxu0
        %v2557 = vpop.f32.mrf.mxu0
        %v2558 = vadd.f32 0.0, %v2557
        %v2559 = vpop.f32.mrf.mxu0
        %2560 = vmatprep.mubr.bf16.mxu0 0
        %2561 = vmatmul.mubr.bf16.gmra.mxu0 %v2471
        %v2562 = vpop.f32.mrf.mxu0
        %v2563 = vadd.f32 0.0, %v2562
        %v2564 = vpop.f32.mrf.mxu0
        %v2565 = vpop.f32.mrf.mxu0
        %v2566 = vadd.f32 0.0, %v2565
        %v2567 = vpop.f32.mrf.mxu0
        %2568 = vmatprep.mubr.bf16.mxu0 0
        %2569 = vmatmul.mubr.bf16.gmra.mxu0 %v2474
        %v2570 = vpop.f32.mrf.mxu0
        %v2571 = vadd.f32 0.0, %v2570
        %v2572 = vpop.f32.mrf.mxu0
        %v2573 = vpop.f32.mrf.mxu0
        %v2574 = vadd.f32 0.0, %v2573
        %v2575 = vpop.f32.mrf.mxu0
        %2576 = vmatprep.mubr.bf16.mxu0 0
        %2577 = vmatmul.mubr.bf16.gmra.mxu0 %v2477
        %v2578 = vpop.f32.mrf.mxu0
        %v2579 = vadd.f32 0.0, %v2578
        %v2580 = vpop.f32.mrf.mxu0
        %v2581 = vpop.f32.mrf.mxu0
        %v2582 = vadd.f32 0.0, %v2581
        %v2583 = vpop.f32.mrf.mxu0
        %2584 = vmatprep.mubr.bf16.mxu0 0
        %2585 = vmatmul.mubr.bf16.gmra.mxu0 %v2480
        %v2586 = vpop.f32.mrf.mxu0
        %v2587 = vadd.f32 0.0, %v2586
        %v2588 = vpop.f32.mrf.mxu0
        %v2589 = vpop.f32.mrf.mxu0
        %v2590 = vadd.f32 0.0, %v2589
        %v2591 = vpop.f32.mrf.mxu0
        %2592 = vmatprep.mubr.bf16.mxu0 0
        %2593 = vmatmul.mubr.bf16.gmra.mxu0 %v2483
        %v2594 = vpop.f32.mrf.mxu0
        %v2595 = vadd.f32 0.0, %v2594
        %v2596 = vpop.f32.mrf.mxu0
        %v2597 = vpop.f32.mrf.mxu0
        %v2598 = vadd.f32 0.0, %v2597
        %v2599 = vpop.f32.mrf.mxu0
        %2600 = vmatprep.mubr.bf16.mxu0 0
        %2601 = vmatmul.mubr.bf16.gmra.mxu0 %v2486
        %v2602 = vpop.f32.mrf.mxu0
        %v2603 = vadd.f32 0.0, %v2602
        %v2604 = vpop.f32.mrf.mxu0
        %v2605 = vpop.f32.mrf.mxu0
        %v2606 = vadd.f32 0.0, %v2605
        %v2607 = vpop.f32.mrf.mxu0
        %2608 = vdwg.mxu0
        %2609 = vmax.xlane.f32.xlu0 %v2547
        %v2610 = vpop.xlane.xlu0 %2609
        %2611 = vmax.xlane.f32.xlu0 %v2550
        %v2612 = vpop.xlane.xlu0 %2611
        %2613 = vmax.xlane.f32.xlu0 %v2555
        %v2614 = vpop.xlane.xlu0 %2613
        %2615 = vmax.xlane.f32.xlu0 %v2558
        %v2616 = vpop.xlane.xlu0 %2615
        %2617 = vmax.xlane.f32.xlu0 %v2563
        %v2618 = vpop.xlane.xlu0 %2617
        %2619 = vmax.xlane.f32.xlu0 %v2566
        %v2620 = vpop.xlane.xlu0 %2619
        %2621 = vmax.xlane.f32.xlu0 %v2571
        %v2622 = vpop.xlane.xlu0 %2621
        %2623 = vmax.xlane.f32.xlu0 %v2574
        %v2624 = vpop.xlane.xlu0 %2623
        %2625 = vmax.xlane.f32.xlu0 %v2579
        %v2626 = vpop.xlane.xlu0 %2625
        %2627 = vmax.xlane.f32.xlu0 %v2582
        %v2628 = vpop.xlane.xlu0 %2627
        %2629 = vmax.xlane.f32.xlu0 %v2587
        %v2630 = vpop.xlane.xlu0 %2629
        %2631 = vmax.xlane.f32.xlu0 %v2590
        %v2632 = vpop.xlane.xlu0 %2631
        %2633 = vmax.xlane.f32.xlu0 %v2595
        %v2634 = vpop.xlane.xlu0 %2633
        %2635 = vmax.xlane.f32.xlu0 %v2598
        %v2636 = vpop.xlane.xlu0 %2635
        %2637 = vmax.xlane.f32.xlu0 %v2603
        %v2638 = vpop.xlane.xlu0 %2637
        %2639 = vmax.xlane.f32.xlu0 %v2606
        %v2640 = vpop.xlane.xlu0 %2639
        %v2641 = vsub.f32 %v2547, %v2610
        %v2642 = vsub.f32 %v2550, %v2612
        %v2643 = vsub.f32 %v2555, %v2614
        %v2644 = vsub.f32 %v2558, %v2616
        %v2645 = vsub.f32 %v2563, %v2618
        %v2646 = vsub.f32 %v2566, %v2620
        %v2647 = vsub.f32 %v2571, %v2622
        %v2648 = vsub.f32 %v2574, %v2624
        %v2649 = vsub.f32 %v2579, %v2626
        %v2650 = vsub.f32 %v2582, %v2628
        %v2651 = vsub.f32 %v2587, %v2630
        %v2652 = vsub.f32 %v2590, %v2632
        %v2653 = vsub.f32 %v2595, %v2634
        %v2654 = vsub.f32 %v2598, %v2636
        %v2655 = vsub.f32 %v2603, %v2638
        %v2656 = vsub.f32 %v2606, %v2640
        %v2657 = vmul.f32 %v2641, 1.442695
        %v2658 = vpow.pop %v2657
        %v2659 = vmul.f32 %v2642, 1.442695
        %v2660 = vpow.pop %v2659
        %v2661 = vmul.f32 %v2643, 1.442695
        %v2662 = vpow.pop %v2661
        %v2663 = vmul.f32 %v2644, 1.442695
        %v2664 = vpow.pop %v2663
        %v2665 = vmul.f32 %v2645, 1.442695
        %v2666 = vpow.pop %v2665
        %v2667 = vmul.f32 %v2646, 1.442695
        %v2668 = vpow.pop %v2667
        %v2669 = vmul.f32 %v2647, 1.442695
        %v2670 = vpow.pop %v2669
        %v2671 = vmul.f32 %v2648, 1.442695
        %v2672 = vpow.pop %v2671
        %v2673 = vmul.f32 %v2649, 1.442695
        %v2674 = vpow.pop %v2673
        %v2675 = vmul.f32 %v2650, 1.442695
        %v2676 = vpow.pop %v2675
        %v2677 = vmul.f32 %v2651, 1.442695
        %v2678 = vpow.pop %v2677
        %v2679 = vmul.f32 %v2652, 1.442695
        %v2680 = vpow.pop %v2679
        %v2681 = vmul.f32 %v2653, 1.442695
        %v2682 = vpow.pop %v2681
        %v2683 = vmul.f32 %v2654, 1.442695
        %v2684 = vpow.pop %v2683
        %v2685 = vmul.f32 %v2655, 1.442695
        %v2686 = vpow.pop %v2685
        %v2687 = vmul.f32 %v2656, 1.442695
        %v2688 = vpow.pop %v2687
        %2689 = vadd.xlane.f32.xlu0 %v2658
        %v2690 = vpop.xlane.xlu0 %2689
        %2691 = vadd.xlane.f32.xlu0 %v2660
        %v2692 = vpop.xlane.xlu0 %2691
        %2693 = vadd.xlane.f32.xlu0 %v2662
        %v2694 = vpop.xlane.xlu0 %2693
        %2695 = vadd.xlane.f32.xlu0 %v2664
        %v2696 = vpop.xlane.xlu0 %2695
        %2697 = vadd.xlane.f32.xlu0 %v2666
        %v2698 = vpop.xlane.xlu0 %2697
        %2699 = vadd.xlane.f32.xlu0 %v2668
        %v2700 = vpop.xlane.xlu0 %2699
        %2701 = vadd.xlane.f32.xlu0 %v2670
        %v2702 = vpop.xlane.xlu0 %2701
        %2703 = vadd.xlane.f32.xlu0 %v2672
        %v2704 = vpop.xlane.xlu0 %2703
        %2705 = vadd.xlane.f32.xlu0 %v2674
        %v2706 = vpop.xlane.xlu0 %2705
        %2707 = vadd.xlane.f32.xlu0 %v2676
        %v2708 = vpop.xlane.xlu0 %2707
        %2709 = vadd.xlane.f32.xlu0 %v2678
        %v2710 = vpop.xlane.xlu0 %2709
        %2711 = vadd.xlane.f32.xlu0 %v2680
        %v2712 = vpop.xlane.xlu0 %2711
        %2713 = vadd.xlane.f32.xlu0 %v2682
        %v2714 = vpop.xlane.xlu0 %2713
        %2715 = vadd.xlane.f32.xlu0 %v2684
        %v2716 = vpop.xlane.xlu0 %2715
        %2717 = vadd.xlane.f32.xlu0 %v2686
        %v2718 = vpop.xlane.xlu0 %2717
        %2719 = vadd.xlane.f32.xlu0 %v2688
        %v2720 = vpop.xlane.xlu0 %2719
        %v2721 = vpack.c.bf16 %v2660, %v2658
        %v2722 = vpack.c.bf16 %v2664, %v2662
        %v2723 = vpack.c.bf16 %v2668, %v2666
        %v2724 = vpack.c.bf16 %v2672, %v2670
        %v2725 = vpack.c.bf16 %v2676, %v2674
        %v2726 = vpack.c.bf16 %v2680, %v2678
        %v2727 = vpack.c.bf16 %v2684, %v2682
        %v2728 = vpack.c.bf16 %v2688, %v2686
        %2737 = vrot.lane.b32.xlu0 %v2005, 96
        %v2738 = vpop.permute.xlu0 %2737
        %2739 = vrot.lane.b32.xlu0 %v2006, 96
        %v2740 = vpop.permute.xlu0 %2739
        %2741 = vrot.lane.b32.xlu0 %v2007, 96
        %v2742 = vpop.permute.xlu0 %2741
        %2743 = vrot.lane.b32.xlu0 %v2008, 96
        %v2744 = vpop.permute.xlu0 %2743
        %2745 = vrot.lane.b32.xlu0 %v2009, 96
        %v2746 = vpop.permute.xlu0 %2745
        %2747 = vrot.lane.b32.xlu0 %v2010, 96
        %v2748 = vpop.permute.xlu0 %2747
        %2749 = vrot.lane.b32.xlu0 %v2011, 96
        %v2750 = vpop.permute.xlu0 %2749
        %2751 = vrot.lane.b32.xlu0 %v2012, 96
        %v2752 = vpop.permute.xlu0 %2751
        %2761 = vmatprep.subr.bf16.mxu0 0
        %2762 = vmatpush1.bf16.msra.mxu0 %v2752
        %2763 = vmatprep.subr.bf16.mxu0 0
        %2764 = vmatpush1.bf16.msra.mxu0 %v2750
        %2765 = vmatprep.subr.bf16.mxu0 0
        %2766 = vmatpush1.bf16.msra.mxu0 %v2748
        %2767 = vmatprep.subr.bf16.mxu0 0
        %2768 = vmatpush1.bf16.msra.mxu0 %v2746
        %2769 = vmatprep.subr.bf16.mxu0 0
        %2770 = vmatpush1.bf16.msra.mxu0 %v2744
        %2771 = vmatprep.subr.bf16.mxu0 0
        %2772 = vmatpush1.bf16.msra.mxu0 %v2742
        %2773 = vmatprep.subr.bf16.mxu0 0
        %2774 = vmatpush1.bf16.msra.mxu0 %v2740
        %2775 = vmatprep.subr.bf16.mxu0 0
        %2776 = vmatpush1.bf16.msra.mxu0 %v2738
        %2777 = vmatprep.subr.bf16.mxu0 0
        %2778 = vmatpush2.bf16.msra.mxu0 0
        %2779 = vmatprep.subr.bf16.mxu0 0
        %2780 = vmatpush2.bf16.msra.mxu0 0
        %2781 = vmatprep.subr.bf16.mxu0 0
        %2782 = vmatpush2.bf16.msra.mxu0 0
        %2783 = vmatprep.subr.bf16.mxu0 0
        %2784 = vmatpush2.bf16.msra.mxu0 0
        %2785 = vmatprep.subr.bf16.mxu0 0
        %2786 = vmatpush2.bf16.msra.mxu0 0
        %2787 = vmatprep.subr.bf16.mxu0 0
        %2788 = vmatpush2.bf16.msra.mxu0 0
        %2789 = vmatprep.subr.bf16.mxu0 0
        %2790 = vmatpush2.bf16.msra.mxu0 0
        %2791 = vmatprep.subr.bf16.mxu0 0
        %2792 = vmatpush2.bf16.msra.mxu0 0
        %2793 = vmatprep.mubr.bf16.mxu0 0
        %2794 = vmatmul.mubr.bf16.gmra.mxu0 %v2721
        %v2795 = vpop.f32.mrf.mxu0
        %v2796 = vadd.f32 0.0, %v2795
        %v2797 = vpop.f32.mrf.mxu0
        %v2798 = vpop.f32.mrf.mxu0
        %v2799 = vadd.f32 0.0, %v2798
        %v2800 = vpop.f32.mrf.mxu0
        %2801 = vmatprep.mubr.bf16.mxu0 0
        %2802 = vmatmul.mubr.bf16.gmra.mxu0 %v2722
        %v2803 = vpop.f32.mrf.mxu0
        %v2804 = vadd.f32 0.0, %v2803
        %v2805 = vpop.f32.mrf.mxu0
        %v2806 = vpop.f32.mrf.mxu0
        %v2807 = vadd.f32 0.0, %v2806
        %v2808 = vpop.f32.mrf.mxu0
        %2809 = vmatprep.mubr.bf16.mxu0 0
        %2810 = vmatmul.mubr.bf16.gmra.mxu0 %v2723
        %v2811 = vpop.f32.mrf.mxu0
        %v2812 = vadd.f32 0.0, %v2811
        %v2813 = vpop.f32.mrf.mxu0
        %v2814 = vpop.f32.mrf.mxu0
        %v2815 = vadd.f32 0.0, %v2814
        %v2816 = vpop.f32.mrf.mxu0
        %2817 = vmatprep.mubr.bf16.mxu0 0
        %2818 = vmatmul.mubr.bf16.gmra.mxu0 %v2724
        %v2819 = vpop.f32.mrf.mxu0
        %v2820 = vadd.f32 0.0, %v2819
        %v2821 = vpop.f32.mrf.mxu0
        %v2822 = vpop.f32.mrf.mxu0
        %v2823 = vadd.f32 0.0, %v2822
        %v2824 = vpop.f32.mrf.mxu0
        %2825 = vmatprep.mubr.bf16.mxu0 0
        %2826 = vmatmul.mubr.bf16.gmra.mxu0 %v2725
        %v2827 = vpop.f32.mrf.mxu0
        %v2828 = vadd.f32 0.0, %v2827
        %v2829 = vpop.f32.mrf.mxu0
        %v2830 = vpop.f32.mrf.mxu0
        %v2831 = vadd.f32 0.0, %v2830
        %v2832 = vpop.f32.mrf.mxu0
        %2833 = vmatprep.mubr.bf16.mxu0 0
        %2834 = vmatmul.mubr.bf16.gmra.mxu0 %v2726
        %v2835 = vpop.f32.mrf.mxu0
        %v2836 = vadd.f32 0.0, %v2835
        %v2837 = vpop.f32.mrf.mxu0
        %v2838 = vpop.f32.mrf.mxu0
        %v2839 = vadd.f32 0.0, %v2838
        %v2840 = vpop.f32.mrf.mxu0
        %2841 = vmatprep.mubr.bf16.mxu0 0
        %2842 = vmatmul.mubr.bf16.gmra.mxu0 %v2727
        %v2843 = vpop.f32.mrf.mxu0
        %v2844 = vadd.f32 0.0, %v2843
        %v2845 = vpop.f32.mrf.mxu0
        %v2846 = vpop.f32.mrf.mxu0
        %v2847 = vadd.f32 0.0, %v2846
        %v2848 = vpop.f32.mrf.mxu0
        %2849 = vmatprep.mubr.bf16.mxu0 0
        %2850 = vmatmul.mubr.bf16.gmra.mxu0 %v2728
        %v2851 = vpop.f32.mrf.mxu0
        %v2852 = vadd.f32 0.0, %v2851
        %v2853 = vpop.f32.mrf.mxu0
        %v2854 = vpop.f32.mrf.mxu0
        %v2855 = vadd.f32 0.0, %v2854
        %v2856 = vpop.f32.mrf.mxu0
        %2857 = vdwg.mxu0
        %v2858 = vrcp.pop %v2690
        %v2859 = vrcp.pop %v2692
        %v2860 = vrcp.pop %v2694
        %v2861 = vrcp.pop %v2696
        %v2862 = vrcp.pop %v2698
        %v2863 = vrcp.pop %v2700
        %v2864 = vrcp.pop %v2702
        %v2865 = vrcp.pop %v2704
        %v2866 = vrcp.pop %v2706
        %v2867 = vrcp.pop %v2708
        %v2868 = vrcp.pop %v2710
        %v2869 = vrcp.pop %v2712
        %v2870 = vrcp.pop %v2714
        %v2871 = vrcp.pop %v2716
        %v2872 = vrcp.pop %v2718
        %v2873 = vrcp.pop %v2720
        %v2874 = vmul.f32 %v2796, %v2858
        %v2875 = vmul.f32 %v2799, %v2859
        %v2876 = vmul.f32 %v2804, %v2860
        %v2877 = vmul.f32 %v2807, %v2861
        %v2878 = vmul.f32 %v2812, %v2862
        %v2879 = vmul.f32 %v2815, %v2863
        %v2880 = vmul.f32 %v2820, %v2864
        %v2881 = vmul.f32 %v2823, %v2865
        %v2882 = vmul.f32 %v2828, %v2866
        %v2883 = vmul.f32 %v2831, %v2867
        %v2884 = vmul.f32 %v2836, %v2868
        %v2885 = vmul.f32 %v2839, %v2869
        %v2886 = vmul.f32 %v2844, %v2870
        %v2887 = vmul.f32 %v2847, %v2871
        %v2888 = vmul.f32 %v2852, %v2872
        %v2889 = vmul.f32 %v2855, %v2873
        %2890 = vrot.lane.b32.xlu0 %v1973, 64
        %v2891 = vpop.permute.xlu0 %2890
        %2892 = vrot.lane.b32.xlu0 %v1974, 64
        %v2893 = vpop.permute.xlu0 %2892
        %2894 = vrot.lane.b32.xlu0 %v1975, 64
        %v2895 = vpop.permute.xlu0 %2894
        %2896 = vrot.lane.b32.xlu0 %v1976, 64
        %v2897 = vpop.permute.xlu0 %2896
        %2898 = vrot.lane.b32.xlu0 %v1977, 64
        %v2899 = vpop.permute.xlu0 %2898
        %2900 = vrot.lane.b32.xlu0 %v1978, 64
        %v2901 = vpop.permute.xlu0 %2900
        %2902 = vrot.lane.b32.xlu0 %v1979, 64
        %v2903 = vpop.permute.xlu0 %2902
        %2904 = vrot.lane.b32.xlu0 %v1980, 64
        %v2905 = vpop.permute.xlu0 %2904
        %2906 = vrot.lane.b32.xlu0 %v1989, 64
        %v2907 = vpop.permute.xlu0 %2906
        %2908 = vrot.lane.b32.xlu0 %v1990, 64
        %v2909 = vpop.permute.xlu0 %2908
        %2910 = vrot.lane.b32.xlu0 %v1991, 64
        %v2911 = vpop.permute.xlu0 %2910
        %2912 = vrot.lane.b32.xlu0 %v1992, 64
        %v2913 = vpop.permute.xlu0 %2912
        %2914 = vrot.lane.b32.xlu0 %v1993, 64
        %v2915 = vpop.permute.xlu0 %2914
        %2916 = vrot.lane.b32.xlu0 %v1994, 64
        %v2917 = vpop.permute.xlu0 %2916
        %2918 = vrot.lane.b32.xlu0 %v1995, 64
        %v2919 = vpop.permute.xlu0 %2918
        %2920 = vrot.lane.b32.xlu0 %v1996, 64
        %v2921 = vpop.permute.xlu0 %2920
        %v2923 = vsel %vm2021, %v2891, 0
        %v2926 = vsel %vm2021, %v2893, 0
        %v2929 = vsel %vm2021, %v2895, 0
        %v2932 = vsel %vm2021, %v2897, 0
        %v2935 = vsel %vm2021, %v2899, 0
        %v2938 = vsel %vm2021, %v2901, 0
        %v2941 = vsel %vm2021, %v2903, 0
        %v2944 = vsel %vm2021, %v2905, 0
        %v2947 = vsel %vm2021, %v2907, 0
        %v2950 = vsel %vm2021, %v2909, 0
        %v2953 = vsel %vm2021, %v2911, 0
        %v2956 = vsel %vm2021, %v2913, 0
        %v2959 = vsel %vm2021, %v2915, 0
        %v2962 = vsel %vm2021, %v2917, 0
        %v2965 = vsel %vm2021, %v2919, 0
        %v2968 = vsel %vm2021, %v2921, 0
        %2970 = vmatprep.subr.bf16.mxu0 0
        %2971 = vmatpush1.bf16.xpose.msra.mxu0 %v2968
        %2972 = vmatprep.subr.bf16.mxu0 0
        %2973 = vmatpush1.bf16.xpose.msra.mxu0 %v2965
        %2974 = vmatprep.subr.bf16.mxu0 0
        %2975 = vmatpush1.bf16.xpose.msra.mxu0 %v2962
        %2976 = vmatprep.subr.bf16.mxu0 0
        %2977 = vmatpush1.bf16.xpose.msra.mxu0 %v2959
        %2978 = vmatprep.subr.bf16.mxu0 0
        %2979 = vmatpush1.bf16.xpose.msra.mxu0 %v2956
        %2980 = vmatprep.subr.bf16.mxu0 0
        %2981 = vmatpush1.bf16.xpose.msra.mxu0 %v2953
        %2982 = vmatprep.subr.bf16.mxu0 0
        %2983 = vmatpush1.bf16.xpose.msra.mxu0 %v2950
        %2984 = vmatprep.subr.bf16.mxu0 0
        %2985 = vmatpush1.bf16.xpose.msra.mxu0 %v2947
        %2986 = vmatprep.subr.bf16.mxu0 0
        %2987 = vmatpush2.bf16.xpose.msra.mxu0 0
        %2988 = vmatprep.subr.bf16.mxu0 0
        %2989 = vmatpush2.bf16.xpose.msra.mxu0 0
        %2990 = vmatprep.subr.bf16.mxu0 0
        %2991 = vmatpush2.bf16.xpose.msra.mxu0 0
        %2992 = vmatprep.subr.bf16.mxu0 0
        %2993 = vmatpush2.bf16.xpose.msra.mxu0 0
        %2994 = vmatprep.subr.bf16.mxu0 0
        %2995 = vmatpush2.bf16.xpose.msra.mxu0 0
        %2996 = vmatprep.subr.bf16.mxu0 0
        %2997 = vmatpush2.bf16.xpose.msra.mxu0 0
        %2998 = vmatprep.subr.bf16.mxu0 0
        %2999 = vmatpush2.bf16.xpose.msra.mxu0 0
        %3000 = vmatprep.subr.bf16.mxu0 0
        %3001 = vmatpush2.bf16.xpose.msra.mxu0 0
        %3002 = vmatprep.mubr.bf16.mxu0 0
        %3003 = vmatmul.mubr.bf16.gmra.mxu0 %v2923
        %v3004 = vpop.f32.mrf.mxu0
        %v3005 = vadd.f32 0.0, %v3004
        %v3006 = vpop.f32.mrf.mxu0
        %v3007 = vpop.f32.mrf.mxu0
        %v3008 = vadd.f32 0.0, %v3007
        %v3009 = vpop.f32.mrf.mxu0
        %3010 = vmatprep.mubr.bf16.mxu0 0
        %3011 = vmatmul.mubr.bf16.gmra.mxu0 %v2926
        %v3012 = vpop.f32.mrf.mxu0
        %v3013 = vadd.f32 0.0, %v3012
        %v3014 = vpop.f32.mrf.mxu0
        %v3015 = vpop.f32.mrf.mxu0
        %v3016 = vadd.f32 0.0, %v3015
        %v3017 = vpop.f32.mrf.mxu0
        %3018 = vmatprep.mubr.bf16.mxu0 0
        %3019 = vmatmul.mubr.bf16.gmra.mxu0 %v2929
        %v3020 = vpop.f32.mrf.mxu0
        %v3021 = vadd.f32 0.0, %v3020
        %v3022 = vpop.f32.mrf.mxu0
        %v3023 = vpop.f32.mrf.mxu0
        %v3024 = vadd.f32 0.0, %v3023
        %v3025 = vpop.f32.mrf.mxu0
        %3026 = vmatprep.mubr.bf16.mxu0 0
        %3027 = vmatmul.mubr.bf16.gmra.mxu0 %v2932
        %v3028 = vpop.f32.mrf.mxu0
        %v3029 = vadd.f32 0.0, %v3028
        %v3030 = vpop.f32.mrf.mxu0
        %v3031 = vpop.f32.mrf.mxu0
        %v3032 = vadd.f32 0.0, %v3031
        %v3033 = vpop.f32.mrf.mxu0
        %3034 = vmatprep.mubr.bf16.mxu0 0
        %3035 = vmatmul.mubr.bf16.gmra.mxu0 %v2935
        %v3036 = vpop.f32.mrf.mxu0
        %v3037 = vadd.f32 0.0, %v3036
        %v3038 = vpop.f32.mrf.mxu0
        %v3039 = vpop.f32.mrf.mxu0
        %v3040 = vadd.f32 0.0, %v3039
        %v3041 = vpop.f32.mrf.mxu0
        %3042 = vmatprep.mubr.bf16.mxu0 0
        %3043 = vmatmul.mubr.bf16.gmra.mxu0 %v2938
        %v3044 = vpop.f32.mrf.mxu0
        %v3045 = vadd.f32 0.0, %v3044
        %v3046 = vpop.f32.mrf.mxu0
        %v3047 = vpop.f32.mrf.mxu0
        %v3048 = vadd.f32 0.0, %v3047
        %v3049 = vpop.f32.mrf.mxu0
        %3050 = vmatprep.mubr.bf16.mxu0 0
        %3051 = vmatmul.mubr.bf16.gmra.mxu0 %v2941
        %v3052 = vpop.f32.mrf.mxu0
        %v3053 = vadd.f32 0.0, %v3052
        %v3054 = vpop.f32.mrf.mxu0
        %v3055 = vpop.f32.mrf.mxu0
        %v3056 = vadd.f32 0.0, %v3055
        %v3057 = vpop.f32.mrf.mxu0
        %3058 = vmatprep.mubr.bf16.mxu0 0
        %3059 = vmatmul.mubr.bf16.gmra.mxu0 %v2944
        %v3060 = vpop.f32.mrf.mxu0
        %v3061 = vadd.f32 0.0, %v3060
        %v3062 = vpop.f32.mrf.mxu0
        %v3063 = vpop.f32.mrf.mxu0
        %v3064 = vadd.f32 0.0, %v3063
        %v3065 = vpop.f32.mrf.mxu0
        %3066 = vdwg.mxu0
        %3067 = vmax.xlane.f32.xlu0 %v3005
        %v3068 = vpop.xlane.xlu0 %3067
        %3069 = vmax.xlane.f32.xlu0 %v3008
        %v3070 = vpop.xlane.xlu0 %3069
        %3071 = vmax.xlane.f32.xlu0 %v3013
        %v3072 = vpop.xlane.xlu0 %3071
        %3073 = vmax.xlane.f32.xlu0 %v3016
        %v3074 = vpop.xlane.xlu0 %3073
        %3075 = vmax.xlane.f32.xlu0 %v3021
        %v3076 = vpop.xlane.xlu0 %3075
        %3077 = vmax.xlane.f32.xlu0 %v3024
        %v3078 = vpop.xlane.xlu0 %3077
        %3079 = vmax.xlane.f32.xlu0 %v3029
        %v3080 = vpop.xlane.xlu0 %3079
        %3081 = vmax.xlane.f32.xlu0 %v3032
        %v3082 = vpop.xlane.xlu0 %3081
        %3083 = vmax.xlane.f32.xlu0 %v3037
        %v3084 = vpop.xlane.xlu0 %3083
        %3085 = vmax.xlane.f32.xlu0 %v3040
        %v3086 = vpop.xlane.xlu0 %3085
        %3087 = vmax.xlane.f32.xlu0 %v3045
        %v3088 = vpop.xlane.xlu0 %3087
        %3089 = vmax.xlane.f32.xlu0 %v3048
        %v3090 = vpop.xlane.xlu0 %3089
        %3091 = vmax.xlane.f32.xlu0 %v3053
        %v3092 = vpop.xlane.xlu0 %3091
        %3093 = vmax.xlane.f32.xlu0 %v3056
        %v3094 = vpop.xlane.xlu0 %3093
        %3095 = vmax.xlane.f32.xlu0 %v3061
        %v3096 = vpop.xlane.xlu0 %3095
        %3097 = vmax.xlane.f32.xlu0 %v3064
        %v3098 = vpop.xlane.xlu0 %3097
        %v3099 = vsub.f32 %v3005, %v3068
        %v3100 = vsub.f32 %v3008, %v3070
        %v3101 = vsub.f32 %v3013, %v3072
        %v3102 = vsub.f32 %v3016, %v3074
        %v3103 = vsub.f32 %v3021, %v3076
        %v3104 = vsub.f32 %v3024, %v3078
        %v3105 = vsub.f32 %v3029, %v3080
        %v3106 = vsub.f32 %v3032, %v3082
        %v3107 = vsub.f32 %v3037, %v3084
        %v3108 = vsub.f32 %v3040, %v3086
        %v3109 = vsub.f32 %v3045, %v3088
        %v3110 = vsub.f32 %v3048, %v3090
        %v3111 = vsub.f32 %v3053, %v3092
        %v3112 = vsub.f32 %v3056, %v3094
        %v3113 = vsub.f32 %v3061, %v3096
        %v3114 = vsub.f32 %v3064, %v3098
        %v3115 = vmul.f32 %v3099, 1.442695
        %v3116 = vpow.pop %v3115
        %v3117 = vmul.f32 %v3100, 1.442695
        %v3118 = vpow.pop %v3117
        %v3119 = vmul.f32 %v3101, 1.442695
        %v3120 = vpow.pop %v3119
        %v3121 = vmul.f32 %v3102, 1.442695
        %v3122 = vpow.pop %v3121
        %v3123 = vmul.f32 %v3103, 1.442695
        %v3124 = vpow.pop %v3123
        %v3125 = vmul.f32 %v3104, 1.442695
        %v3126 = vpow.pop %v3125
        %v3127 = vmul.f32 %v3105, 1.442695
        %v3128 = vpow.pop %v3127
        %v3129 = vmul.f32 %v3106, 1.442695
        %v3130 = vpow.pop %v3129
        %v3131 = vmul.f32 %v3107, 1.442695
        %v3132 = vpow.pop %v3131
        %v3133 = vmul.f32 %v3108, 1.442695
        %v3134 = vpow.pop %v3133
        %v3135 = vmul.f32 %v3109, 1.442695
        %v3136 = vpow.pop %v3135
        %v3137 = vmul.f32 %v3110, 1.442695
        %v3138 = vpow.pop %v3137
        %v3139 = vmul.f32 %v3111, 1.442695
        %v3140 = vpow.pop %v3139
        %v3141 = vmul.f32 %v3112, 1.442695
        %v3142 = vpow.pop %v3141
        %v3143 = vmul.f32 %v3113, 1.442695
        %v3144 = vpow.pop %v3143
        %v3145 = vmul.f32 %v3114, 1.442695
        %v3146 = vpow.pop %v3145
        %3147 = vadd.xlane.f32.xlu0 %v3116
        %v3148 = vpop.xlane.xlu0 %3147
        %3149 = vadd.xlane.f32.xlu0 %v3118
        %v3150 = vpop.xlane.xlu0 %3149
        %3151 = vadd.xlane.f32.xlu0 %v3120
        %v3152 = vpop.xlane.xlu0 %3151
        %3153 = vadd.xlane.f32.xlu0 %v3122
        %v3154 = vpop.xlane.xlu0 %3153
        %3155 = vadd.xlane.f32.xlu0 %v3124
        %v3156 = vpop.xlane.xlu0 %3155
        %3157 = vadd.xlane.f32.xlu0 %v3126
        %v3158 = vpop.xlane.xlu0 %3157
        %3159 = vadd.xlane.f32.xlu0 %v3128
        %v3160 = vpop.xlane.xlu0 %3159
        %3161 = vadd.xlane.f32.xlu0 %v3130
        %v3162 = vpop.xlane.xlu0 %3161
        %3163 = vadd.xlane.f32.xlu0 %v3132
        %v3164 = vpop.xlane.xlu0 %3163
        %3165 = vadd.xlane.f32.xlu0 %v3134
        %v3166 = vpop.xlane.xlu0 %3165
        %3167 = vadd.xlane.f32.xlu0 %v3136
        %v3168 = vpop.xlane.xlu0 %3167
        %3169 = vadd.xlane.f32.xlu0 %v3138
        %v3170 = vpop.xlane.xlu0 %3169
        %3171 = vadd.xlane.f32.xlu0 %v3140
        %v3172 = vpop.xlane.xlu0 %3171
        %3173 = vadd.xlane.f32.xlu0 %v3142
        %v3174 = vpop.xlane.xlu0 %3173
        %3175 = vadd.xlane.f32.xlu0 %v3144
        %v3176 = vpop.xlane.xlu0 %3175
        %3177 = vadd.xlane.f32.xlu0 %v3146
        %v3178 = vpop.xlane.xlu0 %3177
        %v3179 = vpack.c.bf16 %v3118, %v3116
        %v3180 = vpack.c.bf16 %v3122, %v3120
        %v3181 = vpack.c.bf16 %v3126, %v3124
        %v3182 = vpack.c.bf16 %v3130, %v3128
        %v3183 = vpack.c.bf16 %v3134, %v3132
        %v3184 = vpack.c.bf16 %v3138, %v3136
        %v3185 = vpack.c.bf16 %v3142, %v3140
        %v3186 = vpack.c.bf16 %v3146, %v3144
        %3187 = vrot.lane.b32.xlu0 %v2005, 64
        %v3188 = vpop.permute.xlu0 %3187
        %3189 = vrot.lane.b32.xlu0 %v2006, 64
        %v3190 = vpop.permute.xlu0 %3189
        %3191 = vrot.lane.b32.xlu0 %v2007, 64
        %v3192 = vpop.permute.xlu0 %3191
        %3193 = vrot.lane.b32.xlu0 %v2008, 64
        %v3194 = vpop.permute.xlu0 %3193
        %3195 = vrot.lane.b32.xlu0 %v2009, 64
        %v3196 = vpop.permute.xlu0 %3195
        %3197 = vrot.lane.b32.xlu0 %v2010, 64
        %v3198 = vpop.permute.xlu0 %3197
        %3199 = vrot.lane.b32.xlu0 %v2011, 64
        %v3200 = vpop.permute.xlu0 %3199
        %3201 = vrot.lane.b32.xlu0 %v2012, 64
        %v3202 = vpop.permute.xlu0 %3201
        %3211 = vmatprep.subr.bf16.mxu0 0
        %3212 = vmatpush1.bf16.msra.mxu0 %v3202
        %3213 = vmatprep.subr.bf16.mxu0 0
        %3214 = vmatpush1.bf16.msra.mxu0 %v3200
        %3215 = vmatprep.subr.bf16.mxu0 0
        %3216 = vmatpush1.bf16.msra.mxu0 %v3198
        %3217 = vmatprep.subr.bf16.mxu0 0
        %3218 = vmatpush1.bf16.msra.mxu0 %v3196
        %3219 = vmatprep.subr.bf16.mxu0 0
        %3220 = vmatpush1.bf16.msra.mxu0 %v3194
        %3221 = vmatprep.subr.bf16.mxu0 0
        %3222 = vmatpush1.bf16.msra.mxu0 %v3192
        %3223 = vmatprep.subr.bf16.mxu0 0
        %3224 = vmatpush1.bf16.msra.mxu0 %v3190
        %3225 = vmatprep.subr.bf16.mxu0 0
        %3226 = vmatpush1.bf16.msra.mxu0 %v3188
        %3227 = vmatprep.subr.bf16.mxu0 0
        %3228 = vmatpush2.bf16.msra.mxu0 0
        %3229 = vmatprep.subr.bf16.mxu0 0
        %3230 = vmatpush2.bf16.msra.mxu0 0
        %3231 = vmatprep.subr.bf16.mxu0 0
        %3232 = vmatpush2.bf16.msra.mxu0 0
        %3233 = vmatprep.subr.bf16.mxu0 0
        %3234 = vmatpush2.bf16.msra.mxu0 0
        %3235 = vmatprep.subr.bf16.mxu0 0
        %3236 = vmatpush2.bf16.msra.mxu0 0
        %3237 = vmatprep.subr.bf16.mxu0 0
        %3238 = vmatpush2.bf16.msra.mxu0 0
        %3239 = vmatprep.subr.bf16.mxu0 0
        %3240 = vmatpush2.bf16.msra.mxu0 0
        %3241 = vmatprep.subr.bf16.mxu0 0
        %3242 = vmatpush2.bf16.msra.mxu0 0
        %3243 = vmatprep.mubr.bf16.mxu0 0
        %3244 = vmatmul.mubr.bf16.gmra.mxu0 %v3179
        %v3245 = vpop.f32.mrf.mxu0
        %v3246 = vadd.f32 0.0, %v3245
        %v3247 = vpop.f32.mrf.mxu0
        %v3248 = vpop.f32.mrf.mxu0
        %v3249 = vadd.f32 0.0, %v3248
        %v3250 = vpop.f32.mrf.mxu0
        %3251 = vmatprep.mubr.bf16.mxu0 0
        %3252 = vmatmul.mubr.bf16.gmra.mxu0 %v3180
        %v3253 = vpop.f32.mrf.mxu0
        %v3254 = vadd.f32 0.0, %v3253
        %v3255 = vpop.f32.mrf.mxu0
        %v3256 = vpop.f32.mrf.mxu0
        %v3257 = vadd.f32 0.0, %v3256
        %v3258 = vpop.f32.mrf.mxu0
        %3259 = vmatprep.mubr.bf16.mxu0 0
        %3260 = vmatmul.mubr.bf16.gmra.mxu0 %v3181
        %v3261 = vpop.f32.mrf.mxu0
        %v3262 = vadd.f32 0.0, %v3261
        %v3263 = vpop.f32.mrf.mxu0
        %v3264 = vpop.f32.mrf.mxu0
        %v3265 = vadd.f32 0.0, %v3264
        %v3266 = vpop.f32.mrf.mxu0
        %3267 = vmatprep.mubr.bf16.mxu0 0
        %3268 = vmatmul.mubr.bf16.gmra.mxu0 %v3182
        %v3269 = vpop.f32.mrf.mxu0
        %v3270 = vadd.f32 0.0, %v3269
        %v3271 = vpop.f32.mrf.mxu0
        %v3272 = vpop.f32.mrf.mxu0
        %v3273 = vadd.f32 0.0, %v3272
        %v3274 = vpop.f32.mrf.mxu0
        %3275 = vmatprep.mubr.bf16.mxu0 0
        %3276 = vmatmul.mubr.bf16.gmra.mxu0 %v3183
        %v3277 = vpop.f32.mrf.mxu0
        %v3278 = vadd.f32 0.0, %v3277
        %v3279 = vpop.f32.mrf.mxu0
        %v3280 = vpop.f32.mrf.mxu0
        %v3281 = vadd.f32 0.0, %v3280
        %v3282 = vpop.f32.mrf.mxu0
        %3283 = vmatprep.mubr.bf16.mxu0 0
        %3284 = vmatmul.mubr.bf16.gmra.mxu0 %v3184
        %v3285 = vpop.f32.mrf.mxu0
        %v3286 = vadd.f32 0.0, %v3285
        %v3287 = vpop.f32.mrf.mxu0
        %v3288 = vpop.f32.mrf.mxu0
        %v3289 = vadd.f32 0.0, %v3288
        %v3290 = vpop.f32.mrf.mxu0
        %3291 = vmatprep.mubr.bf16.mxu0 0
        %3292 = vmatmul.mubr.bf16.gmra.mxu0 %v3185
        %v3293 = vpop.f32.mrf.mxu0
        %v3294 = vadd.f32 0.0, %v3293
        %v3295 = vpop.f32.mrf.mxu0
        %v3296 = vpop.f32.mrf.mxu0
        %v3297 = vadd.f32 0.0, %v3296
        %v3298 = vpop.f32.mrf.mxu0
        %3299 = vmatprep.mubr.bf16.mxu0 0
        %3300 = vmatmul.mubr.bf16.gmra.mxu0 %v3186
        %v3301 = vpop.f32.mrf.mxu0
        %v3302 = vadd.f32 0.0, %v3301
        %v3303 = vpop.f32.mrf.mxu0
        %v3304 = vpop.f32.mrf.mxu0
        %v3305 = vadd.f32 0.0, %v3304
        %v3306 = vpop.f32.mrf.mxu0
        %3307 = vdwg.mxu0
        %v3308 = vrcp.pop %v3148
        %v3309 = vrcp.pop %v3150
        %v3310 = vrcp.pop %v3152
        %v3311 = vrcp.pop %v3154
        %v3312 = vrcp.pop %v3156
        %v3313 = vrcp.pop %v3158
        %v3314 = vrcp.pop %v3160
        %v3315 = vrcp.pop %v3162
        %v3316 = vrcp.pop %v3164
        %v3317 = vrcp.pop %v3166
        %v3318 = vrcp.pop %v3168
        %v3319 = vrcp.pop %v3170
        %v3320 = vrcp.pop %v3172
        %v3321 = vrcp.pop %v3174
        %v3322 = vrcp.pop %v3176
        %v3323 = vrcp.pop %v3178
        %v3324 = vmul.f32 %v3246, %v3308
        %v3325 = vmul.f32 %v3249, %v3309
        %v3326 = vmul.f32 %v3254, %v3310
        %v3327 = vmul.f32 %v3257, %v3311
        %v3328 = vmul.f32 %v3262, %v3312
        %v3329 = vmul.f32 %v3265, %v3313
        %v3330 = vmul.f32 %v3270, %v3314
        %v3331 = vmul.f32 %v3273, %v3315
        %v3332 = vmul.f32 %v3278, %v3316
        %v3333 = vmul.f32 %v3281, %v3317
        %v3334 = vmul.f32 %v3286, %v3318
        %v3335 = vmul.f32 %v3289, %v3319
        %v3336 = vmul.f32 %v3294, %v3320
        %v3337 = vmul.f32 %v3297, %v3321
        %v3338 = vmul.f32 %v3302, %v3322
        %v3339 = vmul.f32 %v3305, %v3323
        %3340 = vrot.lane.b32.xlu0 %v1973, 32
        %v3341 = vpop.permute.xlu0 %3340
        %3342 = vrot.lane.b32.xlu0 %v1974, 32
        %v3343 = vpop.permute.xlu0 %3342
        %3344 = vrot.lane.b32.xlu0 %v1975, 32
        %v3345 = vpop.permute.xlu0 %3344
        %3346 = vrot.lane.b32.xlu0 %v1976, 32
        %v3347 = vpop.permute.xlu0 %3346
        %3348 = vrot.lane.b32.xlu0 %v1977, 32
        %v3349 = vpop.permute.xlu0 %3348
        %3350 = vrot.lane.b32.xlu0 %v1978, 32
        %v3351 = vpop.permute.xlu0 %3350
        %3352 = vrot.lane.b32.xlu0 %v1979, 32
        %v3353 = vpop.permute.xlu0 %3352
        %3354 = vrot.lane.b32.xlu0 %v1980, 32
        %v3355 = vpop.permute.xlu0 %3354
        %3356 = vrot.lane.b32.xlu0 %v1989, 32
        %v3357 = vpop.permute.xlu0 %3356
        %3358 = vrot.lane.b32.xlu0 %v1990, 32
        %v3359 = vpop.permute.xlu0 %3358
        %3360 = vrot.lane.b32.xlu0 %v1991, 32
        %v3361 = vpop.permute.xlu0 %3360
        %3362 = vrot.lane.b32.xlu0 %v1992, 32
        %v3363 = vpop.permute.xlu0 %3362
        %3364 = vrot.lane.b32.xlu0 %v1993, 32
        %v3365 = vpop.permute.xlu0 %3364
        %3366 = vrot.lane.b32.xlu0 %v1994, 32
        %v3367 = vpop.permute.xlu0 %3366
        %3368 = vrot.lane.b32.xlu0 %v1995, 32
        %v3369 = vpop.permute.xlu0 %3368
        %3370 = vrot.lane.b32.xlu0 %v1996, 32
        %v3371 = vpop.permute.xlu0 %3370
        %v3373 = vsel %vm2021, %v3341, 0
        %v3376 = vsel %vm2021, %v3343, 0
        %v3379 = vsel %vm2021, %v3345, 0
        %v3382 = vsel %vm2021, %v3347, 0
        %v3385 = vsel %vm2021, %v3349, 0
        %v3388 = vsel %vm2021, %v3351, 0
        %v3391 = vsel %vm2021, %v3353, 0
        %v3394 = vsel %vm2021, %v3355, 0
        %v3397 = vsel %vm2021, %v3357, 0
        %v3400 = vsel %vm2021, %v3359, 0
        %v3403 = vsel %vm2021, %v3361, 0
        %v3406 = vsel %vm2021, %v3363, 0
        %v3409 = vsel %vm2021, %v3365, 0
        %v3412 = vsel %vm2021, %v3367, 0
        %v3415 = vsel %vm2021, %v3369, 0
        %v3418 = vsel %vm2021, %v3371, 0
        %3420 = vmatprep.subr.bf16.mxu0 0
        %3421 = vmatpush1.bf16.xpose.msra.mxu0 %v3418
        %3422 = vmatprep.subr.bf16.mxu0 0
        %3423 = vmatpush1.bf16.xpose.msra.mxu0 %v3415
        %3424 = vmatprep.subr.bf16.mxu0 0
        %3425 = vmatpush1.bf16.xpose.msra.mxu0 %v3412
        %3426 = vmatprep.subr.bf16.mxu0 0
        %3427 = vmatpush1.bf16.xpose.msra.mxu0 %v3409
        %3428 = vmatprep.subr.bf16.mxu0 0
        %3429 = vmatpush1.bf16.xpose.msra.mxu0 %v3406
        %3430 = vmatprep.subr.bf16.mxu0 0
        %3431 = vmatpush1.bf16.xpose.msra.mxu0 %v3403
        %3432 = vmatprep.subr.bf16.mxu0 0
        %3433 = vmatpush1.bf16.xpose.msra.mxu0 %v3400
        %3434 = vmatprep.subr.bf16.mxu0 0
        %3435 = vmatpush1.bf16.xpose.msra.mxu0 %v3397
        %3436 = vmatprep.subr.bf16.mxu0 0
        %3437 = vmatpush2.bf16.xpose.msra.mxu0 0
        %3438 = vmatprep.subr.bf16.mxu0 0
        %3439 = vmatpush2.bf16.xpose.msra.mxu0 0
        %3440 = vmatprep.subr.bf16.mxu0 0
        %3441 = vmatpush2.bf16.xpose.msra.mxu0 0
        %3442 = vmatprep.subr.bf16.mxu0 0
        %3443 = vmatpush2.bf16.xpose.msra.mxu0 0
        %3444 = vmatprep.subr.bf16.mxu0 0
        %3445 = vmatpush2.bf16.xpose.msra.mxu0 0
        %3446 = vmatprep.subr.bf16.mxu0 0
        %3447 = vmatpush2.bf16.xpose.msra.mxu0 0
        %3448 = vmatprep.subr.bf16.mxu0 0
        %3449 = vmatpush2.bf16.xpose.msra.mxu0 0
        %3450 = vmatprep.subr.bf16.mxu0 0
        %3451 = vmatpush2.bf16.xpose.msra.mxu0 0
        %3452 = vmatprep.mubr.bf16.mxu0 0
        %3453 = vmatmul.mubr.bf16.gmra.mxu0 %v3373
        %v3454 = vpop.f32.mrf.mxu0
        %v3455 = vadd.f32 0.0, %v3454
        %v3456 = vpop.f32.mrf.mxu0
        %v3457 = vpop.f32.mrf.mxu0
        %v3458 = vadd.f32 0.0, %v3457
        %v3459 = vpop.f32.mrf.mxu0
        %3460 = vmatprep.mubr.bf16.mxu0 0
        %3461 = vmatmul.mubr.bf16.gmra.mxu0 %v3376
        %v3462 = vpop.f32.mrf.mxu0
        %v3463 = vadd.f32 0.0, %v3462
        %v3464 = vpop.f32.mrf.mxu0
        %v3465 = vpop.f32.mrf.mxu0
        %v3466 = vadd.f32 0.0, %v3465
        %v3467 = vpop.f32.mrf.mxu0
        %3468 = vmatprep.mubr.bf16.mxu0 0
        %3469 = vmatmul.mubr.bf16.gmra.mxu0 %v3379
        %v3470 = vpop.f32.mrf.mxu0
        %v3471 = vadd.f32 0.0, %v3470
        %v3472 = vpop.f32.mrf.mxu0
        %v3473 = vpop.f32.mrf.mxu0
        %v3474 = vadd.f32 0.0, %v3473
        %v3475 = vpop.f32.mrf.mxu0
        %3476 = vmatprep.mubr.bf16.mxu0 0
        %3477 = vmatmul.mubr.bf16.gmra.mxu0 %v3382
        %v3478 = vpop.f32.mrf.mxu0
        %v3479 = vadd.f32 0.0, %v3478
        %v3480 = vpop.f32.mrf.mxu0
        %v3481 = vpop.f32.mrf.mxu0
        %v3482 = vadd.f32 0.0, %v3481
        %v3483 = vpop.f32.mrf.mxu0
        %3484 = vmatprep.mubr.bf16.mxu0 0
        %3485 = vmatmul.mubr.bf16.gmra.mxu0 %v3385
        %v3486 = vpop.f32.mrf.mxu0
        %v3487 = vadd.f32 0.0, %v3486
        %v3488 = vpop.f32.mrf.mxu0
        %v3489 = vpop.f32.mrf.mxu0
        %v3490 = vadd.f32 0.0, %v3489
        %v3491 = vpop.f32.mrf.mxu0
        %3492 = vmatprep.mubr.bf16.mxu0 0
        %3493 = vmatmul.mubr.bf16.gmra.mxu0 %v3388
        %v3494 = vpop.f32.mrf.mxu0
        %v3495 = vadd.f32 0.0, %v3494
        %v3496 = vpop.f32.mrf.mxu0
        %v3497 = vpop.f32.mrf.mxu0
        %v3498 = vadd.f32 0.0, %v3497
        %v3499 = vpop.f32.mrf.mxu0
        %3500 = vmatprep.mubr.bf16.mxu0 0
        %3501 = vmatmul.mubr.bf16.gmra.mxu0 %v3391
        %v3502 = vpop.f32.mrf.mxu0
        %v3503 = vadd.f32 0.0, %v3502
        %v3504 = vpop.f32.mrf.mxu0
        %v3505 = vpop.f32.mrf.mxu0
        %v3506 = vadd.f32 0.0, %v3505
        %v3507 = vpop.f32.mrf.mxu0
        %3508 = vmatprep.mubr.bf16.mxu0 0
        %3509 = vmatmul.mubr.bf16.gmra.mxu0 %v3394
        %v3510 = vpop.f32.mrf.mxu0
        %v3511 = vadd.f32 0.0, %v3510
        %v3512 = vpop.f32.mrf.mxu0
        %v3513 = vpop.f32.mrf.mxu0
        %v3514 = vadd.f32 0.0, %v3513
        %v3515 = vpop.f32.mrf.mxu0
        %3516 = vdwg.mxu0
        %3517 = vmax.xlane.f32.xlu0 %v3455
        %v3518 = vpop.xlane.xlu0 %3517
        %3519 = vmax.xlane.f32.xlu0 %v3458
        %v3520 = vpop.xlane.xlu0 %3519
        %3521 = vmax.xlane.f32.xlu0 %v3463
        %v3522 = vpop.xlane.xlu0 %3521
        %3523 = vmax.xlane.f32.xlu0 %v3466
        %v3524 = vpop.xlane.xlu0 %3523
        %3525 = vmax.xlane.f32.xlu0 %v3471
        %v3526 = vpop.xlane.xlu0 %3525
        %3527 = vmax.xlane.f32.xlu0 %v3474
        %v3528 = vpop.xlane.xlu0 %3527
        %3529 = vmax.xlane.f32.xlu0 %v3479
        %v3530 = vpop.xlane.xlu0 %3529
        %3531 = vmax.xlane.f32.xlu0 %v3482
        %v3532 = vpop.xlane.xlu0 %3531
        %3533 = vmax.xlane.f32.xlu0 %v3487
        %v3534 = vpop.xlane.xlu0 %3533
        %3535 = vmax.xlane.f32.xlu0 %v3490
        %v3536 = vpop.xlane.xlu0 %3535
        %3537 = vmax.xlane.f32.xlu0 %v3495
        %v3538 = vpop.xlane.xlu0 %3537
        %3539 = vmax.xlane.f32.xlu0 %v3498
        %v3540 = vpop.xlane.xlu0 %3539
        %3541 = vmax.xlane.f32.xlu0 %v3503
        %v3542 = vpop.xlane.xlu0 %3541
        %3543 = vmax.xlane.f32.xlu0 %v3506
        %v3544 = vpop.xlane.xlu0 %3543
        %3545 = vmax.xlane.f32.xlu0 %v3511
        %v3546 = vpop.xlane.xlu0 %3545
        %3547 = vmax.xlane.f32.xlu0 %v3514
        %v3548 = vpop.xlane.xlu0 %3547
        %v3549 = vsub.f32 %v3455, %v3518
        %v3550 = vsub.f32 %v3458, %v3520
        %v3551 = vsub.f32 %v3463, %v3522
        %v3552 = vsub.f32 %v3466, %v3524
        %v3553 = vsub.f32 %v3471, %v3526
        %v3554 = vsub.f32 %v3474, %v3528
        %v3555 = vsub.f32 %v3479, %v3530
        %v3556 = vsub.f32 %v3482, %v3532
        %v3557 = vsub.f32 %v3487, %v3534
        %v3558 = vsub.f32 %v3490, %v3536
        %v3559 = vsub.f32 %v3495, %v3538
        %v3560 = vsub.f32 %v3498, %v3540
        %v3561 = vsub.f32 %v3503, %v3542
        %v3562 = vsub.f32 %v3506, %v3544
        %v3563 = vsub.f32 %v3511, %v3546
        %v3564 = vsub.f32 %v3514, %v3548
        %v3565 = vmul.f32 %v3549, 1.442695
        %v3566 = vpow.pop %v3565
        %v3567 = vmul.f32 %v3550, 1.442695
        %v3568 = vpow.pop %v3567
        %v3569 = vmul.f32 %v3551, 1.442695
        %v3570 = vpow.pop %v3569
        %v3571 = vmul.f32 %v3552, 1.442695
        %v3572 = vpow.pop %v3571
        %v3573 = vmul.f32 %v3553, 1.442695
        %v3574 = vpow.pop %v3573
        %v3575 = vmul.f32 %v3554, 1.442695
        %v3576 = vpow.pop %v3575
        %v3577 = vmul.f32 %v3555, 1.442695
        %v3578 = vpow.pop %v3577
        %v3579 = vmul.f32 %v3556, 1.442695
        %v3580 = vpow.pop %v3579
        %v3581 = vmul.f32 %v3557, 1.442695
        %v3582 = vpow.pop %v3581
        %v3583 = vmul.f32 %v3558, 1.442695
        %v3584 = vpow.pop %v3583
        %v3585 = vmul.f32 %v3559, 1.442695
        %v3586 = vpow.pop %v3585
        %v3587 = vmul.f32 %v3560, 1.442695
        %v3588 = vpow.pop %v3587
        %v3589 = vmul.f32 %v3561, 1.442695
        %v3590 = vpow.pop %v3589
        %v3591 = vmul.f32 %v3562, 1.442695
        %v3592 = vpow.pop %v3591
        %v3593 = vmul.f32 %v3563, 1.442695
        %v3594 = vpow.pop %v3593
        %v3595 = vmul.f32 %v3564, 1.442695
        %v3596 = vpow.pop %v3595
        %3597 = vadd.xlane.f32.xlu0 %v3566
        %v3598 = vpop.xlane.xlu0 %3597
        %3599 = vadd.xlane.f32.xlu0 %v3568
        %v3600 = vpop.xlane.xlu0 %3599
        %3601 = vadd.xlane.f32.xlu0 %v3570
        %v3602 = vpop.xlane.xlu0 %3601
        %3603 = vadd.xlane.f32.xlu0 %v3572
        %v3604 = vpop.xlane.xlu0 %3603
        %3605 = vadd.xlane.f32.xlu0 %v3574
        %v3606 = vpop.xlane.xlu0 %3605
        %3607 = vadd.xlane.f32.xlu0 %v3576
        %v3608 = vpop.xlane.xlu0 %3607
        %3609 = vadd.xlane.f32.xlu0 %v3578
        %v3610 = vpop.xlane.xlu0 %3609
        %3611 = vadd.xlane.f32.xlu0 %v3580
        %v3612 = vpop.xlane.xlu0 %3611
        %3613 = vadd.xlane.f32.xlu0 %v3582
        %v3614 = vpop.xlane.xlu0 %3613
        %3615 = vadd.xlane.f32.xlu0 %v3584
        %v3616 = vpop.xlane.xlu0 %3615
        %3617 = vadd.xlane.f32.xlu0 %v3586
        %v3618 = vpop.xlane.xlu0 %3617
        %3619 = vadd.xlane.f32.xlu0 %v3588
        %v3620 = vpop.xlane.xlu0 %3619
        %3621 = vadd.xlane.f32.xlu0 %v3590
        %v3622 = vpop.xlane.xlu0 %3621
        %3623 = vadd.xlane.f32.xlu0 %v3592
        %v3624 = vpop.xlane.xlu0 %3623
        %3625 = vadd.xlane.f32.xlu0 %v3594
        %v3626 = vpop.xlane.xlu0 %3625
        %3627 = vadd.xlane.f32.xlu0 %v3596
        %v3628 = vpop.xlane.xlu0 %3627
        %v3629 = vpack.c.bf16 %v3568, %v3566
        %v3630 = vpack.c.bf16 %v3572, %v3570
        %v3631 = vpack.c.bf16 %v3576, %v3574
        %v3632 = vpack.c.bf16 %v3580, %v3578
        %v3633 = vpack.c.bf16 %v3584, %v3582
        %v3634 = vpack.c.bf16 %v3588, %v3586
        %v3635 = vpack.c.bf16 %v3592, %v3590
        %v3636 = vpack.c.bf16 %v3596, %v3594
        %3637 = vrot.lane.b32.xlu0 %v2005, 32
        %v3638 = vpop.permute.xlu0 %3637
        %3639 = vrot.lane.b32.xlu0 %v2006, 32
        %v3640 = vpop.permute.xlu0 %3639
        %3641 = vrot.lane.b32.xlu0 %v2007, 32
        %v3642 = vpop.permute.xlu0 %3641
        %3643 = vrot.lane.b32.xlu0 %v2008, 32
        %v3644 = vpop.permute.xlu0 %3643
        %3645 = vrot.lane.b32.xlu0 %v2009, 32
        %v3646 = vpop.permute.xlu0 %3645
        %3647 = vrot.lane.b32.xlu0 %v2010, 32
        %v3648 = vpop.permute.xlu0 %3647
        %3649 = vrot.lane.b32.xlu0 %v2011, 32
        %v3650 = vpop.permute.xlu0 %3649
        %3651 = vrot.lane.b32.xlu0 %v2012, 32
        %v3652 = vpop.permute.xlu0 %3651
        %3661 = vmatprep.subr.bf16.mxu0 0
        %3662 = vmatpush1.bf16.msra.mxu0 %v3652
        %3663 = vmatprep.subr.bf16.mxu0 0
        %3664 = vmatpush1.bf16.msra.mxu0 %v3650
        %3665 = vmatprep.subr.bf16.mxu0 0
        %3666 = vmatpush1.bf16.msra.mxu0 %v3648
        %3667 = vmatprep.subr.bf16.mxu0 0
        %3668 = vmatpush1.bf16.msra.mxu0 %v3646
        %3669 = vmatprep.subr.bf16.mxu0 0
        %3670 = vmatpush1.bf16.msra.mxu0 %v3644
        %3671 = vmatprep.subr.bf16.mxu0 0
        %3672 = vmatpush1.bf16.msra.mxu0 %v3642
        %3673 = vmatprep.subr.bf16.mxu0 0
        %3674 = vmatpush1.bf16.msra.mxu0 %v3640
        %3675 = vmatprep.subr.bf16.mxu0 0
        %3676 = vmatpush1.bf16.msra.mxu0 %v3638
        %3677 = vmatprep.subr.bf16.mxu0 0
        %3678 = vmatpush2.bf16.msra.mxu0 0
        %3679 = vmatprep.subr.bf16.mxu0 0
        %3680 = vmatpush2.bf16.msra.mxu0 0
        %3681 = vmatprep.subr.bf16.mxu0 0
        %3682 = vmatpush2.bf16.msra.mxu0 0
        %3683 = vmatprep.subr.bf16.mxu0 0
        %3684 = vmatpush2.bf16.msra.mxu0 0
        %3685 = vmatprep.subr.bf16.mxu0 0
        %3686 = vmatpush2.bf16.msra.mxu0 0
        %3687 = vmatprep.subr.bf16.mxu0 0
        %3688 = vmatpush2.bf16.msra.mxu0 0
        %3689 = vmatprep.subr.bf16.mxu0 0
        %3690 = vmatpush2.bf16.msra.mxu0 0
        %3691 = vmatprep.subr.bf16.mxu0 0
        %3692 = vmatpush2.bf16.msra.mxu0 0
        %3693 = vmatprep.mubr.bf16.mxu0 0
        %3694 = vmatmul.mubr.bf16.gmra.mxu0 %v3629
        %v3695 = vpop.f32.mrf.mxu0
        %v3696 = vadd.f32 0.0, %v3695
        %v3697 = vpop.f32.mrf.mxu0
        %v3698 = vpop.f32.mrf.mxu0
        %v3699 = vadd.f32 0.0, %v3698
        %v3700 = vpop.f32.mrf.mxu0
        %3701 = vmatprep.mubr.bf16.mxu0 0
        %3702 = vmatmul.mubr.bf16.gmra.mxu0 %v3630
        %v3703 = vpop.f32.mrf.mxu0
        %v3704 = vadd.f32 0.0, %v3703
        %v3705 = vpop.f32.mrf.mxu0
        %v3706 = vpop.f32.mrf.mxu0
        %v3707 = vadd.f32 0.0, %v3706
        %v3708 = vpop.f32.mrf.mxu0
        %3709 = vmatprep.mubr.bf16.mxu0 0
        %3710 = vmatmul.mubr.bf16.gmra.mxu0 %v3631
        %v3711 = vpop.f32.mrf.mxu0
        %v3712 = vadd.f32 0.0, %v3711
        %v3713 = vpop.f32.mrf.mxu0
        %v3714 = vpop.f32.mrf.mxu0
        %v3715 = vadd.f32 0.0, %v3714
        %v3716 = vpop.f32.mrf.mxu0
        %3717 = vmatprep.mubr.bf16.mxu0 0
        %3718 = vmatmul.mubr.bf16.gmra.mxu0 %v3632
        %v3719 = vpop.f32.mrf.mxu0
        %v3720 = vadd.f32 0.0, %v3719
        %v3721 = vpop.f32.mrf.mxu0
        %v3722 = vpop.f32.mrf.mxu0
        %v3723 = vadd.f32 0.0, %v3722
        %v3724 = vpop.f32.mrf.mxu0
        %3725 = vmatprep.mubr.bf16.mxu0 0
        %3726 = vmatmul.mubr.bf16.gmra.mxu0 %v3633
        %v3727 = vpop.f32.mrf.mxu0
        %v3728 = vadd.f32 0.0, %v3727
        %v3729 = vpop.f32.mrf.mxu0
        %v3730 = vpop.f32.mrf.mxu0
        %v3731 = vadd.f32 0.0, %v3730
        %v3732 = vpop.f32.mrf.mxu0
        %3733 = vmatprep.mubr.bf16.mxu0 0
        %3734 = vmatmul.mubr.bf16.gmra.mxu0 %v3634
        %v3735 = vpop.f32.mrf.mxu0
        %v3736 = vadd.f32 0.0, %v3735
        %v3737 = vpop.f32.mrf.mxu0
        %v3738 = vpop.f32.mrf.mxu0
        %v3739 = vadd.f32 0.0, %v3738
        %v3740 = vpop.f32.mrf.mxu0
        %3741 = vmatprep.mubr.bf16.mxu0 0
        %3742 = vmatmul.mubr.bf16.gmra.mxu0 %v3635
        %v3743 = vpop.f32.mrf.mxu0
        %v3744 = vadd.f32 0.0, %v3743
        %v3745 = vpop.f32.mrf.mxu0
        %v3746 = vpop.f32.mrf.mxu0
        %v3747 = vadd.f32 0.0, %v3746
        %v3748 = vpop.f32.mrf.mxu0
        %3749 = vmatprep.mubr.bf16.mxu0 0
        %3750 = vmatmul.mubr.bf16.gmra.mxu0 %v3636
        %v3751 = vpop.f32.mrf.mxu0
        %v3752 = vadd.f32 0.0, %v3751
        %v3753 = vpop.f32.mrf.mxu0
        %v3754 = vpop.f32.mrf.mxu0
        %v3755 = vadd.f32 0.0, %v3754
        %v3756 = vpop.f32.mrf.mxu0
        %3757 = vdwg.mxu0
        %v3758 = vrcp.pop %v3598
        %v3759 = vrcp.pop %v3600
        %v3760 = vrcp.pop %v3602
        %v3761 = vrcp.pop %v3604
        %v3762 = vrcp.pop %v3606
        %v3763 = vrcp.pop %v3608
        %v3764 = vrcp.pop %v3610
        %v3765 = vrcp.pop %v3612
        %v3766 = vrcp.pop %v3614
        %v3767 = vrcp.pop %v3616
        %v3768 = vrcp.pop %v3618
        %v3769 = vrcp.pop %v3620
        %v3770 = vrcp.pop %v3622
        %v3771 = vrcp.pop %v3624
        %v3772 = vrcp.pop %v3626
        %v3773 = vrcp.pop %v3628
        %v3774 = vmul.f32 %v3696, %v3758
        %v3775 = vmul.f32 %v3699, %v3759
        %v3776 = vmul.f32 %v3704, %v3760
        %v3777 = vmul.f32 %v3707, %v3761
        %v3778 = vmul.f32 %v3712, %v3762
        %v3779 = vmul.f32 %v3715, %v3763
        %v3780 = vmul.f32 %v3720, %v3764
        %v3781 = vmul.f32 %v3723, %v3765
        %v3782 = vmul.f32 %v3728, %v3766
        %v3783 = vmul.f32 %v3731, %v3767
        %v3784 = vmul.f32 %v3736, %v3768
        %v3785 = vmul.f32 %v3739, %v3769
        %v3786 = vmul.f32 %v3744, %v3770
        %v3787 = vmul.f32 %v3747, %v3771
        %v3788 = vmul.f32 %v3752, %v3772
        %v3789 = vmul.f32 %v3755, %v3773
        %3806 = vrot.lane.b32.xlu0 %v2874, 32
        %v3807 = vpop.permute.xlu0 %3806
        %3808 = vrot.lane.b32.xlu0 %v2875, 32
        %v3809 = vpop.permute.xlu0 %3808
        %3810 = vrot.lane.b32.xlu0 %v2876, 32
        %v3811 = vpop.permute.xlu0 %3810
        %3812 = vrot.lane.b32.xlu0 %v2877, 32
        %v3813 = vpop.permute.xlu0 %3812
        %3814 = vrot.lane.b32.xlu0 %v2878, 32
        %v3815 = vpop.permute.xlu0 %3814
        %3816 = vrot.lane.b32.xlu0 %v2879, 32
        %v3817 = vpop.permute.xlu0 %3816
        %3818 = vrot.lane.b32.xlu0 %v2880, 32
        %v3819 = vpop.permute.xlu0 %3818
        %3820 = vrot.lane.b32.xlu0 %v2881, 32
        %v3821 = vpop.permute.xlu0 %3820
        %3822 = vrot.lane.b32.xlu0 %v2882, 32
        %v3823 = vpop.permute.xlu0 %3822
        %3824 = vrot.lane.b32.xlu0 %v2883, 32
        %v3825 = vpop.permute.xlu0 %3824
        %3826 = vrot.lane.b32.xlu0 %v2884, 32
        %v3827 = vpop.permute.xlu0 %3826
        %3828 = vrot.lane.b32.xlu0 %v2885, 32
        %v3829 = vpop.permute.xlu0 %3828
        %3830 = vrot.lane.b32.xlu0 %v2886, 32
        %v3831 = vpop.permute.xlu0 %3830
        %3832 = vrot.lane.b32.xlu0 %v2887, 32
        %v3833 = vpop.permute.xlu0 %3832
        %3834 = vrot.lane.b32.xlu0 %v2888, 32
        %v3835 = vpop.permute.xlu0 %3834
        %3836 = vrot.lane.b32.xlu0 %v2889, 32
        %v3837 = vpop.permute.xlu0 %3836
        %3870 = vrot.lane.b32.xlu0 %v3324, 64
        %v3871 = vpop.permute.xlu0 %3870
        %3872 = vrot.lane.b32.xlu0 %v3325, 64
        %v3873 = vpop.permute.xlu0 %3872
        %3874 = vrot.lane.b32.xlu0 %v3326, 64
        %v3875 = vpop.permute.xlu0 %3874
        %3876 = vrot.lane.b32.xlu0 %v3327, 64
        %v3877 = vpop.permute.xlu0 %3876
        %3878 = vrot.lane.b32.xlu0 %v3328, 64
        %v3879 = vpop.permute.xlu0 %3878
        %3880 = vrot.lane.b32.xlu0 %v3329, 64
        %v3881 = vpop.permute.xlu0 %3880
        %3882 = vrot.lane.b32.xlu0 %v3330, 64
        %v3883 = vpop.permute.xlu0 %3882
        %3884 = vrot.lane.b32.xlu0 %v3331, 64
        %v3885 = vpop.permute.xlu0 %3884
        %3886 = vrot.lane.b32.xlu0 %v3332, 64
        %v3887 = vpop.permute.xlu0 %3886
        %3888 = vrot.lane.b32.xlu0 %v3333, 64
        %v3889 = vpop.permute.xlu0 %3888
        %3890 = vrot.lane.b32.xlu0 %v3334, 64
        %v3891 = vpop.permute.xlu0 %3890
        %3892 = vrot.lane.b32.xlu0 %v3335, 64
        %v3893 = vpop.permute.xlu0 %3892
        %3894 = vrot.lane.b32.xlu0 %v3336, 64
        %v3895 = vpop.permute.xlu0 %3894
        %3896 = vrot.lane.b32.xlu0 %v3337, 64
        %v3897 = vpop.permute.xlu0 %3896
        %3898 = vrot.lane.b32.xlu0 %v3338, 64
        %v3899 = vpop.permute.xlu0 %3898
        %3900 = vrot.lane.b32.xlu0 %v3339, 64
        %v3901 = vpop.permute.xlu0 %3900
        %3934 = vrot.lane.b32.xlu0 %v3774, 96
        %v3935 = vpop.permute.xlu0 %3934
        %3936 = vrot.lane.b32.xlu0 %v3775, 96
        %v3937 = vpop.permute.xlu0 %3936
        %3938 = vrot.lane.b32.xlu0 %v3776, 96
        %v3939 = vpop.permute.xlu0 %3938
        %3940 = vrot.lane.b32.xlu0 %v3777, 96
        %v3941 = vpop.permute.xlu0 %3940
        %3942 = vrot.lane.b32.xlu0 %v3778, 96
        %v3943 = vpop.permute.xlu0 %3942
        %3944 = vrot.lane.b32.xlu0 %v3779, 96
        %v3945 = vpop.permute.xlu0 %3944
        %3946 = vrot.lane.b32.xlu0 %v3780, 96
        %v3947 = vpop.permute.xlu0 %3946
        %3948 = vrot.lane.b32.xlu0 %v3781, 96
        %v3949 = vpop.permute.xlu0 %3948
        %3950 = vrot.lane.b32.xlu0 %v3782, 96
        %v3951 = vpop.permute.xlu0 %3950
        %3952 = vrot.lane.b32.xlu0 %v3783, 96
        %v3953 = vpop.permute.xlu0 %3952
        %3954 = vrot.lane.b32.xlu0 %v3784, 96
        %v3955 = vpop.permute.xlu0 %3954
        %3956 = vrot.lane.b32.xlu0 %v3785, 96
        %v3957 = vpop.permute.xlu0 %3956
        %3958 = vrot.lane.b32.xlu0 %v3786, 96
        %v3959 = vpop.permute.xlu0 %3958
        %3960 = vrot.lane.b32.xlu0 %v3787, 96
        %v3961 = vpop.permute.xlu0 %3960
        %3962 = vrot.lane.b32.xlu0 %v3788, 96
        %v3963 = vpop.permute.xlu0 %3962
        %3964 = vrot.lane.b32.xlu0 %v3789, 96
        %v3965 = vpop.permute.xlu0 %3964
        %v3982 = vsel %vm2021, %v2400, %v3807
        %v3983 = vsel %vm2021, %v2401, %v3809
        %v3984 = vsel %vm2021, %v2402, %v3811
        %v3985 = vsel %vm2021, %v2403, %v3813
        %v3986 = vsel %vm2021, %v2404, %v3815
        %v3987 = vsel %vm2021, %v2405, %v3817
        %v3988 = vsel %vm2021, %v2406, %v3819
        %v3989 = vsel %vm2021, %v2407, %v3821
        %v3990 = vsel %vm2021, %v2408, %v3823
        %v3991 = vsel %vm2021, %v2409, %v3825
        %v3992 = vsel %vm2021, %v2410, %v3827
        %v3993 = vsel %vm2021, %v2411, %v3829
        %v3994 = vsel %vm2021, %v2412, %v3831
        %v3995 = vsel %vm2021, %v2413, %v3833
        %v3996 = vsel %vm2021, %v2414, %v3835
        %v3997 = vsel %vm2021, %v2415, %v3837
        %vm3998 = vcmask 523264
        %v3999 = vsel %vm3998, %v3982, %v3871
        %v4000 = vsel %vm3998, %v3983, %v3873
        %v4001 = vsel %vm3998, %v3984, %v3875
        %v4002 = vsel %vm3998, %v3985, %v3877
        %v4003 = vsel %vm3998, %v3986, %v3879
        %v4004 = vsel %vm3998, %v3987, %v3881
        %v4005 = vsel %vm3998, %v3988, %v3883
        %v4006 = vsel %vm3998, %v3989, %v3885
        %v4007 = vsel %vm3998, %v3990, %v3887
        %v4008 = vsel %vm3998, %v3991, %v3889
        %v4009 = vsel %vm3998, %v3992, %v3891
        %v4010 = vsel %vm3998, %v3993, %v3893
        %v4011 = vsel %vm3998, %v3994, %v3895
        %v4012 = vsel %vm3998, %v3995, %v3897
        %v4013 = vsel %vm3998, %v3996, %v3899
        %v4014 = vsel %vm3998, %v3997, %v3901
        %vm4015 = vcmask 785408
        %v4016 = vsel %vm4015, %v3999, %v3935
        %v4017 = vsel %vm4015, %v4000, %v3937
        %v4018 = vsel %vm4015, %v4001, %v3939
        %v4019 = vsel %vm4015, %v4002, %v3941
        %v4020 = vsel %vm4015, %v4003, %v3943
        %v4021 = vsel %vm4015, %v4004, %v3945
        %v4022 = vsel %vm4015, %v4005, %v3947
        %v4023 = vsel %vm4015, %v4006, %v3949
        %v4024 = vsel %vm4015, %v4007, %v3951
        %v4025 = vsel %vm4015, %v4008, %v3953
        %v4026 = vsel %vm4015, %v4009, %v3955
        %v4027 = vsel %vm4015, %v4010, %v3957
        %v4028 = vsel %vm4015, %v4011, %v3959
        %v4029 = vsel %vm4015, %v4012, %v3961
        %v4030 = vsel %vm4015, %v4013, %v3963
        %v4031 = vsel %vm4015, %v4014, %v3965
        %v4033 = vsel %vm2021, %v1981, 0
        %v4036 = vsel %vm2021, %v1982, 0
        %v4039 = vsel %vm2021, %v1983, 0
        %v4042 = vsel %vm2021, %v1984, 0
        %v4045 = vsel %vm2021, %v1985, 0
        %v4048 = vsel %vm2021, %v1986, 0
        %v4051 = vsel %vm2021, %v1987, 0
        %v4054 = vsel %vm2021, %v1988, 0
        %v4057 = vsel %vm2021, %v1997, 0
        %v4060 = vsel %vm2021, %v1998, 0
        %v4063 = vsel %vm2021, %v1999, 0
        %v4066 = vsel %vm2021, %v2000, 0
        %v4069 = vsel %vm2021, %v2001, 0
        %v4072 = vsel %vm2021, %v2002, 0
        %v4075 = vsel %vm2021, %v2003, 0
        %v4078 = vsel %vm2021, %v2004, 0
        %4080 = vmatprep.subr.bf16.mxu0 0
        %4081 = vmatpush1.bf16.xpose.msra.mxu0 %v4078
        %4082 = vmatprep.subr.bf16.mxu0 0
        %4083 = vmatpush1.bf16.xpose.msra.mxu0 %v4075
        %4084 = vmatprep.subr.bf16.mxu0 0
        %4085 = vmatpush1.bf16.xpose.msra.mxu0 %v4072
        %4086 = vmatprep.subr.bf16.mxu0 0
        %4087 = vmatpush1.bf16.xpose.msra.mxu0 %v4069
        %4088 = vmatprep.subr.bf16.mxu0 0
        %4089 = vmatpush1.bf16.xpose.msra.mxu0 %v4066
        %4090 = vmatprep.subr.bf16.mxu0 0
        %4091 = vmatpush1.bf16.xpose.msra.mxu0 %v4063
        %4092 = vmatprep.subr.bf16.mxu0 0
        %4093 = vmatpush1.bf16.xpose.msra.mxu0 %v4060
        %4094 = vmatprep.subr.bf16.mxu0 0
        %4095 = vmatpush1.bf16.xpose.msra.mxu0 %v4057
        %4096 = vmatprep.subr.bf16.mxu0 0
        %4097 = vmatpush2.bf16.xpose.msra.mxu0 0
        %4098 = vmatprep.subr.bf16.mxu0 0
        %4099 = vmatpush2.bf16.xpose.msra.mxu0 0
        %4100 = vmatprep.subr.bf16.mxu0 0
        %4101 = vmatpush2.bf16.xpose.msra.mxu0 0
        %4102 = vmatprep.subr.bf16.mxu0 0
        %4103 = vmatpush2.bf16.xpose.msra.mxu0 0
        %4104 = vmatprep.subr.bf16.mxu0 0
        %4105 = vmatpush2.bf16.xpose.msra.mxu0 0
        %4106 = vmatprep.subr.bf16.mxu0 0
        %4107 = vmatpush2.bf16.xpose.msra.mxu0 0
        %4108 = vmatprep.subr.bf16.mxu0 0
        %4109 = vmatpush2.bf16.xpose.msra.mxu0 0
        %4110 = vmatprep.subr.bf16.mxu0 0
        %4111 = vmatpush2.bf16.xpose.msra.mxu0 0
        %4112 = vmatprep.mubr.bf16.mxu0 0
        %4113 = vmatmul.mubr.bf16.gmra.mxu0 %v4033
        %v4114 = vpop.f32.mrf.mxu0
        %v4115 = vadd.f32 0.0, %v4114
        %v4116 = vpop.f32.mrf.mxu0
        %v4117 = vpop.f32.mrf.mxu0
        %v4118 = vadd.f32 0.0, %v4117
        %v4119 = vpop.f32.mrf.mxu0
        %4120 = vmatprep.mubr.bf16.mxu0 0
        %4121 = vmatmul.mubr.bf16.gmra.mxu0 %v4036
        %v4122 = vpop.f32.mrf.mxu0
        %v4123 = vadd.f32 0.0, %v4122
        %v4124 = vpop.f32.mrf.mxu0
        %v4125 = vpop.f32.mrf.mxu0
        %v4126 = vadd.f32 0.0, %v4125
        %v4127 = vpop.f32.mrf.mxu0
        %4128 = vmatprep.mubr.bf16.mxu0 0
        %4129 = vmatmul.mubr.bf16.gmra.mxu0 %v4039
        %v4130 = vpop.f32.mrf.mxu0
        %v4131 = vadd.f32 0.0, %v4130
        %v4132 = vpop.f32.mrf.mxu0
        %v4133 = vpop.f32.mrf.mxu0
        %v4134 = vadd.f32 0.0, %v4133
        %v4135 = vpop.f32.mrf.mxu0
        %4136 = vmatprep.mubr.bf16.mxu0 0
        %4137 = vmatmul.mubr.bf16.gmra.mxu0 %v4042
        %v4138 = vpop.f32.mrf.mxu0
        %v4139 = vadd.f32 0.0, %v4138
        %v4140 = vpop.f32.mrf.mxu0
        %v4141 = vpop.f32.mrf.mxu0
        %v4142 = vadd.f32 0.0, %v4141
        %v4143 = vpop.f32.mrf.mxu0
        %4144 = vmatprep.mubr.bf16.mxu0 0
        %4145 = vmatmul.mubr.bf16.gmra.mxu0 %v4045
        %v4146 = vpop.f32.mrf.mxu0
        %v4147 = vadd.f32 0.0, %v4146
        %v4148 = vpop.f32.mrf.mxu0
        %v4149 = vpop.f32.mrf.mxu0
        %v4150 = vadd.f32 0.0, %v4149
        %v4151 = vpop.f32.mrf.mxu0
        %4152 = vmatprep.mubr.bf16.mxu0 0
        %4153 = vmatmul.mubr.bf16.gmra.mxu0 %v4048
        %v4154 = vpop.f32.mrf.mxu0
        %v4155 = vadd.f32 0.0, %v4154
        %v4156 = vpop.f32.mrf.mxu0
        %v4157 = vpop.f32.mrf.mxu0
        %v4158 = vadd.f32 0.0, %v4157
        %v4159 = vpop.f32.mrf.mxu0
        %4160 = vmatprep.mubr.bf16.mxu0 0
        %4161 = vmatmul.mubr.bf16.gmra.mxu0 %v4051
        %v4162 = vpop.f32.mrf.mxu0
        %v4163 = vadd.f32 0.0, %v4162
        %v4164 = vpop.f32.mrf.mxu0
        %v4165 = vpop.f32.mrf.mxu0
        %v4166 = vadd.f32 0.0, %v4165
        %v4167 = vpop.f32.mrf.mxu0
        %4168 = vmatprep.mubr.bf16.mxu0 0
        %4169 = vmatmul.mubr.bf16.gmra.mxu0 %v4054
        %v4170 = vpop.f32.mrf.mxu0
        %v4171 = vadd.f32 0.0, %v4170
        %v4172 = vpop.f32.mrf.mxu0
        %v4173 = vpop.f32.mrf.mxu0
        %v4174 = vadd.f32 0.0, %v4173
        %v4175 = vpop.f32.mrf.mxu0
        %4176 = vdwg.mxu0
        %4177 = vmax.xlane.f32.xlu0 %v4115
        %v4178 = vpop.xlane.xlu0 %4177
        %4179 = vmax.xlane.f32.xlu0 %v4118
        %v4180 = vpop.xlane.xlu0 %4179
        %4181 = vmax.xlane.f32.xlu0 %v4123
        %v4182 = vpop.xlane.xlu0 %4181
        %4183 = vmax.xlane.f32.xlu0 %v4126
        %v4184 = vpop.xlane.xlu0 %4183
        %4185 = vmax.xlane.f32.xlu0 %v4131
        %v4186 = vpop.xlane.xlu0 %4185
        %4187 = vmax.xlane.f32.xlu0 %v4134
        %v4188 = vpop.xlane.xlu0 %4187
        %4189 = vmax.xlane.f32.xlu0 %v4139
        %v4190 = vpop.xlane.xlu0 %4189
        %4191 = vmax.xlane.f32.xlu0 %v4142
        %v4192 = vpop.xlane.xlu0 %4191
        %4193 = vmax.xlane.f32.xlu0 %v4147
        %v4194 = vpop.xlane.xlu0 %4193
        %4195 = vmax.xlane.f32.xlu0 %v4150
        %v4196 = vpop.xlane.xlu0 %4195
        %4197 = vmax.xlane.f32.xlu0 %v4155
        %v4198 = vpop.xlane.xlu0 %4197
        %4199 = vmax.xlane.f32.xlu0 %v4158
        %v4200 = vpop.xlane.xlu0 %4199
        %4201 = vmax.xlane.f32.xlu0 %v4163
        %v4202 = vpop.xlane.xlu0 %4201
        %4203 = vmax.xlane.f32.xlu0 %v4166
        %v4204 = vpop.xlane.xlu0 %4203
        %4205 = vmax.xlane.f32.xlu0 %v4171
        %v4206 = vpop.xlane.xlu0 %4205
        %4207 = vmax.xlane.f32.xlu0 %v4174
        %v4208 = vpop.xlane.xlu0 %4207
        %v4209 = vsub.f32 %v4115, %v4178
        %v4210 = vsub.f32 %v4118, %v4180
        %v4211 = vsub.f32 %v4123, %v4182
        %v4212 = vsub.f32 %v4126, %v4184
        %v4213 = vsub.f32 %v4131, %v4186
        %v4214 = vsub.f32 %v4134, %v4188
        %v4215 = vsub.f32 %v4139, %v4190
        %v4216 = vsub.f32 %v4142, %v4192
        %v4217 = vsub.f32 %v4147, %v4194
        %v4218 = vsub.f32 %v4150, %v4196
        %v4219 = vsub.f32 %v4155, %v4198
        %v4220 = vsub.f32 %v4158, %v4200
        %v4221 = vsub.f32 %v4163, %v4202
        %v4222 = vsub.f32 %v4166, %v4204
        %v4223 = vsub.f32 %v4171, %v4206
        %v4224 = vsub.f32 %v4174, %v4208
        %v4225 = vmul.f32 %v4209, 1.442695
        %v4226 = vpow.pop %v4225
        %v4227 = vmul.f32 %v4210, 1.442695
        %v4228 = vpow.pop %v4227
        %v4229 = vmul.f32 %v4211, 1.442695
        %v4230 = vpow.pop %v4229
        %v4231 = vmul.f32 %v4212, 1.442695
        %v4232 = vpow.pop %v4231
        %v4233 = vmul.f32 %v4213, 1.442695
        %v4234 = vpow.pop %v4233
        %v4235 = vmul.f32 %v4214, 1.442695
        %v4236 = vpow.pop %v4235
        %v4237 = vmul.f32 %v4215, 1.442695
        %v4238 = vpow.pop %v4237
        %v4239 = vmul.f32 %v4216, 1.442695
        %v4240 = vpow.pop %v4239
        %v4241 = vmul.f32 %v4217, 1.442695
        %v4242 = vpow.pop %v4241
        %v4243 = vmul.f32 %v4218, 1.442695
        %v4244 = vpow.pop %v4243
        %v4245 = vmul.f32 %v4219, 1.442695
        %v4246 = vpow.pop %v4245
        %v4247 = vmul.f32 %v4220, 1.442695
        %v4248 = vpow.pop %v4247
        %v4249 = vmul.f32 %v4221, 1.442695
        %v4250 = vpow.pop %v4249
        %v4251 = vmul.f32 %v4222, 1.442695
        %v4252 = vpow.pop %v4251
        %v4253 = vmul.f32 %v4223, 1.442695
        %v4254 = vpow.pop %v4253
        %v4255 = vmul.f32 %v4224, 1.442695
        %v4256 = vpow.pop %v4255
        %4257 = vadd.xlane.f32.xlu0 %v4226
        %v4258 = vpop.xlane.xlu0 %4257
        %4259 = vadd.xlane.f32.xlu0 %v4228
        %v4260 = vpop.xlane.xlu0 %4259
        %4261 = vadd.xlane.f32.xlu0 %v4230
        %v4262 = vpop.xlane.xlu0 %4261
        %4263 = vadd.xlane.f32.xlu0 %v4232
        %v4264 = vpop.xlane.xlu0 %4263
        %4265 = vadd.xlane.f32.xlu0 %v4234
        %v4266 = vpop.xlane.xlu0 %4265
        %4267 = vadd.xlane.f32.xlu0 %v4236
        %v4268 = vpop.xlane.xlu0 %4267
        %4269 = vadd.xlane.f32.xlu0 %v4238
        %v4270 = vpop.xlane.xlu0 %4269
        %4271 = vadd.xlane.f32.xlu0 %v4240
        %v4272 = vpop.xlane.xlu0 %4271
        %4273 = vadd.xlane.f32.xlu0 %v4242
        %v4274 = vpop.xlane.xlu0 %4273
        %4275 = vadd.xlane.f32.xlu0 %v4244
        %v4276 = vpop.xlane.xlu0 %4275
        %4277 = vadd.xlane.f32.xlu0 %v4246
        %v4278 = vpop.xlane.xlu0 %4277
        %4279 = vadd.xlane.f32.xlu0 %v4248
        %v4280 = vpop.xlane.xlu0 %4279
        %4281 = vadd.xlane.f32.xlu0 %v4250
        %v4282 = vpop.xlane.xlu0 %4281
        %4283 = vadd.xlane.f32.xlu0 %v4252
        %v4284 = vpop.xlane.xlu0 %4283
        %4285 = vadd.xlane.f32.xlu0 %v4254
        %v4286 = vpop.xlane.xlu0 %4285
        %4287 = vadd.xlane.f32.xlu0 %v4256
        %v4288 = vpop.xlane.xlu0 %4287
        %v4289 = vpack.c.bf16 %v4228, %v4226
        %v4290 = vpack.c.bf16 %v4232, %v4230
        %v4291 = vpack.c.bf16 %v4236, %v4234
        %v4292 = vpack.c.bf16 %v4240, %v4238
        %v4293 = vpack.c.bf16 %v4244, %v4242
        %v4294 = vpack.c.bf16 %v4248, %v4246
        %v4295 = vpack.c.bf16 %v4252, %v4250
        %v4296 = vpack.c.bf16 %v4256, %v4254
        %4297 = vmatprep.subr.bf16.mxu0 0
        %4298 = vmatpush1.bf16.msra.mxu0 %v2020
        %4299 = vmatprep.subr.bf16.mxu0 0
        %4300 = vmatpush1.bf16.msra.mxu0 %v2019
        %4301 = vmatprep.subr.bf16.mxu0 0
        %4302 = vmatpush1.bf16.msra.mxu0 %v2018
        %4303 = vmatprep.subr.bf16.mxu0 0
        %4304 = vmatpush1.bf16.msra.mxu0 %v2017
        %4305 = vmatprep.subr.bf16.mxu0 0
        %4306 = vmatpush1.bf16.msra.mxu0 %v2016
        %4307 = vmatprep.subr.bf16.mxu0 0
        %4308 = vmatpush1.bf16.msra.mxu0 %v2015
        %4309 = vmatprep.subr.bf16.mxu0 0
        %4310 = vmatpush1.bf16.msra.mxu0 %v2014
        %4311 = vmatprep.subr.bf16.mxu0 0
        %4312 = vmatpush1.bf16.msra.mxu0 %v2013
        %4313 = vmatprep.subr.bf16.mxu0 0
        %4314 = vmatpush2.bf16.msra.mxu0 0
        %4315 = vmatprep.subr.bf16.mxu0 0
        %4316 = vmatpush2.bf16.msra.mxu0 0
        %4317 = vmatprep.subr.bf16.mxu0 0
        %4318 = vmatpush2.bf16.msra.mxu0 0
        %4319 = vmatprep.subr.bf16.mxu0 0
        %4320 = vmatpush2.bf16.msra.mxu0 0
        %4321 = vmatprep.subr.bf16.mxu0 0
        %4322 = vmatpush2.bf16.msra.mxu0 0
        %4323 = vmatprep.subr.bf16.mxu0 0
        %4324 = vmatpush2.bf16.msra.mxu0 0
        %4325 = vmatprep.subr.bf16.mxu0 0
        %4326 = vmatpush2.bf16.msra.mxu0 0
        %4327 = vmatprep.subr.bf16.mxu0 0
        %4328 = vmatpush2.bf16.msra.mxu0 0
        %4329 = vmatprep.mubr.bf16.mxu0 0
        %4330 = vmatmul.mubr.bf16.gmra.mxu0 %v4289
        %v4331 = vpop.f32.mrf.mxu0
        %v4332 = vadd.f32 0.0, %v4331
        %v4333 = vpop.f32.mrf.mxu0
        %v4334 = vpop.f32.mrf.mxu0
        %v4335 = vadd.f32 0.0, %v4334
        %v4336 = vpop.f32.mrf.mxu0
        %4337 = vmatprep.mubr.bf16.mxu0 0
        %4338 = vmatmul.mubr.bf16.gmra.mxu0 %v4290
        %v4339 = vpop.f32.mrf.mxu0
        %v4340 = vadd.f32 0.0, %v4339
        %v4341 = vpop.f32.mrf.mxu0
        %v4342 = vpop.f32.mrf.mxu0
        %v4343 = vadd.f32 0.0, %v4342
        %v4344 = vpop.f32.mrf.mxu0
        %4345 = vmatprep.mubr.bf16.mxu0 0
        %4346 = vmatmul.mubr.bf16.gmra.mxu0 %v4291
        %v4347 = vpop.f32.mrf.mxu0
        %v4348 = vadd.f32 0.0, %v4347
        %v4349 = vpop.f32.mrf.mxu0
        %v4350 = vpop.f32.mrf.mxu0
        %v4351 = vadd.f32 0.0, %v4350
        %v4352 = vpop.f32.mrf.mxu0
        %4353 = vmatprep.mubr.bf16.mxu0 0
        %4354 = vmatmul.mubr.bf16.gmra.mxu0 %v4292
        %v4355 = vpop.f32.mrf.mxu0
        %v4356 = vadd.f32 0.0, %v4355
        %v4357 = vpop.f32.mrf.mxu0
        %v4358 = vpop.f32.mrf.mxu0
        %v4359 = vadd.f32 0.0, %v4358
        %v4360 = vpop.f32.mrf.mxu0
        %4361 = vmatprep.mubr.bf16.mxu0 0
        %4362 = vmatmul.mubr.bf16.gmra.mxu0 %v4293
        %v4363 = vpop.f32.mrf.mxu0
        %v4364 = vadd.f32 0.0, %v4363
        %v4365 = vpop.f32.mrf.mxu0
        %v4366 = vpop.f32.mrf.mxu0
        %v4367 = vadd.f32 0.0, %v4366
        %v4368 = vpop.f32.mrf.mxu0
        %4369 = vmatprep.mubr.bf16.mxu0 0
        %4370 = vmatmul.mubr.bf16.gmra.mxu0 %v4294
        %v4371 = vpop.f32.mrf.mxu0
        %v4372 = vadd.f32 0.0, %v4371
        %v4373 = vpop.f32.mrf.mxu0
        %v4374 = vpop.f32.mrf.mxu0
        %v4375 = vadd.f32 0.0, %v4374
        %v4376 = vpop.f32.mrf.mxu0
        %4377 = vmatprep.mubr.bf16.mxu0 0
        %4378 = vmatmul.mubr.bf16.gmra.mxu0 %v4295
        %v4379 = vpop.f32.mrf.mxu0
        %v4380 = vadd.f32 0.0, %v4379
        %v4381 = vpop.f32.mrf.mxu0
        %v4382 = vpop.f32.mrf.mxu0
        %v4383 = vadd.f32 0.0, %v4382
        %v4384 = vpop.f32.mrf.mxu0
        %4385 = vmatprep.mubr.bf16.mxu0 0
        %4386 = vmatmul.mubr.bf16.gmra.mxu0 %v4296
        %v4387 = vpop.f32.mrf.mxu0
        %v4388 = vadd.f32 0.0, %v4387
        %v4389 = vpop.f32.mrf.mxu0
        %v4390 = vpop.f32.mrf.mxu0
        %v4391 = vadd.f32 0.0, %v4390
        %v4392 = vpop.f32.mrf.mxu0
        %4393 = vdwg.mxu0
        %v4394 = vrcp.pop %v4258
        %v4395 = vrcp.pop %v4260
        %v4396 = vrcp.pop %v4262
        %v4397 = vrcp.pop %v4264
        %v4398 = vrcp.pop %v4266
        %v4399 = vrcp.pop %v4268
        %v4400 = vrcp.pop %v4270
        %v4401 = vrcp.pop %v4272
        %v4402 = vrcp.pop %v4274
        %v4403 = vrcp.pop %v4276
        %v4404 = vrcp.pop %v4278
        %v4405 = vrcp.pop %v4280
        %v4406 = vrcp.pop %v4282
        %v4407 = vrcp.pop %v4284
        %v4408 = vrcp.pop %v4286
        %v4409 = vrcp.pop %v4288
        %v4410 = vmul.f32 %v4332, %v4394
        %v4411 = vmul.f32 %v4335, %v4395
        %v4412 = vmul.f32 %v4340, %v4396
        %v4413 = vmul.f32 %v4343, %v4397
        %v4414 = vmul.f32 %v4348, %v4398
        %v4415 = vmul.f32 %v4351, %v4399
        %v4416 = vmul.f32 %v4356, %v4400
        %v4417 = vmul.f32 %v4359, %v4401
        %v4418 = vmul.f32 %v4364, %v4402
        %v4419 = vmul.f32 %v4367, %v4403
        %v4420 = vmul.f32 %v4372, %v4404
        %v4421 = vmul.f32 %v4375, %v4405
        %v4422 = vmul.f32 %v4380, %v4406
        %v4423 = vmul.f32 %v4383, %v4407
        %v4424 = vmul.f32 %v4388, %v4408
        %v4425 = vmul.f32 %v4391, %v4409
        %4434 = vrot.lane.b32.xlu0 %v1981, 96
        %v4435 = vpop.permute.xlu0 %4434
        %4436 = vrot.lane.b32.xlu0 %v1982, 96
        %v4437 = vpop.permute.xlu0 %4436
        %4438 = vrot.lane.b32.xlu0 %v1983, 96
        %v4439 = vpop.permute.xlu0 %4438
        %4440 = vrot.lane.b32.xlu0 %v1984, 96
        %v4441 = vpop.permute.xlu0 %4440
        %4442 = vrot.lane.b32.xlu0 %v1985, 96
        %v4443 = vpop.permute.xlu0 %4442
        %4444 = vrot.lane.b32.xlu0 %v1986, 96
        %v4445 = vpop.permute.xlu0 %4444
        %4446 = vrot.lane.b32.xlu0 %v1987, 96
        %v4447 = vpop.permute.xlu0 %4446
        %4448 = vrot.lane.b32.xlu0 %v1988, 96
        %v4449 = vpop.permute.xlu0 %4448
        %4458 = vrot.lane.b32.xlu0 %v1997, 96
        %v4459 = vpop.permute.xlu0 %4458
        %4460 = vrot.lane.b32.xlu0 %v1998, 96
        %v4461 = vpop.permute.xlu0 %4460
        %4462 = vrot.lane.b32.xlu0 %v1999, 96
        %v4463 = vpop.permute.xlu0 %4462
        %4464 = vrot.lane.b32.xlu0 %v2000, 96
        %v4465 = vpop.permute.xlu0 %4464
        %4466 = vrot.lane.b32.xlu0 %v2001, 96
        %v4467 = vpop.permute.xlu0 %4466
        %4468 = vrot.lane.b32.xlu0 %v2002, 96
        %v4469 = vpop.permute.xlu0 %4468
        %4470 = vrot.lane.b32.xlu0 %v2003, 96
        %v4471 = vpop.permute.xlu0 %4470
        %4472 = vrot.lane.b32.xlu0 %v2004, 96
        %v4473 = vpop.permute.xlu0 %4472
        %v4475 = vsel %vm2021, %v4435, 0
        %v4478 = vsel %vm2021, %v4437, 0
        %v4481 = vsel %vm2021, %v4439, 0
        %v4484 = vsel %vm2021, %v4441, 0
        %v4487 = vsel %vm2021, %v4443, 0
        %v4490 = vsel %vm2021, %v4445, 0
        %v4493 = vsel %vm2021, %v4447, 0
        %v4496 = vsel %vm2021, %v4449, 0
        %v4499 = vsel %vm2021, %v4459, 0
        %v4502 = vsel %vm2021, %v4461, 0
        %v4505 = vsel %vm2021, %v4463, 0
        %v4508 = vsel %vm2021, %v4465, 0
        %v4511 = vsel %vm2021, %v4467, 0
        %v4514 = vsel %vm2021, %v4469, 0
        %v4517 = vsel %vm2021, %v4471, 0
        %v4520 = vsel %vm2021, %v4473, 0
        %4522 = vmatprep.subr.bf16.mxu0 0
        %4523 = vmatpush1.bf16.xpose.msra.mxu0 %v4520
        %4524 = vmatprep.subr.bf16.mxu0 0
        %4525 = vmatpush1.bf16.xpose.msra.mxu0 %v4517
        %4526 = vmatprep.subr.bf16.mxu0 0
        %4527 = vmatpush1.bf16.xpose.msra.mxu0 %v4514
        %4528 = vmatprep.subr.bf16.mxu0 0
        %4529 = vmatpush1.bf16.xpose.msra.mxu0 %v4511
        %4530 = vmatprep.subr.bf16.mxu0 0
        %4531 = vmatpush1.bf16.xpose.msra.mxu0 %v4508
        %4532 = vmatprep.subr.bf16.mxu0 0
        %4533 = vmatpush1.bf16.xpose.msra.mxu0 %v4505
        %4534 = vmatprep.subr.bf16.mxu0 0
        %4535 = vmatpush1.bf16.xpose.msra.mxu0 %v4502
        %4536 = vmatprep.subr.bf16.mxu0 0
        %4537 = vmatpush1.bf16.xpose.msra.mxu0 %v4499
        %4538 = vmatprep.subr.bf16.mxu0 0
        %4539 = vmatpush2.bf16.xpose.msra.mxu0 0
        %4540 = vmatprep.subr.bf16.mxu0 0
        %4541 = vmatpush2.bf16.xpose.msra.mxu0 0
        %4542 = vmatprep.subr.bf16.mxu0 0
        %4543 = vmatpush2.bf16.xpose.msra.mxu0 0
        %4544 = vmatprep.subr.bf16.mxu0 0
        %4545 = vmatpush2.bf16.xpose.msra.mxu0 0
        %4546 = vmatprep.subr.bf16.mxu0 0
        %4547 = vmatpush2.bf16.xpose.msra.mxu0 0
        %4548 = vmatprep.subr.bf16.mxu0 0
        %4549 = vmatpush2.bf16.xpose.msra.mxu0 0
        %4550 = vmatprep.subr.bf16.mxu0 0
        %4551 = vmatpush2.bf16.xpose.msra.mxu0 0
        %4552 = vmatprep.subr.bf16.mxu0 0
        %4553 = vmatpush2.bf16.xpose.msra.mxu0 0
        %4554 = vmatprep.mubr.bf16.mxu0 0
        %4555 = vmatmul.mubr.bf16.gmra.mxu0 %v4475
        %v4556 = vpop.f32.mrf.mxu0
        %v4557 = vadd.f32 0.0, %v4556
        %v4558 = vpop.f32.mrf.mxu0
        %v4559 = vpop.f32.mrf.mxu0
        %v4560 = vadd.f32 0.0, %v4559
        %v4561 = vpop.f32.mrf.mxu0
        %4562 = vmatprep.mubr.bf16.mxu0 0
        %4563 = vmatmul.mubr.bf16.gmra.mxu0 %v4478
        %v4564 = vpop.f32.mrf.mxu0
        %v4565 = vadd.f32 0.0, %v4564
        %v4566 = vpop.f32.mrf.mxu0
        %v4567 = vpop.f32.mrf.mxu0
        %v4568 = vadd.f32 0.0, %v4567
        %v4569 = vpop.f32.mrf.mxu0
        %4570 = vmatprep.mubr.bf16.mxu0 0
        %4571 = vmatmul.mubr.bf16.gmra.mxu0 %v4481
        %v4572 = vpop.f32.mrf.mxu0
        %v4573 = vadd.f32 0.0, %v4572
        %v4574 = vpop.f32.mrf.mxu0
        %v4575 = vpop.f32.mrf.mxu0
        %v4576 = vadd.f32 0.0, %v4575
        %v4577 = vpop.f32.mrf.mxu0
        %4578 = vmatprep.mubr.bf16.mxu0 0
        %4579 = vmatmul.mubr.bf16.gmra.mxu0 %v4484
        %v4580 = vpop.f32.mrf.mxu0
        %v4581 = vadd.f32 0.0, %v4580
        %v4582 = vpop.f32.mrf.mxu0
        %v4583 = vpop.f32.mrf.mxu0
        %v4584 = vadd.f32 0.0, %v4583
        %v4585 = vpop.f32.mrf.mxu0
        %4586 = vmatprep.mubr.bf16.mxu0 0
        %4587 = vmatmul.mubr.bf16.gmra.mxu0 %v4487
        %v4588 = vpop.f32.mrf.mxu0
        %v4589 = vadd.f32 0.0, %v4588
        %v4590 = vpop.f32.mrf.mxu0
        %v4591 = vpop.f32.mrf.mxu0
        %v4592 = vadd.f32 0.0, %v4591
        %v4593 = vpop.f32.mrf.mxu0
        %4594 = vmatprep.mubr.bf16.mxu0 0
        %4595 = vmatmul.mubr.bf16.gmra.mxu0 %v4490
        %v4596 = vpop.f32.mrf.mxu0
        %v4597 = vadd.f32 0.0, %v4596
        %v4598 = vpop.f32.mrf.mxu0
        %v4599 = vpop.f32.mrf.mxu0
        %v4600 = vadd.f32 0.0, %v4599
        %v4601 = vpop.f32.mrf.mxu0
        %4602 = vmatprep.mubr.bf16.mxu0 0
        %4603 = vmatmul.mubr.bf16.gmra.mxu0 %v4493
        %v4604 = vpop.f32.mrf.mxu0
        %v4605 = vadd.f32 0.0, %v4604
        %v4606 = vpop.f32.mrf.mxu0
        %v4607 = vpop.f32.mrf.mxu0
        %v4608 = vadd.f32 0.0, %v4607
        %v4609 = vpop.f32.mrf.mxu0
        %4610 = vmatprep.mubr.bf16.mxu0 0
        %4611 = vmatmul.mubr.bf16.gmra.mxu0 %v4496
        %v4612 = vpop.f32.mrf.mxu0
        %v4613 = vadd.f32 0.0, %v4612
        %v4614 = vpop.f32.mrf.mxu0
        %v4615 = vpop.f32.mrf.mxu0
        %v4616 = vadd.f32 0.0, %v4615
        %v4617 = vpop.f32.mrf.mxu0
        %4618 = vdwg.mxu0
        %4619 = vmax.xlane.f32.xlu0 %v4557
        %v4620 = vpop.xlane.xlu0 %4619
        %4621 = vmax.xlane.f32.xlu0 %v4560
        %v4622 = vpop.xlane.xlu0 %4621
        %4623 = vmax.xlane.f32.xlu0 %v4565
        %v4624 = vpop.xlane.xlu0 %4623
        %4625 = vmax.xlane.f32.xlu0 %v4568
        %v4626 = vpop.xlane.xlu0 %4625
        %4627 = vmax.xlane.f32.xlu0 %v4573
        %v4628 = vpop.xlane.xlu0 %4627
        %4629 = vmax.xlane.f32.xlu0 %v4576
        %v4630 = vpop.xlane.xlu0 %4629
        %4631 = vmax.xlane.f32.xlu0 %v4581
        %v4632 = vpop.xlane.xlu0 %4631
        %4633 = vmax.xlane.f32.xlu0 %v4584
        %v4634 = vpop.xlane.xlu0 %4633
        %4635 = vmax.xlane.f32.xlu0 %v4589
        %v4636 = vpop.xlane.xlu0 %4635
        %4637 = vmax.xlane.f32.xlu0 %v4592
        %v4638 = vpop.xlane.xlu0 %4637
        %4639 = vmax.xlane.f32.xlu0 %v4597
        %v4640 = vpop.xlane.xlu0 %4639
        %4641 = vmax.xlane.f32.xlu0 %v4600
        %v4642 = vpop.xlane.xlu0 %4641
        %4643 = vmax.xlane.f32.xlu0 %v4605
        %v4644 = vpop.xlane.xlu0 %4643
        %4645 = vmax.xlane.f32.xlu0 %v4608
        %v4646 = vpop.xlane.xlu0 %4645
        %4647 = vmax.xlane.f32.xlu0 %v4613
        %v4648 = vpop.xlane.xlu0 %4647
        %4649 = vmax.xlane.f32.xlu0 %v4616
        %v4650 = vpop.xlane.xlu0 %4649
        %v4651 = vsub.f32 %v4557, %v4620
        %v4652 = vsub.f32 %v4560, %v4622
        %v4653 = vsub.f32 %v4565, %v4624
        %v4654 = vsub.f32 %v4568, %v4626
        %v4655 = vsub.f32 %v4573, %v4628
        %v4656 = vsub.f32 %v4576, %v4630
        %v4657 = vsub.f32 %v4581, %v4632
        %v4658 = vsub.f32 %v4584, %v4634
        %v4659 = vsub.f32 %v4589, %v4636
        %v4660 = vsub.f32 %v4592, %v4638
        %v4661 = vsub.f32 %v4597, %v4640
        %v4662 = vsub.f32 %v4600, %v4642
        %v4663 = vsub.f32 %v4605, %v4644
        %v4664 = vsub.f32 %v4608, %v4646
        %v4665 = vsub.f32 %v4613, %v4648
        %v4666 = vsub.f32 %v4616, %v4650
        %v4667 = vmul.f32 %v4651, 1.442695
        %v4668 = vpow.pop %v4667
        %v4669 = vmul.f32 %v4652, 1.442695
        %v4670 = vpow.pop %v4669
        %v4671 = vmul.f32 %v4653, 1.442695
        %v4672 = vpow.pop %v4671
        %v4673 = vmul.f32 %v4654, 1.442695
        %v4674 = vpow.pop %v4673
        %v4675 = vmul.f32 %v4655, 1.442695
        %v4676 = vpow.pop %v4675
        %v4677 = vmul.f32 %v4656, 1.442695
        %v4678 = vpow.pop %v4677
        %v4679 = vmul.f32 %v4657, 1.442695
        %v4680 = vpow.pop %v4679
        %v4681 = vmul.f32 %v4658, 1.442695
        %v4682 = vpow.pop %v4681
        %v4683 = vmul.f32 %v4659, 1.442695
        %v4684 = vpow.pop %v4683
        %v4685 = vmul.f32 %v4660, 1.442695
        %v4686 = vpow.pop %v4685
        %v4687 = vmul.f32 %v4661, 1.442695
        %v4688 = vpow.pop %v4687
        %v4689 = vmul.f32 %v4662, 1.442695
        %v4690 = vpow.pop %v4689
        %v4691 = vmul.f32 %v4663, 1.442695
        %v4692 = vpow.pop %v4691
        %v4693 = vmul.f32 %v4664, 1.442695
        %v4694 = vpow.pop %v4693
        %v4695 = vmul.f32 %v4665, 1.442695
        %v4696 = vpow.pop %v4695
        %v4697 = vmul.f32 %v4666, 1.442695
        %v4698 = vpow.pop %v4697
        %4699 = vadd.xlane.f32.xlu0 %v4668
        %v4700 = vpop.xlane.xlu0 %4699
        %4701 = vadd.xlane.f32.xlu0 %v4670
        %v4702 = vpop.xlane.xlu0 %4701
        %4703 = vadd.xlane.f32.xlu0 %v4672
        %v4704 = vpop.xlane.xlu0 %4703
        %4705 = vadd.xlane.f32.xlu0 %v4674
        %v4706 = vpop.xlane.xlu0 %4705
        %4707 = vadd.xlane.f32.xlu0 %v4676
        %v4708 = vpop.xlane.xlu0 %4707
        %4709 = vadd.xlane.f32.xlu0 %v4678
        %v4710 = vpop.xlane.xlu0 %4709
        %4711 = vadd.xlane.f32.xlu0 %v4680
        %v4712 = vpop.xlane.xlu0 %4711
        %4713 = vadd.xlane.f32.xlu0 %v4682
        %v4714 = vpop.xlane.xlu0 %4713
        %4715 = vadd.xlane.f32.xlu0 %v4684
        %v4716 = vpop.xlane.xlu0 %4715
        %4717 = vadd.xlane.f32.xlu0 %v4686
        %v4718 = vpop.xlane.xlu0 %4717
        %4719 = vadd.xlane.f32.xlu0 %v4688
        %v4720 = vpop.xlane.xlu0 %4719
        %4721 = vadd.xlane.f32.xlu0 %v4690
        %v4722 = vpop.xlane.xlu0 %4721
        %4723 = vadd.xlane.f32.xlu0 %v4692
        %v4724 = vpop.xlane.xlu0 %4723
        %4725 = vadd.xlane.f32.xlu0 %v4694
        %v4726 = vpop.xlane.xlu0 %4725
        %4727 = vadd.xlane.f32.xlu0 %v4696
        %v4728 = vpop.xlane.xlu0 %4727
        %4729 = vadd.xlane.f32.xlu0 %v4698
        %v4730 = vpop.xlane.xlu0 %4729
        %v4731 = vpack.c.bf16 %v4670, %v4668
        %v4732 = vpack.c.bf16 %v4674, %v4672
        %v4733 = vpack.c.bf16 %v4678, %v4676
        %v4734 = vpack.c.bf16 %v4682, %v4680
        %v4735 = vpack.c.bf16 %v4686, %v4684
        %v4736 = vpack.c.bf16 %v4690, %v4688
        %v4737 = vpack.c.bf16 %v4694, %v4692
        %v4738 = vpack.c.bf16 %v4698, %v4696
        %4747 = vrot.lane.b32.xlu0 %v2013, 96
        %v4748 = vpop.permute.xlu0 %4747
        %4749 = vrot.lane.b32.xlu0 %v2014, 96
        %v4750 = vpop.permute.xlu0 %4749
        %4751 = vrot.lane.b32.xlu0 %v2015, 96
        %v4752 = vpop.permute.xlu0 %4751
        %4753 = vrot.lane.b32.xlu0 %v2016, 96
        %v4754 = vpop.permute.xlu0 %4753
        %4755 = vrot.lane.b32.xlu0 %v2017, 96
        %v4756 = vpop.permute.xlu0 %4755
        %4757 = vrot.lane.b32.xlu0 %v2018, 96
        %v4758 = vpop.permute.xlu0 %4757
        %4759 = vrot.lane.b32.xlu0 %v2019, 96
        %v4760 = vpop.permute.xlu0 %4759
        %4761 = vrot.lane.b32.xlu0 %v2020, 96
        %v4762 = vpop.permute.xlu0 %4761
        %4771 = vmatprep.subr.bf16.mxu0 0
        %4772 = vmatpush1.bf16.msra.mxu0 %v4762
        %4773 = vmatprep.subr.bf16.mxu0 0
        %4774 = vmatpush1.bf16.msra.mxu0 %v4760
        %4775 = vmatprep.subr.bf16.mxu0 0
        %4776 = vmatpush1.bf16.msra.mxu0 %v4758
        %4777 = vmatprep.subr.bf16.mxu0 0
        %4778 = vmatpush1.bf16.msra.mxu0 %v4756
        %4779 = vmatprep.subr.bf16.mxu0 0
        %4780 = vmatpush1.bf16.msra.mxu0 %v4754
        %4781 = vmatprep.subr.bf16.mxu0 0
        %4782 = vmatpush1.bf16.msra.mxu0 %v4752
        %4783 = vmatprep.subr.bf16.mxu0 0
        %4784 = vmatpush1.bf16.msra.mxu0 %v4750
        %4785 = vmatprep.subr.bf16.mxu0 0
        %4786 = vmatpush1.bf16.msra.mxu0 %v4748
        %4787 = vmatprep.subr.bf16.mxu0 0
        %4788 = vmatpush2.bf16.msra.mxu0 0
        %4789 = vmatprep.subr.bf16.mxu0 0
        %4790 = vmatpush2.bf16.msra.mxu0 0
        %4791 = vmatprep.subr.bf16.mxu0 0
        %4792 = vmatpush2.bf16.msra.mxu0 0
        %4793 = vmatprep.subr.bf16.mxu0 0
        %4794 = vmatpush2.bf16.msra.mxu0 0
        %4795 = vmatprep.subr.bf16.mxu0 0
        %4796 = vmatpush2.bf16.msra.mxu0 0
        %4797 = vmatprep.subr.bf16.mxu0 0
        %4798 = vmatpush2.bf16.msra.mxu0 0
        %4799 = vmatprep.subr.bf16.mxu0 0
        %4800 = vmatpush2.bf16.msra.mxu0 0
        %4801 = vmatprep.subr.bf16.mxu0 0
        %4802 = vmatpush2.bf16.msra.mxu0 0
        %4803 = vmatprep.mubr.bf16.mxu0 0
        %4804 = vmatmul.mubr.bf16.gmra.mxu0 %v4731
        %v4805 = vpop.f32.mrf.mxu0
        %v4806 = vadd.f32 0.0, %v4805
        %v4807 = vpop.f32.mrf.mxu0
        %v4808 = vpop.f32.mrf.mxu0
        %v4809 = vadd.f32 0.0, %v4808
        %v4810 = vpop.f32.mrf.mxu0
        %4811 = vmatprep.mubr.bf16.mxu0 0
        %4812 = vmatmul.mubr.bf16.gmra.mxu0 %v4732
        %v4813 = vpop.f32.mrf.mxu0
        %v4814 = vadd.f32 0.0, %v4813
        %v4815 = vpop.f32.mrf.mxu0
        %v4816 = vpop.f32.mrf.mxu0
        %v4817 = vadd.f32 0.0, %v4816
        %v4818 = vpop.f32.mrf.mxu0
        %4819 = vmatprep.mubr.bf16.mxu0 0
        %4820 = vmatmul.mubr.bf16.gmra.mxu0 %v4733
        %v4821 = vpop.f32.mrf.mxu0
        %v4822 = vadd.f32 0.0, %v4821
        %v4823 = vpop.f32.mrf.mxu0
        %v4824 = vpop.f32.mrf.mxu0
        %v4825 = vadd.f32 0.0, %v4824
        %v4826 = vpop.f32.mrf.mxu0
        %4827 = vmatprep.mubr.bf16.mxu0 0
        %4828 = vmatmul.mubr.bf16.gmra.mxu0 %v4734
        %v4829 = vpop.f32.mrf.mxu0
        %v4830 = vadd.f32 0.0, %v4829
        %v4831 = vpop.f32.mrf.mxu0
        %v4832 = vpop.f32.mrf.mxu0
        %v4833 = vadd.f32 0.0, %v4832
        %v4834 = vpop.f32.mrf.mxu0
        %4835 = vmatprep.mubr.bf16.mxu0 0
        %4836 = vmatmul.mubr.bf16.gmra.mxu0 %v4735
        %v4837 = vpop.f32.mrf.mxu0
        %v4838 = vadd.f32 0.0, %v4837
        %v4839 = vpop.f32.mrf.mxu0
        %v4840 = vpop.f32.mrf.mxu0
        %v4841 = vadd.f32 0.0, %v4840
        %v4842 = vpop.f32.mrf.mxu0
        %4843 = vmatprep.mubr.bf16.mxu0 0
        %4844 = vmatmul.mubr.bf16.gmra.mxu0 %v4736
        %v4845 = vpop.f32.mrf.mxu0
        %v4846 = vadd.f32 0.0, %v4845
        %v4847 = vpop.f32.mrf.mxu0
        %v4848 = vpop.f32.mrf.mxu0
        %v4849 = vadd.f32 0.0, %v4848
        %v4850 = vpop.f32.mrf.mxu0
        %4851 = vmatprep.mubr.bf16.mxu0 0
        %4852 = vmatmul.mubr.bf16.gmra.mxu0 %v4737
        %v4853 = vpop.f32.mrf.mxu0
        %v4854 = vadd.f32 0.0, %v4853
        %v4855 = vpop.f32.mrf.mxu0
        %v4856 = vpop.f32.mrf.mxu0
        %v4857 = vadd.f32 0.0, %v4856
        %v4858 = vpop.f32.mrf.mxu0
        %4859 = vmatprep.mubr.bf16.mxu0 0
        %4860 = vmatmul.mubr.bf16.gmra.mxu0 %v4738
        %v4861 = vpop.f32.mrf.mxu0
        %v4862 = vadd.f32 0.0, %v4861
        %v4863 = vpop.f32.mrf.mxu0
        %v4864 = vpop.f32.mrf.mxu0
        %v4865 = vadd.f32 0.0, %v4864
        %v4866 = vpop.f32.mrf.mxu0
        %4867 = vdwg.mxu0
        %v4868 = vrcp.pop %v4700
        %v4869 = vrcp.pop %v4702
        %v4870 = vrcp.pop %v4704
        %v4871 = vrcp.pop %v4706
        %v4872 = vrcp.pop %v4708
        %v4873 = vrcp.pop %v4710
        %v4874 = vrcp.pop %v4712
        %v4875 = vrcp.pop %v4714
        %v4876 = vrcp.pop %v4716
        %v4877 = vrcp.pop %v4718
        %v4878 = vrcp.pop %v4720
        %v4879 = vrcp.pop %v4722
        %v4880 = vrcp.pop %v4724
        %v4881 = vrcp.pop %v4726
        %v4882 = vrcp.pop %v4728
        %v4883 = vrcp.pop %v4730
        %v4884 = vmul.f32 %v4806, %v4868
        %v4885 = vmul.f32 %v4809, %v4869
        %v4886 = vmul.f32 %v4814, %v4870
        %v4887 = vmul.f32 %v4817, %v4871
        %v4888 = vmul.f32 %v4822, %v4872
        %v4889 = vmul.f32 %v4825, %v4873
        %v4890 = vmul.f32 %v4830, %v4874
        %v4891 = vmul.f32 %v4833, %v4875
        %v4892 = vmul.f32 %v4838, %v4876
        %v4893 = vmul.f32 %v4841, %v4877
        %v4894 = vmul.f32 %v4846, %v4878
        %v4895 = vmul.f32 %v4849, %v4879
        %v4896 = vmul.f32 %v4854, %v4880
        %v4897 = vmul.f32 %v4857, %v4881
        %v4898 = vmul.f32 %v4862, %v4882
        %v4899 = vmul.f32 %v4865, %v4883
        %4900 = vrot.lane.b32.xlu0 %v1981, 64
        %v4901 = vpop.permute.xlu0 %4900
        %4902 = vrot.lane.b32.xlu0 %v1982, 64
        %v4903 = vpop.permute.xlu0 %4902
        %4904 = vrot.lane.b32.xlu0 %v1983, 64
        %v4905 = vpop.permute.xlu0 %4904
        %4906 = vrot.lane.b32.xlu0 %v1984, 64
        %v4907 = vpop.permute.xlu0 %4906
        %4908 = vrot.lane.b32.xlu0 %v1985, 64
        %v4909 = vpop.permute.xlu0 %4908
        %4910 = vrot.lane.b32.xlu0 %v1986, 64
        %v4911 = vpop.permute.xlu0 %4910
        %4912 = vrot.lane.b32.xlu0 %v1987, 64
        %v4913 = vpop.permute.xlu0 %4912
        %4914 = vrot.lane.b32.xlu0 %v1988, 64
        %v4915 = vpop.permute.xlu0 %4914
        %4916 = vrot.lane.b32.xlu0 %v1997, 64
        %v4917 = vpop.permute.xlu0 %4916
        %4918 = vrot.lane.b32.xlu0 %v1998, 64
        %v4919 = vpop.permute.xlu0 %4918
        %4920 = vrot.lane.b32.xlu0 %v1999, 64
        %v4921 = vpop.permute.xlu0 %4920
        %4922 = vrot.lane.b32.xlu0 %v2000, 64
        %v4923 = vpop.permute.xlu0 %4922
        %4924 = vrot.lane.b32.xlu0 %v2001, 64
        %v4925 = vpop.permute.xlu0 %4924
        %4926 = vrot.lane.b32.xlu0 %v2002, 64
        %v4927 = vpop.permute.xlu0 %4926
        %4928 = vrot.lane.b32.xlu0 %v2003, 64
        %v4929 = vpop.permute.xlu0 %4928
        %4930 = vrot.lane.b32.xlu0 %v2004, 64
        %v4931 = vpop.permute.xlu0 %4930
        %v4933 = vsel %vm2021, %v4901, 0
        %v4936 = vsel %vm2021, %v4903, 0
        %v4939 = vsel %vm2021, %v4905, 0
        %v4942 = vsel %vm2021, %v4907, 0
        %v4945 = vsel %vm2021, %v4909, 0
        %v4948 = vsel %vm2021, %v4911, 0
        %v4951 = vsel %vm2021, %v4913, 0
        %v4954 = vsel %vm2021, %v4915, 0
        %v4957 = vsel %vm2021, %v4917, 0
        %v4960 = vsel %vm2021, %v4919, 0
        %v4963 = vsel %vm2021, %v4921, 0
        %v4966 = vsel %vm2021, %v4923, 0
        %v4969 = vsel %vm2021, %v4925, 0
        %v4972 = vsel %vm2021, %v4927, 0
        %v4975 = vsel %vm2021, %v4929, 0
        %v4978 = vsel %vm2021, %v4931, 0
        %4980 = vmatprep.subr.bf16.mxu0 0
        %4981 = vmatpush1.bf16.xpose.msra.mxu0 %v4978
        %4982 = vmatprep.subr.bf16.mxu0 0
        %4983 = vmatpush1.bf16.xpose.msra.mxu0 %v4975
        %4984 = vmatprep.subr.bf16.mxu0 0
        %4985 = vmatpush1.bf16.xpose.msra.mxu0 %v4972
        %4986 = vmatprep.subr.bf16.mxu0 0
        %4987 = vmatpush1.bf16.xpose.msra.mxu0 %v4969
        %4988 = vmatprep.subr.bf16.mxu0 0
        %4989 = vmatpush1.bf16.xpose.msra.mxu0 %v4966
        %4990 = vmatprep.subr.bf16.mxu0 0
        %4991 = vmatpush1.bf16.xpose.msra.mxu0 %v4963
        %4992 = vmatprep.subr.bf16.mxu0 0
        %4993 = vmatpush1.bf16.xpose.msra.mxu0 %v4960
        %4994 = vmatprep.subr.bf16.mxu0 0
        %4995 = vmatpush1.bf16.xpose.msra.mxu0 %v4957
        %4996 = vmatprep.subr.bf16.mxu0 0
        %4997 = vmatpush2.bf16.xpose.msra.mxu0 0
        %4998 = vmatprep.subr.bf16.mxu0 0
        %4999 = vmatpush2.bf16.xpose.msra.mxu0 0
        %5000 = vmatprep.subr.bf16.mxu0 0
        %5001 = vmatpush2.bf16.xpose.msra.mxu0 0
        %5002 = vmatprep.subr.bf16.mxu0 0
        %5003 = vmatpush2.bf16.xpose.msra.mxu0 0
        %5004 = vmatprep.subr.bf16.mxu0 0
        %5005 = vmatpush2.bf16.xpose.msra.mxu0 0
        %5006 = vmatprep.subr.bf16.mxu0 0
        %5007 = vmatpush2.bf16.xpose.msra.mxu0 0
        %5008 = vmatprep.subr.bf16.mxu0 0
        %5009 = vmatpush2.bf16.xpose.msra.mxu0 0
        %5010 = vmatprep.subr.bf16.mxu0 0
        %5011 = vmatpush2.bf16.xpose.msra.mxu0 0
        %5012 = vmatprep.mubr.bf16.mxu0 0
        %5013 = vmatmul.mubr.bf16.gmra.mxu0 %v4933
        %v5014 = vpop.f32.mrf.mxu0
        %v5015 = vadd.f32 0.0, %v5014
        %v5016 = vpop.f32.mrf.mxu0
        %v5017 = vpop.f32.mrf.mxu0
        %v5018 = vadd.f32 0.0, %v5017
        %v5019 = vpop.f32.mrf.mxu0
        %5020 = vmatprep.mubr.bf16.mxu0 0
        %5021 = vmatmul.mubr.bf16.gmra.mxu0 %v4936
        %v5022 = vpop.f32.mrf.mxu0
        %v5023 = vadd.f32 0.0, %v5022
        %v5024 = vpop.f32.mrf.mxu0
        %v5025 = vpop.f32.mrf.mxu0
        %v5026 = vadd.f32 0.0, %v5025
        %v5027 = vpop.f32.mrf.mxu0
        %5028 = vmatprep.mubr.bf16.mxu0 0
        %5029 = vmatmul.mubr.bf16.gmra.mxu0 %v4939
        %v5030 = vpop.f32.mrf.mxu0
        %v5031 = vadd.f32 0.0, %v5030
        %v5032 = vpop.f32.mrf.mxu0
        %v5033 = vpop.f32.mrf.mxu0
        %v5034 = vadd.f32 0.0, %v5033
        %v5035 = vpop.f32.mrf.mxu0
        %5036 = vmatprep.mubr.bf16.mxu0 0
        %5037 = vmatmul.mubr.bf16.gmra.mxu0 %v4942
        %v5038 = vpop.f32.mrf.mxu0
        %v5039 = vadd.f32 0.0, %v5038
        %v5040 = vpop.f32.mrf.mxu0
        %v5041 = vpop.f32.mrf.mxu0
        %v5042 = vadd.f32 0.0, %v5041
        %v5043 = vpop.f32.mrf.mxu0
        %5044 = vmatprep.mubr.bf16.mxu0 0
        %5045 = vmatmul.mubr.bf16.gmra.mxu0 %v4945
        %v5046 = vpop.f32.mrf.mxu0
        %v5047 = vadd.f32 0.0, %v5046
        %v5048 = vpop.f32.mrf.mxu0
        %v5049 = vpop.f32.mrf.mxu0
        %v5050 = vadd.f32 0.0, %v5049
        %v5051 = vpop.f32.mrf.mxu0
        %5052 = vmatprep.mubr.bf16.mxu0 0
        %5053 = vmatmul.mubr.bf16.gmra.mxu0 %v4948
        %v5054 = vpop.f32.mrf.mxu0
        %v5055 = vadd.f32 0.0, %v5054
        %v5056 = vpop.f32.mrf.mxu0
        %v5057 = vpop.f32.mrf.mxu0
        %v5058 = vadd.f32 0.0, %v5057
        %v5059 = vpop.f32.mrf.mxu0
        %5060 = vmatprep.mubr.bf16.mxu0 0
        %5061 = vmatmul.mubr.bf16.gmra.mxu0 %v4951
        %v5062 = vpop.f32.mrf.mxu0
        %v5063 = vadd.f32 0.0, %v5062
        %v5064 = vpop.f32.mrf.mxu0
        %v5065 = vpop.f32.mrf.mxu0
        %v5066 = vadd.f32 0.0, %v5065
        %v5067 = vpop.f32.mrf.mxu0
        %5068 = vmatprep.mubr.bf16.mxu0 0
        %5069 = vmatmul.mubr.bf16.gmra.mxu0 %v4954
        %v5070 = vpop.f32.mrf.mxu0
        %v5071 = vadd.f32 0.0, %v5070
        %v5072 = vpop.f32.mrf.mxu0
        %v5073 = vpop.f32.mrf.mxu0
        %v5074 = vadd.f32 0.0, %v5073
        %v5075 = vpop.f32.mrf.mxu0
        %5076 = vdwg.mxu0
        %5077 = vmax.xlane.f32.xlu0 %v5015
        %v5078 = vpop.xlane.xlu0 %5077
        %5079 = vmax.xlane.f32.xlu0 %v5018
        %v5080 = vpop.xlane.xlu0 %5079
        %5081 = vmax.xlane.f32.xlu0 %v5023
        %v5082 = vpop.xlane.xlu0 %5081
        %5083 = vmax.xlane.f32.xlu0 %v5026
        %v5084 = vpop.xlane.xlu0 %5083
        %5085 = vmax.xlane.f32.xlu0 %v5031
        %v5086 = vpop.xlane.xlu0 %5085
        %5087 = vmax.xlane.f32.xlu0 %v5034
        %v5088 = vpop.xlane.xlu0 %5087
        %5089 = vmax.xlane.f32.xlu0 %v5039
        %v5090 = vpop.xlane.xlu0 %5089
        %5091 = vmax.xlane.f32.xlu0 %v5042
        %v5092 = vpop.xlane.xlu0 %5091
        %5093 = vmax.xlane.f32.xlu0 %v5047
        %v5094 = vpop.xlane.xlu0 %5093
        %5095 = vmax.xlane.f32.xlu0 %v5050
        %v5096 = vpop.xlane.xlu0 %5095
        %5097 = vmax.xlane.f32.xlu0 %v5055
        %v5098 = vpop.xlane.xlu0 %5097
        %5099 = vmax.xlane.f32.xlu0 %v5058
        %v5100 = vpop.xlane.xlu0 %5099
        %5101 = vmax.xlane.f32.xlu0 %v5063
        %v5102 = vpop.xlane.xlu0 %5101
        %5103 = vmax.xlane.f32.xlu0 %v5066
        %v5104 = vpop.xlane.xlu0 %5103
        %5105 = vmax.xlane.f32.xlu0 %v5071
        %v5106 = vpop.xlane.xlu0 %5105
        %5107 = vmax.xlane.f32.xlu0 %v5074
        %v5108 = vpop.xlane.xlu0 %5107
        %v5109 = vsub.f32 %v5015, %v5078
        %v5110 = vsub.f32 %v5018, %v5080
        %v5111 = vsub.f32 %v5023, %v5082
        %v5112 = vsub.f32 %v5026, %v5084
        %v5113 = vsub.f32 %v5031, %v5086
        %v5114 = vsub.f32 %v5034, %v5088
        %v5115 = vsub.f32 %v5039, %v5090
        %v5116 = vsub.f32 %v5042, %v5092
        %v5117 = vsub.f32 %v5047, %v5094
        %v5118 = vsub.f32 %v5050, %v5096
        %v5119 = vsub.f32 %v5055, %v5098
        %v5120 = vsub.f32 %v5058, %v5100
        %v5121 = vsub.f32 %v5063, %v5102
        %v5122 = vsub.f32 %v5066, %v5104
        %v5123 = vsub.f32 %v5071, %v5106
        %v5124 = vsub.f32 %v5074, %v5108
        %v5125 = vmul.f32 %v5109, 1.442695
        %v5126 = vpow.pop %v5125
        %v5127 = vmul.f32 %v5110, 1.442695
        %v5128 = vpow.pop %v5127
        %v5129 = vmul.f32 %v5111, 1.442695
        %v5130 = vpow.pop %v5129
        %v5131 = vmul.f32 %v5112, 1.442695
        %v5132 = vpow.pop %v5131
        %v5133 = vmul.f32 %v5113, 1.442695
        %v5134 = vpow.pop %v5133
        %v5135 = vmul.f32 %v5114, 1.442695
        %v5136 = vpow.pop %v5135
        %v5137 = vmul.f32 %v5115, 1.442695
        %v5138 = vpow.pop %v5137
        %v5139 = vmul.f32 %v5116, 1.442695
        %v5140 = vpow.pop %v5139
        %v5141 = vmul.f32 %v5117, 1.442695
        %v5142 = vpow.pop %v5141
        %v5143 = vmul.f32 %v5118, 1.442695
        %v5144 = vpow.pop %v5143
        %v5145 = vmul.f32 %v5119, 1.442695
        %v5146 = vpow.pop %v5145
        %v5147 = vmul.f32 %v5120, 1.442695
        %v5148 = vpow.pop %v5147
        %v5149 = vmul.f32 %v5121, 1.442695
        %v5150 = vpow.pop %v5149
        %v5151 = vmul.f32 %v5122, 1.442695
        %v5152 = vpow.pop %v5151
        %v5153 = vmul.f32 %v5123, 1.442695
        %v5154 = vpow.pop %v5153
        %v5155 = vmul.f32 %v5124, 1.442695
        %v5156 = vpow.pop %v5155
        %5157 = vadd.xlane.f32.xlu0 %v5126
        %v5158 = vpop.xlane.xlu0 %5157
        %5159 = vadd.xlane.f32.xlu0 %v5128
        %v5160 = vpop.xlane.xlu0 %5159
        %5161 = vadd.xlane.f32.xlu0 %v5130
        %v5162 = vpop.xlane.xlu0 %5161
        %5163 = vadd.xlane.f32.xlu0 %v5132
        %v5164 = vpop.xlane.xlu0 %5163
        %5165 = vadd.xlane.f32.xlu0 %v5134
        %v5166 = vpop.xlane.xlu0 %5165
        %5167 = vadd.xlane.f32.xlu0 %v5136
        %v5168 = vpop.xlane.xlu0 %5167
        %5169 = vadd.xlane.f32.xlu0 %v5138
        %v5170 = vpop.xlane.xlu0 %5169
        %5171 = vadd.xlane.f32.xlu0 %v5140
        %v5172 = vpop.xlane.xlu0 %5171
        %5173 = vadd.xlane.f32.xlu0 %v5142
        %v5174 = vpop.xlane.xlu0 %5173
        %5175 = vadd.xlane.f32.xlu0 %v5144
        %v5176 = vpop.xlane.xlu0 %5175
        %5177 = vadd.xlane.f32.xlu0 %v5146
        %v5178 = vpop.xlane.xlu0 %5177
        %5179 = vadd.xlane.f32.xlu0 %v5148
        %v5180 = vpop.xlane.xlu0 %5179
        %5181 = vadd.xlane.f32.xlu0 %v5150
        %v5182 = vpop.xlane.xlu0 %5181
        %5183 = vadd.xlane.f32.xlu0 %v5152
        %v5184 = vpop.xlane.xlu0 %5183
        %5185 = vadd.xlane.f32.xlu0 %v5154
        %v5186 = vpop.xlane.xlu0 %5185
        %5187 = vadd.xlane.f32.xlu0 %v5156
        %v5188 = vpop.xlane.xlu0 %5187
        %v5189 = vpack.c.bf16 %v5128, %v5126
        %v5190 = vpack.c.bf16 %v5132, %v5130
        %v5191 = vpack.c.bf16 %v5136, %v5134
        %v5192 = vpack.c.bf16 %v5140, %v5138
        %v5193 = vpack.c.bf16 %v5144, %v5142
        %v5194 = vpack.c.bf16 %v5148, %v5146
        %v5195 = vpack.c.bf16 %v5152, %v5150
        %v5196 = vpack.c.bf16 %v5156, %v5154
        %5197 = vrot.lane.b32.xlu0 %v2013, 64
        %v5198 = vpop.permute.xlu0 %5197
        %5199 = vrot.lane.b32.xlu0 %v2014, 64
        %v5200 = vpop.permute.xlu0 %5199
        %5201 = vrot.lane.b32.xlu0 %v2015, 64
        %v5202 = vpop.permute.xlu0 %5201
        %5203 = vrot.lane.b32.xlu0 %v2016, 64
        %v5204 = vpop.permute.xlu0 %5203
        %5205 = vrot.lane.b32.xlu0 %v2017, 64
        %v5206 = vpop.permute.xlu0 %5205
        %5207 = vrot.lane.b32.xlu0 %v2018, 64
        %v5208 = vpop.permute.xlu0 %5207
        %5209 = vrot.lane.b32.xlu0 %v2019, 64
        %v5210 = vpop.permute.xlu0 %5209
        %5211 = vrot.lane.b32.xlu0 %v2020, 64
        %v5212 = vpop.permute.xlu0 %5211
        %5221 = vmatprep.subr.bf16.mxu0 0
        %5222 = vmatpush1.bf16.msra.mxu0 %v5212
        %5223 = vmatprep.subr.bf16.mxu0 0
        %5224 = vmatpush1.bf16.msra.mxu0 %v5210
        %5225 = vmatprep.subr.bf16.mxu0 0
        %5226 = vmatpush1.bf16.msra.mxu0 %v5208
        %5227 = vmatprep.subr.bf16.mxu0 0
        %5228 = vmatpush1.bf16.msra.mxu0 %v5206
        %5229 = vmatprep.subr.bf16.mxu0 0
        %5230 = vmatpush1.bf16.msra.mxu0 %v5204
        %5231 = vmatprep.subr.bf16.mxu0 0
        %5232 = vmatpush1.bf16.msra.mxu0 %v5202
        %5233 = vmatprep.subr.bf16.mxu0 0
        %5234 = vmatpush1.bf16.msra.mxu0 %v5200
        %5235 = vmatprep.subr.bf16.mxu0 0
        %5236 = vmatpush1.bf16.msra.mxu0 %v5198
        %5237 = vmatprep.subr.bf16.mxu0 0
        %5238 = vmatpush2.bf16.msra.mxu0 0
        %5239 = vmatprep.subr.bf16.mxu0 0
        %5240 = vmatpush2.bf16.msra.mxu0 0
        %5241 = vmatprep.subr.bf16.mxu0 0
        %5242 = vmatpush2.bf16.msra.mxu0 0
        %5243 = vmatprep.subr.bf16.mxu0 0
        %5244 = vmatpush2.bf16.msra.mxu0 0
        %5245 = vmatprep.subr.bf16.mxu0 0
        %5246 = vmatpush2.bf16.msra.mxu0 0
        %5247 = vmatprep.subr.bf16.mxu0 0
        %5248 = vmatpush2.bf16.msra.mxu0 0
        %5249 = vmatprep.subr.bf16.mxu0 0
        %5250 = vmatpush2.bf16.msra.mxu0 0
        %5251 = vmatprep.subr.bf16.mxu0 0
        %5252 = vmatpush2.bf16.msra.mxu0 0
        %5253 = vmatprep.mubr.bf16.mxu0 0
        %5254 = vmatmul.mubr.bf16.gmra.mxu0 %v5189
        %v5255 = vpop.f32.mrf.mxu0
        %v5256 = vadd.f32 0.0, %v5255
        %v5257 = vpop.f32.mrf.mxu0
        %v5258 = vpop.f32.mrf.mxu0
        %v5259 = vadd.f32 0.0, %v5258
        %v5260 = vpop.f32.mrf.mxu0
        %5261 = vmatprep.mubr.bf16.mxu0 0
        %5262 = vmatmul.mubr.bf16.gmra.mxu0 %v5190
        %v5263 = vpop.f32.mrf.mxu0
        %v5264 = vadd.f32 0.0, %v5263
        %v5265 = vpop.f32.mrf.mxu0
        %v5266 = vpop.f32.mrf.mxu0
        %v5267 = vadd.f32 0.0, %v5266
        %v5268 = vpop.f32.mrf.mxu0
        %5269 = vmatprep.mubr.bf16.mxu0 0
        %5270 = vmatmul.mubr.bf16.gmra.mxu0 %v5191
        %v5271 = vpop.f32.mrf.mxu0
        %v5272 = vadd.f32 0.0, %v5271
        %v5273 = vpop.f32.mrf.mxu0
        %v5274 = vpop.f32.mrf.mxu0
        %v5275 = vadd.f32 0.0, %v5274
        %v5276 = vpop.f32.mrf.mxu0
        %5277 = vmatprep.mubr.bf16.mxu0 0
        %5278 = vmatmul.mubr.bf16.gmra.mxu0 %v5192
        %v5279 = vpop.f32.mrf.mxu0
        %v5280 = vadd.f32 0.0, %v5279
        %v5281 = vpop.f32.mrf.mxu0
        %v5282 = vpop.f32.mrf.mxu0
        %v5283 = vadd.f32 0.0, %v5282
        %v5284 = vpop.f32.mrf.mxu0
        %5285 = vmatprep.mubr.bf16.mxu0 0
        %5286 = vmatmul.mubr.bf16.gmra.mxu0 %v5193
        %v5287 = vpop.f32.mrf.mxu0
        %v5288 = vadd.f32 0.0, %v5287
        %v5289 = vpop.f32.mrf.mxu0
        %v5290 = vpop.f32.mrf.mxu0
        %v5291 = vadd.f32 0.0, %v5290
        %v5292 = vpop.f32.mrf.mxu0
        %5293 = vmatprep.mubr.bf16.mxu0 0
        %5294 = vmatmul.mubr.bf16.gmra.mxu0 %v5194
        %v5295 = vpop.f32.mrf.mxu0
        %v5296 = vadd.f32 0.0, %v5295
        %v5297 = vpop.f32.mrf.mxu0
        %v5298 = vpop.f32.mrf.mxu0
        %v5299 = vadd.f32 0.0, %v5298
        %v5300 = vpop.f32.mrf.mxu0
        %5301 = vmatprep.mubr.bf16.mxu0 0
        %5302 = vmatmul.mubr.bf16.gmra.mxu0 %v5195
        %v5303 = vpop.f32.mrf.mxu0
        %v5304 = vadd.f32 0.0, %v5303
        %v5305 = vpop.f32.mrf.mxu0
        %v5306 = vpop.f32.mrf.mxu0
        %v5307 = vadd.f32 0.0, %v5306
        %v5308 = vpop.f32.mrf.mxu0
        %5309 = vmatprep.mubr.bf16.mxu0 0
        %5310 = vmatmul.mubr.bf16.gmra.mxu0 %v5196
        %v5311 = vpop.f32.mrf.mxu0
        %v5312 = vadd.f32 0.0, %v5311
        %v5313 = vpop.f32.mrf.mxu0
        %v5314 = vpop.f32.mrf.mxu0
        %v5315 = vadd.f32 0.0, %v5314
        %v5316 = vpop.f32.mrf.mxu0
        %5317 = vdwg.mxu0
        %v5318 = vrcp.pop %v5158
        %v5319 = vrcp.pop %v5160
        %v5320 = vrcp.pop %v5162
        %v5321 = vrcp.pop %v5164
        %v5322 = vrcp.pop %v5166
        %v5323 = vrcp.pop %v5168
        %v5324 = vrcp.pop %v5170
        %v5325 = vrcp.pop %v5172
        %v5326 = vrcp.pop %v5174
        %v5327 = vrcp.pop %v5176
        %v5328 = vrcp.pop %v5178
        %v5329 = vrcp.pop %v5180
        %v5330 = vrcp.pop %v5182
        %v5331 = vrcp.pop %v5184
        %v5332 = vrcp.pop %v5186
        %v5333 = vrcp.pop %v5188
        %v5334 = vmul.f32 %v5256, %v5318
        %v5335 = vmul.f32 %v5259, %v5319
        %v5336 = vmul.f32 %v5264, %v5320
        %v5337 = vmul.f32 %v5267, %v5321
        %v5338 = vmul.f32 %v5272, %v5322
        %v5339 = vmul.f32 %v5275, %v5323
        %v5340 = vmul.f32 %v5280, %v5324
        %v5341 = vmul.f32 %v5283, %v5325
        %v5342 = vmul.f32 %v5288, %v5326
        %v5343 = vmul.f32 %v5291, %v5327
        %v5344 = vmul.f32 %v5296, %v5328
        %v5345 = vmul.f32 %v5299, %v5329
        %v5346 = vmul.f32 %v5304, %v5330
        %v5347 = vmul.f32 %v5307, %v5331
        %v5348 = vmul.f32 %v5312, %v5332
        %v5349 = vmul.f32 %v5315, %v5333
        %5350 = vrot.lane.b32.xlu0 %v1981, 32
        %v5351 = vpop.permute.xlu0 %5350
        %5352 = vrot.lane.b32.xlu0 %v1982, 32
        %v5353 = vpop.permute.xlu0 %5352
        %5354 = vrot.lane.b32.xlu0 %v1983, 32
        %v5355 = vpop.permute.xlu0 %5354
        %5356 = vrot.lane.b32.xlu0 %v1984, 32
        %v5357 = vpop.permute.xlu0 %5356
        %5358 = vrot.lane.b32.xlu0 %v1985, 32
        %v5359 = vpop.permute.xlu0 %5358
        %5360 = vrot.lane.b32.xlu0 %v1986, 32
        %v5361 = vpop.permute.xlu0 %5360
        %5362 = vrot.lane.b32.xlu0 %v1987, 32
        %v5363 = vpop.permute.xlu0 %5362
        %5364 = vrot.lane.b32.xlu0 %v1988, 32
        %v5365 = vpop.permute.xlu0 %5364
        %5366 = vrot.lane.b32.xlu0 %v1997, 32
        %v5367 = vpop.permute.xlu0 %5366
        %5368 = vrot.lane.b32.xlu0 %v1998, 32
        %v5369 = vpop.permute.xlu0 %5368
        %5370 = vrot.lane.b32.xlu0 %v1999, 32
        %v5371 = vpop.permute.xlu0 %5370
        %5372 = vrot.lane.b32.xlu0 %v2000, 32
        %v5373 = vpop.permute.xlu0 %5372
        %5374 = vrot.lane.b32.xlu0 %v2001, 32
        %v5375 = vpop.permute.xlu0 %5374
        %5376 = vrot.lane.b32.xlu0 %v2002, 32
        %v5377 = vpop.permute.xlu0 %5376
        %5378 = vrot.lane.b32.xlu0 %v2003, 32
        %v5379 = vpop.permute.xlu0 %5378
        %5380 = vrot.lane.b32.xlu0 %v2004, 32
        %v5381 = vpop.permute.xlu0 %5380
        %v5383 = vsel %vm2021, %v5351, 0
        %v5386 = vsel %vm2021, %v5353, 0
        %v5389 = vsel %vm2021, %v5355, 0
        %v5392 = vsel %vm2021, %v5357, 0
        %v5395 = vsel %vm2021, %v5359, 0
        %v5398 = vsel %vm2021, %v5361, 0
        %v5401 = vsel %vm2021, %v5363, 0
        %v5404 = vsel %vm2021, %v5365, 0
        %v5407 = vsel %vm2021, %v5367, 0
        %v5410 = vsel %vm2021, %v5369, 0
        %v5413 = vsel %vm2021, %v5371, 0
        %v5416 = vsel %vm2021, %v5373, 0
        %v5419 = vsel %vm2021, %v5375, 0
        %v5422 = vsel %vm2021, %v5377, 0
        %v5425 = vsel %vm2021, %v5379, 0
        %v5428 = vsel %vm2021, %v5381, 0
        %5430 = vmatprep.subr.bf16.mxu0 0
        %5431 = vmatpush1.bf16.xpose.msra.mxu0 %v5428
        %5432 = vmatprep.subr.bf16.mxu0 0
        %5433 = vmatpush1.bf16.xpose.msra.mxu0 %v5425
        %5434 = vmatprep.subr.bf16.mxu0 0
        %5435 = vmatpush1.bf16.xpose.msra.mxu0 %v5422
        %5436 = vmatprep.subr.bf16.mxu0 0
        %5437 = vmatpush1.bf16.xpose.msra.mxu0 %v5419
        %5438 = vmatprep.subr.bf16.mxu0 0
        %5439 = vmatpush1.bf16.xpose.msra.mxu0 %v5416
        %5440 = vmatprep.subr.bf16.mxu0 0
        %5441 = vmatpush1.bf16.xpose.msra.mxu0 %v5413
        %5442 = vmatprep.subr.bf16.mxu0 0
        %5443 = vmatpush1.bf16.xpose.msra.mxu0 %v5410
        %5444 = vmatprep.subr.bf16.mxu0 0
        %5445 = vmatpush1.bf16.xpose.msra.mxu0 %v5407
        %5446 = vmatprep.subr.bf16.mxu0 0
        %5447 = vmatpush2.bf16.xpose.msra.mxu0 0
        %5448 = vmatprep.subr.bf16.mxu0 0
        %5449 = vmatpush2.bf16.xpose.msra.mxu0 0
        %5450 = vmatprep.subr.bf16.mxu0 0
        %5451 = vmatpush2.bf16.xpose.msra.mxu0 0
        %5452 = vmatprep.subr.bf16.mxu0 0
        %5453 = vmatpush2.bf16.xpose.msra.mxu0 0
        %5454 = vmatprep.subr.bf16.mxu0 0
        %5455 = vmatpush2.bf16.xpose.msra.mxu0 0
        %5456 = vmatprep.subr.bf16.mxu0 0
        %5457 = vmatpush2.bf16.xpose.msra.mxu0 0
        %5458 = vmatprep.subr.bf16.mxu0 0
        %5459 = vmatpush2.bf16.xpose.msra.mxu0 0
        %5460 = vmatprep.subr.bf16.mxu0 0
        %5461 = vmatpush2.bf16.xpose.msra.mxu0 0
        %5462 = vmatprep.mubr.bf16.mxu0 0
        %5463 = vmatmul.mubr.bf16.gmra.mxu0 %v5383
        %v5464 = vpop.f32.mrf.mxu0
        %v5465 = vadd.f32 0.0, %v5464
        %v5466 = vpop.f32.mrf.mxu0
        %v5467 = vpop.f32.mrf.mxu0
        %v5468 = vadd.f32 0.0, %v5467
        %v5469 = vpop.f32.mrf.mxu0
        %5470 = vmatprep.mubr.bf16.mxu0 0
        %5471 = vmatmul.mubr.bf16.gmra.mxu0 %v5386
        %v5472 = vpop.f32.mrf.mxu0
        %v5473 = vadd.f32 0.0, %v5472
        %v5474 = vpop.f32.mrf.mxu0
        %v5475 = vpop.f32.mrf.mxu0
        %v5476 = vadd.f32 0.0, %v5475
        %v5477 = vpop.f32.mrf.mxu0
        %5478 = vmatprep.mubr.bf16.mxu0 0
        %5479 = vmatmul.mubr.bf16.gmra.mxu0 %v5389
        %v5480 = vpop.f32.mrf.mxu0
        %v5481 = vadd.f32 0.0, %v5480
        %v5482 = vpop.f32.mrf.mxu0
        %v5483 = vpop.f32.mrf.mxu0
        %v5484 = vadd.f32 0.0, %v5483
        %v5485 = vpop.f32.mrf.mxu0
        %5486 = vmatprep.mubr.bf16.mxu0 0
        %5487 = vmatmul.mubr.bf16.gmra.mxu0 %v5392
        %v5488 = vpop.f32.mrf.mxu0
        %v5489 = vadd.f32 0.0, %v5488
        %v5490 = vpop.f32.mrf.mxu0
        %v5491 = vpop.f32.mrf.mxu0
        %v5492 = vadd.f32 0.0, %v5491
        %v5493 = vpop.f32.mrf.mxu0
        %5494 = vmatprep.mubr.bf16.mxu0 0
        %5495 = vmatmul.mubr.bf16.gmra.mxu0 %v5395
        %v5496 = vpop.f32.mrf.mxu0
        %v5497 = vadd.f32 0.0, %v5496
        %v5498 = vpop.f32.mrf.mxu0
        %v5499 = vpop.f32.mrf.mxu0
        %v5500 = vadd.f32 0.0, %v5499
        %v5501 = vpop.f32.mrf.mxu0
        %5502 = vmatprep.mubr.bf16.mxu0 0
        %5503 = vmatmul.mubr.bf16.gmra.mxu0 %v5398
        %v5504 = vpop.f32.mrf.mxu0
        %v5505 = vadd.f32 0.0, %v5504
        %v5506 = vpop.f32.mrf.mxu0
        %v5507 = vpop.f32.mrf.mxu0
        %v5508 = vadd.f32 0.0, %v5507
        %v5509 = vpop.f32.mrf.mxu0
        %5510 = vmatprep.mubr.bf16.mxu0 0
        %5511 = vmatmul.mubr.bf16.gmra.mxu0 %v5401
        %v5512 = vpop.f32.mrf.mxu0
        %v5513 = vadd.f32 0.0, %v5512
        %v5514 = vpop.f32.mrf.mxu0
        %v5515 = vpop.f32.mrf.mxu0
        %v5516 = vadd.f32 0.0, %v5515
        %v5517 = vpop.f32.mrf.mxu0
        %5518 = vmatprep.mubr.bf16.mxu0 0
        %5519 = vmatmul.mubr.bf16.gmra.mxu0 %v5404
        %v5520 = vpop.f32.mrf.mxu0
        %v5521 = vadd.f32 0.0, %v5520
        %v5522 = vpop.f32.mrf.mxu0
        %v5523 = vpop.f32.mrf.mxu0
        %v5524 = vadd.f32 0.0, %v5523
        %v5525 = vpop.f32.mrf.mxu0
        %5526 = vdwg.mxu0
        %5527 = vmax.xlane.f32.xlu0 %v5465
        %v5528 = vpop.xlane.xlu0 %5527
        %5529 = vmax.xlane.f32.xlu0 %v5468
        %v5530 = vpop.xlane.xlu0 %5529
        %5531 = vmax.xlane.f32.xlu0 %v5473
        %v5532 = vpop.xlane.xlu0 %5531
        %5533 = vmax.xlane.f32.xlu0 %v5476
        %v5534 = vpop.xlane.xlu0 %5533
        %5535 = vmax.xlane.f32.xlu0 %v5481
        %v5536 = vpop.xlane.xlu0 %5535
        %5537 = vmax.xlane.f32.xlu0 %v5484
        %v5538 = vpop.xlane.xlu0 %5537
        %5539 = vmax.xlane.f32.xlu0 %v5489
        %v5540 = vpop.xlane.xlu0 %5539
        %5541 = vmax.xlane.f32.xlu0 %v5492
        %v5542 = vpop.xlane.xlu0 %5541
        %5543 = vmax.xlane.f32.xlu0 %v5497
        %v5544 = vpop.xlane.xlu0 %5543
        %5545 = vmax.xlane.f32.xlu0 %v5500
        %v5546 = vpop.xlane.xlu0 %5545
        %5547 = vmax.xlane.f32.xlu0 %v5505
        %v5548 = vpop.xlane.xlu0 %5547
        %5549 = vmax.xlane.f32.xlu0 %v5508
        %v5550 = vpop.xlane.xlu0 %5549
        %5551 = vmax.xlane.f32.xlu0 %v5513
        %v5552 = vpop.xlane.xlu0 %5551
        %5553 = vmax.xlane.f32.xlu0 %v5516
        %v5554 = vpop.xlane.xlu0 %5553
        %5555 = vmax.xlane.f32.xlu0 %v5521
        %v5556 = vpop.xlane.xlu0 %5555
        %5557 = vmax.xlane.f32.xlu0 %v5524
        %v5558 = vpop.xlane.xlu0 %5557
        %v5559 = vsub.f32 %v5465, %v5528
        %v5560 = vsub.f32 %v5468, %v5530
        %v5561 = vsub.f32 %v5473, %v5532
        %v5562 = vsub.f32 %v5476, %v5534
        %v5563 = vsub.f32 %v5481, %v5536
        %v5564 = vsub.f32 %v5484, %v5538
        %v5565 = vsub.f32 %v5489, %v5540
        %v5566 = vsub.f32 %v5492, %v5542
        %v5567 = vsub.f32 %v5497, %v5544
        %v5568 = vsub.f32 %v5500, %v5546
        %v5569 = vsub.f32 %v5505, %v5548
        %v5570 = vsub.f32 %v5508, %v5550
        %v5571 = vsub.f32 %v5513, %v5552
        %v5572 = vsub.f32 %v5516, %v5554
        %v5573 = vsub.f32 %v5521, %v5556
        %v5574 = vsub.f32 %v5524, %v5558
        %v5575 = vmul.f32 %v5559, 1.442695
        %v5576 = vpow.pop %v5575
        %v5577 = vmul.f32 %v5560, 1.442695
        %v5578 = vpow.pop %v5577
        %v5579 = vmul.f32 %v5561, 1.442695
        %v5580 = vpow.pop %v5579
        %v5581 = vmul.f32 %v5562, 1.442695
        %v5582 = vpow.pop %v5581
        %v5583 = vmul.f32 %v5563, 1.442695
        %v5584 = vpow.pop %v5583
        %v5585 = vmul.f32 %v5564, 1.442695
        %v5586 = vpow.pop %v5585
        %v5587 = vmul.f32 %v5565, 1.442695
        %v5588 = vpow.pop %v5587
        %v5589 = vmul.f32 %v5566, 1.442695
        %v5590 = vpow.pop %v5589
        %v5591 = vmul.f32 %v5567, 1.442695
        %v5592 = vpow.pop %v5591
        %v5593 = vmul.f32 %v5568, 1.442695
        %v5594 = vpow.pop %v5593
        %v5595 = vmul.f32 %v5569, 1.442695
        %v5596 = vpow.pop %v5595
        %v5597 = vmul.f32 %v5570, 1.442695
        %v5598 = vpow.pop %v5597
        %v5599 = vmul.f32 %v5571, 1.442695
        %v5600 = vpow.pop %v5599
        %v5601 = vmul.f32 %v5572, 1.442695
        %v5602 = vpow.pop %v5601
        %v5603 = vmul.f32 %v5573, 1.442695
        %v5604 = vpow.pop %v5603
        %v5605 = vmul.f32 %v5574, 1.442695
        %v5606 = vpow.pop %v5605
        %5607 = vadd.xlane.f32.xlu0 %v5576
        %v5608 = vpop.xlane.xlu0 %5607
        %5609 = vadd.xlane.f32.xlu0 %v5578
        %v5610 = vpop.xlane.xlu0 %5609
        %5611 = vadd.xlane.f32.xlu0 %v5580
        %v5612 = vpop.xlane.xlu0 %5611
        %5613 = vadd.xlane.f32.xlu0 %v5582
        %v5614 = vpop.xlane.xlu0 %5613
        %5615 = vadd.xlane.f32.xlu0 %v5584
        %v5616 = vpop.xlane.xlu0 %5615
        %5617 = vadd.xlane.f32.xlu0 %v5586
        %v5618 = vpop.xlane.xlu0 %5617
        %5619 = vadd.xlane.f32.xlu0 %v5588
        %v5620 = vpop.xlane.xlu0 %5619
        %5621 = vadd.xlane.f32.xlu0 %v5590
        %v5622 = vpop.xlane.xlu0 %5621
        %5623 = vadd.xlane.f32.xlu0 %v5592
        %v5624 = vpop.xlane.xlu0 %5623
        %5625 = vadd.xlane.f32.xlu0 %v5594
        %v5626 = vpop.xlane.xlu0 %5625
        %5627 = vadd.xlane.f32.xlu0 %v5596
        %v5628 = vpop.xlane.xlu0 %5627
        %5629 = vadd.xlane.f32.xlu0 %v5598
        %v5630 = vpop.xlane.xlu0 %5629
        %5631 = vadd.xlane.f32.xlu0 %v5600
        %v5632 = vpop.xlane.xlu0 %5631
        %5633 = vadd.xlane.f32.xlu0 %v5602
        %v5634 = vpop.xlane.xlu0 %5633
        %5635 = vadd.xlane.f32.xlu0 %v5604
        %v5636 = vpop.xlane.xlu0 %5635
        %5637 = vadd.xlane.f32.xlu0 %v5606
        %v5638 = vpop.xlane.xlu0 %5637
        %v5639 = vpack.c.bf16 %v5578, %v5576
        %v5640 = vpack.c.bf16 %v5582, %v5580
        %v5641 = vpack.c.bf16 %v5586, %v5584
        %v5642 = vpack.c.bf16 %v5590, %v5588
        %v5643 = vpack.c.bf16 %v5594, %v5592
        %v5644 = vpack.c.bf16 %v5598, %v5596
        %v5645 = vpack.c.bf16 %v5602, %v5600
        %v5646 = vpack.c.bf16 %v5606, %v5604
        %5647 = vrot.lane.b32.xlu0 %v2013, 32
        %v5648 = vpop.permute.xlu0 %5647
        %5649 = vrot.lane.b32.xlu0 %v2014, 32
        %v5650 = vpop.permute.xlu0 %5649
        %5651 = vrot.lane.b32.xlu0 %v2015, 32
        %v5652 = vpop.permute.xlu0 %5651
        %5653 = vrot.lane.b32.xlu0 %v2016, 32
        %v5654 = vpop.permute.xlu0 %5653
        %5655 = vrot.lane.b32.xlu0 %v2017, 32
        %v5656 = vpop.permute.xlu0 %5655
        %5657 = vrot.lane.b32.xlu0 %v2018, 32
        %v5658 = vpop.permute.xlu0 %5657
        %5659 = vrot.lane.b32.xlu0 %v2019, 32
        %v5660 = vpop.permute.xlu0 %5659
        %5661 = vrot.lane.b32.xlu0 %v2020, 32
        %v5662 = vpop.permute.xlu0 %5661
        %5671 = vmatprep.subr.bf16.mxu0 0
        %5672 = vmatpush1.bf16.msra.mxu0 %v5662
        %5673 = vmatprep.subr.bf16.mxu0 0
        %5674 = vmatpush1.bf16.msra.mxu0 %v5660
        %5675 = vmatprep.subr.bf16.mxu0 0
        %5676 = vmatpush1.bf16.msra.mxu0 %v5658
        %5677 = vmatprep.subr.bf16.mxu0 0
        %5678 = vmatpush1.bf16.msra.mxu0 %v5656
        %5679 = vmatprep.subr.bf16.mxu0 0
        %5680 = vmatpush1.bf16.msra.mxu0 %v5654
        %5681 = vmatprep.subr.bf16.mxu0 0
        %5682 = vmatpush1.bf16.msra.mxu0 %v5652
        %5683 = vmatprep.subr.bf16.mxu0 0
        %5684 = vmatpush1.bf16.msra.mxu0 %v5650
        %5685 = vmatprep.subr.bf16.mxu0 0
        %5686 = vmatpush1.bf16.msra.mxu0 %v5648
        %5687 = vmatprep.subr.bf16.mxu0 0
        %5688 = vmatpush2.bf16.msra.mxu0 0
        %5689 = vmatprep.subr.bf16.mxu0 0
        %5690 = vmatpush2.bf16.msra.mxu0 0
        %5691 = vmatprep.subr.bf16.mxu0 0
        %5692 = vmatpush2.bf16.msra.mxu0 0
        %5693 = vmatprep.subr.bf16.mxu0 0
        %5694 = vmatpush2.bf16.msra.mxu0 0
        %5695 = vmatprep.subr.bf16.mxu0 0
        %5696 = vmatpush2.bf16.msra.mxu0 0
        %5697 = vmatprep.subr.bf16.mxu0 0
        %5698 = vmatpush2.bf16.msra.mxu0 0
        %5699 = vmatprep.subr.bf16.mxu0 0
        %5700 = vmatpush2.bf16.msra.mxu0 0
        %5701 = vmatprep.subr.bf16.mxu0 0
        %5702 = vmatpush2.bf16.msra.mxu0 0
        %5703 = vmatprep.mubr.bf16.mxu0 0
        %5704 = vmatmul.mubr.bf16.gmra.mxu0 %v5639
        %v5705 = vpop.f32.mrf.mxu0
        %v5706 = vadd.f32 0.0, %v5705
        %v5707 = vpop.f32.mrf.mxu0
        %v5708 = vpop.f32.mrf.mxu0
        %v5709 = vadd.f32 0.0, %v5708
        %v5710 = vpop.f32.mrf.mxu0
        %5711 = vmatprep.mubr.bf16.mxu0 0
        %5712 = vmatmul.mubr.bf16.gmra.mxu0 %v5640
        %v5713 = vpop.f32.mrf.mxu0
        %v5714 = vadd.f32 0.0, %v5713
        %v5715 = vpop.f32.mrf.mxu0
        %v5716 = vpop.f32.mrf.mxu0
        %v5717 = vadd.f32 0.0, %v5716
        %v5718 = vpop.f32.mrf.mxu0
        %5719 = vmatprep.mubr.bf16.mxu0 0
        %5720 = vmatmul.mubr.bf16.gmra.mxu0 %v5641
        %v5721 = vpop.f32.mrf.mxu0
        %v5722 = vadd.f32 0.0, %v5721
        %v5723 = vpop.f32.mrf.mxu0
        %v5724 = vpop.f32.mrf.mxu0
        %v5725 = vadd.f32 0.0, %v5724
        %v5726 = vpop.f32.mrf.mxu0
        %5727 = vmatprep.mubr.bf16.mxu0 0
        %5728 = vmatmul.mubr.bf16.gmra.mxu0 %v5642
        %v5729 = vpop.f32.mrf.mxu0
        %v5730 = vadd.f32 0.0, %v5729
        %v5731 = vpop.f32.mrf.mxu0
        %v5732 = vpop.f32.mrf.mxu0
        %v5733 = vadd.f32 0.0, %v5732
        %v5734 = vpop.f32.mrf.mxu0
        %5735 = vmatprep.mubr.bf16.mxu0 0
        %5736 = vmatmul.mubr.bf16.gmra.mxu0 %v5643
        %v5737 = vpop.f32.mrf.mxu0
        %v5738 = vadd.f32 0.0, %v5737
        %v5739 = vpop.f32.mrf.mxu0
        %v5740 = vpop.f32.mrf.mxu0
        %v5741 = vadd.f32 0.0, %v5740
        %v5742 = vpop.f32.mrf.mxu0
        %5743 = vmatprep.mubr.bf16.mxu0 0
        %5744 = vmatmul.mubr.bf16.gmra.mxu0 %v5644
        %v5745 = vpop.f32.mrf.mxu0
        %v5746 = vadd.f32 0.0, %v5745
        %v5747 = vpop.f32.mrf.mxu0
        %v5748 = vpop.f32.mrf.mxu0
        %v5749 = vadd.f32 0.0, %v5748
        %v5750 = vpop.f32.mrf.mxu0
        %5751 = vmatprep.mubr.bf16.mxu0 0
        %5752 = vmatmul.mubr.bf16.gmra.mxu0 %v5645
        %v5753 = vpop.f32.mrf.mxu0
        %v5754 = vadd.f32 0.0, %v5753
        %v5755 = vpop.f32.mrf.mxu0
        %v5756 = vpop.f32.mrf.mxu0
        %v5757 = vadd.f32 0.0, %v5756
        %v5758 = vpop.f32.mrf.mxu0
        %5759 = vmatprep.mubr.bf16.mxu0 0
        %5760 = vmatmul.mubr.bf16.gmra.mxu0 %v5646
        %v5761 = vpop.f32.mrf.mxu0
        %v5762 = vadd.f32 0.0, %v5761
        %v5763 = vpop.f32.mrf.mxu0
        %v5764 = vpop.f32.mrf.mxu0
        %v5765 = vadd.f32 0.0, %v5764
        %v5766 = vpop.f32.mrf.mxu0
        %5767 = vdwg.mxu0
        %v5768 = vrcp.pop %v5608
        %v5769 = vrcp.pop %v5610
        %v5770 = vrcp.pop %v5612
        %v5771 = vrcp.pop %v5614
        %v5772 = vrcp.pop %v5616
        %v5773 = vrcp.pop %v5618
        %v5774 = vrcp.pop %v5620
        %v5775 = vrcp.pop %v5622
        %v5776 = vrcp.pop %v5624
        %v5777 = vrcp.pop %v5626
        %v5778 = vrcp.pop %v5628
        %v5779 = vrcp.pop %v5630
        %v5780 = vrcp.pop %v5632
        %v5781 = vrcp.pop %v5634
        %v5782 = vrcp.pop %v5636
        %v5783 = vrcp.pop %v5638
        %v5784 = vmul.f32 %v5706, %v5768
        %v5785 = vmul.f32 %v5709, %v5769
        %v5786 = vmul.f32 %v5714, %v5770
        %v5787 = vmul.f32 %v5717, %v5771
        %v5788 = vmul.f32 %v5722, %v5772
        %v5789 = vmul.f32 %v5725, %v5773
        %v5790 = vmul.f32 %v5730, %v5774
        %v5791 = vmul.f32 %v5733, %v5775
        %v5792 = vmul.f32 %v5738, %v5776
        %v5793 = vmul.f32 %v5741, %v5777
        %v5794 = vmul.f32 %v5746, %v5778
        %v5795 = vmul.f32 %v5749, %v5779
        %v5796 = vmul.f32 %v5754, %v5780
        %v5797 = vmul.f32 %v5757, %v5781
        %v5798 = vmul.f32 %v5762, %v5782
        %v5799 = vmul.f32 %v5765, %v5783
        %5816 = vrot.lane.b32.xlu0 %v4884, 32
        %v5817 = vpop.permute.xlu0 %5816
        %5818 = vrot.lane.b32.xlu0 %v4885, 32
        %v5819 = vpop.permute.xlu0 %5818
        %5820 = vrot.lane.b32.xlu0 %v4886, 32
        %v5821 = vpop.permute.xlu0 %5820
        %5822 = vrot.lane.b32.xlu0 %v4887, 32
        %v5823 = vpop.permute.xlu0 %5822
        %5824 = vrot.lane.b32.xlu0 %v4888, 32
        %v5825 = vpop.permute.xlu0 %5824
        %5826 = vrot.lane.b32.xlu0 %v4889, 32
        %v5827 = vpop.permute.xlu0 %5826
        %5828 = vrot.lane.b32.xlu0 %v4890, 32
        %v5829 = vpop.permute.xlu0 %5828
        %5830 = vrot.lane.b32.xlu0 %v4891, 32
        %v5831 = vpop.permute.xlu0 %5830
        %5832 = vrot.lane.b32.xlu0 %v4892, 32
        %v5833 = vpop.permute.xlu0 %5832
        %5834 = vrot.lane.b32.xlu0 %v4893, 32
        %v5835 = vpop.permute.xlu0 %5834
        %5836 = vrot.lane.b32.xlu0 %v4894, 32
        %v5837 = vpop.permute.xlu0 %5836
        %5838 = vrot.lane.b32.xlu0 %v4895, 32
        %v5839 = vpop.permute.xlu0 %5838
        %5840 = vrot.lane.b32.xlu0 %v4896, 32
        %v5841 = vpop.permute.xlu0 %5840
        %5842 = vrot.lane.b32.xlu0 %v4897, 32
        %v5843 = vpop.permute.xlu0 %5842
        %5844 = vrot.lane.b32.xlu0 %v4898, 32
        %v5845 = vpop.permute.xlu0 %5844
        %5846 = vrot.lane.b32.xlu0 %v4899, 32
        %v5847 = vpop.permute.xlu0 %5846
        %5880 = vrot.lane.b32.xlu0 %v5334, 64
        %v5881 = vpop.permute.xlu0 %5880
        %5882 = vrot.lane.b32.xlu0 %v5335, 64
        %v5883 = vpop.permute.xlu0 %5882
        %5884 = vrot.lane.b32.xlu0 %v5336, 64
        %v5885 = vpop.permute.xlu0 %5884
        %5886 = vrot.lane.b32.xlu0 %v5337, 64
        %v5887 = vpop.permute.xlu0 %5886
        %5888 = vrot.lane.b32.xlu0 %v5338, 64
        %v5889 = vpop.permute.xlu0 %5888
        %5890 = vrot.lane.b32.xlu0 %v5339, 64
        %v5891 = vpop.permute.xlu0 %5890
        %5892 = vrot.lane.b32.xlu0 %v5340, 64
        %v5893 = vpop.permute.xlu0 %5892
        %5894 = vrot.lane.b32.xlu0 %v5341, 64
        %v5895 = vpop.permute.xlu0 %5894
        %5896 = vrot.lane.b32.xlu0 %v5342, 64
        %v5897 = vpop.permute.xlu0 %5896
        %5898 = vrot.lane.b32.xlu0 %v5343, 64
        %v5899 = vpop.permute.xlu0 %5898
        %5900 = vrot.lane.b32.xlu0 %v5344, 64
        %v5901 = vpop.permute.xlu0 %5900
        %5902 = vrot.lane.b32.xlu0 %v5345, 64
        %v5903 = vpop.permute.xlu0 %5902
        %5904 = vrot.lane.b32.xlu0 %v5346, 64
        %v5905 = vpop.permute.xlu0 %5904
        %5906 = vrot.lane.b32.xlu0 %v5347, 64
        %v5907 = vpop.permute.xlu0 %5906
        %5908 = vrot.lane.b32.xlu0 %v5348, 64
        %v5909 = vpop.permute.xlu0 %5908
        %5910 = vrot.lane.b32.xlu0 %v5349, 64
        %v5911 = vpop.permute.xlu0 %5910
        %5944 = vrot.lane.b32.xlu0 %v5784, 96
        %v5945 = vpop.permute.xlu0 %5944
        %5946 = vrot.lane.b32.xlu0 %v5785, 96
        %v5947 = vpop.permute.xlu0 %5946
        %5948 = vrot.lane.b32.xlu0 %v5786, 96
        %v5949 = vpop.permute.xlu0 %5948
        %5950 = vrot.lane.b32.xlu0 %v5787, 96
        %v5951 = vpop.permute.xlu0 %5950
        %5952 = vrot.lane.b32.xlu0 %v5788, 96
        %v5953 = vpop.permute.xlu0 %5952
        %5954 = vrot.lane.b32.xlu0 %v5789, 96
        %v5955 = vpop.permute.xlu0 %5954
        %5956 = vrot.lane.b32.xlu0 %v5790, 96
        %v5957 = vpop.permute.xlu0 %5956
        %5958 = vrot.lane.b32.xlu0 %v5791, 96
        %v5959 = vpop.permute.xlu0 %5958
        %5960 = vrot.lane.b32.xlu0 %v5792, 96
        %v5961 = vpop.permute.xlu0 %5960
        %5962 = vrot.lane.b32.xlu0 %v5793, 96
        %v5963 = vpop.permute.xlu0 %5962
        %5964 = vrot.lane.b32.xlu0 %v5794, 96
        %v5965 = vpop.permute.xlu0 %5964
        %5966 = vrot.lane.b32.xlu0 %v5795, 96
        %v5967 = vpop.permute.xlu0 %5966
        %5968 = vrot.lane.b32.xlu0 %v5796, 96
        %v5969 = vpop.permute.xlu0 %5968
        %5970 = vrot.lane.b32.xlu0 %v5797, 96
        %v5971 = vpop.permute.xlu0 %5970
        %5972 = vrot.lane.b32.xlu0 %v5798, 96
        %v5973 = vpop.permute.xlu0 %5972
        %5974 = vrot.lane.b32.xlu0 %v5799, 96
        %v5975 = vpop.permute.xlu0 %5974
        %v5992 = vsel %vm2021, %v4410, %v5817
        %v5993 = vsel %vm2021, %v4411, %v5819
        %v5994 = vsel %vm2021, %v4412, %v5821
        %v5995 = vsel %vm2021, %v4413, %v5823
        %v5996 = vsel %vm2021, %v4414, %v5825
        %v5997 = vsel %vm2021, %v4415, %v5827
        %v5998 = vsel %vm2021, %v4416, %v5829
        %v5999 = vsel %vm2021, %v4417, %v5831
        %v6000 = vsel %vm2021, %v4418, %v5833
        %v6001 = vsel %vm2021, %v4419, %v5835
        %v6002 = vsel %vm2021, %v4420, %v5837
        %v6003 = vsel %vm2021, %v4421, %v5839
        %v6004 = vsel %vm2021, %v4422, %v5841
        %v6005 = vsel %vm2021, %v4423, %v5843
        %v6006 = vsel %vm2021, %v4424, %v5845
        %v6007 = vsel %vm2021, %v4425, %v5847
        %v6008 = vsel %vm3998, %v5992, %v5881
        %v6009 = vsel %vm3998, %v5993, %v5883
        %v6010 = vsel %vm3998, %v5994, %v5885
        %v6011 = vsel %vm3998, %v5995, %v5887
        %v6012 = vsel %vm3998, %v5996, %v5889
        %v6013 = vsel %vm3998, %v5997, %v5891
        %v6014 = vsel %vm3998, %v5998, %v5893
        %v6015 = vsel %vm3998, %v5999, %v5895
        %v6016 = vsel %vm3998, %v6000, %v5897
        %v6017 = vsel %vm3998, %v6001, %v5899
        %v6018 = vsel %vm3998, %v6002, %v5901
        %v6019 = vsel %vm3998, %v6003, %v5903
        %v6020 = vsel %vm3998, %v6004, %v5905
        %v6021 = vsel %vm3998, %v6005, %v5907
        %v6022 = vsel %vm3998, %v6006, %v5909
        %v6023 = vsel %vm3998, %v6007, %v5911
        %v6024 = vsel %vm4015, %v6008, %v5945
        %v6025 = vsel %vm4015, %v6009, %v5947
        %v6026 = vsel %vm4015, %v6010, %v5949
        %v6027 = vsel %vm4015, %v6011, %v5951
        %v6028 = vsel %vm4015, %v6012, %v5953
        %v6029 = vsel %vm4015, %v6013, %v5955
        %v6030 = vsel %vm4015, %v6014, %v5957
        %v6031 = vsel %vm4015, %v6015, %v5959
        %v6032 = vsel %vm4015, %v6016, %v5961
        %v6033 = vsel %vm4015, %v6017, %v5963
        %v6034 = vsel %vm4015, %v6018, %v5965
        %v6035 = vsel %vm4015, %v6019, %v5967
        %v6036 = vsel %vm4015, %v6020, %v5969
        %v6037 = vsel %vm4015, %v6021, %v5971
        %v6038 = vsel %vm4015, %v6022, %v5973
        %v6039 = vsel %vm4015, %v6023, %v5975
        %v6040 = vpack.c.bf16 %v4017, %v4016
        %v6041 = vpack.c.bf16 %v4019, %v4018
        %v6042 = vpack.c.bf16 %v4021, %v4020
        %v6043 = vpack.c.bf16 %v4023, %v4022
        %v6044 = vpack.c.bf16 %v4025, %v4024
        %v6045 = vpack.c.bf16 %v4027, %v4026
        %v6046 = vpack.c.bf16 %v4029, %v4028
        %v6047 = vpack.c.bf16 %v4031, %v4030
        %v6048 = vpack.c.bf16 %v6025, %v6024
        %v6049 = vpack.c.bf16 %v6027, %v6026
        %v6050 = vpack.c.bf16 %v6029, %v6028
        %v6051 = vpack.c.bf16 %v6031, %v6030
        %v6052 = vpack.c.bf16 %v6033, %v6032
        %v6053 = vpack.c.bf16 %v6035, %v6034
        %v6054 = vpack.c.bf16 %v6037, %v6036
        %v6055 = vpack.c.bf16 %v6039, %v6038
        %v6056 = vld [vmem:[%s719] sm:$0xf]
        %v6057 = vld [vmem:[%s719 + $0x4] sm:$0xf]
        %v6058 = vld [vmem:[%s719 + $0x8] sm:$0xf]
        %v6059 = vld [vmem:[%s719 + $0xc] sm:$0xf]
        %v6060 = vld [vmem:[%s719 + $0x10] sm:$0xf]
        %v6061 = vld [vmem:[%s719 + $0x14] sm:$0xf]
        %v6062 = vld [vmem:[%s719 + $0x18] sm:$0xf]
        %v6063 = vld [vmem:[%s719 + $0x1c] sm:$0xf]
        %v6064 = vld [vmem:[%s719 + $0x20] sm:$0xf]
        %v6065 = vld [vmem:[%s719 + $0x24] sm:$0xf]
        %v6066 = vld [vmem:[%s719 + $0x28] sm:$0xf]
        %v6067 = vld [vmem:[%s719 + $0x2c] sm:$0xf]
        %v6068 = vld [vmem:[%s719 + $0x30] sm:$0xf]
        %v6069 = vld [vmem:[%s719 + $0x34] sm:$0xf]
        %v6070 = vld [vmem:[%s719 + $0x38] sm:$0xf]
        %v6071 = vld [vmem:[%s719 + $0x3c] sm:$0xf]
        %v6072 = vld [vmem:[%s831] sm:$0x1]
        %v6074 = vlaneseq
        %v6075 = vshrl.u32 %v6074, 7
        %v6076 = vsub.s32 0, %v6075
        %v6077 = vrot.slane %v6072, %v6076
        %v6095 = vunpack.c.l.b16 %v6056
        %v6096 = vunpack.c.l.b16 %v6057
        %v6097 = vunpack.c.l.b16 %v6058
        %v6098 = vunpack.c.l.b16 %v6059
        %v6099 = vunpack.c.l.b16 %v6060
        %v6100 = vunpack.c.l.b16 %v6061
        %v6101 = vunpack.c.l.b16 %v6062
        %v6102 = vunpack.c.l.b16 %v6063
        %v6103 = vunpack.c.l.b16 %v6064
        %v6104 = vunpack.c.l.b16 %v6065
        %v6105 = vunpack.c.l.b16 %v6066
        %v6106 = vunpack.c.l.b16 %v6067
        %v6107 = vunpack.c.l.b16 %v6068
        %v6108 = vunpack.c.l.b16 %v6069
        %v6109 = vunpack.c.l.b16 %v6070
        %v6110 = vunpack.c.l.b16 %v6071
        %v6111 = vpack.c.b16 %v6096, %v6095
        %v6112 = vpack.c.b16 %v6098, %v6097
        %v6113 = vpack.c.b16 %v6100, %v6099
        %v6114 = vpack.c.b16 %v6102, %v6101
        %v6115 = vpack.c.b16 %v6104, %v6103
        %v6116 = vpack.c.b16 %v6106, %v6105
        %v6117 = vpack.c.b16 %v6108, %v6107
        %v6118 = vpack.c.b16 %v6110, %v6109
        %6127 = vmatprep.subr.bf16.mxu0 0
        %6128 = vmatpush1.bf16.msra.mxu0 %v6118
        %6129 = vmatprep.subr.bf16.mxu0 0
        %6130 = vmatpush1.bf16.msra.mxu0 %v6117
        %6131 = vmatprep.subr.bf16.mxu0 0
        %6132 = vmatpush1.bf16.msra.mxu0 %v6116
        %6133 = vmatprep.subr.bf16.mxu0 0
        %6134 = vmatpush1.bf16.msra.mxu0 %v6115
        %6135 = vmatprep.subr.bf16.mxu0 0
        %6136 = vmatpush1.bf16.msra.mxu0 %v6114
        %6137 = vmatprep.subr.bf16.mxu0 0
        %6138 = vmatpush1.bf16.msra.mxu0 %v6113
        %6139 = vmatprep.subr.bf16.mxu0 0
        %6140 = vmatpush1.bf16.msra.mxu0 %v6112
        %6141 = vmatprep.subr.bf16.mxu0 0
        %6142 = vmatpush1.bf16.msra.mxu0 %v6111
        %6143 = vmatprep.subr.bf16.mxu0 0
        %6144 = vmatpush2.bf16.msra.mxu0 0
        %6145 = vmatprep.subr.bf16.mxu0 0
        %6146 = vmatpush2.bf16.msra.mxu0 0
        %6147 = vmatprep.subr.bf16.mxu0 0
        %6148 = vmatpush2.bf16.msra.mxu0 0
        %6149 = vmatprep.subr.bf16.mxu0 0
        %6150 = vmatpush2.bf16.msra.mxu0 0
        %6151 = vmatprep.subr.bf16.mxu0 0
        %6152 = vmatpush2.bf16.msra.mxu0 0
        %6153 = vmatprep.subr.bf16.mxu0 0
        %6154 = vmatpush2.bf16.msra.mxu0 0
        %6155 = vmatprep.subr.bf16.mxu0 0
        %6156 = vmatpush2.bf16.msra.mxu0 0
        %6157 = vmatprep.subr.bf16.mxu0 0
        %6158 = vmatpush2.bf16.msra.mxu0 0
        %6159 = vmatprep.mubr.bf16.mxu0 0
        %6160 = vmatmul.mubr.bf16.gmra.mxu0 %v6040
        %v6161 = vpop.f32.mrf.mxu0
        %v6162 = vadd.f32 %v6077, %v6161
        %v6163 = vpop.f32.mrf.mxu0
        %v6164 = vpop.f32.mrf.mxu0
        %v6165 = vadd.f32 %v6077, %v6164
        %v6166 = vpop.f32.mrf.mxu0
        %6167 = vmatprep.mubr.bf16.mxu0 0
        %6168 = vmatmul.mubr.bf16.gmra.mxu0 %v6041
        %v6169 = vpop.f32.mrf.mxu0
        %v6170 = vadd.f32 %v6077, %v6169
        %v6171 = vpop.f32.mrf.mxu0
        %v6172 = vpop.f32.mrf.mxu0
        %v6173 = vadd.f32 %v6077, %v6172
        %v6174 = vpop.f32.mrf.mxu0
        %6175 = vmatprep.mubr.bf16.mxu0 0
        %6176 = vmatmul.mubr.bf16.gmra.mxu0 %v6042
        %v6177 = vpop.f32.mrf.mxu0
        %v6178 = vadd.f32 %v6077, %v6177
        %v6179 = vpop.f32.mrf.mxu0
        %v6180 = vpop.f32.mrf.mxu0
        %v6181 = vadd.f32 %v6077, %v6180
        %v6182 = vpop.f32.mrf.mxu0
        %6183 = vmatprep.mubr.bf16.mxu0 0
        %6184 = vmatmul.mubr.bf16.gmra.mxu0 %v6043
        %v6185 = vpop.f32.mrf.mxu0
        %v6186 = vadd.f32 %v6077, %v6185
        %v6187 = vpop.f32.mrf.mxu0
        %v6188 = vpop.f32.mrf.mxu0
        %v6189 = vadd.f32 %v6077, %v6188
        %v6190 = vpop.f32.mrf.mxu0
        %6191 = vmatprep.mubr.bf16.mxu0 0
        %6192 = vmatmul.mubr.bf16.gmra.mxu0 %v6044
        %v6193 = vpop.f32.mrf.mxu0
        %v6194 = vadd.f32 %v6077, %v6193
        %v6195 = vpop.f32.mrf.mxu0
        %v6196 = vpop.f32.mrf.mxu0
        %v6197 = vadd.f32 %v6077, %v6196
        %v6198 = vpop.f32.mrf.mxu0
        %6199 = vmatprep.mubr.bf16.mxu0 0
        %6200 = vmatmul.mubr.bf16.gmra.mxu0 %v6045
        %v6201 = vpop.f32.mrf.mxu0
        %v6202 = vadd.f32 %v6077, %v6201
        %v6203 = vpop.f32.mrf.mxu0
        %v6204 = vpop.f32.mrf.mxu0
        %v6205 = vadd.f32 %v6077, %v6204
        %v6206 = vpop.f32.mrf.mxu0
        %6207 = vmatprep.mubr.bf16.mxu0 0
        %6208 = vmatmul.mubr.bf16.gmra.mxu0 %v6046
        %v6209 = vpop.f32.mrf.mxu0
        %v6210 = vadd.f32 %v6077, %v6209
        %v6211 = vpop.f32.mrf.mxu0
        %v6212 = vpop.f32.mrf.mxu0
        %v6213 = vadd.f32 %v6077, %v6212
        %v6214 = vpop.f32.mrf.mxu0
        %6215 = vmatprep.mubr.bf16.mxu0 0
        %6216 = vmatmul.mubr.bf16.gmra.mxu0 %v6047
        %v6217 = vpop.f32.mrf.mxu0
        %v6218 = vadd.f32 %v6077, %v6217
        %v6219 = vpop.f32.mrf.mxu0
        %v6220 = vpop.f32.mrf.mxu0
        %v6221 = vadd.f32 %v6077, %v6220
        %v6222 = vpop.f32.mrf.mxu0
        %6223 = vmatprep.mubr.bf16.mxu0 0
        %6224 = vmatmul.mubr.bf16.gmra.mxu0 %v6048
        %v6225 = vpop.f32.mrf.mxu0
        %v6226 = vadd.f32 %v6077, %v6225
        %v6227 = vpop.f32.mrf.mxu0
        %v6228 = vpop.f32.mrf.mxu0
        %v6229 = vadd.f32 %v6077, %v6228
        %v6230 = vpop.f32.mrf.mxu0
        %6231 = vmatprep.mubr.bf16.mxu0 0
        %6232 = vmatmul.mubr.bf16.gmra.mxu0 %v6049
        %v6233 = vpop.f32.mrf.mxu0
        %v6234 = vadd.f32 %v6077, %v6233
        %v6235 = vpop.f32.mrf.mxu0
        %v6236 = vpop.f32.mrf.mxu0
        %v6237 = vadd.f32 %v6077, %v6236
        %v6238 = vpop.f32.mrf.mxu0
        %6239 = vmatprep.mubr.bf16.mxu0 0
        %6240 = vmatmul.mubr.bf16.gmra.mxu0 %v6050
        %v6241 = vpop.f32.mrf.mxu0
        %v6242 = vadd.f32 %v6077, %v6241
        %v6243 = vpop.f32.mrf.mxu0
        %v6244 = vpop.f32.mrf.mxu0
        %v6245 = vadd.f32 %v6077, %v6244
        %v6246 = vpop.f32.mrf.mxu0
        %6247 = vmatprep.mubr.bf16.mxu0 0
        %6248 = vmatmul.mubr.bf16.gmra.mxu0 %v6051
        %v6249 = vpop.f32.mrf.mxu0
        %v6250 = vadd.f32 %v6077, %v6249
        %v6251 = vpop.f32.mrf.mxu0
        %v6252 = vpop.f32.mrf.mxu0
        %v6253 = vadd.f32 %v6077, %v6252
        %v6254 = vpop.f32.mrf.mxu0
        %6255 = vmatprep.mubr.bf16.mxu0 0
        %6256 = vmatmul.mubr.bf16.gmra.mxu0 %v6052
        %v6257 = vpop.f32.mrf.mxu0
        %v6258 = vadd.f32 %v6077, %v6257
        %v6259 = vpop.f32.mrf.mxu0
        %v6260 = vpop.f32.mrf.mxu0
        %v6261 = vadd.f32 %v6077, %v6260
        %v6262 = vpop.f32.mrf.mxu0
        %6263 = vmatprep.mubr.bf16.mxu0 0
        %6264 = vmatmul.mubr.bf16.gmra.mxu0 %v6053
        %v6265 = vpop.f32.mrf.mxu0
        %v6266 = vadd.f32 %v6077, %v6265
        %v6267 = vpop.f32.mrf.mxu0
        %v6268 = vpop.f32.mrf.mxu0
        %v6269 = vadd.f32 %v6077, %v6268
        %v6270 = vpop.f32.mrf.mxu0
        %6271 = vmatprep.mubr.bf16.mxu0 0
        %6272 = vmatmul.mubr.bf16.gmra.mxu0 %v6054
        %v6273 = vpop.f32.mrf.mxu0
        %v6274 = vadd.f32 %v6077, %v6273
        %v6275 = vpop.f32.mrf.mxu0
        %v6276 = vpop.f32.mrf.mxu0
        %v6277 = vadd.f32 %v6077, %v6276
        %v6278 = vpop.f32.mrf.mxu0
        %6279 = vmatprep.mubr.bf16.mxu0 0
        %6280 = vmatmul.mubr.bf16.gmra.mxu0 %v6055
        %v6281 = vpop.f32.mrf.mxu0
        %v6282 = vadd.f32 %v6077, %v6281
        %v6283 = vpop.f32.mrf.mxu0
        %v6284 = vpop.f32.mrf.mxu0
        %v6285 = vadd.f32 %v6077, %v6284
        %v6286 = vpop.f32.mrf.mxu0
        %6287 = vdwg.mxu0
        %v6288 = vadd.f32 %v963, %v6162
        %v6289 = vadd.f32 %v964, %v6165
        %v6290 = vadd.f32 %v965, %v6170
        %v6291 = vadd.f32 %v966, %v6173
        %v6292 = vadd.f32 %v967, %v6178
        %v6293 = vadd.f32 %v968, %v6181
        %v6294 = vadd.f32 %v969, %v6186
        %v6295 = vadd.f32 %v970, %v6189
        %v6296 = vadd.f32 %v971, %v6194
        %v6297 = vadd.f32 %v972, %v6197
        %v6298 = vadd.f32 %v973, %v6202
        %v6299 = vadd.f32 %v974, %v6205
        %v6300 = vadd.f32 %v975, %v6210
        %v6301 = vadd.f32 %v976, %v6213
        %v6302 = vadd.f32 %v977, %v6218
        %v6303 = vadd.f32 %v978, %v6221
        %v6304 = vadd.f32 %v979, %v6226
        %v6305 = vadd.f32 %v980, %v6229
        %v6306 = vadd.f32 %v981, %v6234
        %v6307 = vadd.f32 %v982, %v6237
        %v6308 = vadd.f32 %v983, %v6242
        %v6309 = vadd.f32 %v984, %v6245
        %v6310 = vadd.f32 %v985, %v6250
        %v6311 = vadd.f32 %v986, %v6253
        %v6312 = vadd.f32 %v987, %v6258
        %v6313 = vadd.f32 %v988, %v6261
        %v6314 = vadd.f32 %v989, %v6266
        %v6315 = vadd.f32 %v990, %v6269
        %v6316 = vadd.f32 %v991, %v6274
        %v6317 = vadd.f32 %v992, %v6277
        %v6318 = vadd.f32 %v993, %v6282
        %v6319 = vadd.f32 %v994, %v6285
        %v6320 = vld [vmem:[%s834] sm:$0x1]
        %v6321 = vld [vmem:[%s837] sm:$0x1]
        %6322 = vadd.xlane.f32.xlu0 %v6288
        %v6323 = vpop.xlane.xlu0 %6322
        %6324 = vadd.xlane.f32.xlu0 %v6289
        %v6325 = vpop.xlane.xlu0 %6324
        %6326 = vadd.xlane.f32.xlu0 %v6290
        %v6327 = vpop.xlane.xlu0 %6326
        %6328 = vadd.xlane.f32.xlu0 %v6291
        %v6329 = vpop.xlane.xlu0 %6328
        %6330 = vadd.xlane.f32.xlu0 %v6292
        %v6331 = vpop.xlane.xlu0 %6330
        %6332 = vadd.xlane.f32.xlu0 %v6293
        %v6333 = vpop.xlane.xlu0 %6332
        %6334 = vadd.xlane.f32.xlu0 %v6294
        %v6335 = vpop.xlane.xlu0 %6334
        %6336 = vadd.xlane.f32.xlu0 %v6295
        %v6337 = vpop.xlane.xlu0 %6336
        %6338 = vadd.xlane.f32.xlu0 %v6296
        %v6339 = vpop.xlane.xlu0 %6338
        %6340 = vadd.xlane.f32.xlu0 %v6297
        %v6341 = vpop.xlane.xlu0 %6340
        %6342 = vadd.xlane.f32.xlu0 %v6298
        %v6343 = vpop.xlane.xlu0 %6342
        %6344 = vadd.xlane.f32.xlu0 %v6299
        %v6345 = vpop.xlane.xlu0 %6344
        %6346 = vadd.xlane.f32.xlu0 %v6300
        %v6347 = vpop.xlane.xlu0 %6346
        %6348 = vadd.xlane.f32.xlu0 %v6301
        %v6349 = vpop.xlane.xlu0 %6348
        %6350 = vadd.xlane.f32.xlu0 %v6302
        %v6351 = vpop.xlane.xlu0 %6350
        %6352 = vadd.xlane.f32.xlu0 %v6303
        %v6353 = vpop.xlane.xlu0 %6352
        %6354 = vadd.xlane.f32.xlu0 %v6304
        %v6355 = vpop.xlane.xlu0 %6354
        %6356 = vadd.xlane.f32.xlu0 %v6305
        %v6357 = vpop.xlane.xlu0 %6356
        %6358 = vadd.xlane.f32.xlu0 %v6306
        %v6359 = vpop.xlane.xlu0 %6358
        %6360 = vadd.xlane.f32.xlu0 %v6307
        %v6361 = vpop.xlane.xlu0 %6360
        %6362 = vadd.xlane.f32.xlu0 %v6308
        %v6363 = vpop.xlane.xlu0 %6362
        %6364 = vadd.xlane.f32.xlu0 %v6309
        %v6365 = vpop.xlane.xlu0 %6364
        %6366 = vadd.xlane.f32.xlu0 %v6310
        %v6367 = vpop.xlane.xlu0 %6366
        %6368 = vadd.xlane.f32.xlu0 %v6311
        %v6369 = vpop.xlane.xlu0 %6368
        %6370 = vadd.xlane.f32.xlu0 %v6312
        %v6371 = vpop.xlane.xlu0 %6370
        %6372 = vadd.xlane.f32.xlu0 %v6313
        %v6373 = vpop.xlane.xlu0 %6372
        %6374 = vadd.xlane.f32.xlu0 %v6314
        %v6375 = vpop.xlane.xlu0 %6374
        %6376 = vadd.xlane.f32.xlu0 %v6315
        %v6377 = vpop.xlane.xlu0 %6376
        %6378 = vadd.xlane.f32.xlu0 %v6316
        %v6379 = vpop.xlane.xlu0 %6378
        %6380 = vadd.xlane.f32.xlu0 %v6317
        %v6381 = vpop.xlane.xlu0 %6380
        %6382 = vadd.xlane.f32.xlu0 %v6318
        %v6383 = vpop.xlane.xlu0 %6382
        %6384 = vadd.xlane.f32.xlu0 %v6319
        %v6385 = vpop.xlane.xlu0 %6384
        %v6386 = vmul.f32 %v6323, %v1061
        %v6387 = vmul.f32 %v6325, %v1061
        %v6388 = vmul.f32 %v6327, %v1061
        %v6389 = vmul.f32 %v6329, %v1061
        %v6390 = vmul.f32 %v6331, %v1061
        %v6391 = vmul.f32 %v6333, %v1061
        %v6392 = vmul.f32 %v6335, %v1061
        %v6393 = vmul.f32 %v6337, %v1061
        %v6394 = vmul.f32 %v6339, %v1061
        %v6395 = vmul.f32 %v6341, %v1061
        %v6396 = vmul.f32 %v6343, %v1061
        %v6397 = vmul.f32 %v6345, %v1061
        %v6398 = vmul.f32 %v6347, %v1061
        %v6399 = vmul.f32 %v6349, %v1061
        %v6400 = vmul.f32 %v6351, %v1061
        %v6401 = vmul.f32 %v6353, %v1061
        %v6402 = vmul.f32 %v6355, %v1061
        %v6403 = vmul.f32 %v6357, %v1061
        %v6404 = vmul.f32 %v6359, %v1061
        %v6405 = vmul.f32 %v6361, %v1061
        %v6406 = vmul.f32 %v6363, %v1061
        %v6407 = vmul.f32 %v6365, %v1061
        %v6408 = vmul.f32 %v6367, %v1061
        %v6409 = vmul.f32 %v6369, %v1061
        %v6410 = vmul.f32 %v6371, %v1061
        %v6411 = vmul.f32 %v6373, %v1061
        %v6412 = vmul.f32 %v6375, %v1061
        %v6413 = vmul.f32 %v6377, %v1061
        %v6414 = vmul.f32 %v6379, %v1061
        %v6415 = vmul.f32 %v6381, %v1061
        %v6416 = vmul.f32 %v6383, %v1061
        %v6417 = vmul.f32 %v6385, %v1061
        %v6418 = vsub.f32 %v6288, %v6386
        %v6419 = vsub.f32 %v6289, %v6387
        %v6420 = vsub.f32 %v6290, %v6388
        %v6421 = vsub.f32 %v6291, %v6389
        %v6422 = vsub.f32 %v6292, %v6390
        %v6423 = vsub.f32 %v6293, %v6391
        %v6424 = vsub.f32 %v6294, %v6392
        %v6425 = vsub.f32 %v6295, %v6393
        %v6426 = vsub.f32 %v6296, %v6394
        %v6427 = vsub.f32 %v6297, %v6395
        %v6428 = vsub.f32 %v6298, %v6396
        %v6429 = vsub.f32 %v6299, %v6397
        %v6430 = vsub.f32 %v6300, %v6398
        %v6431 = vsub.f32 %v6301, %v6399
        %v6432 = vsub.f32 %v6302, %v6400
        %v6433 = vsub.f32 %v6303, %v6401
        %v6434 = vsub.f32 %v6304, %v6402
        %v6435 = vsub.f32 %v6305, %v6403
        %v6436 = vsub.f32 %v6306, %v6404
        %v6437 = vsub.f32 %v6307, %v6405
        %v6438 = vsub.f32 %v6308, %v6406
        %v6439 = vsub.f32 %v6309, %v6407
        %v6440 = vsub.f32 %v6310, %v6408
        %v6441 = vsub.f32 %v6311, %v6409
        %v6442 = vsub.f32 %v6312, %v6410
        %v6443 = vsub.f32 %v6313, %v6411
        %v6444 = vsub.f32 %v6314, %v6412
        %v6445 = vsub.f32 %v6315, %v6413
        %v6446 = vsub.f32 %v6316, %v6414
        %v6447 = vsub.f32 %v6317, %v6415
        %v6448 = vsub.f32 %v6318, %v6416
        %v6449 = vsub.f32 %v6319, %v6417
        %v6450 = vmul.f32 %v6418, %v6418
        %v6451 = vmul.f32 %v6419, %v6419
        %v6452 = vmul.f32 %v6420, %v6420
        %v6453 = vmul.f32 %v6421, %v6421
        %v6454 = vmul.f32 %v6422, %v6422
        %v6455 = vmul.f32 %v6423, %v6423
        %v6456 = vmul.f32 %v6424, %v6424
        %v6457 = vmul.f32 %v6425, %v6425
        %v6458 = vmul.f32 %v6426, %v6426
        %v6459 = vmul.f32 %v6427, %v6427
        %v6460 = vmul.f32 %v6428, %v6428
        %v6461 = vmul.f32 %v6429, %v6429
        %v6462 = vmul.f32 %v6430, %v6430
        %v6463 = vmul.f32 %v6431, %v6431
        %v6464 = vmul.f32 %v6432, %v6432
        %v6465 = vmul.f32 %v6433, %v6433
        %v6466 = vmul.f32 %v6434, %v6434
        %v6467 = vmul.f32 %v6435, %v6435
        %v6468 = vmul.f32 %v6436, %v6436
        %v6469 = vmul.f32 %v6437, %v6437
        %v6470 = vmul.f32 %v6438, %v6438
        %v6471 = vmul.f32 %v6439, %v6439
        %v6472 = vmul.f32 %v6440, %v6440
        %v6473 = vmul.f32 %v6441, %v6441
        %v6474 = vmul.f32 %v6442, %v6442
        %v6475 = vmul.f32 %v6443, %v6443
        %v6476 = vmul.f32 %v6444, %v6444
        %v6477 = vmul.f32 %v6445, %v6445
        %v6478 = vmul.f32 %v6446, %v6446
        %v6479 = vmul.f32 %v6447, %v6447
        %v6480 = vmul.f32 %v6448, %v6448
        %v6481 = vmul.f32 %v6449, %v6449
        %6482 = vadd.xlane.f32.xlu0 %v6450
        %v6483 = vpop.xlane.xlu0 %6482
        %6484 = vadd.xlane.f32.xlu0 %v6451
        %v6485 = vpop.xlane.xlu0 %6484
        %6486 = vadd.xlane.f32.xlu0 %v6452
        %v6487 = vpop.xlane.xlu0 %6486
        %6488 = vadd.xlane.f32.xlu0 %v6453
        %v6489 = vpop.xlane.xlu0 %6488
        %6490 = vadd.xlane.f32.xlu0 %v6454
        %v6491 = vpop.xlane.xlu0 %6490
        %6492 = vadd.xlane.f32.xlu0 %v6455
        %v6493 = vpop.xlane.xlu0 %6492
        %6494 = vadd.xlane.f32.xlu0 %v6456
        %v6495 = vpop.xlane.xlu0 %6494
        %6496 = vadd.xlane.f32.xlu0 %v6457
        %v6497 = vpop.xlane.xlu0 %6496
        %6498 = vadd.xlane.f32.xlu0 %v6458
        %v6499 = vpop.xlane.xlu0 %6498
        %6500 = vadd.xlane.f32.xlu0 %v6459
        %v6501 = vpop.xlane.xlu0 %6500
        %6502 = vadd.xlane.f32.xlu0 %v6460
        %v6503 = vpop.xlane.xlu0 %6502
        %6504 = vadd.xlane.f32.xlu0 %v6461
        %v6505 = vpop.xlane.xlu0 %6504
        %6506 = vadd.xlane.f32.xlu0 %v6462
        %v6507 = vpop.xlane.xlu0 %6506
        %6508 = vadd.xlane.f32.xlu0 %v6463
        %v6509 = vpop.xlane.xlu0 %6508
        %6510 = vadd.xlane.f32.xlu0 %v6464
        %v6511 = vpop.xlane.xlu0 %6510
        %6512 = vadd.xlane.f32.xlu0 %v6465
        %v6513 = vpop.xlane.xlu0 %6512
        %6514 = vadd.xlane.f32.xlu0 %v6466
        %v6515 = vpop.xlane.xlu0 %6514
        %6516 = vadd.xlane.f32.xlu0 %v6467
        %v6517 = vpop.xlane.xlu0 %6516
        %6518 = vadd.xlane.f32.xlu0 %v6468
        %v6519 = vpop.xlane.xlu0 %6518
        %6520 = vadd.xlane.f32.xlu0 %v6469
        %v6521 = vpop.xlane.xlu0 %6520
        %6522 = vadd.xlane.f32.xlu0 %v6470
        %v6523 = vpop.xlane.xlu0 %6522
        %6524 = vadd.xlane.f32.xlu0 %v6471
        %v6525 = vpop.xlane.xlu0 %6524
        %6526 = vadd.xlane.f32.xlu0 %v6472
        %v6527 = vpop.xlane.xlu0 %6526
        %6528 = vadd.xlane.f32.xlu0 %v6473
        %v6529 = vpop.xlane.xlu0 %6528
        %6530 = vadd.xlane.f32.xlu0 %v6474
        %v6531 = vpop.xlane.xlu0 %6530
        %6532 = vadd.xlane.f32.xlu0 %v6475
        %v6533 = vpop.xlane.xlu0 %6532
        %6534 = vadd.xlane.f32.xlu0 %v6476
        %v6535 = vpop.xlane.xlu0 %6534
        %6536 = vadd.xlane.f32.xlu0 %v6477
        %v6537 = vpop.xlane.xlu0 %6536
        %6538 = vadd.xlane.f32.xlu0 %v6478
        %v6539 = vpop.xlane.xlu0 %6538
        %6540 = vadd.xlane.f32.xlu0 %v6479
        %v6541 = vpop.xlane.xlu0 %6540
        %6542 = vadd.xlane.f32.xlu0 %v6480
        %v6543 = vpop.xlane.xlu0 %6542
        %6544 = vadd.xlane.f32.xlu0 %v6481
        %v6545 = vpop.xlane.xlu0 %6544
        %v6546 = vmul.f32 %v6483, %v1061
        %v6547 = vmul.f32 %v6485, %v1061
        %v6548 = vmul.f32 %v6487, %v1061
        %v6549 = vmul.f32 %v6489, %v1061
        %v6550 = vmul.f32 %v6491, %v1061
        %v6551 = vmul.f32 %v6493, %v1061
        %v6552 = vmul.f32 %v6495, %v1061
        %v6553 = vmul.f32 %v6497, %v1061
        %v6554 = vmul.f32 %v6499, %v1061
        %v6555 = vmul.f32 %v6501, %v1061
        %v6556 = vmul.f32 %v6503, %v1061
        %v6557 = vmul.f32 %v6505, %v1061
        %v6558 = vmul.f32 %v6507, %v1061
        %v6559 = vmul.f32 %v6509, %v1061
        %v6560 = vmul.f32 %v6511, %v1061
        %v6561 = vmul.f32 %v6513, %v1061
        %v6562 = vmul.f32 %v6515, %v1061
        %v6563 = vmul.f32 %v6517, %v1061
        %v6564 = vmul.f32 %v6519, %v1061
        %v6565 = vmul.f32 %v6521, %v1061
        %v6566 = vmul.f32 %v6523, %v1061
        %v6567 = vmul.f32 %v6525, %v1061
        %v6568 = vmul.f32 %v6527, %v1061
        %v6569 = vmul.f32 %v6529, %v1061
        %v6570 = vmul.f32 %v6531, %v1061
        %v6571 = vmul.f32 %v6533, %v1061
        %v6572 = vmul.f32 %v6535, %v1061
        %v6573 = vmul.f32 %v6537, %v1061
        %v6574 = vmul.f32 %v6539, %v1061
        %v6575 = vmul.f32 %v6541, %v1061
        %v6576 = vmul.f32 %v6543, %v1061
        %v6577 = vmul.f32 %v6545, %v1061
        %v6578 = vadd.f32 %v6546, 1e-06
        %v6579 = vadd.f32 %v6547, 1e-06
        %v6580 = vadd.f32 %v6548, 1e-06
        %v6581 = vadd.f32 %v6549, 1e-06
        %v6582 = vadd.f32 %v6550, 1e-06
        %v6583 = vadd.f32 %v6551, 1e-06
        %v6584 = vadd.f32 %v6552, 1e-06
        %v6585 = vadd.f32 %v6553, 1e-06
        %v6586 = vadd.f32 %v6554, 1e-06
        %v6587 = vadd.f32 %v6555, 1e-06
        %v6588 = vadd.f32 %v6556, 1e-06
        %v6589 = vadd.f32 %v6557, 1e-06
        %v6590 = vadd.f32 %v6558, 1e-06
        %v6591 = vadd.f32 %v6559, 1e-06
        %v6592 = vadd.f32 %v6560, 1e-06
        %v6593 = vadd.f32 %v6561, 1e-06
        %v6594 = vadd.f32 %v6562, 1e-06
        %v6595 = vadd.f32 %v6563, 1e-06
        %v6596 = vadd.f32 %v6564, 1e-06
        %v6597 = vadd.f32 %v6565, 1e-06
        %v6598 = vadd.f32 %v6566, 1e-06
        %v6599 = vadd.f32 %v6567, 1e-06
        %v6600 = vadd.f32 %v6568, 1e-06
        %v6601 = vadd.f32 %v6569, 1e-06
        %v6602 = vadd.f32 %v6570, 1e-06
        %v6603 = vadd.f32 %v6571, 1e-06
        %v6604 = vadd.f32 %v6572, 1e-06
        %v6605 = vadd.f32 %v6573, 1e-06
        %v6606 = vadd.f32 %v6574, 1e-06
        %v6607 = vadd.f32 %v6575, 1e-06
        %v6608 = vadd.f32 %v6576, 1e-06
        %v6609 = vadd.f32 %v6577, 1e-06
        %v6610 = vrsqrt.pop %v6578
        %v6611 = vrsqrt.pop %v6579
        %v6612 = vrsqrt.pop %v6580
        %v6613 = vrsqrt.pop %v6581
        %v6614 = vrsqrt.pop %v6582
        %v6615 = vrsqrt.pop %v6583
        %v6616 = vrsqrt.pop %v6584
        %v6617 = vrsqrt.pop %v6585
        %v6618 = vrsqrt.pop %v6586
        %v6619 = vrsqrt.pop %v6587
        %v6620 = vrsqrt.pop %v6588
        %v6621 = vrsqrt.pop %v6589
        %v6622 = vrsqrt.pop %v6590
        %v6623 = vrsqrt.pop %v6591
        %v6624 = vrsqrt.pop %v6592
        %v6625 = vrsqrt.pop %v6593
        %v6626 = vrsqrt.pop %v6594
        %v6627 = vrsqrt.pop %v6595
        %v6628 = vrsqrt.pop %v6596
        %v6629 = vrsqrt.pop %v6597
        %v6630 = vrsqrt.pop %v6598
        %v6631 = vrsqrt.pop %v6599
        %v6632 = vrsqrt.pop %v6600
        %v6633 = vrsqrt.pop %v6601
        %v6634 = vrsqrt.pop %v6602
        %v6635 = vrsqrt.pop %v6603
        %v6636 = vrsqrt.pop %v6604
        %v6637 = vrsqrt.pop %v6605
        %v6638 = vrsqrt.pop %v6606
        %v6639 = vrsqrt.pop %v6607
        %v6640 = vrsqrt.pop %v6608
        %v6641 = vrsqrt.pop %v6609
        %v6642 = vmul.f32 %v6418, %v6610
        %v6643 = vmul.f32 %v6419, %v6611
        %v6644 = vmul.f32 %v6420, %v6612
        %v6645 = vmul.f32 %v6421, %v6613
        %v6646 = vmul.f32 %v6422, %v6614
        %v6647 = vmul.f32 %v6423, %v6615
        %v6648 = vmul.f32 %v6424, %v6616
        %v6649 = vmul.f32 %v6425, %v6617
        %v6650 = vmul.f32 %v6426, %v6618
        %v6651 = vmul.f32 %v6427, %v6619
        %v6652 = vmul.f32 %v6428, %v6620
        %v6653 = vmul.f32 %v6429, %v6621
        %v6654 = vmul.f32 %v6430, %v6622
        %v6655 = vmul.f32 %v6431, %v6623
        %v6656 = vmul.f32 %v6432, %v6624
        %v6657 = vmul.f32 %v6433, %v6625
        %v6658 = vmul.f32 %v6434, %v6626
        %v6659 = vmul.f32 %v6435, %v6627
        %v6660 = vmul.f32 %v6436, %v6628
        %v6661 = vmul.f32 %v6437, %v6629
        %v6662 = vmul.f32 %v6438, %v6630
        %v6663 = vmul.f32 %v6439, %v6631
        %v6664 = vmul.f32 %v6440, %v6632
        %v6665 = vmul.f32 %v6441, %v6633
        %v6666 = vmul.f32 %v6442, %v6634
        %v6667 = vmul.f32 %v6443, %v6635
        %v6668 = vmul.f32 %v6444, %v6636
        %v6669 = vmul.f32 %v6445, %v6637
        %v6670 = vmul.f32 %v6446, %v6638
        %v6671 = vmul.f32 %v6447, %v6639
        %v6672 = vmul.f32 %v6448, %v6640
        %v6673 = vmul.f32 %v6449, %v6641
        %v6675 = vlaneseq
        %v6676 = vshrl.u32 %v6675, 7
        %v6677 = vsub.s32 0, %v6676
        %v6678 = vrot.slane %v6320, %v6677
        %v6680 = vmul.f32 %v6642, %v6678
        %v6681 = vmul.f32 %v6643, %v6678
        %v6682 = vmul.f32 %v6644, %v6678
        %v6683 = vmul.f32 %v6645, %v6678
        %v6684 = vmul.f32 %v6646, %v6678
        %v6685 = vmul.f32 %v6647, %v6678
        %v6686 = vmul.f32 %v6648, %v6678
        %v6687 = vmul.f32 %v6649, %v6678
        %v6688 = vmul.f32 %v6650, %v6678
        %v6689 = vmul.f32 %v6651, %v6678
        %v6690 = vmul.f32 %v6652, %v6678
        %v6691 = vmul.f32 %v6653, %v6678
        %v6692 = vmul.f32 %v6654, %v6678
        %v6693 = vmul.f32 %v6655, %v6678
        %v6694 = vmul.f32 %v6656, %v6678
        %v6695 = vmul.f32 %v6657, %v6678
        %v6696 = vmul.f32 %v6658, %v6678
        %v6697 = vmul.f32 %v6659, %v6678
        %v6698 = vmul.f32 %v6660, %v6678
        %v6699 = vmul.f32 %v6661, %v6678
        %v6700 = vmul.f32 %v6662, %v6678
        %v6701 = vmul.f32 %v6663, %v6678
        %v6702 = vmul.f32 %v6664, %v6678
        %v6703 = vmul.f32 %v6665, %v6678
        %v6704 = vmul.f32 %v6666, %v6678
        %v6705 = vmul.f32 %v6667, %v6678
        %v6706 = vmul.f32 %v6668, %v6678
        %v6707 = vmul.f32 %v6669, %v6678
        %v6708 = vmul.f32 %v6670, %v6678
        %v6709 = vmul.f32 %v6671, %v6678
        %v6710 = vmul.f32 %v6672, %v6678
        %v6711 = vmul.f32 %v6673, %v6678
        %v6713 = vlaneseq
        %v6714 = vshrl.u32 %v6713, 7
        %v6715 = vsub.s32 0, %v6714
        %v6716 = vrot.slane %v6321, %v6715
        %v6718 = vadd.f32 %v6680, %v6716
        %v6719 = vadd.f32 %v6681, %v6716
        %v6720 = vadd.f32 %v6682, %v6716
        %v6721 = vadd.f32 %v6683, %v6716
        %v6722 = vadd.f32 %v6684, %v6716
        %v6723 = vadd.f32 %v6685, %v6716
        %v6724 = vadd.f32 %v6686, %v6716
        %v6725 = vadd.f32 %v6687, %v6716
        %v6726 = vadd.f32 %v6688, %v6716
        %v6727 = vadd.f32 %v6689, %v6716
        %v6728 = vadd.f32 %v6690, %v6716
        %v6729 = vadd.f32 %v6691, %v6716
        %v6730 = vadd.f32 %v6692, %v6716
        %v6731 = vadd.f32 %v6693, %v6716
        %v6732 = vadd.f32 %v6694, %v6716
        %v6733 = vadd.f32 %v6695, %v6716
        %v6734 = vadd.f32 %v6696, %v6716
        %v6735 = vadd.f32 %v6697, %v6716
        %v6736 = vadd.f32 %v6698, %v6716
        %v6737 = vadd.f32 %v6699, %v6716
        %v6738 = vadd.f32 %v6700, %v6716
        %v6739 = vadd.f32 %v6701, %v6716
        %v6740 = vadd.f32 %v6702, %v6716
        %v6741 = vadd.f32 %v6703, %v6716
        %v6742 = vadd.f32 %v6704, %v6716
        %v6743 = vadd.f32 %v6705, %v6716
        %v6744 = vadd.f32 %v6706, %v6716
        %v6745 = vadd.f32 %v6707, %v6716
        %v6746 = vadd.f32 %v6708, %v6716
        %v6747 = vadd.f32 %v6709, %v6716
        %v6748 = vadd.f32 %v6710, %v6716
        %v6749 = vadd.f32 %v6711, %v6716
        %v6750 = vpack.c.bf16 %v6719, %v6718
        %v6751 = vpack.c.bf16 %v6721, %v6720
        %v6752 = vpack.c.bf16 %v6723, %v6722
        %v6753 = vpack.c.bf16 %v6725, %v6724
        %v6754 = vpack.c.bf16 %v6727, %v6726
        %v6755 = vpack.c.bf16 %v6729, %v6728
        %v6756 = vpack.c.bf16 %v6731, %v6730
        %v6757 = vpack.c.bf16 %v6733, %v6732
        %v6758 = vpack.c.bf16 %v6735, %v6734
        %v6759 = vpack.c.bf16 %v6737, %v6736
        %v6760 = vpack.c.bf16 %v6739, %v6738
        %v6761 = vpack.c.bf16 %v6741, %v6740
        %v6762 = vpack.c.bf16 %v6743, %v6742
        %v6763 = vpack.c.bf16 %v6745, %v6744
        %v6764 = vpack.c.bf16 %v6747, %v6746
        %v6765 = vpack.c.bf16 %v6749, %v6748
        %v6766 = vld [vmem:[%s728] sm:$0xff]
        %v6767 = vld [vmem:[%s728 + $0x8] sm:$0xff]
        %v6768 = vld [vmem:[%s728 + $0x10] sm:$0xff]
        %v6769 = vld [vmem:[%s728 + $0x18] sm:$0xff]
        %v6770 = vld [vmem:[%s728 + $0x20] sm:$0xff]
        %v6771 = vld [vmem:[%s728 + $0x28] sm:$0xff]
        %v6772 = vld [vmem:[%s728 + $0x30] sm:$0xff]
        %v6773 = vld [vmem:[%s728 + $0x38] sm:$0xff]
        %v6774 = vld [vmem:[%s728 + $0x40] sm:$0xff]
        %v6775 = vld [vmem:[%s728 + $0x48] sm:$0xff]
        %v6776 = vld [vmem:[%s728 + $0x50] sm:$0xff]
        %v6777 = vld [vmem:[%s728 + $0x58] sm:$0xff]
        %v6778 = vld [vmem:[%s728 + $0x60] sm:$0xff]
        %v6779 = vld [vmem:[%s728 + $0x68] sm:$0xff]
        %v6780 = vld [vmem:[%s728 + $0x70] sm:$0xff]
        %v6781 = vld [vmem:[%s728 + $0x78] sm:$0xff]
        %v6782 = vld [vmem:[%s841] sm:$0x3]
        %v6784 = vlaneseq
        %v6785 = vshrl.u32 %v6784, 7
        %v6786 = vsub.s32 0, %v6785
        %v6787 = vrot.slane %v6782, %v6786
        %v6788 = vlaneseq
        %v6789 = vshrl.u32 %v6788, 7
        %v6790 = vsub.s32 1, %v6789
        %v6791 = vrot.slane %v6782, %v6790
        %v6810 = vunpack.c.l.b16 %v6766
        %v6811 = vunpack.c.h.b16 %v6766
        %v6812 = vunpack.c.l.b16 %v6767
        %v6813 = vunpack.c.h.b16 %v6767
        %v6814 = vunpack.c.l.b16 %v6768
        %v6815 = vunpack.c.h.b16 %v6768
        %v6816 = vunpack.c.l.b16 %v6769
        %v6817 = vunpack.c.h.b16 %v6769
        %v6818 = vunpack.c.l.b16 %v6770
        %v6819 = vunpack.c.h.b16 %v6770
        %v6820 = vunpack.c.l.b16 %v6771
        %v6821 = vunpack.c.h.b16 %v6771
        %v6822 = vunpack.c.l.b16 %v6772
        %v6823 = vunpack.c.h.b16 %v6772
        %v6824 = vunpack.c.l.b16 %v6773
        %v6825 = vunpack.c.h.b16 %v6773
        %v6826 = vunpack.c.l.b16 %v6774
        %v6827 = vunpack.c.h.b16 %v6774
        %v6828 = vunpack.c.l.b16 %v6775
        %v6829 = vunpack.c.h.b16 %v6775
        %v6830 = vunpack.c.l.b16 %v6776
        %v6831 = vunpack.c.h.b16 %v6776
        %v6832 = vunpack.c.l.b16 %v6777
        %v6833 = vunpack.c.h.b16 %v6777
        %v6834 = vunpack.c.l.b16 %v6778
        %v6835 = vunpack.c.h.b16 %v6778
        %v6836 = vunpack.c.l.b16 %v6779
        %v6837 = vunpack.c.h.b16 %v6779
        %v6838 = vunpack.c.l.b16 %v6780
        %v6839 = vunpack.c.h.b16 %v6780
        %v6840 = vunpack.c.l.b16 %v6781
        %v6841 = vunpack.c.h.b16 %v6781
        %v6842 = vpack.c.b16 %v6812, %v6810
        %v6843 = vpack.c.b16 %v6813, %v6811
        %v6844 = vpack.c.b16 %v6816, %v6814
        %v6845 = vpack.c.b16 %v6817, %v6815
        %v6846 = vpack.c.b16 %v6820, %v6818
        %v6847 = vpack.c.b16 %v6821, %v6819
        %v6848 = vpack.c.b16 %v6824, %v6822
        %v6849 = vpack.c.b16 %v6825, %v6823
        %v6850 = vpack.c.b16 %v6828, %v6826
        %v6851 = vpack.c.b16 %v6829, %v6827
        %v6852 = vpack.c.b16 %v6832, %v6830
        %v6853 = vpack.c.b16 %v6833, %v6831
        %v6854 = vpack.c.b16 %v6836, %v6834
        %v6855 = vpack.c.b16 %v6837, %v6835
        %v6856 = vpack.c.b16 %v6840, %v6838
        %v6857 = vpack.c.b16 %v6841, %v6839
        %6874 = vmatprep.subr.bf16.mxu0 %v6857
        %6875 = vmatpush1.bf16.msra.mxu0 %v6856
        %6876 = vmatprep.subr.bf16.mxu0 %v6855
        %6877 = vmatpush1.bf16.msra.mxu0 %v6854
        %6878 = vmatprep.subr.bf16.mxu0 %v6853
        %6879 = vmatpush1.bf16.msra.mxu0 %v6852
        %6880 = vmatprep.subr.bf16.mxu0 %v6851
        %6881 = vmatpush1.bf16.msra.mxu0 %v6850
        %6882 = vmatprep.subr.bf16.mxu0 %v6849
        %6883 = vmatpush1.bf16.msra.mxu0 %v6848
        %6884 = vmatprep.subr.bf16.mxu0 %v6847
        %6885 = vmatpush1.bf16.msra.mxu0 %v6846
        %6886 = vmatprep.subr.bf16.mxu0 %v6845
        %6887 = vmatpush1.bf16.msra.mxu0 %v6844
        %6888 = vmatprep.subr.bf16.mxu0 %v6843
        %6889 = vmatpush1.bf16.msra.mxu0 %v6842
        %6890 = vmatprep.subr.bf16.mxu0 0
        %6891 = vmatpush2.bf16.msra.mxu0 0
        %6892 = vmatprep.subr.bf16.mxu0 0
        %6893 = vmatpush2.bf16.msra.mxu0 0
        %6894 = vmatprep.subr.bf16.mxu0 0
        %6895 = vmatpush2.bf16.msra.mxu0 0
        %6896 = vmatprep.subr.bf16.mxu0 0
        %6897 = vmatpush2.bf16.msra.mxu0 0
        %6898 = vmatprep.subr.bf16.mxu0 0
        %6899 = vmatpush2.bf16.msra.mxu0 0
        %6900 = vmatprep.subr.bf16.mxu0 0
        %6901 = vmatpush2.bf16.msra.mxu0 0
        %6902 = vmatprep.subr.bf16.mxu0 0
        %6903 = vmatpush2.bf16.msra.mxu0 0
        %6904 = vmatprep.subr.bf16.mxu0 0
        %6905 = vmatpush2.bf16.msra.mxu0 0
        %6906 = vmatprep.mubr.bf16.mxu0 0
        %6907 = vmatmul.mubr.bf16.gmra.mxu0 %v6750
        %v6908 = vpop.f32.mrf.mxu0
        %v6909 = vadd.f32 %v6787, %v6908
        %v6910 = vpop.f32.mrf.mxu0
        %v6911 = vadd.f32 %v6791, %v6910
        %v6912 = vpop.f32.mrf.mxu0
        %v6913 = vadd.f32 %v6787, %v6912
        %v6914 = vpop.f32.mrf.mxu0
        %v6915 = vadd.f32 %v6791, %v6914
        %6916 = vmatprep.mubr.bf16.mxu0 0
        %6917 = vmatmul.mubr.bf16.gmra.mxu0 %v6751
        %v6918 = vpop.f32.mrf.mxu0
        %v6919 = vadd.f32 %v6787, %v6918
        %v6920 = vpop.f32.mrf.mxu0
        %v6921 = vadd.f32 %v6791, %v6920
        %v6922 = vpop.f32.mrf.mxu0
        %v6923 = vadd.f32 %v6787, %v6922
        %v6924 = vpop.f32.mrf.mxu0
        %v6925 = vadd.f32 %v6791, %v6924
        %6926 = vmatprep.mubr.bf16.mxu0 0
        %6927 = vmatmul.mubr.bf16.gmra.mxu0 %v6752
        %v6928 = vpop.f32.mrf.mxu0
        %v6929 = vadd.f32 %v6787, %v6928
        %v6930 = vpop.f32.mrf.mxu0
        %v6931 = vadd.f32 %v6791, %v6930
        %v6932 = vpop.f32.mrf.mxu0
        %v6933 = vadd.f32 %v6787, %v6932
        %v6934 = vpop.f32.mrf.mxu0
        %v6935 = vadd.f32 %v6791, %v6934
        %6936 = vmatprep.mubr.bf16.mxu0 0
        %6937 = vmatmul.mubr.bf16.gmra.mxu0 %v6753
        %v6938 = vpop.f32.mrf.mxu0
        %v6939 = vadd.f32 %v6787, %v6938
        %v6940 = vpop.f32.mrf.mxu0
        %v6941 = vadd.f32 %v6791, %v6940
        %v6942 = vpop.f32.mrf.mxu0
        %v6943 = vadd.f32 %v6787, %v6942
        %v6944 = vpop.f32.mrf.mxu0
        %v6945 = vadd.f32 %v6791, %v6944
        %6946 = vmatprep.mubr.bf16.mxu0 0
        %6947 = vmatmul.mubr.bf16.gmra.mxu0 %v6754
        %v6948 = vpop.f32.mrf.mxu0
        %v6949 = vadd.f32 %v6787, %v6948
        %v6950 = vpop.f32.mrf.mxu0
        %v6951 = vadd.f32 %v6791, %v6950
        %v6952 = vpop.f32.mrf.mxu0
        %v6953 = vadd.f32 %v6787, %v6952
        %v6954 = vpop.f32.mrf.mxu0
        %v6955 = vadd.f32 %v6791, %v6954
        %6956 = vmatprep.mubr.bf16.mxu0 0
        %6957 = vmatmul.mubr.bf16.gmra.mxu0 %v6755
        %v6958 = vpop.f32.mrf.mxu0
        %v6959 = vadd.f32 %v6787, %v6958
        %v6960 = vpop.f32.mrf.mxu0
        %v6961 = vadd.f32 %v6791, %v6960
        %v6962 = vpop.f32.mrf.mxu0
        %v6963 = vadd.f32 %v6787, %v6962
        %v6964 = vpop.f32.mrf.mxu0
        %v6965 = vadd.f32 %v6791, %v6964
        %6966 = vmatprep.mubr.bf16.mxu0 0
        %6967 = vmatmul.mubr.bf16.gmra.mxu0 %v6756
        %v6968 = vpop.f32.mrf.mxu0
        %v6969 = vadd.f32 %v6787, %v6968
        %v6970 = vpop.f32.mrf.mxu0
        %v6971 = vadd.f32 %v6791, %v6970
        %v6972 = vpop.f32.mrf.mxu0
        %v6973 = vadd.f32 %v6787, %v6972
        %v6974 = vpop.f32.mrf.mxu0
        %v6975 = vadd.f32 %v6791, %v6974
        %6976 = vmatprep.mubr.bf16.mxu0 0
        %6977 = vmatmul.mubr.bf16.gmra.mxu0 %v6757
        %v6978 = vpop.f32.mrf.mxu0
        %v6979 = vadd.f32 %v6787, %v6978
        %v6980 = vpop.f32.mrf.mxu0
        %v6981 = vadd.f32 %v6791, %v6980
        %v6982 = vpop.f32.mrf.mxu0
        %v6983 = vadd.f32 %v6787, %v6982
        %v6984 = vpop.f32.mrf.mxu0
        %v6985 = vadd.f32 %v6791, %v6984
        %6986 = vmatprep.mubr.bf16.mxu0 0
        %6987 = vmatmul.mubr.bf16.gmra.mxu0 %v6758
        %v6988 = vpop.f32.mrf.mxu0
        %v6989 = vadd.f32 %v6787, %v6988
        %v6990 = vpop.f32.mrf.mxu0
        %v6991 = vadd.f32 %v6791, %v6990
        %v6992 = vpop.f32.mrf.mxu0
        %v6993 = vadd.f32 %v6787, %v6992
        %v6994 = vpop.f32.mrf.mxu0
        %v6995 = vadd.f32 %v6791, %v6994
        %6996 = vmatprep.mubr.bf16.mxu0 0
        %6997 = vmatmul.mubr.bf16.gmra.mxu0 %v6759
        %v6998 = vpop.f32.mrf.mxu0
        %v6999 = vadd.f32 %v6787, %v6998
        %v7000 = vpop.f32.mrf.mxu0
        %v7001 = vadd.f32 %v6791, %v7000
        %v7002 = vpop.f32.mrf.mxu0
        %v7003 = vadd.f32 %v6787, %v7002
        %v7004 = vpop.f32.mrf.mxu0
        %v7005 = vadd.f32 %v6791, %v7004
        %7006 = vmatprep.mubr.bf16.mxu0 0
        %7007 = vmatmul.mubr.bf16.gmra.mxu0 %v6760
        %v7008 = vpop.f32.mrf.mxu0
        %v7009 = vadd.f32 %v6787, %v7008
        %v7010 = vpop.f32.mrf.mxu0
        %v7011 = vadd.f32 %v6791, %v7010
        %v7012 = vpop.f32.mrf.mxu0
        %v7013 = vadd.f32 %v6787, %v7012
        %v7014 = vpop.f32.mrf.mxu0
        %v7015 = vadd.f32 %v6791, %v7014
        %7016 = vmatprep.mubr.bf16.mxu0 0
        %7017 = vmatmul.mubr.bf16.gmra.mxu0 %v6761
        %v7018 = vpop.f32.mrf.mxu0
        %v7019 = vadd.f32 %v6787, %v7018
        %v7020 = vpop.f32.mrf.mxu0
        %v7021 = vadd.f32 %v6791, %v7020
        %v7022 = vpop.f32.mrf.mxu0
        %v7023 = vadd.f32 %v6787, %v7022
        %v7024 = vpop.f32.mrf.mxu0
        %v7025 = vadd.f32 %v6791, %v7024
        %7026 = vmatprep.mubr.bf16.mxu0 0
        %7027 = vmatmul.mubr.bf16.gmra.mxu0 %v6762
        %v7028 = vpop.f32.mrf.mxu0
        %v7029 = vadd.f32 %v6787, %v7028
        %v7030 = vpop.f32.mrf.mxu0
        %v7031 = vadd.f32 %v6791, %v7030
        %v7032 = vpop.f32.mrf.mxu0
        %v7033 = vadd.f32 %v6787, %v7032
        %v7034 = vpop.f32.mrf.mxu0
        %v7035 = vadd.f32 %v6791, %v7034
        %7036 = vmatprep.mubr.bf16.mxu0 0
        %7037 = vmatmul.mubr.bf16.gmra.mxu0 %v6763
        %v7038 = vpop.f32.mrf.mxu0
        %v7039 = vadd.f32 %v6787, %v7038
        %v7040 = vpop.f32.mrf.mxu0
        %v7041 = vadd.f32 %v6791, %v7040
        %v7042 = vpop.f32.mrf.mxu0
        %v7043 = vadd.f32 %v6787, %v7042
        %v7044 = vpop.f32.mrf.mxu0
        %v7045 = vadd.f32 %v6791, %v7044
        %7046 = vmatprep.mubr.bf16.mxu0 0
        %7047 = vmatmul.mubr.bf16.gmra.mxu0 %v6764
        %v7048 = vpop.f32.mrf.mxu0
        %v7049 = vadd.f32 %v6787, %v7048
        %v7050 = vpop.f32.mrf.mxu0
        %v7051 = vadd.f32 %v6791, %v7050
        %v7052 = vpop.f32.mrf.mxu0
        %v7053 = vadd.f32 %v6787, %v7052
        %v7054 = vpop.f32.mrf.mxu0
        %v7055 = vadd.f32 %v6791, %v7054
        %7056 = vmatprep.mubr.bf16.mxu0 0
        %7057 = vmatmul.mubr.bf16.gmra.mxu0 %v6765
        %v7058 = vpop.f32.mrf.mxu0
        %v7059 = vadd.f32 %v6787, %v7058
        %v7060 = vpop.f32.mrf.mxu0
        %v7061 = vadd.f32 %v6791, %v7060
        %v7062 = vpop.f32.mrf.mxu0
        %v7063 = vadd.f32 %v6787, %v7062
        %v7064 = vpop.f32.mrf.mxu0
        %v7065 = vadd.f32 %v6791, %v7064
        %7066 = vdwg.mxu0
        %v7067 = vmax.f32 %v6909, 0.0
        %v7068 = vmax.f32 %v6911, 0.0
        %v7069 = vmax.f32 %v6913, 0.0
        %v7070 = vmax.f32 %v6915, 0.0
        %v7071 = vmax.f32 %v6919, 0.0
        %v7072 = vmax.f32 %v6921, 0.0
        %v7073 = vmax.f32 %v6923, 0.0
        %v7074 = vmax.f32 %v6925, 0.0
        %v7075 = vmax.f32 %v6929, 0.0
        %v7076 = vmax.f32 %v6931, 0.0
        %v7077 = vmax.f32 %v6933, 0.0
        %v7078 = vmax.f32 %v6935, 0.0
        %v7079 = vmax.f32 %v6939, 0.0
        %v7080 = vmax.f32 %v6941, 0.0
        %v7081 = vmax.f32 %v6943, 0.0
        %v7082 = vmax.f32 %v6945, 0.0
        %v7083 = vmax.f32 %v6949, 0.0
        %v7084 = vmax.f32 %v6951, 0.0
        %v7085 = vmax.f32 %v6953, 0.0
        %v7086 = vmax.f32 %v6955, 0.0
        %v7087 = vmax.f32 %v6959, 0.0
        %v7088 = vmax.f32 %v6961, 0.0
        %v7089 = vmax.f32 %v6963, 0.0
        %v7090 = vmax.f32 %v6965, 0.0
        %v7091 = vmax.f32 %v6969, 0.0
        %v7092 = vmax.f32 %v6971, 0.0
        %v7093 = vmax.f32 %v6973, 0.0
        %v7094 = vmax.f32 %v6975, 0.0
        %v7095 = vmax.f32 %v6979, 0.0
        %v7096 = vmax.f32 %v6981, 0.0
        %v7097 = vmax.f32 %v6983, 0.0
        %v7098 = vmax.f32 %v6985, 0.0
        %v7099 = vmax.f32 %v6989, 0.0
        %v7100 = vmax.f32 %v6991, 0.0
        %v7101 = vmax.f32 %v6993, 0.0
        %v7102 = vmax.f32 %v6995, 0.0
        %v7103 = vmax.f32 %v6999, 0.0
        %v7104 = vmax.f32 %v7001, 0.0
        %v7105 = vmax.f32 %v7003, 0.0
        %v7106 = vmax.f32 %v7005, 0.0
        %v7107 = vmax.f32 %v7009, 0.0
        %v7108 = vmax.f32 %v7011, 0.0
        %v7109 = vmax.f32 %v7013, 0.0
        %v7110 = vmax.f32 %v7015, 0.0
        %v7111 = vmax.f32 %v7019, 0.0
        %v7112 = vmax.f32 %v7021, 0.0
        %v7113 = vmax.f32 %v7023, 0.0
        %v7114 = vmax.f32 %v7025, 0.0
        %v7115 = vmax.f32 %v7029, 0.0
        %v7116 = vmax.f32 %v7031, 0.0
        %v7117 = vmax.f32 %v7033, 0.0
        %v7118 = vmax.f32 %v7035, 0.0
        %v7119 = vmax.f32 %v7039, 0.0
        %v7120 = vmax.f32 %v7041, 0.0
        %v7121 = vmax.f32 %v7043, 0.0
        %v7122 = vmax.f32 %v7045, 0.0
        %v7123 = vmax.f32 %v7049, 0.0
        %v7124 = vmax.f32 %v7051, 0.0
        %v7125 = vmax.f32 %v7053, 0.0
        %v7126 = vmax.f32 %v7055, 0.0
        %v7127 = vmax.f32 %v7059, 0.0
        %v7128 = vmax.f32 %v7061, 0.0
        %v7129 = vmax.f32 %v7063, 0.0
        %v7130 = vmax.f32 %v7065, 0.0
        %v7131 = vpack.c.bf16 %v7069, %v7067
        %v7132 = vpack.c.bf16 %v7070, %v7068
        %v7133 = vpack.c.bf16 %v7073, %v7071
        %v7134 = vpack.c.bf16 %v7074, %v7072
        %v7135 = vpack.c.bf16 %v7077, %v7075
        %v7136 = vpack.c.bf16 %v7078, %v7076
        %v7137 = vpack.c.bf16 %v7081, %v7079
        %v7138 = vpack.c.bf16 %v7082, %v7080
        %v7139 = vpack.c.bf16 %v7085, %v7083
        %v7140 = vpack.c.bf16 %v7086, %v7084
        %v7141 = vpack.c.bf16 %v7089, %v7087
        %v7142 = vpack.c.bf16 %v7090, %v7088
        %v7143 = vpack.c.bf16 %v7093, %v7091
        %v7144 = vpack.c.bf16 %v7094, %v7092
        %v7145 = vpack.c.bf16 %v7097, %v7095
        %v7146 = vpack.c.bf16 %v7098, %v7096
        %v7147 = vpack.c.bf16 %v7101, %v7099
        %v7148 = vpack.c.bf16 %v7102, %v7100
        %v7149 = vpack.c.bf16 %v7105, %v7103
        %v7150 = vpack.c.bf16 %v7106, %v7104
        %v7151 = vpack.c.bf16 %v7109, %v7107
        %v7152 = vpack.c.bf16 %v7110, %v7108
        %v7153 = vpack.c.bf16 %v7113, %v7111
        %v7154 = vpack.c.bf16 %v7114, %v7112
        %v7155 = vpack.c.bf16 %v7117, %v7115
        %v7156 = vpack.c.bf16 %v7118, %v7116
        %v7157 = vpack.c.bf16 %v7121, %v7119
        %v7158 = vpack.c.bf16 %v7122, %v7120
        %v7159 = vpack.c.bf16 %v7125, %v7123
        %v7160 = vpack.c.bf16 %v7126, %v7124
        %v7161 = vpack.c.bf16 %v7129, %v7127
        %v7162 = vpack.c.bf16 %v7130, %v7128
        %v7163 = vld [vmem:[%s737] sm:$0xf]
        %v7164 = vld [vmem:[%s737 + $0x4] sm:$0xf]
        %v7165 = vld [vmem:[%s737 + $0x8] sm:$0xf]
        %v7166 = vld [vmem:[%s737 + $0xc] sm:$0xf]
        %v7167 = vld [vmem:[%s737 + $0x10] sm:$0xf]
        %v7168 = vld [vmem:[%s737 + $0x14] sm:$0xf]
        %v7169 = vld [vmem:[%s737 + $0x18] sm:$0xf]
        %v7170 = vld [vmem:[%s737 + $0x1c] sm:$0xf]
        %v7171 = vld [vmem:[%s737 + $0x20] sm:$0xf]
        %v7172 = vld [vmem:[%s737 + $0x24] sm:$0xf]
        %v7173 = vld [vmem:[%s737 + $0x28] sm:$0xf]
        %v7174 = vld [vmem:[%s737 + $0x2c] sm:$0xf]
        %v7175 = vld [vmem:[%s737 + $0x30] sm:$0xf]
        %v7176 = vld [vmem:[%s737 + $0x34] sm:$0xf]
        %v7177 = vld [vmem:[%s737 + $0x38] sm:$0xf]
        %v7178 = vld [vmem:[%s737 + $0x3c] sm:$0xf]
        %v7179 = vld [vmem:[%s737 + $0x40] sm:$0xf]
        %v7180 = vld [vmem:[%s737 + $0x44] sm:$0xf]
        %v7181 = vld [vmem:[%s737 + $0x48] sm:$0xf]
        %v7182 = vld [vmem:[%s737 + $0x4c] sm:$0xf]
        %v7183 = vld [vmem:[%s737 + $0x50] sm:$0xf]
        %v7184 = vld [vmem:[%s737 + $0x54] sm:$0xf]
        %v7185 = vld [vmem:[%s737 + $0x58] sm:$0xf]
        %v7186 = vld [vmem:[%s737 + $0x5c] sm:$0xf]
        %v7187 = vld [vmem:[%s737 + $0x60] sm:$0xf]
        %v7188 = vld [vmem:[%s737 + $0x64] sm:$0xf]
        %v7189 = vld [vmem:[%s737 + $0x68] sm:$0xf]
        %v7190 = vld [vmem:[%s737 + $0x6c] sm:$0xf]
        %v7191 = vld [vmem:[%s737 + $0x70] sm:$0xf]
        %v7192 = vld [vmem:[%s737 + $0x74] sm:$0xf]
        %v7193 = vld [vmem:[%s737 + $0x78] sm:$0xf]
        %v7194 = vld [vmem:[%s737 + $0x7c] sm:$0xf]
        %v7195 = vld [vmem:[%s844] sm:$0x1]
        %v7197 = vlaneseq
        %v7198 = vshrl.u32 %v7197, 7
        %v7199 = vsub.s32 0, %v7198
        %v7200 = vrot.slane %v7195, %v7199
        %v7234 = vunpack.c.l.b16 %v7163
        %v7235 = vunpack.c.l.b16 %v7164
        %v7236 = vunpack.c.l.b16 %v7165
        %v7237 = vunpack.c.l.b16 %v7166
        %v7238 = vunpack.c.l.b16 %v7167
        %v7239 = vunpack.c.l.b16 %v7168
        %v7240 = vunpack.c.l.b16 %v7169
        %v7241 = vunpack.c.l.b16 %v7170
        %v7242 = vunpack.c.l.b16 %v7171
        %v7243 = vunpack.c.l.b16 %v7172
        %v7244 = vunpack.c.l.b16 %v7173
        %v7245 = vunpack.c.l.b16 %v7174
        %v7246 = vunpack.c.l.b16 %v7175
        %v7247 = vunpack.c.l.b16 %v7176
        %v7248 = vunpack.c.l.b16 %v7177
        %v7249 = vunpack.c.l.b16 %v7178
        %v7250 = vunpack.c.l.b16 %v7179
        %v7251 = vunpack.c.l.b16 %v7180
        %v7252 = vunpack.c.l.b16 %v7181
        %v7253 = vunpack.c.l.b16 %v7182
        %v7254 = vunpack.c.l.b16 %v7183
        %v7255 = vunpack.c.l.b16 %v7184
        %v7256 = vunpack.c.l.b16 %v7185
        %v7257 = vunpack.c.l.b16 %v7186
        %v7258 = vunpack.c.l.b16 %v7187
        %v7259 = vunpack.c.l.b16 %v7188
        %v7260 = vunpack.c.l.b16 %v7189
        %v7261 = vunpack.c.l.b16 %v7190
        %v7262 = vunpack.c.l.b16 %v7191
        %v7263 = vunpack.c.l.b16 %v7192
        %v7264 = vunpack.c.l.b16 %v7193
        %v7265 = vunpack.c.l.b16 %v7194
        %v7266 = vpack.c.b16 %v7235, %v7234
        %v7267 = vpack.c.b16 %v7237, %v7236
        %v7268 = vpack.c.b16 %v7239, %v7238
        %v7269 = vpack.c.b16 %v7241, %v7240
        %v7270 = vpack.c.b16 %v7243, %v7242
        %v7271 = vpack.c.b16 %v7245, %v7244
        %v7272 = vpack.c.b16 %v7247, %v7246
        %v7273 = vpack.c.b16 %v7249, %v7248
        %v7274 = vpack.c.b16 %v7251, %v7250
        %v7275 = vpack.c.b16 %v7253, %v7252
        %v7276 = vpack.c.b16 %v7255, %v7254
        %v7277 = vpack.c.b16 %v7257, %v7256
        %v7278 = vpack.c.b16 %v7259, %v7258
        %v7279 = vpack.c.b16 %v7261, %v7260
        %v7280 = vpack.c.b16 %v7263, %v7262
        %v7281 = vpack.c.b16 %v7265, %v7264
        %7298 = vmatprep.subr.bf16.mxu0 0
        %7299 = vmatpush1.bf16.msra.mxu0 %v7273
        %7300 = vmatprep.subr.bf16.mxu0 0
        %7301 = vmatpush1.bf16.msra.mxu0 %v7272
        %7302 = vmatprep.subr.bf16.mxu0 0
        %7303 = vmatpush1.bf16.msra.mxu0 %v7271
        %7304 = vmatprep.subr.bf16.mxu0 0
        %7305 = vmatpush1.bf16.msra.mxu0 %v7270
        %7306 = vmatprep.subr.bf16.mxu0 0
        %7307 = vmatpush1.bf16.msra.mxu0 %v7269
        %7308 = vmatprep.subr.bf16.mxu0 0
        %7309 = vmatpush1.bf16.msra.mxu0 %v7268
        %7310 = vmatprep.subr.bf16.mxu0 0
        %7311 = vmatpush1.bf16.msra.mxu0 %v7267
        %7312 = vmatprep.subr.bf16.mxu0 0
        %7313 = vmatpush1.bf16.msra.mxu0 %v7266
        %7314 = vmatprep.subr.bf16.mxu0 0
        %7315 = vmatpush2.bf16.msra.mxu0 %v7281
        %7316 = vmatprep.subr.bf16.mxu0 0
        %7317 = vmatpush2.bf16.msra.mxu0 %v7280
        %7318 = vmatprep.subr.bf16.mxu0 0
        %7319 = vmatpush2.bf16.msra.mxu0 %v7279
        %7320 = vmatprep.subr.bf16.mxu0 0
        %7321 = vmatpush2.bf16.msra.mxu0 %v7278
        %7322 = vmatprep.subr.bf16.mxu0 0
        %7323 = vmatpush2.bf16.msra.mxu0 %v7277
        %7324 = vmatprep.subr.bf16.mxu0 0
        %7325 = vmatpush2.bf16.msra.mxu0 %v7276
        %7326 = vmatprep.subr.bf16.mxu0 0
        %7327 = vmatpush2.bf16.msra.mxu0 %v7275
        %7328 = vmatprep.subr.bf16.mxu0 0
        %7329 = vmatpush2.bf16.msra.mxu0 %v7274
        %7330 = vmatprep.mubr.bf16.mxu0 %v7132
        %7331 = vmatmul.mubr.bf16.gmra.mxu0 %v7131
        %v7332 = vpop.f32.mrf.mxu0
        %v7333 = vadd.f32 %v7200, %v7332
        %v7334 = vpop.f32.mrf.mxu0
        %v7335 = vpop.f32.mrf.mxu0
        %v7336 = vadd.f32 %v7200, %v7335
        %v7337 = vpop.f32.mrf.mxu0
        %7338 = vmatprep.mubr.bf16.mxu0 %v7134
        %7339 = vmatmul.mubr.bf16.gmra.mxu0 %v7133
        %v7340 = vpop.f32.mrf.mxu0
        %v7341 = vadd.f32 %v7200, %v7340
        %v7342 = vpop.f32.mrf.mxu0
        %v7343 = vpop.f32.mrf.mxu0
        %v7344 = vadd.f32 %v7200, %v7343
        %v7345 = vpop.f32.mrf.mxu0
        %7346 = vmatprep.mubr.bf16.mxu0 %v7136
        %7347 = vmatmul.mubr.bf16.gmra.mxu0 %v7135
        %v7348 = vpop.f32.mrf.mxu0
        %v7349 = vadd.f32 %v7200, %v7348
        %v7350 = vpop.f32.mrf.mxu0
        %v7351 = vpop.f32.mrf.mxu0
        %v7352 = vadd.f32 %v7200, %v7351
        %v7353 = vpop.f32.mrf.mxu0
        %7354 = vmatprep.mubr.bf16.mxu0 %v7138
        %7355 = vmatmul.mubr.bf16.gmra.mxu0 %v7137
        %v7356 = vpop.f32.mrf.mxu0
        %v7357 = vadd.f32 %v7200, %v7356
        %v7358 = vpop.f32.mrf.mxu0
        %v7359 = vpop.f32.mrf.mxu0
        %v7360 = vadd.f32 %v7200, %v7359
        %v7361 = vpop.f32.mrf.mxu0
        %7362 = vmatprep.mubr.bf16.mxu0 %v7140
        %7363 = vmatmul.mubr.bf16.gmra.mxu0 %v7139
        %v7364 = vpop.f32.mrf.mxu0
        %v7365 = vadd.f32 %v7200, %v7364
        %v7366 = vpop.f32.mrf.mxu0
        %v7367 = vpop.f32.mrf.mxu0
        %v7368 = vadd.f32 %v7200, %v7367
        %v7369 = vpop.f32.mrf.mxu0
        %7370 = vmatprep.mubr.bf16.mxu0 %v7142
        %7371 = vmatmul.mubr.bf16.gmra.mxu0 %v7141
        %v7372 = vpop.f32.mrf.mxu0
        %v7373 = vadd.f32 %v7200, %v7372
        %v7374 = vpop.f32.mrf.mxu0
        %v7375 = vpop.f32.mrf.mxu0
        %v7376 = vadd.f32 %v7200, %v7375
        %v7377 = vpop.f32.mrf.mxu0
        %7378 = vmatprep.mubr.bf16.mxu0 %v7144
        %7379 = vmatmul.mubr.bf16.gmra.mxu0 %v7143
        %v7380 = vpop.f32.mrf.mxu0
        %v7381 = vadd.f32 %v7200, %v7380
        %v7382 = vpop.f32.mrf.mxu0
        %v7383 = vpop.f32.mrf.mxu0
        %v7384 = vadd.f32 %v7200, %v7383
        %v7385 = vpop.f32.mrf.mxu0
        %7386 = vmatprep.mubr.bf16.mxu0 %v7146
        %7387 = vmatmul.mubr.bf16.gmra.mxu0 %v7145
        %v7388 = vpop.f32.mrf.mxu0
        %v7389 = vadd.f32 %v7200, %v7388
        %v7390 = vpop.f32.mrf.mxu0
        %v7391 = vpop.f32.mrf.mxu0
        %v7392 = vadd.f32 %v7200, %v7391
        %v7393 = vpop.f32.mrf.mxu0
        %7394 = vmatprep.mubr.bf16.mxu0 %v7148
        %7395 = vmatmul.mubr.bf16.gmra.mxu0 %v7147
        %v7396 = vpop.f32.mrf.mxu0
        %v7397 = vadd.f32 %v7200, %v7396
        %v7398 = vpop.f32.mrf.mxu0
        %v7399 = vpop.f32.mrf.mxu0
        %v7400 = vadd.f32 %v7200, %v7399
        %v7401 = vpop.f32.mrf.mxu0
        %7402 = vmatprep.mubr.bf16.mxu0 %v7150
        %7403 = vmatmul.mubr.bf16.gmra.mxu0 %v7149
        %v7404 = vpop.f32.mrf.mxu0
        %v7405 = vadd.f32 %v7200, %v7404
        %v7406 = vpop.f32.mrf.mxu0
        %v7407 = vpop.f32.mrf.mxu0
        %v7408 = vadd.f32 %v7200, %v7407
        %v7409 = vpop.f32.mrf.mxu0
        %7410 = vmatprep.mubr.bf16.mxu0 %v7152
        %7411 = vmatmul.mubr.bf16.gmra.mxu0 %v7151
        %v7412 = vpop.f32.mrf.mxu0
        %v7413 = vadd.f32 %v7200, %v7412
        %v7414 = vpop.f32.mrf.mxu0
        %v7415 = vpop.f32.mrf.mxu0
        %v7416 = vadd.f32 %v7200, %v7415
        %v7417 = vpop.f32.mrf.mxu0
        %7418 = vmatprep.mubr.bf16.mxu0 %v7154
        %7419 = vmatmul.mubr.bf16.gmra.mxu0 %v7153
        %v7420 = vpop.f32.mrf.mxu0
        %v7421 = vadd.f32 %v7200, %v7420
        %v7422 = vpop.f32.mrf.mxu0
        %v7423 = vpop.f32.mrf.mxu0
        %v7424 = vadd.f32 %v7200, %v7423
        %v7425 = vpop.f32.mrf.mxu0
        %7426 = vmatprep.mubr.bf16.mxu0 %v7156
        %7427 = vmatmul.mubr.bf16.gmra.mxu0 %v7155
        %v7428 = vpop.f32.mrf.mxu0
        %v7429 = vadd.f32 %v7200, %v7428
        %v7430 = vpop.f32.mrf.mxu0
        %v7431 = vpop.f32.mrf.mxu0
        %v7432 = vadd.f32 %v7200, %v7431
        %v7433 = vpop.f32.mrf.mxu0
        %7434 = vmatprep.mubr.bf16.mxu0 %v7158
        %7435 = vmatmul.mubr.bf16.gmra.mxu0 %v7157
        %v7436 = vpop.f32.mrf.mxu0
        %v7437 = vadd.f32 %v7200, %v7436
        %v7438 = vpop.f32.mrf.mxu0
        %v7439 = vpop.f32.mrf.mxu0
        %v7440 = vadd.f32 %v7200, %v7439
        %v7441 = vpop.f32.mrf.mxu0
        %7442 = vmatprep.mubr.bf16.mxu0 %v7160
        %7443 = vmatmul.mubr.bf16.gmra.mxu0 %v7159
        %v7444 = vpop.f32.mrf.mxu0
        %v7445 = vadd.f32 %v7200, %v7444
        %v7446 = vpop.f32.mrf.mxu0
        %v7447 = vpop.f32.mrf.mxu0
        %v7448 = vadd.f32 %v7200, %v7447
        %v7449 = vpop.f32.mrf.mxu0
        %7450 = vmatprep.mubr.bf16.mxu0 %v7162
        %7451 = vmatmul.mubr.bf16.gmra.mxu0 %v7161
        %v7452 = vpop.f32.mrf.mxu0
        %v7453 = vadd.f32 %v7200, %v7452
        %v7454 = vpop.f32.mrf.mxu0
        %v7455 = vpop.f32.mrf.mxu0
        %v7456 = vadd.f32 %v7200, %v7455
        %v7457 = vpop.f32.mrf.mxu0
        %7458 = vdwg.mxu0
        %v7459 = vadd.f32 %v6288, %v7333
        %v7460 = vadd.f32 %v6289, %v7336
        %v7461 = vadd.f32 %v6290, %v7341
        %v7462 = vadd.f32 %v6291, %v7344
        %v7463 = vadd.f32 %v6292, %v7349
        %v7464 = vadd.f32 %v6293, %v7352
        %v7465 = vadd.f32 %v6294, %v7357
        %v7466 = vadd.f32 %v6295, %v7360
        %v7467 = vadd.f32 %v6296, %v7365
        %v7468 = vadd.f32 %v6297, %v7368
        %v7469 = vadd.f32 %v6298, %v7373
        %v7470 = vadd.f32 %v6299, %v7376
        %v7471 = vadd.f32 %v6300, %v7381
        %v7472 = vadd.f32 %v6301, %v7384
        %v7473 = vadd.f32 %v6302, %v7389
        %v7474 = vadd.f32 %v6303, %v7392
        %v7475 = vadd.f32 %v6304, %v7397
        %v7476 = vadd.f32 %v6305, %v7400
        %v7477 = vadd.f32 %v6306, %v7405
        %v7478 = vadd.f32 %v6307, %v7408
        %v7479 = vadd.f32 %v6308, %v7413
        %v7480 = vadd.f32 %v6309, %v7416
        %v7481 = vadd.f32 %v6310, %v7421
        %v7482 = vadd.f32 %v6311, %v7424
        %v7483 = vadd.f32 %v6312, %v7429
        %v7484 = vadd.f32 %v6313, %v7432
        %v7485 = vadd.f32 %v6314, %v7437
        %v7486 = vadd.f32 %v6315, %v7440
        %v7487 = vadd.f32 %v6316, %v7445
        %v7488 = vadd.f32 %v6317, %v7448
        %v7489 = vadd.f32 %v6318, %v7453
        %v7490 = vadd.f32 %v6319, %v7456
        %7491 = vst [vmem:[#allocation2] sm:$0xff] %v7459
        %7492 = vst [vmem:[#allocation2 + $0x8] sm:$0xff] %v7460
        %7493 = vst [vmem:[#allocation2 + $0x10] sm:$0xff] %v7461
        %7494 = vst [vmem:[#allocation2 + $0x18] sm:$0xff] %v7462
        %7495 = vst [vmem:[#allocation2 + $0x20] sm:$0xff] %v7463
        %7496 = vst [vmem:[#allocation2 + $0x28] sm:$0xff] %v7464
        %7497 = vst [vmem:[#allocation2 + $0x30] sm:$0xff] %v7465
        %7498 = vst [vmem:[#allocation2 + $0x38] sm:$0xff] %v7466
        %7499 = vst [vmem:[#allocation2 + $0x40] sm:$0xff] %v7467
        %7500 = vst [vmem:[#allocation2 + $0x48] sm:$0xff] %v7468
        %7501 = vst [vmem:[#allocation2 + $0x50] sm:$0xff] %v7469
        %7502 = vst [vmem:[#allocation2 + $0x58] sm:$0xff] %v7470
        %7503 = vst [vmem:[#allocation2 + $0x60] sm:$0xff] %v7471
        %7504 = vst [vmem:[#allocation2 + $0x68] sm:$0xff] %v7472
        %7505 = vst [vmem:[#allocation2 + $0x70] sm:$0xff] %v7473
        %7506 = vst [vmem:[#allocation2 + $0x78] sm:$0xff] %v7474
        %7507 = vst [vmem:[#allocation2 + $0x80] sm:$0xff] %v7475
        %7508 = vst [vmem:[#allocation2 + $0x88] sm:$0xff] %v7476
        %7509 = vst [vmem:[#allocation2 + $0x90] sm:$0xff] %v7477
        %7510 = vst [vmem:[#allocation2 + $0x98] sm:$0xff] %v7478
        %7511 = vst [vmem:[#allocation2 + $0xa0] sm:$0xff] %v7479
        %7512 = vst [vmem:[#allocation2 + $0xa8] sm:$0xff] %v7480
        %7513 = vst [vmem:[#allocation2 + $0xb0] sm:$0xff] %v7481
        %7514 = vst [vmem:[#allocation2 + $0xb8] sm:$0xff] %v7482
        %7515 = vst [vmem:[#allocation2 + $0xc0] sm:$0xff] %v7483
        %7516 = vst [vmem:[#allocation2 + $0xc8] sm:$0xff] %v7484
        %7517 = vst [vmem:[#allocation2 + $0xd0] sm:$0xff] %v7485
        %7518 = vst [vmem:[#allocation2 + $0xd8] sm:$0xff] %v7486
        %7519 = vst [vmem:[#allocation2 + $0xe0] sm:$0xff] %v7487
        %7520 = vst [vmem:[#allocation2 + $0xe8] sm:$0xff] %v7488
        %7521 = vst [vmem:[#allocation2 + $0xf0] sm:$0xff] %v7489
        %7522 = vst [vmem:[#allocation2 + $0xf8] sm:$0xff] %v7490
        %p7523 = scmp.eq.s32.totalorder %s35, 1
        // Predicated region
        $region121: #{tpu_custom_call.1} parent=83 // pred_check
          %p7524 = pneg %p7523
        $region122: #{tpu_custom_call.1} parent=83 // pred_check_branch
          %7526 = sbr.rel (%p7524) target = $region124
        $region123: #{tpu_custom_call.1} parent=83 // pred_region
          %v7527 = vld [vmem:[%s14] sm:$0x1]
          %v7528 = vld [vmem:[%s15] sm:$0x1]
          %7529 = vadd.xlane.f32.xlu0 %v7459
          %v7530 = vpop.xlane.xlu0 %7529
          %7531 = vadd.xlane.f32.xlu0 %v7460
          %v7532 = vpop.xlane.xlu0 %7531
          %7533 = vadd.xlane.f32.xlu0 %v7461
          %v7534 = vpop.xlane.xlu0 %7533
          %7535 = vadd.xlane.f32.xlu0 %v7462
          %v7536 = vpop.xlane.xlu0 %7535
          %7537 = vadd.xlane.f32.xlu0 %v7463
          %v7538 = vpop.xlane.xlu0 %7537
          %7539 = vadd.xlane.f32.xlu0 %v7464
          %v7540 = vpop.xlane.xlu0 %7539
          %7541 = vadd.xlane.f32.xlu0 %v7465
          %v7542 = vpop.xlane.xlu0 %7541
          %7543 = vadd.xlane.f32.xlu0 %v7466
          %v7544 = vpop.xlane.xlu0 %7543
          %7545 = vadd.xlane.f32.xlu0 %v7467
          %v7546 = vpop.xlane.xlu0 %7545
          %7547 = vadd.xlane.f32.xlu0 %v7468
          %v7548 = vpop.xlane.xlu0 %7547
          %7549 = vadd.xlane.f32.xlu0 %v7469
          %v7550 = vpop.xlane.xlu0 %7549
          %7551 = vadd.xlane.f32.xlu0 %v7470
          %v7552 = vpop.xlane.xlu0 %7551
          %7553 = vadd.xlane.f32.xlu0 %v7471
          %v7554 = vpop.xlane.xlu0 %7553
          %7555 = vadd.xlane.f32.xlu0 %v7472
          %v7556 = vpop.xlane.xlu0 %7555
          %7557 = vadd.xlane.f32.xlu0 %v7473
          %v7558 = vpop.xlane.xlu0 %7557
          %7559 = vadd.xlane.f32.xlu0 %v7474
          %v7560 = vpop.xlane.xlu0 %7559
          %7561 = vadd.xlane.f32.xlu0 %v7475
          %v7562 = vpop.xlane.xlu0 %7561
          %7563 = vadd.xlane.f32.xlu0 %v7476
          %v7564 = vpop.xlane.xlu0 %7563
          %7565 = vadd.xlane.f32.xlu0 %v7477
          %v7566 = vpop.xlane.xlu0 %7565
          %7567 = vadd.xlane.f32.xlu0 %v7478
          %v7568 = vpop.xlane.xlu0 %7567
          %7569 = vadd.xlane.f32.xlu0 %v7479
          %v7570 = vpop.xlane.xlu0 %7569
          %7571 = vadd.xlane.f32.xlu0 %v7480
          %v7572 = vpop.xlane.xlu0 %7571
          %7573 = vadd.xlane.f32.xlu0 %v7481
          %v7574 = vpop.xlane.xlu0 %7573
          %7575 = vadd.xlane.f32.xlu0 %v7482
          %v7576 = vpop.xlane.xlu0 %7575
          %7577 = vadd.xlane.f32.xlu0 %v7483
          %v7578 = vpop.xlane.xlu0 %7577
          %7579 = vadd.xlane.f32.xlu0 %v7484
          %v7580 = vpop.xlane.xlu0 %7579
          %7581 = vadd.xlane.f32.xlu0 %v7485
          %v7582 = vpop.xlane.xlu0 %7581
          %7583 = vadd.xlane.f32.xlu0 %v7486
          %v7584 = vpop.xlane.xlu0 %7583
          %7585 = vadd.xlane.f32.xlu0 %v7487
          %v7586 = vpop.xlane.xlu0 %7585
          %7587 = vadd.xlane.f32.xlu0 %v7488
          %v7588 = vpop.xlane.xlu0 %7587
          %7589 = vadd.xlane.f32.xlu0 %v7489
          %v7590 = vpop.xlane.xlu0 %7589
          %7591 = vadd.xlane.f32.xlu0 %v7490
          %v7592 = vpop.xlane.xlu0 %7591
          %v7593 = vmul.f32 %v7530, %v1061
          %v7594 = vmul.f32 %v7532, %v1061
          %v7595 = vmul.f32 %v7534, %v1061
          %v7596 = vmul.f32 %v7536, %v1061
          %v7597 = vmul.f32 %v7538, %v1061
          %v7598 = vmul.f32 %v7540, %v1061
          %v7599 = vmul.f32 %v7542, %v1061
          %v7600 = vmul.f32 %v7544, %v1061
          %v7601 = vmul.f32 %v7546, %v1061
          %v7602 = vmul.f32 %v7548, %v1061
          %v7603 = vmul.f32 %v7550, %v1061
          %v7604 = vmul.f32 %v7552, %v1061
          %v7605 = vmul.f32 %v7554, %v1061
          %v7606 = vmul.f32 %v7556, %v1061
          %v7607 = vmul.f32 %v7558, %v1061
          %v7608 = vmul.f32 %v7560, %v1061
          %v7609 = vmul.f32 %v7562, %v1061
          %v7610 = vmul.f32 %v7564, %v1061
          %v7611 = vmul.f32 %v7566, %v1061
          %v7612 = vmul.f32 %v7568, %v1061
          %v7613 = vmul.f32 %v7570, %v1061
          %v7614 = vmul.f32 %v7572, %v1061
          %v7615 = vmul.f32 %v7574, %v1061
          %v7616 = vmul.f32 %v7576, %v1061
          %v7617 = vmul.f32 %v7578, %v1061
          %v7618 = vmul.f32 %v7580, %v1061
          %v7619 = vmul.f32 %v7582, %v1061
          %v7620 = vmul.f32 %v7584, %v1061
          %v7621 = vmul.f32 %v7586, %v1061
          %v7622 = vmul.f32 %v7588, %v1061
          %v7623 = vmul.f32 %v7590, %v1061
          %v7624 = vmul.f32 %v7592, %v1061
          %v7625 = vsub.f32 %v7459, %v7593
          %v7626 = vsub.f32 %v7460, %v7594
          %v7627 = vsub.f32 %v7461, %v7595
          %v7628 = vsub.f32 %v7462, %v7596
          %v7629 = vsub.f32 %v7463, %v7597
          %v7630 = vsub.f32 %v7464, %v7598
          %v7631 = vsub.f32 %v7465, %v7599
          %v7632 = vsub.f32 %v7466, %v7600
          %v7633 = vsub.f32 %v7467, %v7601
          %v7634 = vsub.f32 %v7468, %v7602
          %v7635 = vsub.f32 %v7469, %v7603
          %v7636 = vsub.f32 %v7470, %v7604
          %v7637 = vsub.f32 %v7471, %v7605
          %v7638 = vsub.f32 %v7472, %v7606
          %v7639 = vsub.f32 %v7473, %v7607
          %v7640 = vsub.f32 %v7474, %v7608
          %v7641 = vsub.f32 %v7475, %v7609
          %v7642 = vsub.f32 %v7476, %v7610
          %v7643 = vsub.f32 %v7477, %v7611
          %v7644 = vsub.f32 %v7478, %v7612
          %v7645 = vsub.f32 %v7479, %v7613
          %v7646 = vsub.f32 %v7480, %v7614
          %v7647 = vsub.f32 %v7481, %v7615
          %v7648 = vsub.f32 %v7482, %v7616
          %v7649 = vsub.f32 %v7483, %v7617
          %v7650 = vsub.f32 %v7484, %v7618
          %v7651 = vsub.f32 %v7485, %v7619
          %v7652 = vsub.f32 %v7486, %v7620
          %v7653 = vsub.f32 %v7487, %v7621
          %v7654 = vsub.f32 %v7488, %v7622
          %v7655 = vsub.f32 %v7489, %v7623
          %v7656 = vsub.f32 %v7490, %v7624
          %v7657 = vmul.f32 %v7625, %v7625
          %v7658 = vmul.f32 %v7626, %v7626
          %v7659 = vmul.f32 %v7627, %v7627
          %v7660 = vmul.f32 %v7628, %v7628
          %v7661 = vmul.f32 %v7629, %v7629
          %v7662 = vmul.f32 %v7630, %v7630
          %v7663 = vmul.f32 %v7631, %v7631
          %v7664 = vmul.f32 %v7632, %v7632
          %v7665 = vmul.f32 %v7633, %v7633
          %v7666 = vmul.f32 %v7634, %v7634
          %v7667 = vmul.f32 %v7635, %v7635
          %v7668 = vmul.f32 %v7636, %v7636
          %v7669 = vmul.f32 %v7637, %v7637
          %v7670 = vmul.f32 %v7638, %v7638
          %v7671 = vmul.f32 %v7639, %v7639
          %v7672 = vmul.f32 %v7640, %v7640
          %v7673 = vmul.f32 %v7641, %v7641
          %v7674 = vmul.f32 %v7642, %v7642
          %v7675 = vmul.f32 %v7643, %v7643
          %v7676 = vmul.f32 %v7644, %v7644
          %v7677 = vmul.f32 %v7645, %v7645
          %v7678 = vmul.f32 %v7646, %v7646
          %v7679 = vmul.f32 %v7647, %v7647
          %v7680 = vmul.f32 %v7648, %v7648
          %v7681 = vmul.f32 %v7649, %v7649
          %v7682 = vmul.f32 %v7650, %v7650
          %v7683 = vmul.f32 %v7651, %v7651
          %v7684 = vmul.f32 %v7652, %v7652
          %v7685 = vmul.f32 %v7653, %v7653
          %v7686 = vmul.f32 %v7654, %v7654
          %v7687 = vmul.f32 %v7655, %v7655
          %v7688 = vmul.f32 %v7656, %v7656
          %7689 = vadd.xlane.f32.xlu0 %v7657
          %v7690 = vpop.xlane.xlu0 %7689
          %7691 = vadd.xlane.f32.xlu0 %v7658
          %v7692 = vpop.xlane.xlu0 %7691
          %7693 = vadd.xlane.f32.xlu0 %v7659
          %v7694 = vpop.xlane.xlu0 %7693
          %7695 = vadd.xlane.f32.xlu0 %v7660
          %v7696 = vpop.xlane.xlu0 %7695
          %7697 = vadd.xlane.f32.xlu0 %v7661
          %v7698 = vpop.xlane.xlu0 %7697
          %7699 = vadd.xlane.f32.xlu0 %v7662
          %v7700 = vpop.xlane.xlu0 %7699
          %7701 = vadd.xlane.f32.xlu0 %v7663
          %v7702 = vpop.xlane.xlu0 %7701
          %7703 = vadd.xlane.f32.xlu0 %v7664
          %v7704 = vpop.xlane.xlu0 %7703
          %7705 = vadd.xlane.f32.xlu0 %v7665
          %v7706 = vpop.xlane.xlu0 %7705
          %7707 = vadd.xlane.f32.xlu0 %v7666
          %v7708 = vpop.xlane.xlu0 %7707
          %7709 = vadd.xlane.f32.xlu0 %v7667
          %v7710 = vpop.xlane.xlu0 %7709
          %7711 = vadd.xlane.f32.xlu0 %v7668
          %v7712 = vpop.xlane.xlu0 %7711
          %7713 = vadd.xlane.f32.xlu0 %v7669
          %v7714 = vpop.xlane.xlu0 %7713
          %7715 = vadd.xlane.f32.xlu0 %v7670
          %v7716 = vpop.xlane.xlu0 %7715
          %7717 = vadd.xlane.f32.xlu0 %v7671
          %v7718 = vpop.xlane.xlu0 %7717
          %7719 = vadd.xlane.f32.xlu0 %v7672
          %v7720 = vpop.xlane.xlu0 %7719
          %7721 = vadd.xlane.f32.xlu0 %v7673
          %v7722 = vpop.xlane.xlu0 %7721
          %7723 = vadd.xlane.f32.xlu0 %v7674
          %v7724 = vpop.xlane.xlu0 %7723
          %7725 = vadd.xlane.f32.xlu0 %v7675
          %v7726 = vpop.xlane.xlu0 %7725
          %7727 = vadd.xlane.f32.xlu0 %v7676
          %v7728 = vpop.xlane.xlu0 %7727
          %7729 = vadd.xlane.f32.xlu0 %v7677
          %v7730 = vpop.xlane.xlu0 %7729
          %7731 = vadd.xlane.f32.xlu0 %v7678
          %v7732 = vpop.xlane.xlu0 %7731
          %7733 = vadd.xlane.f32.xlu0 %v7679
          %v7734 = vpop.xlane.xlu0 %7733
          %7735 = vadd.xlane.f32.xlu0 %v7680
          %v7736 = vpop.xlane.xlu0 %7735
          %7737 = vadd.xlane.f32.xlu0 %v7681
          %v7738 = vpop.xlane.xlu0 %7737
          %7739 = vadd.xlane.f32.xlu0 %v7682
          %v7740 = vpop.xlane.xlu0 %7739
          %7741 = vadd.xlane.f32.xlu0 %v7683
          %v7742 = vpop.xlane.xlu0 %7741
          %7743 = vadd.xlane.f32.xlu0 %v7684
          %v7744 = vpop.xlane.xlu0 %7743
          %7745 = vadd.xlane.f32.xlu0 %v7685
          %v7746 = vpop.xlane.xlu0 %7745
          %7747 = vadd.xlane.f32.xlu0 %v7686
          %v7748 = vpop.xlane.xlu0 %7747
          %7749 = vadd.xlane.f32.xlu0 %v7687
          %v7750 = vpop.xlane.xlu0 %7749
          %7751 = vadd.xlane.f32.xlu0 %v7688
          %v7752 = vpop.xlane.xlu0 %7751
          %v7753 = vmul.f32 %v7690, %v1061
          %v7754 = vmul.f32 %v7692, %v1061
          %v7755 = vmul.f32 %v7694, %v1061
          %v7756 = vmul.f32 %v7696, %v1061
          %v7757 = vmul.f32 %v7698, %v1061
          %v7758 = vmul.f32 %v7700, %v1061
          %v7759 = vmul.f32 %v7702, %v1061
          %v7760 = vmul.f32 %v7704, %v1061
          %v7761 = vmul.f32 %v7706, %v1061
          %v7762 = vmul.f32 %v7708, %v1061
          %v7763 = vmul.f32 %v7710, %v1061
          %v7764 = vmul.f32 %v7712, %v1061
          %v7765 = vmul.f32 %v7714, %v1061
          %v7766 = vmul.f32 %v7716, %v1061
          %v7767 = vmul.f32 %v7718, %v1061
          %v7768 = vmul.f32 %v7720, %v1061
          %v7769 = vmul.f32 %v7722, %v1061
          %v7770 = vmul.f32 %v7724, %v1061
          %v7771 = vmul.f32 %v7726, %v1061
          %v7772 = vmul.f32 %v7728, %v1061
          %v7773 = vmul.f32 %v7730, %v1061
          %v7774 = vmul.f32 %v7732, %v1061
          %v7775 = vmul.f32 %v7734, %v1061
          %v7776 = vmul.f32 %v7736, %v1061
          %v7777 = vmul.f32 %v7738, %v1061
          %v7778 = vmul.f32 %v7740, %v1061
          %v7779 = vmul.f32 %v7742, %v1061
          %v7780 = vmul.f32 %v7744, %v1061
          %v7781 = vmul.f32 %v7746, %v1061
          %v7782 = vmul.f32 %v7748, %v1061
          %v7783 = vmul.f32 %v7750, %v1061
          %v7784 = vmul.f32 %v7752, %v1061
          %v7785 = vadd.f32 %v7753, 1e-06
          %v7786 = vadd.f32 %v7754, 1e-06
          %v7787 = vadd.f32 %v7755, 1e-06
          %v7788 = vadd.f32 %v7756, 1e-06
          %v7789 = vadd.f32 %v7757, 1e-06
          %v7790 = vadd.f32 %v7758, 1e-06
          %v7791 = vadd.f32 %v7759, 1e-06
          %v7792 = vadd.f32 %v7760, 1e-06
          %v7793 = vadd.f32 %v7761, 1e-06
          %v7794 = vadd.f32 %v7762, 1e-06
          %v7795 = vadd.f32 %v7763, 1e-06
          %v7796 = vadd.f32 %v7764, 1e-06
          %v7797 = vadd.f32 %v7765, 1e-06
          %v7798 = vadd.f32 %v7766, 1e-06
          %v7799 = vadd.f32 %v7767, 1e-06
          %v7800 = vadd.f32 %v7768, 1e-06
          %v7801 = vadd.f32 %v7769, 1e-06
          %v7802 = vadd.f32 %v7770, 1e-06
          %v7803 = vadd.f32 %v7771, 1e-06
          %v7804 = vadd.f32 %v7772, 1e-06
          %v7805 = vadd.f32 %v7773, 1e-06
          %v7806 = vadd.f32 %v7774, 1e-06
          %v7807 = vadd.f32 %v7775, 1e-06
          %v7808 = vadd.f32 %v7776, 1e-06
          %v7809 = vadd.f32 %v7777, 1e-06
          %v7810 = vadd.f32 %v7778, 1e-06
          %v7811 = vadd.f32 %v7779, 1e-06
          %v7812 = vadd.f32 %v7780, 1e-06
          %v7813 = vadd.f32 %v7781, 1e-06
          %v7814 = vadd.f32 %v7782, 1e-06
          %v7815 = vadd.f32 %v7783, 1e-06
          %v7816 = vadd.f32 %v7784, 1e-06
          %v7817 = vrsqrt.pop %v7785
          %v7818 = vrsqrt.pop %v7786
          %v7819 = vrsqrt.pop %v7787
          %v7820 = vrsqrt.pop %v7788
          %v7821 = vrsqrt.pop %v7789
          %v7822 = vrsqrt.pop %v7790
          %v7823 = vrsqrt.pop %v7791
          %v7824 = vrsqrt.pop %v7792
          %v7825 = vrsqrt.pop %v7793
          %v7826 = vrsqrt.pop %v7794
          %v7827 = vrsqrt.pop %v7795
          %v7828 = vrsqrt.pop %v7796
          %v7829 = vrsqrt.pop %v7797
          %v7830 = vrsqrt.pop %v7798
          %v7831 = vrsqrt.pop %v7799
          %v7832 = vrsqrt.pop %v7800
          %v7833 = vrsqrt.pop %v7801
          %v7834 = vrsqrt.pop %v7802
          %v7835 = vrsqrt.pop %v7803
          %v7836 = vrsqrt.pop %v7804
          %v7837 = vrsqrt.pop %v7805
          %v7838 = vrsqrt.pop %v7806
          %v7839 = vrsqrt.pop %v7807
          %v7840 = vrsqrt.pop %v7808
          %v7841 = vrsqrt.pop %v7809
          %v7842 = vrsqrt.pop %v7810
          %v7843 = vrsqrt.pop %v7811
          %v7844 = vrsqrt.pop %v7812
          %v7845 = vrsqrt.pop %v7813
          %v7846 = vrsqrt.pop %v7814
          %v7847 = vrsqrt.pop %v7815
          %v7848 = vrsqrt.pop %v7816
          %v7849 = vmul.f32 %v7625, %v7817
          %v7850 = vmul.f32 %v7626, %v7818
          %v7851 = vmul.f32 %v7627, %v7819
          %v7852 = vmul.f32 %v7628, %v7820
          %v7853 = vmul.f32 %v7629, %v7821
          %v7854 = vmul.f32 %v7630, %v7822
          %v7855 = vmul.f32 %v7631, %v7823
          %v7856 = vmul.f32 %v7632, %v7824
          %v7857 = vmul.f32 %v7633, %v7825
          %v7858 = vmul.f32 %v7634, %v7826
          %v7859 = vmul.f32 %v7635, %v7827
          %v7860 = vmul.f32 %v7636, %v7828
          %v7861 = vmul.f32 %v7637, %v7829
          %v7862 = vmul.f32 %v7638, %v7830
          %v7863 = vmul.f32 %v7639, %v7831
          %v7864 = vmul.f32 %v7640, %v7832
          %v7865 = vmul.f32 %v7641, %v7833
          %v7866 = vmul.f32 %v7642, %v7834
          %v7867 = vmul.f32 %v7643, %v7835
          %v7868 = vmul.f32 %v7644, %v7836
          %v7869 = vmul.f32 %v7645, %v7837
          %v7870 = vmul.f32 %v7646, %v7838
          %v7871 = vmul.f32 %v7647, %v7839
          %v7872 = vmul.f32 %v7648, %v7840
          %v7873 = vmul.f32 %v7649, %v7841
          %v7874 = vmul.f32 %v7650, %v7842
          %v7875 = vmul.f32 %v7651, %v7843
          %v7876 = vmul.f32 %v7652, %v7844
          %v7877 = vmul.f32 %v7653, %v7845
          %v7878 = vmul.f32 %v7654, %v7846
          %v7879 = vmul.f32 %v7655, %v7847
          %v7880 = vmul.f32 %v7656, %v7848
          %v7882 = vlaneseq
          %v7883 = vshrl.u32 %v7882, 7
          %v7884 = vsub.s32 0, %v7883
          %v7885 = vrot.slane %v7527, %v7884
          %v7887 = vmul.f32 %v7849, %v7885
          %v7888 = vmul.f32 %v7850, %v7885
          %v7889 = vmul.f32 %v7851, %v7885
          %v7890 = vmul.f32 %v7852, %v7885
          %v7891 = vmul.f32 %v7853, %v7885
          %v7892 = vmul.f32 %v7854, %v7885
          %v7893 = vmul.f32 %v7855, %v7885
          %v7894 = vmul.f32 %v7856, %v7885
          %v7895 = vmul.f32 %v7857, %v7885
          %v7896 = vmul.f32 %v7858, %v7885
          %v7897 = vmul.f32 %v7859, %v7885
          %v7898 = vmul.f32 %v7860, %v7885
          %v7899 = vmul.f32 %v7861, %v7885
          %v7900 = vmul.f32 %v7862, %v7885
          %v7901 = vmul.f32 %v7863, %v7885
          %v7902 = vmul.f32 %v7864, %v7885
          %v7903 = vmul.f32 %v7865, %v7885
          %v7904 = vmul.f32 %v7866, %v7885
          %v7905 = vmul.f32 %v7867, %v7885
          %v7906 = vmul.f32 %v7868, %v7885
          %v7907 = vmul.f32 %v7869, %v7885
          %v7908 = vmul.f32 %v7870, %v7885
          %v7909 = vmul.f32 %v7871, %v7885
          %v7910 = vmul.f32 %v7872, %v7885
          %v7911 = vmul.f32 %v7873, %v7885
          %v7912 = vmul.f32 %v7874, %v7885
          %v7913 = vmul.f32 %v7875, %v7885
          %v7914 = vmul.f32 %v7876, %v7885
          %v7915 = vmul.f32 %v7877, %v7885
          %v7916 = vmul.f32 %v7878, %v7885
          %v7917 = vmul.f32 %v7879, %v7885
          %v7918 = vmul.f32 %v7880, %v7885
          %v7920 = vlaneseq
          %v7921 = vshrl.u32 %v7920, 7
          %v7922 = vsub.s32 0, %v7921
          %v7923 = vrot.slane %v7528, %v7922
          %v7925 = vadd.f32 %v7887, %v7923
          %v7926 = vadd.f32 %v7888, %v7923
          %v7927 = vadd.f32 %v7889, %v7923
          %v7928 = vadd.f32 %v7890, %v7923
          %v7929 = vadd.f32 %v7891, %v7923
          %v7930 = vadd.f32 %v7892, %v7923
          %v7931 = vadd.f32 %v7893, %v7923
          %v7932 = vadd.f32 %v7894, %v7923
          %v7933 = vadd.f32 %v7895, %v7923
          %v7934 = vadd.f32 %v7896, %v7923
          %v7935 = vadd.f32 %v7897, %v7923
          %v7936 = vadd.f32 %v7898, %v7923
          %v7937 = vadd.f32 %v7899, %v7923
          %v7938 = vadd.f32 %v7900, %v7923
          %v7939 = vadd.f32 %v7901, %v7923
          %v7940 = vadd.f32 %v7902, %v7923
          %v7941 = vadd.f32 %v7903, %v7923
          %v7942 = vadd.f32 %v7904, %v7923
          %v7943 = vadd.f32 %v7905, %v7923
          %v7944 = vadd.f32 %v7906, %v7923
          %v7945 = vadd.f32 %v7907, %v7923
          %v7946 = vadd.f32 %v7908, %v7923
          %v7947 = vadd.f32 %v7909, %v7923
          %v7948 = vadd.f32 %v7910, %v7923
          %v7949 = vadd.f32 %v7911, %v7923
          %v7950 = vadd.f32 %v7912, %v7923
          %v7951 = vadd.f32 %v7913, %v7923
          %v7952 = vadd.f32 %v7914, %v7923
          %v7953 = vadd.f32 %v7915, %v7923
          %v7954 = vadd.f32 %v7916, %v7923
          %v7955 = vadd.f32 %v7917, %v7923
          %v7956 = vadd.f32 %v7918, %v7923
          %7957 = vst [vmem:[#allocation14] sm:$0xff] %v7925
          %7958 = vst [vmem:[#allocation14 + $0x8] sm:$0xff] %v7926
          %7959 = vst [vmem:[#allocation14 + $0x10] sm:$0xff] %v7927
          %7960 = vst [vmem:[#allocation14 + $0x18] sm:$0xff] %v7928
          %7961 = vst [vmem:[#allocation14 + $0x20] sm:$0xff] %v7929
          %7962 = vst [vmem:[#allocation14 + $0x28] sm:$0xff] %v7930
          %7963 = vst [vmem:[#allocation14 + $0x30] sm:$0xff] %v7931
          %7964 = vst [vmem:[#allocation14 + $0x38] sm:$0xff] %v7932
          %7965 = vst [vmem:[#allocation14 + $0x40] sm:$0xff] %v7933
          %7966 = vst [vmem:[#allocation14 + $0x48] sm:$0xff] %v7934
          %7967 = vst [vmem:[#allocation14 + $0x50] sm:$0xff] %v7935
          %7968 = vst [vmem:[#allocation14 + $0x58] sm:$0xff] %v7936
          %7969 = vst [vmem:[#allocation14 + $0x60] sm:$0xff] %v7937
          %7970 = vst [vmem:[#allocation14 + $0x68] sm:$0xff] %v7938
          %7971 = vst [vmem:[#allocation14 + $0x70] sm:$0xff] %v7939
          %7972 = vst [vmem:[#allocation14 + $0x78] sm:$0xff] %v7940
          %7973 = vst [vmem:[#allocation14 + $0x80] sm:$0xff] %v7941
          %7974 = vst [vmem:[#allocation14 + $0x88] sm:$0xff] %v7942
          %7975 = vst [vmem:[#allocation14 + $0x90] sm:$0xff] %v7943
          %7976 = vst [vmem:[#allocation14 + $0x98] sm:$0xff] %v7944
          %7977 = vst [vmem:[#allocation14 + $0xa0] sm:$0xff] %v7945
          %7978 = vst [vmem:[#allocation14 + $0xa8] sm:$0xff] %v7946
          %7979 = vst [vmem:[#allocation14 + $0xb0] sm:$0xff] %v7947
          %7980 = vst [vmem:[#allocation14 + $0xb8] sm:$0xff] %v7948
          %7981 = vst [vmem:[#allocation14 + $0xc0] sm:$0xff] %v7949
          %7982 = vst [vmem:[#allocation14 + $0xc8] sm:$0xff] %v7950
          %7983 = vst [vmem:[#allocation14 + $0xd0] sm:$0xff] %v7951
          %7984 = vst [vmem:[#allocation14 + $0xd8] sm:$0xff] %v7952
          %7985 = vst [vmem:[#allocation14 + $0xe0] sm:$0xff] %v7953
          %7986 = vst [vmem:[#allocation14 + $0xe8] sm:$0xff] %v7954
          %7987 = vst [vmem:[#allocation14 + $0xf0] sm:$0xff] %v7955
          %7988 = vst [vmem:[#allocation14 + $0xf8] sm:$0xff] %v7956
        $region124: #{tpu_custom_call.1} parent=83 // pred_fallthru
          _
        // Predicated region
        $region125: #{tpu_custom_call.1} parent=83 // pred_check
          %p7989 = pneg %p461
        $region126: #{tpu_custom_call.1} parent=83 // pred_check_branch
          %7991 = sbr.rel (%p7989) target = $region128
        $region127: #{tpu_custom_call.1} parent=83 // pred_region
          %s7992 = smul.u32 2, %s34
          %s7994 = ssub.s32 4096, 4096
          %7995 = vsyncadd [#allocation5], %s7994
          %s7996 = smul.addr %s7992, 16
          %s7997 = smul.addr %s7996, 128
          %s7998 = scalar_lea.hbm %s16, %s7997
          %s7999 = sshll.u32 [#allocation14], 4
          %s8000 = int_to_ptr.vmem [resolvable:$true] %s7999
          %8005 = dma.vmem_to_hbm [thread:$0]  %s8000, 4096, %s7998, [#allocation5], 128, 128, 8
        $region128: #{tpu_custom_call.1} parent=83 // pred_fallthru
          _
        // Predicated region
        $region129: #{tpu_custom_call.1} parent=83 // pred_check
          %p8006 = pneg %p461
        $region130: #{tpu_custom_call.1} parent=83 // pred_check_branch
          %8008 = sbr.rel (%p8006) target = $region132
        $region131: #{tpu_custom_call.1} parent=83 // pred_region
          %8009 = dma.done [#allocation5], 4096
        $region132: #{tpu_custom_call.1} parent=83 // pred_fallthru
          _
      $region84: #{tpu_custom_call.1} parent=5 // pred_fallthru
        _
      %p8010 = scmp.le.s32.totalorder 2, %s25
      // Predicated region
      $region133: #{tpu_custom_call.1} parent=5 // pred_check
        %p8011 = pneg %p8010
      $region134: #{tpu_custom_call.1} parent=5 // pred_check_branch
        %8013 = sbr.rel (%p8011) target = $region136
      $region135: #{tpu_custom_call.1} parent=5 // pred_region
        %s8014 = ssub.s32 %s25, 2
      $region136: #{tpu_custom_call.1} parent=5 // pred_fallthru
        _
    $region6: #{tpu_custom_call.1} parent=1 // loop_footer
      %s29 = sadd.s32 1, %s25
    $region7: #{tpu_custom_call.1} parent=1 // loop_footer_branch
      %24 = sbr.rel target = $region3
    $region8: #{tpu_custom_call.1} parent=1 // loop_exit
      _
    %8015 = vsyncpa [#allocation4], 1
    %s8016 = scalar_lea.sflag [#allocation4], 1
    %8017 = vsyncpa %s8016, 1
    %8018 = vsyncpa [#allocation7], 1
    %8019 = vsyncpa [#allocation5], 1
    %s8020 = scalar_lea.sflag [#allocation5], 1
    %8021 = vsyncpa %s8020, 1

</llo_original>
